<compile_context>
chip_gen: v6e
topology: v6e:2x2x1
jax: 0.10.0
libtpu: 0.0.40
codegen_flags: <defaults>
</compile_context>

<pallas_src>
import functools

import jax
import jax.numpy as jnp
from jax import lax
from jax.experimental import pallas as pl
from jax.experimental.pallas import tpu as pltpu

DROPOUT = 0.2      # nn.Dropout is identity in eval-mode forward
BN_EPS = 1e-5      # PyTorch BatchNorm default eps
LIN2_OUT = 37
LIN2_PAD = 128     # lane-dense padded width for the final linear output


# ----------------------------- Pallas kernels ------------------------------

def _conv_pool_kernel(p00_ref, p01_ref, p10_ref, p11_ref,
                      wt_ref, b_ref, s_ref, t_ref, o_ref, *, pool):
    """Fused 3x3 conv (channel-major matmul) -> +bias -> ReLU -> BN affine
    -> 2x2 pool, for one image.

    p??_ref : (1, K, M) bf16  im2col patches for pool parity (py, px),
              K = 9*C_in, M = Hp*Wp (pooled spatial size), M on lanes.
    wt_ref  : (C_out, K) bf16  conv weights, k = (kh*3+kw)*C_in + ci.
    b/s/t   : (C_out, 1) f32   conv bias / BN scale / BN shift.
    o_ref   : (1, C_out, M)    pooled output (channel-major, lane-dense).
    """
    w = wt_ref[...]
    bias = b_ref[...]
    scale = s_ref[...]
    shift = t_ref[...]

    def branch(p_ref):
        acc = jnp.dot(w, p_ref[0], preferred_element_type=jnp.float32)
        acc = jnp.maximum(acc + bias, 0.0)          # conv bias + ReLU
        return acc * scale + shift                  # BatchNorm (eval affine)

    res = branch(p00_ref)
    for p_ref in (p01_ref, p10_ref, p11_ref):       # static unroll, keeps live
        r = branch(p_ref)                           # values to 2 tiles
        res = jnp.maximum(res, r) if pool == "max" else res + r
    if pool == "avg":
        res = res * 0.25
    o_ref[0] = res.astype(o_ref.dtype)


def conv3x3_relu_bn_pool(parities, wt, bias, scale, shift, *, pool,
                         out_dtype=jnp.bfloat16):
    """parities: 4 arrays (B, K, M).  Returns (B, C_out, M) pooled activations."""
    p00, p01, p10, p11 = parities
    B, K, M = p00.shape
    c_out = wt.shape[0]
    par_spec = pl.BlockSpec((1, K, M), lambda b: (b, 0, 0))
    full2 = lambda b: (0, 0)
    return pl.pallas_call(
        functools.partial(_conv_pool_kernel, pool=pool),
        out_shape=jax.ShapeDtypeStruct((B, c_out, M), out_dtype),
        grid=(B,),
        in_specs=[
            par_spec, par_spec, par_spec, par_spec,
            pl.BlockSpec((c_out, K), full2),
            pl.BlockSpec((c_out, 1), full2),
            pl.BlockSpec((c_out, 1), full2),
            pl.BlockSpec((c_out, 1), full2),
        ],
        out_specs=pl.BlockSpec((1, c_out, M), lambda b: (b, 0, 0)),
        compiler_params=pltpu.CompilerParams(
            dimension_semantics=("parallel",)),     # both TCs on v7x megacore
    )(p00, p01, p10, p11, wt, bias, scale, shift)


def _fc_head_kernel(x_ref, w1_ref, b1_ref, s1_ref, t1_ref, w2_ref, b2_ref,
                    o_ref):
    """linear1 -> ReLU -> BatchNorm1d -> (Dropout: eval identity) -> linear2.

    x_ref : (B, 6272) bf16   NCHW-flattened pooled activations
    w1    : (6272, 32) bf16; b1/s1/t1: (1, 32) f32
    w2    : (32, 128) f32 (zero-padded from 37 cols); b2: (1, 128) f32
    o_ref : (B, 128) f32     lane-dense store; sliced back to 37 outside
    """
    h = jnp.dot(x_ref[...], w1_ref[...], preferred_element_type=jnp.float32)
    h = jnp.maximum(h + b1_ref[...], 0.0)
    h = h * s1_ref[...] + t1_ref[...]
    # TODO(synk): train-mode Dropout/BatchNorm (batch stats + RNG mask) not
    # implemented; eval-mode semantics (identity / running stats) are used.
    o_ref[...] = jnp.dot(h, w2_ref[...],
                         preferred_element_type=jnp.float32) + b2_ref[...]


def fc_head(flat, w1, b1, s1, t1, w2p, b2p):
    B = flat.shape[0]
    return pl.pallas_call(
        _fc_head_kernel,
        out_shape=jax.ShapeDtypeStruct((B, w2p.shape[1]), jnp.float32),
    )(flat, w1, b1, s1, t1, w2p, b2p)


# ------------------------------ glue helpers -------------------------------

def im2col3x3_pool_parity(x_nchw, dtype=jnp.bfloat16):
    """NCHW input -> 4 parity patch matrices for a fused 3x3-conv + 2x2-pool.

    For pool parity (py, px) the returned (B, 9*C, Hp*Wp) matrix has column
    m = hp*Wp + wp holding the 3x3xC window of conv output position
    (2*hp + py, 2*wp + px); k order is (kh*3 + kw)*C + ci, matching the OIHW
    weight reshape.  Trailing odd rows/cols are dropped like nn.*Pool2d(2).
    """
    B, C, H, W = x_nchw.shape
    Ho, Wo = H - 2, W - 2
    Hp, Wp = Ho // 2, Wo // 2
    x = x_nchw.astype(dtype)
    outs = []
    for py in (0, 1):
        for px in (0, 1):
            ks = []
            for dy in range(3):
                for dx in range(3):
                    sl = x[:, :,
                           py + dy: py + dy + 2 * Hp - 1: 2,
                           px + dx: px + dx + 2 * Wp - 1: 2]
                    ks.append(sl.reshape(B, C, Hp * Wp))
            outs.append(jnp.concatenate(ks, axis=1))        # (B, 9*C, Hp*Wp)
    return tuple(outs)


def bn_affine(gamma, beta, mean, var):
    scale = gamma * lax.rsqrt(var + BN_EPS)
    shift = beta - mean * scale
    return scale, shift


# ------------------------------ parameters ---------------------------------

def init_params(key):
    ks = jax.random.split(key, 8)

    def nrm(k, shape, s=0.05):
        return (s * jax.random.normal(k, shape)).astype(jnp.float32)

    p = {
        "conv1_w": nrm(ks[0], (16, 3, 3, 3)),        # nn.Conv2d(3, 16, 3) OIHW
        "conv1_b": nrm(ks[1], (16,)),
        "conv2_w": nrm(ks[2], (32, 16, 3, 3)),       # nn.Conv2d(16, 32, 3)
        "conv2_b": nrm(ks[3], (32,)),
        "lin1_w": nrm(ks[4], (32, 32 * 14 * 14)),    # nn.Linear(6272, 32) (out,in)
        "lin1_b": nrm(ks[5], (32,)),
        "lin2_w": nrm(ks[6], (37, 32)),              # nn.Linear(32, 37)
        "lin2_b": nrm(ks[7], (37,)),
    }
    # BatchNorm params at PyTorch defaults (gamma=1, beta=0, running stats 0/1).
    for name, n in (("bn1", 16), ("bn2", 32), ("bn3", 32)):
        p[f"{name}_gamma"] = jnp.ones((n,), jnp.float32)
        p[f"{name}_beta"] = jnp.zeros((n,), jnp.float32)
        p[f"{name}_mean"] = jnp.zeros((n,), jnp.float32)
        p[f"{name}_var"] = jnp.ones((n,), jnp.float32)
    return p


def prepare_params(p):
    """One-time repack of PyTorch-layout params into kernel operands."""
    def conv_wt(w_oihw):      # OIHW -> (C_out, 9*C_in), k = (kh*3+kw)*C_in + ci
        o, c = w_oihw.shape[0], w_oihw.shape[1]
        return jnp.transpose(w_oihw, (0, 2, 3, 1)).reshape(o, 9 * c)

    s1, t1 = bn_affine(p["bn1_gamma"], p["bn1_beta"], p["bn1_mean"], p["bn1_var"])
    s2, t2 = bn_affine(p["bn2_gamma"], p["bn2_beta"], p["bn2_mean"], p["bn2_var"])
    s3, t3 = bn_affine(p["bn3_gamma"], p["bn3_beta"], p["bn3_mean"], p["bn3_var"])
    npad = LIN2_PAD - LIN2_OUT
    return {
        "wt1": conv_wt(p["conv1_w"]).astype(jnp.bfloat16),          # (16, 27)
        "cb1": p["conv1_b"].reshape(-1, 1).astype(jnp.float32),
        "cs1": s1.reshape(-1, 1).astype(jnp.float32),
        "ct1": t1.reshape(-1, 1).astype(jnp.float32),
        "wt2": conv_wt(p["conv2_w"]).astype(jnp.bfloat16),          # (32, 144)
        "cb2": p["conv2_b"].reshape(-1, 1).astype(jnp.float32),
        "cs2": s2.reshape(-1, 1).astype(jnp.float32),
        "ct2": t2.reshape(-1, 1).astype(jnp.float32),
        "w1": p["lin1_w"].T.astype(jnp.bfloat16),                   # (6272, 32)
        "b1": p["lin1_b"].reshape(1, -1).astype(jnp.float32),
        "s3": s3.reshape(1, -1).astype(jnp.float32),
        "t3": t3.reshape(1, -1).astype(jnp.float32),
        # final linear kept in f32 (tiny); N padded 37 -> 128 for unmasked store
        "w2p": jnp.pad(p["lin2_w"].T.astype(jnp.float32), ((0, 0), (0, npad))),
        "b2p": jnp.pad(p["lin2_b"].astype(jnp.float32), (0, npad)).reshape(1, -1),
    }


# ------------------------------ forward pass --------------------------------

def net_forward(prep, x_nchw):
    B = x_nchw.shape[0]
    assert x_nchw.shape[1:] == (3, 64, 64), \
        "linear1 hard-codes 32*14*14: input must be (B, 3, 64, 64)"

    # conv1 (3->16, 3x3 valid) -> ReLU -> BN -> MaxPool2d(2): one fused kernel
    par = im2col3x3_pool_parity(x_nchw)                     # 4 x (B, 27, 961)
    y = conv3x3_relu_bn_pool(par, prep["wt1"], prep["cb1"],
                             prep["cs1"], prep["ct1"], pool="max")
    y = y.reshape(B, 16, 31, 31)                            # NCHW, free reshape

    # conv2 (16->32, 3x3 valid) -> ReLU -> BN -> AvgPool2d(2): one fused kernel
    par = im2col3x3_pool_parity(y)                          # 4 x (B, 144, 196)
    y = conv3x3_relu_bn_pool(par, prep["wt2"], prep["cb2"],
                             prep["cs2"], prep["ct2"], pool="avg")
    # (B, 32, 196) channel-major == torch x.view(len(x), -1) order for free
    flat = y.reshape(B, 32 * 14 * 14)

    # linear1 -> ReLU -> BN1d -> Dropout(eval) -> linear2: one fused kernel
    logits = fc_head(flat, prep["w1"], prep["b1"], prep["s3"], prep["t3"],
                     prep["w2p"], prep["b2p"])
    return logits[:, :LIN2_OUT]


# ------------------------- pure-JAX reference (check) -----------------------

def net_forward_ref(params, x_nchw):
    x = jnp.transpose(x_nchw, (0, 2, 3, 1)).astype(jnp.float32)

    def conv(inp, w_oihw, b):
        w = jnp.transpose(w_oihw, (2, 3, 1, 0))
        y = lax.conv_general_dilated(
            inp, w, (1, 1), "VALID",
            dimension_numbers=("NHWC", "HWIO", "NHWC"),
            precision=lax.Precision.HIGHEST)
        return y + b

    def bn(v, g, be, m, vr):
        s, t = bn_affine(g, be, m, vr)
        return v * s + t

    def pool(v, kind):
        B, H, W, C = v.shape
        Ho, Wo = H // 2, W // 2
        vr = v[:, :2 * Ho, :2 * Wo, :].reshape(B, Ho, 2, Wo, 2, C)
        return jnp.max(vr, axis=(2, 4)) if kind == "max" else jnp.mean(vr, axis=(2, 4))

    y = conv(x, params["conv1_w"], params["conv1_b"])
    y = pool(bn(jax.nn.relu(y), params["bn1_gamma"], params["bn1_beta"],
                params["bn1_mean"], params["bn1_var"]), "max")
    y = conv(y, params["conv2_w"], params["conv2_b"])
    y = pool(bn(jax.nn.relu(y), params["bn2_gamma"], params["bn2_beta"],
                params["bn2_mean"], params["bn2_var"]), "avg")
    flat = jnp.transpose(y, (0, 3, 1, 2)).reshape(x.shape[0], -1)
    h = jax.nn.relu(jnp.dot(flat, params["lin1_w"].T,
                            precision=lax.Precision.HIGHEST) + params["lin1_b"])
    h = bn(h, params["bn3_gamma"], params["bn3_beta"],
           params["bn3_mean"], params["bn3_var"])
    return jnp.dot(h, params["lin2_w"].T,
                   precision=lax.Precision.HIGHEST) + params["lin2_b"]


if __name__ == "__main__":
    key = jax.random.PRNGKey(0)
    pkey, xkey = jax.random.split(key)
    params = init_params(pkey)
    # Spatial size must be 64x64 so that linear1's hard-coded 32*14*14 matches.
    x = jax.random.uniform(xkey, (2, 3, 64, 64), dtype=jnp.float32)

    prep = prepare_params(params)          # one-time weight repack (host side)
    fwd = jax.jit(net_forward)
    out = jax.block_until_ready(fwd(prep, x))
    assert out.shape == (2, 37), out.shape

    ref = jax.block_until_ready(net_forward_ref(params, x))
    max_err = float(jnp.max(jnp.abs(out - ref)))
    assert jnp.allclose(out, ref, atol=2e-2, rtol=2e-2), max_err

    print("KERNEL_OK")
</pallas_src>

<mosaic_0001>
module attributes {stable_mosaic.version = 11 : i64} {
  func.func @_conv_pool_kernel(%arg0: i32, %arg1: memref<1x27x961xbf16, #tpu.memory_space<vmem>>, %arg2: memref<1x27x961xbf16, #tpu.memory_space<vmem>>, %arg3: memref<1x27x961xbf16, #tpu.memory_space<vmem>>, %arg4: memref<1x27x961xbf16, #tpu.memory_space<vmem>>, %arg5: memref<16x27xbf16, #tpu.memory_space<vmem>>, %arg6: memref<16x1xf32, #tpu.memory_space<vmem>>, %arg7: memref<16x1xf32, #tpu.memory_space<vmem>>, %arg8: memref<16x1xf32, #tpu.memory_space<vmem>>, %arg9: memref<1x16x961xbf16, #tpu.memory_space<vmem>>) attributes {dimension_semantics = [#tpu.dimension_semantics<parallel>], iteration_bounds = array<i64: 2>, scalar_prefetch = 0 : i64, scratch_operands = 0 : i64, tpu.core_type = #tpu.core_type<tc>, window_params = [{transform_indices = @transform_0, window_bounds = array<i64: 1, 27, 961>}, {transform_indices = @transform_1, window_bounds = array<i64: 1, 27, 961>}, {transform_indices = @transform_2, window_bounds = array<i64: 1, 27, 961>}, {transform_indices = @transform_3, window_bounds = array<i64: 1, 27, 961>}, {pipeline_mode = #tpu.pipeline_mode<synchronous>, transform_indices = @transform_4, window_bounds = array<i64: 16, 27>}, {pipeline_mode = #tpu.pipeline_mode<synchronous>, transform_indices = @transform_5, window_bounds = array<i64: 16, 1>}, {pipeline_mode = #tpu.pipeline_mode<synchronous>, transform_indices = @transform_6, window_bounds = array<i64: 16, 1>}, {pipeline_mode = #tpu.pipeline_mode<synchronous>, transform_indices = @transform_7, window_bounds = array<i64: 16, 1>}, {transform_indices = @transform_8, window_bounds = array<i64: 1, 16, 961>}]} {
    %c0 = arith.constant 0 : index
    %c0_0 = arith.constant 0 : index
    %0 = vector.load %arg5[%c0, %c0_0] : memref<16x27xbf16, #tpu.memory_space<vmem>>, vector<16x27xbf16>
    %c0_1 = arith.constant 0 : index
    %c0_2 = arith.constant 0 : index
    %1 = vector.load %arg6[%c0_1, %c0_2] : memref<16x1xf32, #tpu.memory_space<vmem>>, vector<16x1xf32>
    %c0_3 = arith.constant 0 : index
    %c0_4 = arith.constant 0 : index
    %2 = vector.load %arg7[%c0_3, %c0_4] : memref<16x1xf32, #tpu.memory_space<vmem>>, vector<16x1xf32>
    %c0_5 = arith.constant 0 : index
    %c0_6 = arith.constant 0 : index
    %3 = vector.load %arg8[%c0_5, %c0_6] : memref<16x1xf32, #tpu.memory_space<vmem>>, vector<16x1xf32>
    %c0_7 = arith.constant 0 : index
    %c0_8 = arith.constant 0 : index
    %c0_9 = arith.constant 0 : index
    %4 = vector.load %arg1[%c0_7, %c0_8, %c0_9] : memref<1x27x961xbf16, #tpu.memory_space<vmem>>, vector<1x27x961xbf16>
    %5 = vector.shape_cast %4 : vector<1x27x961xbf16> to vector<27x961xbf16>
    %cst = arith.constant dense<0.000000e+00> : vector<16x961xf32>
    %6 = tpu.matmul %0, %5, %cst {dimension_numbers = #tpu.dot_dimension_numbers<[1], [0], [0], [1], [0, 0, 1, 1], [], []>} : vector<16x27xbf16>, vector<27x961xbf16>, vector<16x961xf32> -> vector<16x961xf32>
    %7 = vector.broadcast %1 : vector<16x1xf32> to vector<16x961xf32>
    %8 = arith.addf %6, %7 : vector<16x961xf32>
    %cst_10 = arith.constant 0.000000e+00 : f32
    %9 = vector.broadcast %cst_10 : f32 to vector<16x961xf32>
    %10 = arith.maximumf %8, %9 : vector<16x961xf32>
    %11 = vector.broadcast %2 : vector<16x1xf32> to vector<16x961xf32>
    %12 = arith.mulf %10, %11 : vector<16x961xf32>
    %13 = vector.broadcast %3 : vector<16x1xf32> to vector<16x961xf32>
    %14 = arith.addf %12, %13 : vector<16x961xf32>
    %c0_11 = arith.constant 0 : index
    %c0_12 = arith.constant 0 : index
    %c0_13 = arith.constant 0 : index
    %15 = vector.load %arg2[%c0_11, %c0_12, %c0_13] : memref<1x27x961xbf16, #tpu.memory_space<vmem>>, vector<1x27x961xbf16>
    %16 = vector.shape_cast %15 : vector<1x27x961xbf16> to vector<27x961xbf16>
    %cst_14 = arith.constant dense<0.000000e+00> : vector<16x961xf32>
    %17 = tpu.matmul %0, %16, %cst_14 {dimension_numbers = #tpu.dot_dimension_numbers<[1], [0], [0], [1], [0, 0, 1, 1], [], []>} : vector<16x27xbf16>, vector<27x961xbf16>, vector<16x961xf32> -> vector<16x961xf32>
    %18 = vector.broadcast %1 : vector<16x1xf32> to vector<16x961xf32>
    %19 = arith.addf %17, %18 : vector<16x961xf32>
    %cst_15 = arith.constant 0.000000e+00 : f32
    %20 = vector.broadcast %cst_15 : f32 to vector<16x961xf32>
    %21 = arith.maximumf %19, %20 : vector<16x961xf32>
    %22 = vector.broadcast %2 : vector<16x1xf32> to vector<16x961xf32>
    %23 = arith.mulf %21, %22 : vector<16x961xf32>
    %24 = vector.broadcast %3 : vector<16x1xf32> to vector<16x961xf32>
    %25 = arith.addf %23, %24 : vector<16x961xf32>
    %26 = arith.maximumf %14, %25 : vector<16x961xf32>
    %c0_16 = arith.constant 0 : index
    %c0_17 = arith.constant 0 : index
    %c0_18 = arith.constant 0 : index
    %27 = vector.load %arg3[%c0_16, %c0_17, %c0_18] : memref<1x27x961xbf16, #tpu.memory_space<vmem>>, vector<1x27x961xbf16>
    %28 = vector.shape_cast %27 : vector<1x27x961xbf16> to vector<27x961xbf16>
    %cst_19 = arith.constant dense<0.000000e+00> : vector<16x961xf32>
    %29 = tpu.matmul %0, %28, %cst_19 {dimension_numbers = #tpu.dot_dimension_numbers<[1], [0], [0], [1], [0, 0, 1, 1], [], []>} : vector<16x27xbf16>, vector<27x961xbf16>, vector<16x961xf32> -> vector<16x961xf32>
    %30 = vector.broadcast %1 : vector<16x1xf32> to vector<16x961xf32>
    %31 = arith.addf %29, %30 : vector<16x961xf32>
    %cst_20 = arith.constant 0.000000e+00 : f32
    %32 = vector.broadcast %cst_20 : f32 to vector<16x961xf32>
    %33 = arith.maximumf %31, %32 : vector<16x961xf32>
    %34 = vector.broadcast %2 : vector<16x1xf32> to vector<16x961xf32>
    %35 = arith.mulf %33, %34 : vector<16x961xf32>
    %36 = vector.broadcast %3 : vector<16x1xf32> to vector<16x961xf32>
    %37 = arith.addf %35, %36 : vector<16x961xf32>
    %38 = arith.maximumf %26, %37 : vector<16x961xf32>
    %c0_21 = arith.constant 0 : index
    %c0_22 = arith.constant 0 : index
    %c0_23 = arith.constant 0 : index
    %39 = vector.load %arg4[%c0_21, %c0_22, %c0_23] : memref<1x27x961xbf16, #tpu.memory_space<vmem>>, vector<1x27x961xbf16>
    %40 = vector.shape_cast %39 : vector<1x27x961xbf16> to vector<27x961xbf16>
    %cst_24 = arith.constant dense<0.000000e+00> : vector<16x961xf32>
    %41 = tpu.matmul %0, %40, %cst_24 {dimension_numbers = #tpu.dot_dimension_numbers<[1], [0], [0], [1], [0, 0, 1, 1], [], []>} : vector<16x27xbf16>, vector<27x961xbf16>, vector<16x961xf32> -> vector<16x961xf32>
    %42 = vector.broadcast %1 : vector<16x1xf32> to vector<16x961xf32>
    %43 = arith.addf %41, %42 : vector<16x961xf32>
    %cst_25 = arith.constant 0.000000e+00 : f32
    %44 = vector.broadcast %cst_25 : f32 to vector<16x961xf32>
    %45 = arith.maximumf %43, %44 : vector<16x961xf32>
    %46 = vector.broadcast %2 : vector<16x1xf32> to vector<16x961xf32>
    %47 = arith.mulf %45, %46 : vector<16x961xf32>
    %48 = vector.broadcast %3 : vector<16x1xf32> to vector<16x961xf32>
    %49 = arith.addf %47, %48 : vector<16x961xf32>
    %50 = arith.maximumf %38, %49 : vector<16x961xf32>
    %51 = arith.truncf %50 : vector<16x961xf32> to vector<16x961xbf16>
    %c0_26 = arith.constant 0 : index
    %c0_27 = arith.constant 0 : index
    %c0_28 = arith.constant 0 : index
    %52 = vector.load %arg9[%c0_26, %c0_27, %c0_28] : memref<1x16x961xbf16, #tpu.memory_space<vmem>>, vector<1x16x961xbf16>
    %53 = vector.shape_cast %52 : vector<1x16x961xbf16> to vector<16x961xbf16>
    %54 = vector.shape_cast %51 : vector<16x961xbf16> to vector<1x16x961xbf16>
    tpu.vector_store %arg9[%c0_26, %c0_27, %c0_28], %54 {strides = array<i32>} : memref<1x16x961xbf16, #tpu.memory_space<vmem>>, vector<1x16x961xbf16>,
    return
  }
  func.func @transform_0(%arg0: i32) -> (i32, i32, i32) {
    %c0_i32 = arith.constant 0 : i32
    %c0_i32_0 = arith.constant 0 : i32
    %c0_i32_1 = arith.constant 0 : i32
    return %arg0, %c0_i32, %c0_i32_0 : i32, i32, i32
  }
  func.func @transform_1(%arg0: i32) -> (i32, i32, i32) {
    %c0_i32 = arith.constant 0 : i32
    %c0_i32_0 = arith.constant 0 : i32
    %c0_i32_1 = arith.constant 0 : i32
    return %arg0, %c0_i32, %c0_i32_0 : i32, i32, i32
  }
  func.func @transform_2(%arg0: i32) -> (i32, i32, i32) {
    %c0_i32 = arith.constant 0 : i32
    %c0_i32_0 = arith.constant 0 : i32
    %c0_i32_1 = arith.constant 0 : i32
    return %arg0, %c0_i32, %c0_i32_0 : i32, i32, i32
  }
  func.func @transform_3(%arg0: i32) -> (i32, i32, i32) {
    %c0_i32 = arith.constant 0 : i32
    %c0_i32_0 = arith.constant 0 : i32
    %c0_i32_1 = arith.constant 0 : i32
    return %arg0, %c0_i32, %c0_i32_0 : i32, i32, i32
  }
  func.func @transform_4(%arg0: i32) -> (i32, i32) {
    %c0_i32 = arith.constant 0 : i32
    %c0_i32_0 = arith.constant 0 : i32
    %c0_i32_1 = arith.constant 0 : i32
    return %c0_i32, %c0_i32_0 : i32, i32
  }
  func.func @transform_5(%arg0: i32) -> (i32, i32) {
    %c0_i32 = arith.constant 0 : i32
    %c0_i32_0 = arith.constant 0 : i32
    %c0_i32_1 = arith.constant 0 : i32
    return %c0_i32, %c0_i32_0 : i32, i32
  }
  func.func @transform_6(%arg0: i32) -> (i32, i32) {
    %c0_i32 = arith.constant 0 : i32
    %c0_i32_0 = arith.constant 0 : i32
    %c0_i32_1 = arith.constant 0 : i32
    return %c0_i32, %c0_i32_0 : i32, i32
  }
  func.func @transform_7(%arg0: i32) -> (i32, i32) {
    %c0_i32 = arith.constant 0 : i32
    %c0_i32_0 = arith.constant 0 : i32
    %c0_i32_1 = arith.constant 0 : i32
    return %c0_i32, %c0_i32_0 : i32, i32
  }
  func.func @transform_8(%arg0: i32) -> (i32, i32, i32) {
    %c0_i32 = arith.constant 0 : i32
    %c0_i32_0 = arith.constant 0 : i32
    %c0_i32_1 = arith.constant 0 : i32
    return %arg0, %c0_i32, %c0_i32_0 : i32, i32, i32
  }
}

module attributes {stable_mosaic.version = 11 : i64} {
  func.func @_conv_pool_kernel(%arg0: i32, %arg1: memref<1x144x196xbf16, #tpu.memory_space<vmem>>, %arg2: memref<1x144x196xbf16, #tpu.memory_space<vmem>>, %arg3: memref<1x144x196xbf16, #tpu.memory_space<vmem>>, %arg4: memref<1x144x196xbf16, #tpu.memory_space<vmem>>, %arg5: memref<32x144xbf16, #tpu.memory_space<vmem>>, %arg6: memref<32x1xf32, #tpu.memory_space<vmem>>, %arg7: memref<32x1xf32, #tpu.memory_space<vmem>>, %arg8: memref<32x1xf32, #tpu.memory_space<vmem>>, %arg9: memref<1x32x196xbf16, #tpu.memory_space<vmem>>) attributes {dimension_semantics = [#tpu.dimension_semantics<parallel>], iteration_bounds = array<i64: 2>, scalar_prefetch = 0 : i64, scratch_operands = 0 : i64, tpu.core_type = #tpu.core_type<tc>, window_params = [{transform_indices = @transform_0, window_bounds = array<i64: 1, 144, 196>}, {transform_indices = @transform_1, window_bounds = array<i64: 1, 144, 196>}, {transform_indices = @transform_2, window_bounds = array<i64: 1, 144, 196>}, {transform_indices = @transform_3, window_bounds = array<i64: 1, 144, 196>}, {pipeline_mode = #tpu.pipeline_mode<synchronous>, transform_indices = @transform_4, window_bounds = array<i64: 32, 144>}, {pipeline_mode = #tpu.pipeline_mode<synchronous>, transform_indices = @transform_5, window_bounds = array<i64: 32, 1>}, {pipeline_mode = #tpu.pipeline_mode<synchronous>, transform_indices = @transform_6, window_bounds = array<i64: 32, 1>}, {pipeline_mode = #tpu.pipeline_mode<synchronous>, transform_indices = @transform_7, window_bounds = array<i64: 32, 1>}, {transform_indices = @transform_8, window_bounds = array<i64: 1, 32, 196>}]} {
    %c0 = arith.constant 0 : index
    %c0_0 = arith.constant 0 : index
    %0 = vector.load %arg5[%c0, %c0_0] : memref<32x144xbf16, #tpu.memory_space<vmem>>, vector<32x144xbf16>
    %c0_1 = arith.constant 0 : index
    %c0_2 = arith.constant 0 : index
    %1 = vector.load %arg6[%c0_1, %c0_2] : memref<32x1xf32, #tpu.memory_space<vmem>>, vector<32x1xf32>
    %c0_3 = arith.constant 0 : index
    %c0_4 = arith.constant 0 : index
    %2 = vector.load %arg7[%c0_3, %c0_4] : memref<32x1xf32, #tpu.memory_space<vmem>>, vector<32x1xf32>
    %c0_5 = arith.constant 0 : index
    %c0_6 = arith.constant 0 : index
    %3 = vector.load %arg8[%c0_5, %c0_6] : memref<32x1xf32, #tpu.memory_space<vmem>>, vector<32x1xf32>
    %c0_7 = arith.constant 0 : index
    %c0_8 = arith.constant 0 : index
    %c0_9 = arith.constant 0 : index
    %4 = vector.load %arg1[%c0_7, %c0_8, %c0_9] : memref<1x144x196xbf16, #tpu.memory_space<vmem>>, vector<1x144x196xbf16>
    %5 = vector.shape_cast %4 : vector<1x144x196xbf16> to vector<144x196xbf16>
    %cst = arith.constant dense<0.000000e+00> : vector<32x196xf32>
    %6 = tpu.matmul %0, %5, %cst {dimension_numbers = #tpu.dot_dimension_numbers<[1], [0], [0], [1], [0, 0, 1, 1], [], []>} : vector<32x144xbf16>, vector<144x196xbf16>, vector<32x196xf32> -> vector<32x196xf32>
    %7 = vector.broadcast %1 : vector<32x1xf32> to vector<32x196xf32>
    %8 = arith.addf %6, %7 : vector<32x196xf32>
    %cst_10 = arith.constant 0.000000e+00 : f32
    %9 = vector.broadcast %cst_10 : f32 to vector<32x196xf32>
    %10 = arith.maximumf %8, %9 : vector<32x196xf32>
    %11 = vector.broadcast %2 : vector<32x1xf32> to vector<32x196xf32>
    %12 = arith.mulf %10, %11 : vector<32x196xf32>
    %13 = vector.broadcast %3 : vector<32x1xf32> to vector<32x196xf32>
    %14 = arith.addf %12, %13 : vector<32x196xf32>
    %c0_11 = arith.constant 0 : index
    %c0_12 = arith.constant 0 : index
    %c0_13 = arith.constant 0 : index
    %15 = vector.load %arg2[%c0_11, %c0_12, %c0_13] : memref<1x144x196xbf16, #tpu.memory_space<vmem>>, vector<1x144x196xbf16>
    %16 = vector.shape_cast %15 : vector<1x144x196xbf16> to vector<144x196xbf16>
    %cst_14 = arith.constant dense<0.000000e+00> : vector<32x196xf32>
    %17 = tpu.matmul %0, %16, %cst_14 {dimension_numbers = #tpu.dot_dimension_numbers<[1], [0], [0], [1], [0, 0, 1, 1], [], []>} : vector<32x144xbf16>, vector<144x196xbf16>, vector<32x196xf32> -> vector<32x196xf32>
    %18 = vector.broadcast %1 : vector<32x1xf32> to vector<32x196xf32>
    %19 = arith.addf %17, %18 : vector<32x196xf32>
    %cst_15 = arith.constant 0.000000e+00 : f32
    %20 = vector.broadcast %cst_15 : f32 to vector<32x196xf32>
    %21 = arith.maximumf %19, %20 : vector<32x196xf32>
    %22 = vector.broadcast %2 : vector<32x1xf32> to vector<32x196xf32>
    %23 = arith.mulf %21, %22 : vector<32x196xf32>
    %24 = vector.broadcast %3 : vector<32x1xf32> to vector<32x196xf32>
    %25 = arith.addf %23, %24 : vector<32x196xf32>
    %26 = arith.addf %14, %25 : vector<32x196xf32>
    %c0_16 = arith.constant 0 : index
    %c0_17 = arith.constant 0 : index
    %c0_18 = arith.constant 0 : index
    %27 = vector.load %arg3[%c0_16, %c0_17, %c0_18] : memref<1x144x196xbf16, #tpu.memory_space<vmem>>, vector<1x144x196xbf16>
    %28 = vector.shape_cast %27 : vector<1x144x196xbf16> to vector<144x196xbf16>
    %cst_19 = arith.constant dense<0.000000e+00> : vector<32x196xf32>
    %29 = tpu.matmul %0, %28, %cst_19 {dimension_numbers = #tpu.dot_dimension_numbers<[1], [0], [0], [1], [0, 0, 1, 1], [], []>} : vector<32x144xbf16>, vector<144x196xbf16>, vector<32x196xf32> -> vector<32x196xf32>
    %30 = vector.broadcast %1 : vector<32x1xf32> to vector<32x196xf32>
    %31 = arith.addf %29, %30 : vector<32x196xf32>
    %cst_20 = arith.constant 0.000000e+00 : f32
    %32 = vector.broadcast %cst_20 : f32 to vector<32x196xf32>
    %33 = arith.maximumf %31, %32 : vector<32x196xf32>
    %34 = vector.broadcast %2 : vector<32x1xf32> to vector<32x196xf32>
    %35 = arith.mulf %33, %34 : vector<32x196xf32>
    %36 = vector.broadcast %3 : vector<32x1xf32> to vector<32x196xf32>
    %37 = arith.addf %35, %36 : vector<32x196xf32>
    %38 = arith.addf %26, %37 : vector<32x196xf32>
    %c0_21 = arith.constant 0 : index
    %c0_22 = arith.constant 0 : index
    %c0_23 = arith.constant 0 : index
    %39 = vector.load %arg4[%c0_21, %c0_22, %c0_23] : memref<1x144x196xbf16, #tpu.memory_space<vmem>>, vector<1x144x196xbf16>
    %40 = vector.shape_cast %39 : vector<1x144x196xbf16> to vector<144x196xbf16>
    %cst_24 = arith.constant dense<0.000000e+00> : vector<32x196xf32>
    %41 = tpu.matmul %0, %40, %cst_24 {dimension_numbers = #tpu.dot_dimension_numbers<[1], [0], [0], [1], [0, 0, 1, 1], [], []>} : vector<32x144xbf16>, vector<144x196xbf16>, vector<32x196xf32> -> vector<32x196xf32>
    %42 = vector.broadcast %1 : vector<32x1xf32> to vector<32x196xf32>
    %43 = arith.addf %41, %42 : vector<32x196xf32>
    %cst_25 = arith.constant 0.000000e+00 : f32
    %44 = vector.broadcast %cst_25 : f32 to vector<32x196xf32>
    %45 = arith.maximumf %43, %44 : vector<32x196xf32>
    %46 = vector.broadcast %2 : vector<32x1xf32> to vector<32x196xf32>
    %47 = arith.mulf %45, %46 : vector<32x196xf32>
    %48 = vector.broadcast %3 : vector<32x1xf32> to vector<32x196xf32>
    %49 = arith.addf %47, %48 : vector<32x196xf32>
    %50 = arith.addf %38, %49 : vector<32x196xf32>
    %cst_26 = arith.constant 2.500000e-01 : f32
    %51 = vector.broadcast %cst_26 : f32 to vector<32x196xf32>
    %52 = arith.mulf %50, %51 : vector<32x196xf32>
    %53 = arith.truncf %52 : vector<32x196xf32> to vector<32x196xbf16>
    %c0_27 = arith.constant 0 : index
    %c0_28 = arith.constant 0 : index
    %c0_29 = arith.constant 0 : index
    %54 = vector.load %arg9[%c0_27, %c0_28, %c0_29] : memref<1x32x196xbf16, #tpu.memory_space<vmem>>, vector<1x32x196xbf16>
    %55 = vector.shape_cast %54 : vector<1x32x196xbf16> to vector<32x196xbf16>
    %56 = vector.shape_cast %53 : vector<32x196xbf16> to vector<1x32x196xbf16>
    tpu.vector_store %arg9[%c0_27, %c0_28, %c0_29], %56 {strides = array<i32>} : memref<1x32x196xbf16, #tpu.memory_space<vmem>>, vector<1x32x196xbf16>,
    return
  }
  func.func @transform_0(%arg0: i32) -> (i32, i32, i32) {
    %c0_i32 = arith.constant 0 : i32
    %c0_i32_0 = arith.constant 0 : i32
    %c0_i32_1 = arith.constant 0 : i32
    return %arg0, %c0_i32, %c0_i32_0 : i32, i32, i32
  }
  func.func @transform_1(%arg0: i32) -> (i32, i32, i32) {
    %c0_i32 = arith.constant 0 : i32
    %c0_i32_0 = arith.constant 0 : i32
    %c0_i32_1 = arith.constant 0 : i32
    return %arg0, %c0_i32, %c0_i32_0 : i32, i32, i32
  }
  func.func @transform_2(%arg0: i32) -> (i32, i32, i32) {
    %c0_i32 = arith.constant 0 : i32
    %c0_i32_0 = arith.constant 0 : i32
    %c0_i32_1 = arith.constant 0 : i32
    return %arg0, %c0_i32, %c0_i32_0 : i32, i32, i32
  }
  func.func @transform_3(%arg0: i32) -> (i32, i32, i32) {
    %c0_i32 = arith.constant 0 : i32
    %c0_i32_0 = arith.constant 0 : i32
    %c0_i32_1 = arith.constant 0 : i32
    return %arg0, %c0_i32, %c0_i32_0 : i32, i32, i32
  }
  func.func @transform_4(%arg0: i32) -> (i32, i32) {
    %c0_i32 = arith.constant 0 : i32
    %c0_i32_0 = arith.constant 0 : i32
    %c0_i32_1 = arith.constant 0 : i32
    return %c0_i32, %c0_i32_0 : i32, i32
  }
  func.func @transform_5(%arg0: i32) -> (i32, i32) {
    %c0_i32 = arith.constant 0 : i32
    %c0_i32_0 = arith.constant 0 : i32
    %c0_i32_1 = arith.constant 0 : i32
    return %c0_i32, %c0_i32_0 : i32, i32
  }
  func.func @transform_6(%arg0: i32) -> (i32, i32) {
    %c0_i32 = arith.constant 0 : i32
    %c0_i32_0 = arith.constant 0 : i32
    %c0_i32_1 = arith.constant 0 : i32
    return %c0_i32, %c0_i32_0 : i32, i32
  }
  func.func @transform_7(%arg0: i32) -> (i32, i32) {
    %c0_i32 = arith.constant 0 : i32
    %c0_i32_0 = arith.constant 0 : i32
    %c0_i32_1 = arith.constant 0 : i32
    return %c0_i32, %c0_i32_0 : i32, i32
  }
  func.func @transform_8(%arg0: i32) -> (i32, i32, i32) {
    %c0_i32 = arith.constant 0 : i32
    %c0_i32_0 = arith.constant 0 : i32
    %c0_i32_1 = arith.constant 0 : i32
    return %arg0, %c0_i32, %c0_i32_0 : i32, i32, i32
  }
}

module attributes {stable_mosaic.version = 11 : i64} {
  func.func @_fc_head_kernel(%arg0: memref<2x6272xbf16, #tpu.memory_space<vmem>>, %arg1: memref<6272x32xbf16, #tpu.memory_space<vmem>>, %arg2: memref<1x32xf32, #tpu.memory_space<vmem>>, %arg3: memref<1x32xf32, #tpu.memory_space<vmem>>, %arg4: memref<1x32xf32, #tpu.memory_space<vmem>>, %arg5: memref<32x128xf32, #tpu.memory_space<vmem>>, %arg6: memref<1x128xf32, #tpu.memory_space<vmem>>, %arg7: memref<2x128xf32, #tpu.memory_space<vmem>>) attributes {dimension_semantics = [], scalar_prefetch = 0 : i64, scratch_operands = 0 : i64, tpu.core_type = #tpu.core_type<tc>} {
    %c0 = arith.constant 0 : index
    %c0_0 = arith.constant 0 : index
    %0 = vector.load %arg0[%c0, %c0_0] : memref<2x6272xbf16, #tpu.memory_space<vmem>>, vector<2x6272xbf16>
    %c0_1 = arith.constant 0 : index
    %c0_2 = arith.constant 0 : index
    %1 = vector.load %arg1[%c0_1, %c0_2] : memref<6272x32xbf16, #tpu.memory_space<vmem>>, vector<6272x32xbf16>
    %cst = arith.constant dense<0.000000e+00> : vector<2x32xf32>
    %2 = tpu.matmul %0, %1, %cst {dimension_numbers = #tpu.dot_dimension_numbers<[1], [0], [0], [1], [0, 0, 1, 1], [], []>} : vector<2x6272xbf16>, vector<6272x32xbf16>, vector<2x32xf32> -> vector<2x32xf32>
    %c0_3 = arith.constant 0 : index
    %c0_4 = arith.constant 0 : index
    %3 = vector.load %arg2[%c0_3, %c0_4] : memref<1x32xf32, #tpu.memory_space<vmem>>, vector<1x32xf32>
    %4 = vector.broadcast %3 : vector<1x32xf32> to vector<2x32xf32>
    %5 = arith.addf %2, %4 : vector<2x32xf32>
    %cst_5 = arith.constant 0.000000e+00 : f32
    %6 = vector.broadcast %cst_5 : f32 to vector<2x32xf32>
    %7 = arith.maximumf %5, %6 : vector<2x32xf32>
    %c0_6 = arith.constant 0 : index
    %c0_7 = arith.constant 0 : index
    %8 = vector.load %arg3[%c0_6, %c0_7] : memref<1x32xf32, #tpu.memory_space<vmem>>, vector<1x32xf32>
    %9 = vector.broadcast %8 : vector<1x32xf32> to vector<2x32xf32>
    %10 = arith.mulf %7, %9 : vector<2x32xf32>
    %c0_8 = arith.constant 0 : index
    %c0_9 = arith.constant 0 : index
    %11 = vector.load %arg4[%c0_8, %c0_9] : memref<1x32xf32, #tpu.memory_space<vmem>>, vector<1x32xf32>
    %12 = vector.broadcast %11 : vector<1x32xf32> to vector<2x32xf32>
    %13 = arith.addf %10, %12 : vector<2x32xf32>
    %c0_10 = arith.constant 0 : index
    %c0_11 = arith.constant 0 : index
    %14 = vector.load %arg5[%c0_10, %c0_11] : memref<32x128xf32, #tpu.memory_space<vmem>>, vector<32x128xf32>
    %cst_12 = arith.constant dense<0.000000e+00> : vector<2x128xf32>
    %15 = tpu.matmul %13, %14, %cst_12 {dimension_numbers = #tpu.dot_dimension_numbers<[1], [0], [0], [1], [0, 0, 1, 1], [], []>} : vector<2x32xf32>, vector<32x128xf32>, vector<2x128xf32> -> vector<2x128xf32>
    %c0_13 = arith.constant 0 : index
    %c0_14 = arith.constant 0 : index
    %16 = vector.load %arg6[%c0_13, %c0_14] : memref<1x128xf32, #tpu.memory_space<vmem>>, vector<1x128xf32>
    %17 = vector.broadcast %16 : vector<1x128xf32> to vector<2x128xf32>
    %18 = arith.addf %15, %17 : vector<2x128xf32>
    %c0_15 = arith.constant 0 : index
    %c0_16 = arith.constant 0 : index
    %19 = vector.load %arg7[%c0_15, %c0_16] : memref<2x128xf32, #tpu.memory_space<vmem>>, vector<2x128xf32>
    tpu.vector_store %arg7[%c0_15, %c0_16], %18 {strides = array<i32>} : memref<2x128xf32, #tpu.memory_space<vmem>>, vector<2x128xf32>,
    return
  }
}

</mosaic_0001>

<llo_original>
// kernel: net_forward.3
$region0: #{net_forward.3}
  #allocation0 [shape = 'u32[]', space=smem, size = 0x4, offset = 0x4, fixed_abs, tag = 'smem constant byte address 0x4 - core index']
  #allocation1 [shape = 'u32[144,128]{1,0:T(1,128)}', space=vmem, size = 0x12000, scoped, tag = 'internal scratch']
  %s0 = inlined_call_operand.vmem [shape: bf16[2,27,961], index: 0, kind: input, shape index: {}]
  %s1 = inlined_call_operand.vmem [shape: bf16[2,27,961], index: 1, kind: input, shape index: {}]
  %s2 = inlined_call_operand.vmem [shape: bf16[2,27,961], index: 2, kind: input, shape index: {}]
  %s3 = inlined_call_operand.vmem [shape: bf16[2,27,961], index: 3, kind: input, shape index: {}]
  %s4 = inlined_call_operand.vmem [shape: bf16[16,27], index: 4, kind: input, shape index: {}]
  %s5 = inlined_call_operand.vmem [shape: f32[16,1], index: 5, kind: input, shape index: {}]
  %s6 = inlined_call_operand.vmem [shape: f32[16,1], index: 6, kind: input, shape index: {}]
  %s7 = inlined_call_operand.vmem [shape: f32[16,1], index: 7, kind: input, shape index: {}]
  %s8 = inlined_call_operand.vmem [shape: bf16[2,16,961], index: 8, kind: output, shape index: {}]
  %s9 = sld [smem:[#allocation0]]
  $region65: #{net_forward.3} parent=0
    _
  %s11 = ssub.s32 1, %s9
  %s12 = scalar_select 0, %s11, %s9
  loop: start=0, step=1, limit=4
  $region2: #{net_forward.3} parent=0 // loop_pre_header
    _
  $region3: #{net_forward.3} parent=0 // loop_header
    %s14 = sphi 0, %s18
    %p15 = scmp.ge.s32.totalorder %s14, 4
    %s24 = sphi 0, %s26
    %s27 = sphi 0, %s24
    %s28 = sphi 0, %s27
    %s44 = sphi 0, %s28
    %s50 = sphi 0, %s52
    %s53 = sphi 0, %s50
    %s54 = sphi 0, %s53
    %s70 = sphi 0, %s54
    %s76 = sphi 0, %s78
    %s79 = sphi 0, %s76
    %s80 = sphi 0, %s79
    %s96 = sphi 0, %s80
    %s102 = sphi 0, %s104
    %s105 = sphi 0, %s102
    %s106 = sphi 0, %s105
    %s122 = sphi 0, %s106
    %s126 = sphi 0, %s126
    %s128 = sphi 0, %s126
    %s129 = sphi 0, %s128
    %s143 = sphi 0, %s129
    %s147 = sphi 0, %s147
    %s149 = sphi 0, %s147
    %s150 = sphi 0, %s149
    %s164 = sphi 0, %s150
    %s168 = sphi 0, %s168
    %s170 = sphi 0, %s168
    %s171 = sphi 0, %s170
    %s185 = sphi 0, %s171
    %s189 = sphi 0, %s189
    %s191 = sphi 0, %s189
    %s192 = sphi 0, %s191
    %s206 = sphi 0, %s192
    %s212 = sphi 0, %s214
    %s215 = sphi 0, %s212
    %s216 = sphi 0, %s215
    %s232 = sphi 0, %s216
  $region4: #{net_forward.3} parent=0 // loop_header_branch
    %17 = sbr.rel (%p15) target = $region8
  $region5: #{net_forward.3} parent=0 // loop_body
    %s19 = ssub.s32 %s14, 1
    %s20 = ssub.s32 %s14, 2
    %s21 = sadd.s32 %s14, 1
    %s22 = ssub.s32 %s14, %s21
    %p23 = scmp.eq.s32.totalorder %s22, 0
    %s25 = sadd.s32 %s24, 1
    %s26 = scalar_select %p23, %s24, %s25
    %p29 = pneg %p23
    %p30 = scmp.eq.s32.totalorder %s14, 1
    %p31 = por %p29, %p30
    %p32 = scmp.ne.s32.totalorder %s24, %s27
    %p33 = scmp.eq.s32.totalorder %s14, 0
    %p34 = por %p32, %p33
    %p35 = scmp.ne.s32.totalorder %s24, %s27
    %p36 = scmp.eq.s32.totalorder %s19, 1
    %p37 = por %p35, %p36
    %p38 = scmp.ne.s32.totalorder %s27, %s28
    %p39 = scmp.eq.s32.totalorder %s19, 0
    %p40 = por %p38, %p39
    %p41 = scmp.ne.s32.totalorder %s27, %s28
    %p42 = scmp.eq.s32.totalorder %s20, 1
    %p43 = por %p41, %p42
    %p45 = scmp.ne.s32.totalorder %s28, %s44
    %p46 = scmp.eq.s32.totalorder %s20, 0
    %p47 = por %p45, %p46
    %s48 = ssub.s32 %s14, %s21
    %p49 = scmp.eq.s32.totalorder %s48, 0
    %s51 = sadd.s32 %s50, 1
    %s52 = scalar_select %p49, %s50, %s51
    %p55 = pneg %p49
    %p56 = scmp.eq.s32.totalorder %s14, 1
    %p57 = por %p55, %p56
    %p58 = scmp.ne.s32.totalorder %s50, %s53
    %p59 = scmp.eq.s32.totalorder %s14, 0
    %p60 = por %p58, %p59
    %p61 = scmp.ne.s32.totalorder %s50, %s53
    %p62 = scmp.eq.s32.totalorder %s19, 1
    %p63 = por %p61, %p62
    %p64 = scmp.ne.s32.totalorder %s53, %s54
    %p65 = scmp.eq.s32.totalorder %s19, 0
    %p66 = por %p64, %p65
    %p67 = scmp.ne.s32.totalorder %s53, %s54
    %p68 = scmp.eq.s32.totalorder %s20, 1
    %p69 = por %p67, %p68
    %p71 = scmp.ne.s32.totalorder %s54, %s70
    %p72 = scmp.eq.s32.totalorder %s20, 0
    %p73 = por %p71, %p72
    %s74 = ssub.s32 %s14, %s21
    %p75 = scmp.eq.s32.totalorder %s74, 0
    %s77 = sadd.s32 %s76, 1
    %s78 = scalar_select %p75, %s76, %s77
    %p81 = pneg %p75
    %p82 = scmp.eq.s32.totalorder %s14, 1
    %p83 = por %p81, %p82
    %p84 = scmp.ne.s32.totalorder %s76, %s79
    %p85 = scmp.eq.s32.totalorder %s14, 0
    %p86 = por %p84, %p85
    %p87 = scmp.ne.s32.totalorder %s76, %s79
    %p88 = scmp.eq.s32.totalorder %s19, 1
    %p89 = por %p87, %p88
    %p90 = scmp.ne.s32.totalorder %s79, %s80
    %p91 = scmp.eq.s32.totalorder %s19, 0
    %p92 = por %p90, %p91
    %p93 = scmp.ne.s32.totalorder %s79, %s80
    %p94 = scmp.eq.s32.totalorder %s20, 1
    %p95 = por %p93, %p94
    %p97 = scmp.ne.s32.totalorder %s80, %s96
    %p98 = scmp.eq.s32.totalorder %s20, 0
    %p99 = por %p97, %p98
    %s100 = ssub.s32 %s14, %s21
    %p101 = scmp.eq.s32.totalorder %s100, 0
    %s103 = sadd.s32 %s102, 1
    %s104 = scalar_select %p101, %s102, %s103
    %p107 = pneg %p101
    %p108 = scmp.eq.s32.totalorder %s14, 1
    %p109 = por %p107, %p108
    %p110 = scmp.ne.s32.totalorder %s102, %s105
    %p111 = scmp.eq.s32.totalorder %s14, 0
    %p112 = por %p110, %p111
    %p113 = scmp.ne.s32.totalorder %s102, %s105
    %p114 = scmp.eq.s32.totalorder %s19, 1
    %p115 = por %p113, %p114
    %p116 = scmp.ne.s32.totalorder %s105, %s106
    %p117 = scmp.eq.s32.totalorder %s19, 0
    %p118 = por %p116, %p117
    %p119 = scmp.ne.s32.totalorder %s105, %s106
    %p120 = scmp.eq.s32.totalorder %s20, 1
    %p121 = por %p119, %p120
    %p123 = scmp.ne.s32.totalorder %s106, %s122
    %p124 = scmp.eq.s32.totalorder %s20, 0
    %p125 = por %p123, %p124
    %s127 = sadd.s32 %s126, 1
    %p130 = scmp.eq.s32.totalorder %s14, 1
    %p131 = scmp.ne.s32.totalorder %s126, %s128
    %p132 = scmp.eq.s32.totalorder %s14, 0
    %p133 = por %p131, %p132
    %p134 = scmp.ne.s32.totalorder %s126, %s128
    %p135 = scmp.eq.s32.totalorder %s19, 1
    %p136 = por %p134, %p135
    %p137 = scmp.ne.s32.totalorder %s128, %s129
    %p138 = scmp.eq.s32.totalorder %s19, 0
    %p139 = por %p137, %p138
    %p140 = scmp.ne.s32.totalorder %s128, %s129
    %p141 = scmp.eq.s32.totalorder %s20, 1
    %p142 = por %p140, %p141
    %p144 = scmp.ne.s32.totalorder %s129, %s143
    %p145 = scmp.eq.s32.totalorder %s20, 0
    %p146 = por %p144, %p145
    %s148 = sadd.s32 %s147, 1
    %p151 = scmp.eq.s32.totalorder %s14, 1
    %p152 = scmp.ne.s32.totalorder %s147, %s149
    %p153 = scmp.eq.s32.totalorder %s14, 0
    %p154 = por %p152, %p153
    %p155 = scmp.ne.s32.totalorder %s147, %s149
    %p156 = scmp.eq.s32.totalorder %s19, 1
    %p157 = por %p155, %p156
    %p158 = scmp.ne.s32.totalorder %s149, %s150
    %p159 = scmp.eq.s32.totalorder %s19, 0
    %p160 = por %p158, %p159
    %p161 = scmp.ne.s32.totalorder %s149, %s150
    %p162 = scmp.eq.s32.totalorder %s20, 1
    %p163 = por %p161, %p162
    %p165 = scmp.ne.s32.totalorder %s150, %s164
    %p166 = scmp.eq.s32.totalorder %s20, 0
    %p167 = por %p165, %p166
    %s169 = sadd.s32 %s168, 1
    %p172 = scmp.eq.s32.totalorder %s14, 1
    %p173 = scmp.ne.s32.totalorder %s168, %s170
    %p174 = scmp.eq.s32.totalorder %s14, 0
    %p175 = por %p173, %p174
    %p176 = scmp.ne.s32.totalorder %s168, %s170
    %p177 = scmp.eq.s32.totalorder %s19, 1
    %p178 = por %p176, %p177
    %p179 = scmp.ne.s32.totalorder %s170, %s171
    %p180 = scmp.eq.s32.totalorder %s19, 0
    %p181 = por %p179, %p180
    %p182 = scmp.ne.s32.totalorder %s170, %s171
    %p183 = scmp.eq.s32.totalorder %s20, 1
    %p184 = por %p182, %p183
    %p186 = scmp.ne.s32.totalorder %s171, %s185
    %p187 = scmp.eq.s32.totalorder %s20, 0
    %p188 = por %p186, %p187
    %s190 = sadd.s32 %s189, 1
    %p193 = scmp.eq.s32.totalorder %s14, 1
    %p194 = scmp.ne.s32.totalorder %s189, %s191
    %p195 = scmp.eq.s32.totalorder %s14, 0
    %p196 = por %p194, %p195
    %p197 = scmp.ne.s32.totalorder %s189, %s191
    %p198 = scmp.eq.s32.totalorder %s19, 1
    %p199 = por %p197, %p198
    %p200 = scmp.ne.s32.totalorder %s191, %s192
    %p201 = scmp.eq.s32.totalorder %s19, 0
    %p202 = por %p200, %p201
    %p203 = scmp.ne.s32.totalorder %s191, %s192
    %p204 = scmp.eq.s32.totalorder %s20, 1
    %p205 = por %p203, %p204
    %p207 = scmp.ne.s32.totalorder %s192, %s206
    %p208 = scmp.eq.s32.totalorder %s20, 0
    %p209 = por %p207, %p208
    %s210 = ssub.s32 %s14, %s21
    %p211 = scmp.eq.s32.totalorder %s210, 0
    %s213 = sadd.s32 %s212, 1
    %s214 = scalar_select %p211, %s212, %s213
    %p217 = pneg %p211
    %p218 = scmp.eq.s32.totalorder %s14, 1
    %p219 = por %p217, %p218
    %p220 = scmp.ne.s32.totalorder %s212, %s215
    %p221 = scmp.eq.s32.totalorder %s14, 0
    %p222 = por %p220, %p221
    %p223 = scmp.ne.s32.totalorder %s212, %s215
    %p224 = scmp.eq.s32.totalorder %s19, 1
    %p225 = por %p223, %p224
    %p226 = scmp.ne.s32.totalorder %s215, %s216
    %p227 = scmp.eq.s32.totalorder %s19, 0
    %p228 = por %p226, %p227
    %p229 = scmp.ne.s32.totalorder %s215, %s216
    %p230 = scmp.eq.s32.totalorder %s20, 1
    %p231 = por %p229, %p230
    %p233 = scmp.ne.s32.totalorder %s216, %s232
    %p234 = scmp.eq.s32.totalorder %s20, 0
    %p235 = por %p233, %p234
    %p236 = scmp.le.s32.totalorder 1, %s14
    %p237 = scmp.lt.s32.totalorder %s14, 3
    %p238 = pnand %p236, %p237
    %p239 = pneg %p238
    // Predicated region
    $region9: #{net_forward.3} parent=5 // pred_check
      _
    $region10: #{net_forward.3} parent=5 // pred_check_branch
      %241 = sbr.rel (%p238) target = $region12
    $region11: #{net_forward.3} parent=5 // pred_region
      %s242 = ssub.s32 %s14, 1
      // Predicated region
      $region13: #{net_forward.3} parent=11 // pred_check
        %p243 = pneg %p139
      $region14: #{net_forward.3} parent=11 // pred_check_branch
        %245 = sbr.rel (%p243) target = $region16
      $region15: #{net_forward.3} parent=11 // pred_region
        _
      $region16: #{net_forward.3} parent=11 // pred_fallthru
        _
      // Predicated region
      $region17: #{net_forward.3} parent=11 // pred_check
        %p246 = pneg %p160
      $region18: #{net_forward.3} parent=11 // pred_check_branch
        %248 = sbr.rel (%p246) target = $region20
      $region19: #{net_forward.3} parent=11 // pred_region
        _
      $region20: #{net_forward.3} parent=11 // pred_fallthru
        _
      // Predicated region
      $region21: #{net_forward.3} parent=11 // pred_check
        %p249 = pneg %p181
      $region22: #{net_forward.3} parent=11 // pred_check_branch
        %251 = sbr.rel (%p249) target = $region24
      $region23: #{net_forward.3} parent=11 // pred_region
        _
      $region24: #{net_forward.3} parent=11 // pred_fallthru
        _
      // Predicated region
      $region25: #{net_forward.3} parent=11 // pred_check
        %p252 = pneg %p202
      $region26: #{net_forward.3} parent=11 // pred_check_branch
        %254 = sbr.rel (%p252) target = $region28
      $region27: #{net_forward.3} parent=11 // pred_region
        _
      $region28: #{net_forward.3} parent=11 // pred_fallthru
        _
    $region12: #{net_forward.3} parent=5 // pred_fallthru
      _
    %p255 = scmp.lt.s32.totalorder %s14, 2
    // Predicated region
    $region29: #{net_forward.3} parent=5 // pred_check
      %p256 = pneg %p255
    $region30: #{net_forward.3} parent=5 // pred_check_branch
      %258 = sbr.rel (%p256) target = $region32
    $region31: #{net_forward.3} parent=5 // pred_region
      // Predicated region
      $region33: #{net_forward.3} parent=31 // pred_check
        %p259 = pneg %p34
      $region34: #{net_forward.3} parent=31 // pred_check_branch
        %261 = sbr.rel (%p259) target = $region36
      $region35: #{net_forward.3} parent=31 // pred_region
        %p262 = scmp.lt.s32.totalorder %s14, 1
        %s263 = scalar_select %p262, %s14, 1
        %s264 = smul.addr %s263, 32
        %s265 = smul.addr %s264, 4
        %s266 = scalar_lea.vmem %s0, %s265
      $region36: #{net_forward.3} parent=31 // pred_fallthru
        _
      // Predicated region
      $region37: #{net_forward.3} parent=31 // pred_check
        %p267 = pneg %p60
      $region38: #{net_forward.3} parent=31 // pred_check_branch
        %269 = sbr.rel (%p267) target = $region40
      $region39: #{net_forward.3} parent=31 // pred_region
        %p270 = scmp.lt.s32.totalorder %s14, 1
        %s271 = scalar_select %p270, %s14, 1
        %s272 = smul.addr %s271, 32
        %s273 = smul.addr %s272, 4
        %s274 = scalar_lea.vmem %s1, %s273
      $region40: #{net_forward.3} parent=31 // pred_fallthru
        _
      // Predicated region
      $region41: #{net_forward.3} parent=31 // pred_check
        %p275 = pneg %p86
      $region42: #{net_forward.3} parent=31 // pred_check_branch
        %277 = sbr.rel (%p275) target = $region44
      $region43: #{net_forward.3} parent=31 // pred_region
        %p278 = scmp.lt.s32.totalorder %s14, 1
        %s279 = scalar_select %p278, %s14, 1
        %s280 = smul.addr %s279, 32
        %s281 = smul.addr %s280, 4
        %s282 = scalar_lea.vmem %s2, %s281
      $region44: #{net_forward.3} parent=31 // pred_fallthru
        _
      // Predicated region
      $region45: #{net_forward.3} parent=31 // pred_check
        %p283 = pneg %p112
      $region46: #{net_forward.3} parent=31 // pred_check_branch
        %285 = sbr.rel (%p283) target = $region48
      $region47: #{net_forward.3} parent=31 // pred_region
        %p286 = scmp.lt.s32.totalorder %s14, 1
        %s287 = scalar_select %p286, %s14, 1
        %s288 = smul.addr %s287, 32
        %s289 = smul.addr %s288, 4
        %s290 = scalar_lea.vmem %s3, %s289
      $region48: #{net_forward.3} parent=31 // pred_fallthru
        _
    $region32: #{net_forward.3} parent=5 // pred_fallthru
      _
    %p291 = scmp.le.s32.totalorder 1, %s14
    %p292 = scmp.lt.s32.totalorder %s14, 3
    %p293 = pnand %p291, %p292
    %p294 = pneg %p293
    // Predicated region
    $region49: #{net_forward.3} parent=5 // pred_check
      _
    $region50: #{net_forward.3} parent=5 // pred_check_branch
      %296 = sbr.rel (%p293) target = $region52
    $region51: #{net_forward.3} parent=5 // pred_region
      %s297 = ssub.s32 %s14, 1
      %p298 = scmp.lt.s32.totalorder %s19, 1
      %s299 = scalar_select %p298, %s19, 1
      %s300 = smul.addr %s299, 32
      %s301 = smul.addr %s300, 4
      %s302 = scalar_lea.vmem %s0, %s301
      %p303 = pneg %p40
      %p304 = pneg %p37
      %p305 = scmp.lt.s32.totalorder %s19, 1
      %s306 = scalar_select %p305, %s19, 1
      %s307 = smul.addr %s306, 32
      %s308 = smul.addr %s307, 4
      %s309 = scalar_lea.vmem %s1, %s308
      %p310 = pneg %p66
      %p311 = pneg %p63
      %p312 = scmp.lt.s32.totalorder %s19, 1
      %s313 = scalar_select %p312, %s19, 1
      %s314 = smul.addr %s313, 32
      %s315 = smul.addr %s314, 4
      %s316 = scalar_lea.vmem %s2, %s315
      %p317 = pneg %p92
      %p318 = pneg %p89
      %p319 = scmp.lt.s32.totalorder %s19, 1
      %s320 = scalar_select %p319, %s19, 1
      %s321 = smul.addr %s320, 32
      %s322 = smul.addr %s321, 4
      %s323 = scalar_lea.vmem %s3, %s322
      %p324 = pneg %p118
      %p325 = pneg %p115
      %p326 = pneg %p139
      %p327 = pneg %p136
      %p328 = pneg %p160
      %p329 = pneg %p157
      %p330 = pneg %p181
      %p331 = pneg %p178
      %p332 = pneg %p202
      %p333 = pneg %p199
      %p334 = pneg %p228
      %p335 = pneg %p225
      %p336 = scmp.lt.s32.totalorder %s19, 1
      %s337 = scalar_select %p336, %s19, 1
      %s338 = smul.addr %s337, 16
      %s339 = smul.addr %s338, 4
      %s340 = scalar_lea.vmem %s8, %s339
      %p341 = scmp.lt.s32.totalorder %s19, 1
      %s342 = scalar_select %p341, %s19, 1
      %s343 = smul.addr %s342, 32
      %s344 = smul.addr %s343, 4
      %s345 = scalar_lea.vmem %s0, %s344
      %p346 = scmp.lt.s32.totalorder %s19, 1
      %s347 = scalar_select %p346, %s19, 1
      %s348 = smul.addr %s347, 32
      %s349 = smul.addr %s348, 4
      %s350 = scalar_lea.vmem %s1, %s349
      %p351 = scmp.lt.s32.totalorder %s19, 1
      %s352 = scalar_select %p351, %s19, 1
      %s353 = smul.addr %s352, 32
      %s354 = smul.addr %s353, 4
      %s355 = scalar_lea.vmem %s2, %s354
      %p356 = scmp.lt.s32.totalorder %s19, 1
      %s357 = scalar_select %p356, %s19, 1
      %s358 = smul.addr %s357, 32
      %s359 = smul.addr %s358, 4
      %s360 = scalar_lea.vmem %s3, %s359
      %p361 = scmp.lt.s32.totalorder %s19, 1
      %s362 = scalar_select %p361, %s19, 1
      %s363 = smul.addr %s362, 16
      %s364 = smul.addr %s363, 4
      %s365 = scalar_lea.vmem %s8, %s364
      %v367 = vld [vmem:[%s4] sm:$0xf]
      %v368 = vld [vmem:[%s4 + $0x4] sm:$0xf]
      %v369 = vld [vmem:[%s5] sm:$0xff]
      %v370 = vld [vmem:[%s5 + $0x8] sm:$0xff]
      %v371 = vld [vmem:[%s6] sm:$0xff]
      %v372 = vld [vmem:[%s6 + $0x8] sm:$0xff]
      %v373 = vld [vmem:[%s7] sm:$0xff]
      %v374 = vld [vmem:[%s7 + $0x8] sm:$0xff]
      %v375 = vld [vmem:[%s345] sm:$0xff]
      %v376 = vld [vmem:[%s345 + $0x8] sm:$0xff]
      %v377 = vld [vmem:[%s345 + $0x10] sm:$0xff]
      %v378 = vld [vmem:[%s345 + $0x18] sm:$0xff]
      %v379 = vld [vmem:[%s345 + $0x20] sm:$0xff]
      %v380 = vld [vmem:[%s345 + $0x28] sm:$0xff]
      %v381 = vld [vmem:[%s345 + $0x30] sm:$0xff]
      %v382 = vld [vmem:[%s345 + $0x38] sm:$0xff]
      %v383 = vld [vmem:[%s345 + $0x40] sm:$0xff]
      %v384 = vld [vmem:[%s345 + $0x48] sm:$0xff]
      %v385 = vld [vmem:[%s345 + $0x50] sm:$0xff]
      %v386 = vld [vmem:[%s345 + $0x58] sm:$0xff]
      %v387 = vld [vmem:[%s345 + $0x60] sm:$0x33]
      %v388 = vld [vmem:[%s345 + $0x68] sm:$0x33]
      %v389 = vld [vmem:[%s345 + $0x70] sm:$0x33]
      %v390 = vld [vmem:[%s345 + $0x78] sm:$0x33]
      %392 = vset.pattern.permute.xlu0 0
      %393 = vperm.xlu0 %392, %v369
      %v394 = vpop.permute.xlu0 %393
      %397 = vset.pattern.permute.xlu0 0
      %398 = vperm.xlu0 %397, %v370
      %v399 = vpop.permute.xlu0 %398
      %v403 = vunpack.c.l.b16 %v367
      %v404 = vunpack.c.l.b16 %v368
      %v405 = vpack.c.b16 %v404, %v403
      %v422 = vunpack.c.l.b16 %v375
      %v423 = vunpack.c.h.b16 %v375
      %v424 = vunpack.c.l.b16 %v376
      %v425 = vunpack.c.h.b16 %v376
      %v426 = vunpack.c.l.b16 %v377
      %v427 = vunpack.c.h.b16 %v377
      %v428 = vunpack.c.l.b16 %v378
      %v429 = vunpack.c.h.b16 %v378
      %v430 = vunpack.c.l.b16 %v379
      %v431 = vunpack.c.h.b16 %v379
      %v432 = vunpack.c.l.b16 %v380
      %v433 = vunpack.c.h.b16 %v380
      %v434 = vunpack.c.l.b16 %v381
      %v435 = vunpack.c.h.b16 %v381
      %v436 = vunpack.c.l.b16 %v382
      %v437 = vunpack.c.h.b16 %v382
      %v438 = vunpack.c.l.b16 %v383
      %v439 = vunpack.c.h.b16 %v383
      %v440 = vunpack.c.l.b16 %v384
      %v441 = vunpack.c.h.b16 %v384
      %v442 = vunpack.c.l.b16 %v385
      %v443 = vunpack.c.h.b16 %v385
      %v444 = vunpack.c.l.b16 %v386
      %v445 = vunpack.c.h.b16 %v386
      %v446 = vunpack.c.l.b16 %v387
      %v447 = vunpack.c.h.b16 %v387
      %v448 = vunpack.c.l.b16 %v388
      %v449 = vunpack.c.h.b16 %v388
      %v450 = vunpack.c.l.b16 %v389
      %v451 = vunpack.c.h.b16 %v389
      %v452 = vunpack.c.l.b16 %v390
      %v453 = vunpack.c.h.b16 %v390
      %v454 = vpack.c.b16 %v430, %v422
      %v455 = vpack.c.b16 %v431, %v423
      %v456 = vpack.c.b16 %v432, %v424
      %v457 = vpack.c.b16 %v433, %v425
      %v458 = vpack.c.b16 %v434, %v426
      %v459 = vpack.c.b16 %v435, %v427
      %v460 = vpack.c.b16 %v436, %v428
      %v461 = vpack.c.b16 %v437, %v429
      %v462 = vpack.c.b16 %v446, %v438
      %v463 = vpack.c.b16 %v447, %v439
      %v464 = vpack.c.b16 %v448, %v440
      %v465 = vpack.c.b16 %v449, %v441
      %v466 = vpack.c.b16 %v450, %v442
      %v467 = vpack.c.b16 %v451, %v443
      %v468 = vpack.c.b16 %v452, %v444
      %v469 = vpack.c.b16 %v453, %v445
      %vm478 = vcmask 220160
      %v480 = vsel %vm478, %v405, 0
      %vm482 = vcmask 1044480
      %vm483 = vcmask 1045504
      %v484 = vsel %vm482, 4294967295, 65535
      %v485 = vsel %vm483, %v484, 0
      %v487 = vand.u32 %v462, %v485
      %v490 = vand.u32 %v463, %v485
      %v493 = vand.u32 %v464, %v485
      %v496 = vand.u32 %v465, %v485
      %v499 = vand.u32 %v466, %v485
      %v502 = vand.u32 %v467, %v485
      %v505 = vand.u32 %v468, %v485
      %v508 = vand.u32 %v469, %v485
      %510 = vmatprep.subr.bf16.mxu0 0
      %511 = vmatpush1.bf16.msra.mxu0 0
      %512 = vmatprep.subr.bf16.mxu0 0
      %513 = vmatpush1.bf16.msra.mxu0 0
      %514 = vmatprep.subr.bf16.mxu0 0
      %515 = vmatpush1.bf16.msra.mxu0 0
      %516 = vmatprep.subr.bf16.mxu0 0
      %517 = vmatpush1.bf16.msra.mxu0 0
      %518 = vmatprep.subr.bf16.mxu0 0
      %519 = vmatpush1.bf16.msra.mxu0 0
      %520 = vmatprep.subr.bf16.mxu0 0
      %521 = vmatpush1.bf16.msra.mxu0 0
      %522 = vmatprep.subr.bf16.mxu0 %v490
      %523 = vmatpush1.bf16.msra.mxu0 %v487
      %524 = vmatprep.subr.bf16.mxu0 %v455
      %525 = vmatpush1.bf16.msra.mxu0 %v454
      %526 = vmatprep.subr.bf16.mxu0 0
      %527 = vmatpush2.bf16.msra.mxu0 0
      %528 = vmatprep.subr.bf16.mxu0 0
      %529 = vmatpush2.bf16.msra.mxu0 0
      %530 = vmatprep.subr.bf16.mxu0 0
      %531 = vmatpush2.bf16.msra.mxu0 0
      %532 = vmatprep.subr.bf16.mxu0 0
      %533 = vmatpush2.bf16.msra.mxu0 0
      %534 = vmatprep.subr.bf16.mxu0 0
      %535 = vmatpush2.bf16.msra.mxu0 0
      %536 = vmatprep.subr.bf16.mxu0 0
      %537 = vmatpush2.bf16.msra.mxu0 0
      %538 = vmatprep.subr.bf16.mxu0 0
      %539 = vmatpush2.bf16.msra.mxu0 0
      %540 = vmatprep.subr.bf16.mxu0 0
      %541 = vmatpush2.bf16.msra.mxu0 0
      %542 = vmatprep.mubr.bf16.mxu0 0
      %543 = vmatmul.mubr.bf16.gmra.mxu0 %v480
      %v544 = vpop.f32.mrf.mxu0
      %v545 = vadd.f32 %v394, %v544
      %v546 = vpop.f32.mrf.mxu0
      %v547 = vadd.f32 %v394, %v546
      %v548 = vpop.f32.mrf.mxu0
      %v549 = vadd.f32 %v399, %v548
      %v550 = vpop.f32.mrf.mxu0
      %v551 = vadd.f32 %v399, %v550
      %552 = vdwg.mxu0
      %553 = vmatprep.subr.bf16.mxu0 0
      %554 = vmatpush1.bf16.msra.mxu0 0
      %555 = vmatprep.subr.bf16.mxu0 0
      %556 = vmatpush1.bf16.msra.mxu0 0
      %557 = vmatprep.subr.bf16.mxu0 0
      %558 = vmatpush1.bf16.msra.mxu0 0
      %559 = vmatprep.subr.bf16.mxu0 0
      %560 = vmatpush1.bf16.msra.mxu0 0
      %561 = vmatprep.subr.bf16.mxu0 0
      %562 = vmatpush1.bf16.msra.mxu0 0
      %563 = vmatprep.subr.bf16.mxu0 0
      %564 = vmatpush1.bf16.msra.mxu0 0
      %565 = vmatprep.subr.bf16.mxu0 %v496
      %566 = vmatpush1.bf16.msra.mxu0 %v493
      %567 = vmatprep.subr.bf16.mxu0 %v457
      %568 = vmatpush1.bf16.msra.mxu0 %v456
      %569 = vmatprep.subr.bf16.mxu0 0
      %570 = vmatpush2.bf16.msra.mxu0 0
      %571 = vmatprep.subr.bf16.mxu0 0
      %572 = vmatpush2.bf16.msra.mxu0 0
      %573 = vmatprep.subr.bf16.mxu0 0
      %574 = vmatpush2.bf16.msra.mxu0 0
      %575 = vmatprep.subr.bf16.mxu0 0
      %576 = vmatpush2.bf16.msra.mxu0 0
      %577 = vmatprep.subr.bf16.mxu0 0
      %578 = vmatpush2.bf16.msra.mxu0 0
      %579 = vmatprep.subr.bf16.mxu0 0
      %580 = vmatpush2.bf16.msra.mxu0 0
      %581 = vmatprep.subr.bf16.mxu0 0
      %582 = vmatpush2.bf16.msra.mxu0 0
      %583 = vmatprep.subr.bf16.mxu0 0
      %584 = vmatpush2.bf16.msra.mxu0 0
      %585 = vmatprep.mubr.bf16.mxu0 0
      %586 = vmatmul.mubr.bf16.gmra.mxu0 %v480
      %v587 = vpop.f32.mrf.mxu0
      %v588 = vadd.f32 %v394, %v587
      %v589 = vpop.f32.mrf.mxu0
      %v590 = vadd.f32 %v394, %v589
      %v591 = vpop.f32.mrf.mxu0
      %v592 = vadd.f32 %v399, %v591
      %v593 = vpop.f32.mrf.mxu0
      %v594 = vadd.f32 %v399, %v593
      %595 = vdwg.mxu0
      %596 = vmatprep.subr.bf16.mxu0 0
      %597 = vmatpush1.bf16.msra.mxu0 0
      %598 = vmatprep.subr.bf16.mxu0 0
      %599 = vmatpush1.bf16.msra.mxu0 0
      %600 = vmatprep.subr.bf16.mxu0 0
      %601 = vmatpush1.bf16.msra.mxu0 0
      %602 = vmatprep.subr.bf16.mxu0 0
      %603 = vmatpush1.bf16.msra.mxu0 0
      %604 = vmatprep.subr.bf16.mxu0 0
      %605 = vmatpush1.bf16.msra.mxu0 0
      %606 = vmatprep.subr.bf16.mxu0 0
      %607 = vmatpush1.bf16.msra.mxu0 0
      %608 = vmatprep.subr.bf16.mxu0 %v502
      %609 = vmatpush1.bf16.msra.mxu0 %v499
      %610 = vmatprep.subr.bf16.mxu0 %v459
      %611 = vmatpush1.bf16.msra.mxu0 %v458
      %612 = vmatprep.subr.bf16.mxu0 0
      %613 = vmatpush2.bf16.msra.mxu0 0
      %614 = vmatprep.subr.bf16.mxu0 0
      %615 = vmatpush2.bf16.msra.mxu0 0
      %616 = vmatprep.subr.bf16.mxu0 0
      %617 = vmatpush2.bf16.msra.mxu0 0
      %618 = vmatprep.subr.bf16.mxu0 0
      %619 = vmatpush2.bf16.msra.mxu0 0
      %620 = vmatprep.subr.bf16.mxu0 0
      %621 = vmatpush2.bf16.msra.mxu0 0
      %622 = vmatprep.subr.bf16.mxu0 0
      %623 = vmatpush2.bf16.msra.mxu0 0
      %624 = vmatprep.subr.bf16.mxu0 0
      %625 = vmatpush2.bf16.msra.mxu0 0
      %626 = vmatprep.subr.bf16.mxu0 0
      %627 = vmatpush2.bf16.msra.mxu0 0
      %628 = vmatprep.mubr.bf16.mxu0 0
      %629 = vmatmul.mubr.bf16.gmra.mxu0 %v480
      %v630 = vpop.f32.mrf.mxu0
      %v631 = vadd.f32 %v394, %v630
      %v632 = vpop.f32.mrf.mxu0
      %v633 = vadd.f32 %v394, %v632
      %v634 = vpop.f32.mrf.mxu0
      %v635 = vadd.f32 %v399, %v634
      %v636 = vpop.f32.mrf.mxu0
      %v637 = vadd.f32 %v399, %v636
      %638 = vdwg.mxu0
      %639 = vmatprep.subr.bf16.mxu0 0
      %640 = vmatpush1.bf16.msra.mxu0 0
      %641 = vmatprep.subr.bf16.mxu0 0
      %642 = vmatpush1.bf16.msra.mxu0 0
      %643 = vmatprep.subr.bf16.mxu0 0
      %644 = vmatpush1.bf16.msra.mxu0 0
      %645 = vmatprep.subr.bf16.mxu0 0
      %646 = vmatpush1.bf16.msra.mxu0 0
      %647 = vmatprep.subr.bf16.mxu0 0
      %648 = vmatpush1.bf16.msra.mxu0 0
      %649 = vmatprep.subr.bf16.mxu0 0
      %650 = vmatpush1.bf16.msra.mxu0 0
      %651 = vmatprep.subr.bf16.mxu0 %v508
      %652 = vmatpush1.bf16.msra.mxu0 %v505
      %653 = vmatprep.subr.bf16.mxu0 %v461
      %654 = vmatpush1.bf16.msra.mxu0 %v460
      %655 = vmatprep.subr.bf16.mxu0 0
      %656 = vmatpush2.bf16.msra.mxu0 0
      %657 = vmatprep.subr.bf16.mxu0 0
      %658 = vmatpush2.bf16.msra.mxu0 0
      %659 = vmatprep.subr.bf16.mxu0 0
      %660 = vmatpush2.bf16.msra.mxu0 0
      %661 = vmatprep.subr.bf16.mxu0 0
      %662 = vmatpush2.bf16.msra.mxu0 0
      %663 = vmatprep.subr.bf16.mxu0 0
      %664 = vmatpush2.bf16.msra.mxu0 0
      %665 = vmatprep.subr.bf16.mxu0 0
      %666 = vmatpush2.bf16.msra.mxu0 0
      %667 = vmatprep.subr.bf16.mxu0 0
      %668 = vmatpush2.bf16.msra.mxu0 0
      %669 = vmatprep.subr.bf16.mxu0 0
      %670 = vmatpush2.bf16.msra.mxu0 0
      %671 = vmatprep.mubr.bf16.mxu0 0
      %672 = vmatmul.mubr.bf16.gmra.mxu0 %v480
      %v673 = vpop.f32.mrf.mxu0
      %v674 = vadd.f32 %v394, %v673
      %v675 = vpop.f32.mrf.mxu0
      %v676 = vadd.f32 %v394, %v675
      %v677 = vpop.f32.mrf.mxu0
      %v678 = vadd.f32 %v399, %v677
      %v679 = vpop.f32.mrf.mxu0
      %v680 = vadd.f32 %v399, %v679
      %681 = vdwg.mxu0
      %v682 = vmax.f32 %v545, 0.0
      %v683 = vmax.f32 %v547, 0.0
      %v684 = vmax.f32 %v588, 0.0
      %v685 = vmax.f32 %v590, 0.0
      %v686 = vmax.f32 %v631, 0.0
      %v687 = vmax.f32 %v633, 0.0
      %v688 = vmax.f32 %v674, 0.0
      %v689 = vmax.f32 %v676, 0.0
      %v690 = vmax.f32 %v549, 0.0
      %v691 = vmax.f32 %v551, 0.0
      %v692 = vmax.f32 %v592, 0.0
      %v693 = vmax.f32 %v594, 0.0
      %v694 = vmax.f32 %v635, 0.0
      %v695 = vmax.f32 %v637, 0.0
      %v696 = vmax.f32 %v678, 0.0
      %v697 = vmax.f32 %v680, 0.0
      %699 = vset.pattern.permute.xlu0 0
      %700 = vperm.xlu0 %699, %v371
      %v701 = vpop.permute.xlu0 %700
      %704 = vset.pattern.permute.xlu0 0
      %705 = vperm.xlu0 %704, %v372
      %v706 = vpop.permute.xlu0 %705
      %v708 = vmul.f32 %v682, %v701
      %v709 = vmul.f32 %v683, %v701
      %v710 = vmul.f32 %v684, %v701
      %v711 = vmul.f32 %v685, %v701
      %v712 = vmul.f32 %v686, %v701
      %v713 = vmul.f32 %v687, %v701
      %v714 = vmul.f32 %v688, %v701
      %v715 = vmul.f32 %v689, %v701
      %v716 = vmul.f32 %v690, %v706
      %v717 = vmul.f32 %v691, %v706
      %v718 = vmul.f32 %v692, %v706
      %v719 = vmul.f32 %v693, %v706
      %v720 = vmul.f32 %v694, %v706
      %v721 = vmul.f32 %v695, %v706
      %v722 = vmul.f32 %v696, %v706
      %v723 = vmul.f32 %v697, %v706
      %725 = vset.pattern.permute.xlu0 0
      %726 = vperm.xlu0 %725, %v373
      %v727 = vpop.permute.xlu0 %726
      %730 = vset.pattern.permute.xlu0 0
      %731 = vperm.xlu0 %730, %v374
      %v732 = vpop.permute.xlu0 %731
      %v734 = vadd.f32 %v708, %v727
      %v735 = vadd.f32 %v709, %v727
      %v736 = vadd.f32 %v710, %v727
      %v737 = vadd.f32 %v711, %v727
      %v738 = vadd.f32 %v712, %v727
      %v739 = vadd.f32 %v713, %v727
      %v740 = vadd.f32 %v714, %v727
      %v741 = vadd.f32 %v715, %v727
      %v742 = vadd.f32 %v716, %v732
      %v743 = vadd.f32 %v717, %v732
      %v744 = vadd.f32 %v718, %v732
      %v745 = vadd.f32 %v719, %v732
      %v746 = vadd.f32 %v720, %v732
      %v747 = vadd.f32 %v721, %v732
      %v748 = vadd.f32 %v722, %v732
      %v749 = vadd.f32 %v723, %v732
      %v750 = vld [vmem:[%s350] sm:$0xff]
      %v751 = vld [vmem:[%s350 + $0x8] sm:$0xff]
      %v752 = vld [vmem:[%s350 + $0x10] sm:$0xff]
      %v753 = vld [vmem:[%s350 + $0x18] sm:$0xff]
      %v754 = vld [vmem:[%s350 + $0x20] sm:$0xff]
      %v755 = vld [vmem:[%s350 + $0x28] sm:$0xff]
      %v756 = vld [vmem:[%s350 + $0x30] sm:$0xff]
      %v757 = vld [vmem:[%s350 + $0x38] sm:$0xff]
      %v758 = vld [vmem:[%s350 + $0x40] sm:$0xff]
      %v759 = vld [vmem:[%s350 + $0x48] sm:$0xff]
      %v760 = vld [vmem:[%s350 + $0x50] sm:$0xff]
      %v761 = vld [vmem:[%s350 + $0x58] sm:$0xff]
      %v762 = vld [vmem:[%s350 + $0x60] sm:$0x33]
      %v763 = vld [vmem:[%s350 + $0x68] sm:$0x33]
      %v764 = vld [vmem:[%s350 + $0x70] sm:$0x33]
      %v765 = vld [vmem:[%s350 + $0x78] sm:$0x33]
      %v782 = vunpack.c.l.b16 %v750
      %v783 = vunpack.c.h.b16 %v750
      %v784 = vunpack.c.l.b16 %v751
      %v785 = vunpack.c.h.b16 %v751
      %v786 = vunpack.c.l.b16 %v752
      %v787 = vunpack.c.h.b16 %v752
      %v788 = vunpack.c.l.b16 %v753
      %v789 = vunpack.c.h.b16 %v753
      %v790 = vunpack.c.l.b16 %v754
      %v791 = vunpack.c.h.b16 %v754
      %v792 = vunpack.c.l.b16 %v755
      %v793 = vunpack.c.h.b16 %v755
      %v794 = vunpack.c.l.b16 %v756
      %v795 = vunpack.c.h.b16 %v756
      %v796 = vunpack.c.l.b16 %v757
      %v797 = vunpack.c.h.b16 %v757
      %v798 = vunpack.c.l.b16 %v758
      %v799 = vunpack.c.h.b16 %v758
      %v800 = vunpack.c.l.b16 %v759
      %v801 = vunpack.c.h.b16 %v759
      %v802 = vunpack.c.l.b16 %v760
      %v803 = vunpack.c.h.b16 %v760
      %v804 = vunpack.c.l.b16 %v761
      %v805 = vunpack.c.h.b16 %v761
      %v806 = vunpack.c.l.b16 %v762
      %v807 = vunpack.c.h.b16 %v762
      %v808 = vunpack.c.l.b16 %v763
      %v809 = vunpack.c.h.b16 %v763
      %v810 = vunpack.c.l.b16 %v764
      %v811 = vunpack.c.h.b16 %v764
      %v812 = vunpack.c.l.b16 %v765
      %v813 = vunpack.c.h.b16 %v765
      %v814 = vpack.c.b16 %v790, %v782
      %v815 = vpack.c.b16 %v791, %v783
      %v816 = vpack.c.b16 %v792, %v784
      %v817 = vpack.c.b16 %v793, %v785
      %v818 = vpack.c.b16 %v794, %v786
      %v819 = vpack.c.b16 %v795, %v787
      %v820 = vpack.c.b16 %v796, %v788
      %v821 = vpack.c.b16 %v797, %v789
      %v822 = vpack.c.b16 %v806, %v798
      %v823 = vpack.c.b16 %v807, %v799
      %v824 = vpack.c.b16 %v808, %v800
      %v825 = vpack.c.b16 %v809, %v801
      %v826 = vpack.c.b16 %v810, %v802
      %v827 = vpack.c.b16 %v811, %v803
      %v828 = vpack.c.b16 %v812, %v804
      %v829 = vpack.c.b16 %v813, %v805
      %v839 = vand.u32 %v822, %v485
      %v842 = vand.u32 %v823, %v485
      %v845 = vand.u32 %v824, %v485
      %v848 = vand.u32 %v825, %v485
      %v851 = vand.u32 %v826, %v485
      %v854 = vand.u32 %v827, %v485
      %v857 = vand.u32 %v828, %v485
      %v860 = vand.u32 %v829, %v485
      %862 = vmatprep.subr.bf16.mxu0 0
      %863 = vmatpush1.bf16.msra.mxu0 0
      %864 = vmatprep.subr.bf16.mxu0 0
      %865 = vmatpush1.bf16.msra.mxu0 0
      %866 = vmatprep.subr.bf16.mxu0 0
      %867 = vmatpush1.bf16.msra.mxu0 0
      %868 = vmatprep.subr.bf16.mxu0 0
      %869 = vmatpush1.bf16.msra.mxu0 0
      %870 = vmatprep.subr.bf16.mxu0 0
      %871 = vmatpush1.bf16.msra.mxu0 0
      %872 = vmatprep.subr.bf16.mxu0 0
      %873 = vmatpush1.bf16.msra.mxu0 0
      %874 = vmatprep.subr.bf16.mxu0 %v842
      %875 = vmatpush1.bf16.msra.mxu0 %v839
      %876 = vmatprep.subr.bf16.mxu0 %v815
      %877 = vmatpush1.bf16.msra.mxu0 %v814
      %878 = vmatprep.subr.bf16.mxu0 0
      %879 = vmatpush2.bf16.msra.mxu0 0
      %880 = vmatprep.subr.bf16.mxu0 0
      %881 = vmatpush2.bf16.msra.mxu0 0
      %882 = vmatprep.subr.bf16.mxu0 0
      %883 = vmatpush2.bf16.msra.mxu0 0
      %884 = vmatprep.subr.bf16.mxu0 0
      %885 = vmatpush2.bf16.msra.mxu0 0
      %886 = vmatprep.subr.bf16.mxu0 0
      %887 = vmatpush2.bf16.msra.mxu0 0
      %888 = vmatprep.subr.bf16.mxu0 0
      %889 = vmatpush2.bf16.msra.mxu0 0
      %890 = vmatprep.subr.bf16.mxu0 0
      %891 = vmatpush2.bf16.msra.mxu0 0
      %892 = vmatprep.subr.bf16.mxu0 0
      %893 = vmatpush2.bf16.msra.mxu0 0
      %894 = vmatprep.mubr.bf16.mxu0 0
      %895 = vmatmul.mubr.bf16.gmra.mxu0 %v480
      %v896 = vpop.f32.mrf.mxu0
      %v897 = vadd.f32 %v394, %v896
      %v898 = vpop.f32.mrf.mxu0
      %v899 = vadd.f32 %v394, %v898
      %v900 = vpop.f32.mrf.mxu0
      %v901 = vadd.f32 %v399, %v900
      %v902 = vpop.f32.mrf.mxu0
      %v903 = vadd.f32 %v399, %v902
      %904 = vdwg.mxu0
      %905 = vmatprep.subr.bf16.mxu0 0
      %906 = vmatpush1.bf16.msra.mxu0 0
      %907 = vmatprep.subr.bf16.mxu0 0
      %908 = vmatpush1.bf16.msra.mxu0 0
      %909 = vmatprep.subr.bf16.mxu0 0
      %910 = vmatpush1.bf16.msra.mxu0 0
      %911 = vmatprep.subr.bf16.mxu0 0
      %912 = vmatpush1.bf16.msra.mxu0 0
      %913 = vmatprep.subr.bf16.mxu0 0
      %914 = vmatpush1.bf16.msra.mxu0 0
      %915 = vmatprep.subr.bf16.mxu0 0
      %916 = vmatpush1.bf16.msra.mxu0 0
      %917 = vmatprep.subr.bf16.mxu0 %v848
      %918 = vmatpush1.bf16.msra.mxu0 %v845
      %919 = vmatprep.subr.bf16.mxu0 %v817
      %920 = vmatpush1.bf16.msra.mxu0 %v816
      %921 = vmatprep.subr.bf16.mxu0 0
      %922 = vmatpush2.bf16.msra.mxu0 0
      %923 = vmatprep.subr.bf16.mxu0 0
      %924 = vmatpush2.bf16.msra.mxu0 0
      %925 = vmatprep.subr.bf16.mxu0 0
      %926 = vmatpush2.bf16.msra.mxu0 0
      %927 = vmatprep.subr.bf16.mxu0 0
      %928 = vmatpush2.bf16.msra.mxu0 0
      %929 = vmatprep.subr.bf16.mxu0 0
      %930 = vmatpush2.bf16.msra.mxu0 0
      %931 = vmatprep.subr.bf16.mxu0 0
      %932 = vmatpush2.bf16.msra.mxu0 0
      %933 = vmatprep.subr.bf16.mxu0 0
      %934 = vmatpush2.bf16.msra.mxu0 0
      %935 = vmatprep.subr.bf16.mxu0 0
      %936 = vmatpush2.bf16.msra.mxu0 0
      %937 = vmatprep.mubr.bf16.mxu0 0
      %938 = vmatmul.mubr.bf16.gmra.mxu0 %v480
      %v939 = vpop.f32.mrf.mxu0
      %v940 = vadd.f32 %v394, %v939
      %v941 = vpop.f32.mrf.mxu0
      %v942 = vadd.f32 %v394, %v941
      %v943 = vpop.f32.mrf.mxu0
      %v944 = vadd.f32 %v399, %v943
      %v945 = vpop.f32.mrf.mxu0
      %v946 = vadd.f32 %v399, %v945
      %947 = vdwg.mxu0
      %948 = vmatprep.subr.bf16.mxu0 0
      %949 = vmatpush1.bf16.msra.mxu0 0
      %950 = vmatprep.subr.bf16.mxu0 0
      %951 = vmatpush1.bf16.msra.mxu0 0
      %952 = vmatprep.subr.bf16.mxu0 0
      %953 = vmatpush1.bf16.msra.mxu0 0
      %954 = vmatprep.subr.bf16.mxu0 0
      %955 = vmatpush1.bf16.msra.mxu0 0
      %956 = vmatprep.subr.bf16.mxu0 0
      %957 = vmatpush1.bf16.msra.mxu0 0
      %958 = vmatprep.subr.bf16.mxu0 0
      %959 = vmatpush1.bf16.msra.mxu0 0
      %960 = vmatprep.subr.bf16.mxu0 %v854
      %961 = vmatpush1.bf16.msra.mxu0 %v851
      %962 = vmatprep.subr.bf16.mxu0 %v819
      %963 = vmatpush1.bf16.msra.mxu0 %v818
      %964 = vmatprep.subr.bf16.mxu0 0
      %965 = vmatpush2.bf16.msra.mxu0 0
      %966 = vmatprep.subr.bf16.mxu0 0
      %967 = vmatpush2.bf16.msra.mxu0 0
      %968 = vmatprep.subr.bf16.mxu0 0
      %969 = vmatpush2.bf16.msra.mxu0 0
      %970 = vmatprep.subr.bf16.mxu0 0
      %971 = vmatpush2.bf16.msra.mxu0 0
      %972 = vmatprep.subr.bf16.mxu0 0
      %973 = vmatpush2.bf16.msra.mxu0 0
      %974 = vmatprep.subr.bf16.mxu0 0
      %975 = vmatpush2.bf16.msra.mxu0 0
      %976 = vmatprep.subr.bf16.mxu0 0
      %977 = vmatpush2.bf16.msra.mxu0 0
      %978 = vmatprep.subr.bf16.mxu0 0
      %979 = vmatpush2.bf16.msra.mxu0 0
      %980 = vmatprep.mubr.bf16.mxu0 0
      %981 = vmatmul.mubr.bf16.gmra.mxu0 %v480
      %v982 = vpop.f32.mrf.mxu0
      %v983 = vadd.f32 %v394, %v982
      %v984 = vpop.f32.mrf.mxu0
      %v985 = vadd.f32 %v394, %v984
      %v986 = vpop.f32.mrf.mxu0
      %v987 = vadd.f32 %v399, %v986
      %v988 = vpop.f32.mrf.mxu0
      %v989 = vadd.f32 %v399, %v988
      %990 = vdwg.mxu0
      %991 = vmatprep.subr.bf16.mxu0 0
      %992 = vmatpush1.bf16.msra.mxu0 0
      %993 = vmatprep.subr.bf16.mxu0 0
      %994 = vmatpush1.bf16.msra.mxu0 0
      %995 = vmatprep.subr.bf16.mxu0 0
      %996 = vmatpush1.bf16.msra.mxu0 0
      %997 = vmatprep.subr.bf16.mxu0 0
      %998 = vmatpush1.bf16.msra.mxu0 0
      %999 = vmatprep.subr.bf16.mxu0 0
      %1000 = vmatpush1.bf16.msra.mxu0 0
      %1001 = vmatprep.subr.bf16.mxu0 0
      %1002 = vmatpush1.bf16.msra.mxu0 0
      %1003 = vmatprep.subr.bf16.mxu0 %v860
      %1004 = vmatpush1.bf16.msra.mxu0 %v857
      %1005 = vmatprep.subr.bf16.mxu0 %v821
      %1006 = vmatpush1.bf16.msra.mxu0 %v820
      %1007 = vmatprep.subr.bf16.mxu0 0
      %1008 = vmatpush2.bf16.msra.mxu0 0
      %1009 = vmatprep.subr.bf16.mxu0 0
      %1010 = vmatpush2.bf16.msra.mxu0 0
      %1011 = vmatprep.subr.bf16.mxu0 0
      %1012 = vmatpush2.bf16.msra.mxu0 0
      %1013 = vmatprep.subr.bf16.mxu0 0
      %1014 = vmatpush2.bf16.msra.mxu0 0
      %1015 = vmatprep.subr.bf16.mxu0 0
      %1016 = vmatpush2.bf16.msra.mxu0 0
      %1017 = vmatprep.subr.bf16.mxu0 0
      %1018 = vmatpush2.bf16.msra.mxu0 0
      %1019 = vmatprep.subr.bf16.mxu0 0
      %1020 = vmatpush2.bf16.msra.mxu0 0
      %1021 = vmatprep.subr.bf16.mxu0 0
      %1022 = vmatpush2.bf16.msra.mxu0 0
      %1023 = vmatprep.mubr.bf16.mxu0 0
      %1024 = vmatmul.mubr.bf16.gmra.mxu0 %v480
      %v1025 = vpop.f32.mrf.mxu0
      %v1026 = vadd.f32 %v394, %v1025
      %v1027 = vpop.f32.mrf.mxu0
      %v1028 = vadd.f32 %v394, %v1027
      %v1029 = vpop.f32.mrf.mxu0
      %v1030 = vadd.f32 %v399, %v1029
      %v1031 = vpop.f32.mrf.mxu0
      %v1032 = vadd.f32 %v399, %v1031
      %1033 = vdwg.mxu0
      %v1034 = vmax.f32 %v897, 0.0
      %v1035 = vmax.f32 %v899, 0.0
      %v1036 = vmax.f32 %v940, 0.0
      %v1037 = vmax.f32 %v942, 0.0
      %v1038 = vmax.f32 %v983, 0.0
      %v1039 = vmax.f32 %v985, 0.0
      %v1040 = vmax.f32 %v1026, 0.0
      %v1041 = vmax.f32 %v1028, 0.0
      %v1042 = vmax.f32 %v901, 0.0
      %v1043 = vmax.f32 %v903, 0.0
      %v1044 = vmax.f32 %v944, 0.0
      %v1045 = vmax.f32 %v946, 0.0
      %v1046 = vmax.f32 %v987, 0.0
      %v1047 = vmax.f32 %v989, 0.0
      %v1048 = vmax.f32 %v1030, 0.0
      %v1049 = vmax.f32 %v1032, 0.0
      %v1050 = vmul.f32 %v1034, %v701
      %v1051 = vmul.f32 %v1035, %v701
      %v1052 = vmul.f32 %v1036, %v701
      %v1053 = vmul.f32 %v1037, %v701
      %v1054 = vmul.f32 %v1038, %v701
      %v1055 = vmul.f32 %v1039, %v701
      %v1056 = vmul.f32 %v1040, %v701
      %v1057 = vmul.f32 %v1041, %v701
      %v1058 = vmul.f32 %v1042, %v706
      %v1059 = vmul.f32 %v1043, %v706
      %v1060 = vmul.f32 %v1044, %v706
      %v1061 = vmul.f32 %v1045, %v706
      %v1062 = vmul.f32 %v1046, %v706
      %v1063 = vmul.f32 %v1047, %v706
      %v1064 = vmul.f32 %v1048, %v706
      %v1065 = vmul.f32 %v1049, %v706
      %v1066 = vadd.f32 %v1050, %v727
      %v1067 = vadd.f32 %v1051, %v727
      %v1068 = vadd.f32 %v1052, %v727
      %v1069 = vadd.f32 %v1053, %v727
      %v1070 = vadd.f32 %v1054, %v727
      %v1071 = vadd.f32 %v1055, %v727
      %v1072 = vadd.f32 %v1056, %v727
      %v1073 = vadd.f32 %v1057, %v727
      %v1074 = vadd.f32 %v1058, %v732
      %v1075 = vadd.f32 %v1059, %v732
      %v1076 = vadd.f32 %v1060, %v732
      %v1077 = vadd.f32 %v1061, %v732
      %v1078 = vadd.f32 %v1062, %v732
      %v1079 = vadd.f32 %v1063, %v732
      %v1080 = vadd.f32 %v1064, %v732
      %v1081 = vadd.f32 %v1065, %v732
      %v1082 = vmax.f32 %v734, %v1066
      %v1083 = vmax.f32 %v735, %v1067
      %v1084 = vmax.f32 %v736, %v1068
      %v1085 = vmax.f32 %v737, %v1069
      %v1086 = vmax.f32 %v738, %v1070
      %v1087 = vmax.f32 %v739, %v1071
      %v1088 = vmax.f32 %v740, %v1072
      %v1089 = vmax.f32 %v741, %v1073
      %v1090 = vmax.f32 %v742, %v1074
      %v1091 = vmax.f32 %v743, %v1075
      %v1092 = vmax.f32 %v744, %v1076
      %v1093 = vmax.f32 %v745, %v1077
      %v1094 = vmax.f32 %v746, %v1078
      %v1095 = vmax.f32 %v747, %v1079
      %v1096 = vmax.f32 %v748, %v1080
      %v1097 = vmax.f32 %v749, %v1081
      %v1098 = vld [vmem:[%s355] sm:$0xff]
      %v1099 = vld [vmem:[%s355 + $0x8] sm:$0xff]
      %v1100 = vld [vmem:[%s355 + $0x10] sm:$0xff]
      %v1101 = vld [vmem:[%s355 + $0x18] sm:$0xff]
      %v1102 = vld [vmem:[%s355 + $0x20] sm:$0xff]
      %v1103 = vld [vmem:[%s355 + $0x28] sm:$0xff]
      %v1104 = vld [vmem:[%s355 + $0x30] sm:$0xff]
      %v1105 = vld [vmem:[%s355 + $0x38] sm:$0xff]
      %v1106 = vld [vmem:[%s355 + $0x40] sm:$0xff]
      %v1107 = vld [vmem:[%s355 + $0x48] sm:$0xff]
      %v1108 = vld [vmem:[%s355 + $0x50] sm:$0xff]
      %v1109 = vld [vmem:[%s355 + $0x58] sm:$0xff]
      %v1110 = vld [vmem:[%s355 + $0x60] sm:$0x33]
      %v1111 = vld [vmem:[%s355 + $0x68] sm:$0x33]
      %v1112 = vld [vmem:[%s355 + $0x70] sm:$0x33]
      %v1113 = vld [vmem:[%s355 + $0x78] sm:$0x33]
      %v1130 = vunpack.c.l.b16 %v1098
      %v1131 = vunpack.c.h.b16 %v1098
      %v1132 = vunpack.c.l.b16 %v1099
      %v1133 = vunpack.c.h.b16 %v1099
      %v1134 = vunpack.c.l.b16 %v1100
      %v1135 = vunpack.c.h.b16 %v1100
      %v1136 = vunpack.c.l.b16 %v1101
      %v1137 = vunpack.c.h.b16 %v1101
      %v1138 = vunpack.c.l.b16 %v1102
      %v1139 = vunpack.c.h.b16 %v1102
      %v1140 = vunpack.c.l.b16 %v1103
      %v1141 = vunpack.c.h.b16 %v1103
      %v1142 = vunpack.c.l.b16 %v1104
      %v1143 = vunpack.c.h.b16 %v1104
      %v1144 = vunpack.c.l.b16 %v1105
      %v1145 = vunpack.c.h.b16 %v1105
      %v1146 = vunpack.c.l.b16 %v1106
      %v1147 = vunpack.c.h.b16 %v1106
      %v1148 = vunpack.c.l.b16 %v1107
      %v1149 = vunpack.c.h.b16 %v1107
      %v1150 = vunpack.c.l.b16 %v1108
      %v1151 = vunpack.c.h.b16 %v1108
      %v1152 = vunpack.c.l.b16 %v1109
      %v1153 = vunpack.c.h.b16 %v1109
      %v1154 = vunpack.c.l.b16 %v1110
      %v1155 = vunpack.c.h.b16 %v1110
      %v1156 = vunpack.c.l.b16 %v1111
      %v1157 = vunpack.c.h.b16 %v1111
      %v1158 = vunpack.c.l.b16 %v1112
      %v1159 = vunpack.c.h.b16 %v1112
      %v1160 = vunpack.c.l.b16 %v1113
      %v1161 = vunpack.c.h.b16 %v1113
      %v1162 = vpack.c.b16 %v1138, %v1130
      %v1163 = vpack.c.b16 %v1139, %v1131
      %v1164 = vpack.c.b16 %v1140, %v1132
      %v1165 = vpack.c.b16 %v1141, %v1133
      %v1166 = vpack.c.b16 %v1142, %v1134
      %v1167 = vpack.c.b16 %v1143, %v1135
      %v1168 = vpack.c.b16 %v1144, %v1136
      %v1169 = vpack.c.b16 %v1145, %v1137
      %v1170 = vpack.c.b16 %v1154, %v1146
      %v1171 = vpack.c.b16 %v1155, %v1147
      %v1172 = vpack.c.b16 %v1156, %v1148
      %v1173 = vpack.c.b16 %v1157, %v1149
      %v1174 = vpack.c.b16 %v1158, %v1150
      %v1175 = vpack.c.b16 %v1159, %v1151
      %v1176 = vpack.c.b16 %v1160, %v1152
      %v1177 = vpack.c.b16 %v1161, %v1153
      %v1187 = vand.u32 %v1170, %v485
      %v1190 = vand.u32 %v1171, %v485
      %v1193 = vand.u32 %v1172, %v485
      %v1196 = vand.u32 %v1173, %v485
      %v1199 = vand.u32 %v1174, %v485
      %v1202 = vand.u32 %v1175, %v485
      %v1205 = vand.u32 %v1176, %v485
      %v1208 = vand.u32 %v1177, %v485
      %1210 = vmatprep.subr.bf16.mxu0 0
      %1211 = vmatpush1.bf16.msra.mxu0 0
      %1212 = vmatprep.subr.bf16.mxu0 0
      %1213 = vmatpush1.bf16.msra.mxu0 0
      %1214 = vmatprep.subr.bf16.mxu0 0
      %1215 = vmatpush1.bf16.msra.mxu0 0
      %1216 = vmatprep.subr.bf16.mxu0 0
      %1217 = vmatpush1.bf16.msra.mxu0 0
      %1218 = vmatprep.subr.bf16.mxu0 0
      %1219 = vmatpush1.bf16.msra.mxu0 0
      %1220 = vmatprep.subr.bf16.mxu0 0
      %1221 = vmatpush1.bf16.msra.mxu0 0
      %1222 = vmatprep.subr.bf16.mxu0 %v1190
      %1223 = vmatpush1.bf16.msra.mxu0 %v1187
      %1224 = vmatprep.subr.bf16.mxu0 %v1163
      %1225 = vmatpush1.bf16.msra.mxu0 %v1162
      %1226 = vmatprep.subr.bf16.mxu0 0
      %1227 = vmatpush2.bf16.msra.mxu0 0
      %1228 = vmatprep.subr.bf16.mxu0 0
      %1229 = vmatpush2.bf16.msra.mxu0 0
      %1230 = vmatprep.subr.bf16.mxu0 0
      %1231 = vmatpush2.bf16.msra.mxu0 0
      %1232 = vmatprep.subr.bf16.mxu0 0
      %1233 = vmatpush2.bf16.msra.mxu0 0
      %1234 = vmatprep.subr.bf16.mxu0 0
      %1235 = vmatpush2.bf16.msra.mxu0 0
      %1236 = vmatprep.subr.bf16.mxu0 0
      %1237 = vmatpush2.bf16.msra.mxu0 0
      %1238 = vmatprep.subr.bf16.mxu0 0
      %1239 = vmatpush2.bf16.msra.mxu0 0
      %1240 = vmatprep.subr.bf16.mxu0 0
      %1241 = vmatpush2.bf16.msra.mxu0 0
      %1242 = vmatprep.mubr.bf16.mxu0 0
      %1243 = vmatmul.mubr.bf16.gmra.mxu0 %v480
      %v1244 = vpop.f32.mrf.mxu0
      %v1245 = vadd.f32 %v394, %v1244
      %v1246 = vpop.f32.mrf.mxu0
      %v1247 = vadd.f32 %v394, %v1246
      %v1248 = vpop.f32.mrf.mxu0
      %v1249 = vadd.f32 %v399, %v1248
      %v1250 = vpop.f32.mrf.mxu0
      %v1251 = vadd.f32 %v399, %v1250
      %1252 = vdwg.mxu0
      %1253 = vmatprep.subr.bf16.mxu0 0
      %1254 = vmatpush1.bf16.msra.mxu0 0
      %1255 = vmatprep.subr.bf16.mxu0 0
      %1256 = vmatpush1.bf16.msra.mxu0 0
      %1257 = vmatprep.subr.bf16.mxu0 0
      %1258 = vmatpush1.bf16.msra.mxu0 0
      %1259 = vmatprep.subr.bf16.mxu0 0
      %1260 = vmatpush1.bf16.msra.mxu0 0
      %1261 = vmatprep.subr.bf16.mxu0 0
      %1262 = vmatpush1.bf16.msra.mxu0 0
      %1263 = vmatprep.subr.bf16.mxu0 0
      %1264 = vmatpush1.bf16.msra.mxu0 0
      %1265 = vmatprep.subr.bf16.mxu0 %v1196
      %1266 = vmatpush1.bf16.msra.mxu0 %v1193
      %1267 = vmatprep.subr.bf16.mxu0 %v1165
      %1268 = vmatpush1.bf16.msra.mxu0 %v1164
      %1269 = vmatprep.subr.bf16.mxu0 0
      %1270 = vmatpush2.bf16.msra.mxu0 0
      %1271 = vmatprep.subr.bf16.mxu0 0
      %1272 = vmatpush2.bf16.msra.mxu0 0
      %1273 = vmatprep.subr.bf16.mxu0 0
      %1274 = vmatpush2.bf16.msra.mxu0 0
      %1275 = vmatprep.subr.bf16.mxu0 0
      %1276 = vmatpush2.bf16.msra.mxu0 0
      %1277 = vmatprep.subr.bf16.mxu0 0
      %1278 = vmatpush2.bf16.msra.mxu0 0
      %1279 = vmatprep.subr.bf16.mxu0 0
      %1280 = vmatpush2.bf16.msra.mxu0 0
      %1281 = vmatprep.subr.bf16.mxu0 0
      %1282 = vmatpush2.bf16.msra.mxu0 0
      %1283 = vmatprep.subr.bf16.mxu0 0
      %1284 = vmatpush2.bf16.msra.mxu0 0
      %1285 = vmatprep.mubr.bf16.mxu0 0
      %1286 = vmatmul.mubr.bf16.gmra.mxu0 %v480
      %v1287 = vpop.f32.mrf.mxu0
      %v1288 = vadd.f32 %v394, %v1287
      %v1289 = vpop.f32.mrf.mxu0
      %v1290 = vadd.f32 %v394, %v1289
      %v1291 = vpop.f32.mrf.mxu0
      %v1292 = vadd.f32 %v399, %v1291
      %v1293 = vpop.f32.mrf.mxu0
      %v1294 = vadd.f32 %v399, %v1293
      %1295 = vdwg.mxu0
      %1296 = vmatprep.subr.bf16.mxu0 0
      %1297 = vmatpush1.bf16.msra.mxu0 0
      %1298 = vmatprep.subr.bf16.mxu0 0
      %1299 = vmatpush1.bf16.msra.mxu0 0
      %1300 = vmatprep.subr.bf16.mxu0 0
      %1301 = vmatpush1.bf16.msra.mxu0 0
      %1302 = vmatprep.subr.bf16.mxu0 0
      %1303 = vmatpush1.bf16.msra.mxu0 0
      %1304 = vmatprep.subr.bf16.mxu0 0
      %1305 = vmatpush1.bf16.msra.mxu0 0
      %1306 = vmatprep.subr.bf16.mxu0 0
      %1307 = vmatpush1.bf16.msra.mxu0 0
      %1308 = vmatprep.subr.bf16.mxu0 %v1202
      %1309 = vmatpush1.bf16.msra.mxu0 %v1199
      %1310 = vmatprep.subr.bf16.mxu0 %v1167
      %1311 = vmatpush1.bf16.msra.mxu0 %v1166
      %1312 = vmatprep.subr.bf16.mxu0 0
      %1313 = vmatpush2.bf16.msra.mxu0 0
      %1314 = vmatprep.subr.bf16.mxu0 0
      %1315 = vmatpush2.bf16.msra.mxu0 0
      %1316 = vmatprep.subr.bf16.mxu0 0
      %1317 = vmatpush2.bf16.msra.mxu0 0
      %1318 = vmatprep.subr.bf16.mxu0 0
      %1319 = vmatpush2.bf16.msra.mxu0 0
      %1320 = vmatprep.subr.bf16.mxu0 0
      %1321 = vmatpush2.bf16.msra.mxu0 0
      %1322 = vmatprep.subr.bf16.mxu0 0
      %1323 = vmatpush2.bf16.msra.mxu0 0
      %1324 = vmatprep.subr.bf16.mxu0 0
      %1325 = vmatpush2.bf16.msra.mxu0 0
      %1326 = vmatprep.subr.bf16.mxu0 0
      %1327 = vmatpush2.bf16.msra.mxu0 0
      %1328 = vmatprep.mubr.bf16.mxu0 0
      %1329 = vmatmul.mubr.bf16.gmra.mxu0 %v480
      %v1330 = vpop.f32.mrf.mxu0
      %v1331 = vadd.f32 %v394, %v1330
      %v1332 = vpop.f32.mrf.mxu0
      %v1333 = vadd.f32 %v394, %v1332
      %v1334 = vpop.f32.mrf.mxu0
      %v1335 = vadd.f32 %v399, %v1334
      %v1336 = vpop.f32.mrf.mxu0
      %v1337 = vadd.f32 %v399, %v1336
      %1338 = vdwg.mxu0
      %1339 = vmatprep.subr.bf16.mxu0 0
      %1340 = vmatpush1.bf16.msra.mxu0 0
      %1341 = vmatprep.subr.bf16.mxu0 0
      %1342 = vmatpush1.bf16.msra.mxu0 0
      %1343 = vmatprep.subr.bf16.mxu0 0
      %1344 = vmatpush1.bf16.msra.mxu0 0
      %1345 = vmatprep.subr.bf16.mxu0 0
      %1346 = vmatpush1.bf16.msra.mxu0 0
      %1347 = vmatprep.subr.bf16.mxu0 0
      %1348 = vmatpush1.bf16.msra.mxu0 0
      %1349 = vmatprep.subr.bf16.mxu0 0
      %1350 = vmatpush1.bf16.msra.mxu0 0
      %1351 = vmatprep.subr.bf16.mxu0 %v1208
      %1352 = vmatpush1.bf16.msra.mxu0 %v1205
      %1353 = vmatprep.subr.bf16.mxu0 %v1169
      %1354 = vmatpush1.bf16.msra.mxu0 %v1168
      %1355 = vmatprep.subr.bf16.mxu0 0
      %1356 = vmatpush2.bf16.msra.mxu0 0
      %1357 = vmatprep.subr.bf16.mxu0 0
      %1358 = vmatpush2.bf16.msra.mxu0 0
      %1359 = vmatprep.subr.bf16.mxu0 0
      %1360 = vmatpush2.bf16.msra.mxu0 0
      %1361 = vmatprep.subr.bf16.mxu0 0
      %1362 = vmatpush2.bf16.msra.mxu0 0
      %1363 = vmatprep.subr.bf16.mxu0 0
      %1364 = vmatpush2.bf16.msra.mxu0 0
      %1365 = vmatprep.subr.bf16.mxu0 0
      %1366 = vmatpush2.bf16.msra.mxu0 0
      %1367 = vmatprep.subr.bf16.mxu0 0
      %1368 = vmatpush2.bf16.msra.mxu0 0
      %1369 = vmatprep.subr.bf16.mxu0 0
      %1370 = vmatpush2.bf16.msra.mxu0 0
      %1371 = vmatprep.mubr.bf16.mxu0 0
      %1372 = vmatmul.mubr.bf16.gmra.mxu0 %v480
      %v1373 = vpop.f32.mrf.mxu0
      %v1374 = vadd.f32 %v394, %v1373
      %v1375 = vpop.f32.mrf.mxu0
      %v1376 = vadd.f32 %v394, %v1375
      %v1377 = vpop.f32.mrf.mxu0
      %v1378 = vadd.f32 %v399, %v1377
      %v1379 = vpop.f32.mrf.mxu0
      %v1380 = vadd.f32 %v399, %v1379
      %1381 = vdwg.mxu0
      %v1382 = vmax.f32 %v1245, 0.0
      %v1383 = vmax.f32 %v1247, 0.0
      %v1384 = vmax.f32 %v1288, 0.0
      %v1385 = vmax.f32 %v1290, 0.0
      %v1386 = vmax.f32 %v1331, 0.0
      %v1387 = vmax.f32 %v1333, 0.0
      %v1388 = vmax.f32 %v1374, 0.0
      %v1389 = vmax.f32 %v1376, 0.0
      %v1390 = vmax.f32 %v1249, 0.0
      %v1391 = vmax.f32 %v1251, 0.0
      %v1392 = vmax.f32 %v1292, 0.0
      %v1393 = vmax.f32 %v1294, 0.0
      %v1394 = vmax.f32 %v1335, 0.0
      %v1395 = vmax.f32 %v1337, 0.0
      %v1396 = vmax.f32 %v1378, 0.0
      %v1397 = vmax.f32 %v1380, 0.0
      %v1398 = vmul.f32 %v1382, %v701
      %v1399 = vmul.f32 %v1383, %v701
      %v1400 = vmul.f32 %v1384, %v701
      %v1401 = vmul.f32 %v1385, %v701
      %v1402 = vmul.f32 %v1386, %v701
      %v1403 = vmul.f32 %v1387, %v701
      %v1404 = vmul.f32 %v1388, %v701
      %v1405 = vmul.f32 %v1389, %v701
      %v1406 = vmul.f32 %v1390, %v706
      %v1407 = vmul.f32 %v1391, %v706
      %v1408 = vmul.f32 %v1392, %v706
      %v1409 = vmul.f32 %v1393, %v706
      %v1410 = vmul.f32 %v1394, %v706
      %v1411 = vmul.f32 %v1395, %v706
      %v1412 = vmul.f32 %v1396, %v706
      %v1413 = vmul.f32 %v1397, %v706
      %v1414 = vadd.f32 %v1398, %v727
      %v1415 = vadd.f32 %v1399, %v727
      %v1416 = vadd.f32 %v1400, %v727
      %v1417 = vadd.f32 %v1401, %v727
      %v1418 = vadd.f32 %v1402, %v727
      %v1419 = vadd.f32 %v1403, %v727
      %v1420 = vadd.f32 %v1404, %v727
      %v1421 = vadd.f32 %v1405, %v727
      %v1422 = vadd.f32 %v1406, %v732
      %v1423 = vadd.f32 %v1407, %v732
      %v1424 = vadd.f32 %v1408, %v732
      %v1425 = vadd.f32 %v1409, %v732
      %v1426 = vadd.f32 %v1410, %v732
      %v1427 = vadd.f32 %v1411, %v732
      %v1428 = vadd.f32 %v1412, %v732
      %v1429 = vadd.f32 %v1413, %v732
      %v1430 = vmax.f32 %v1082, %v1414
      %v1431 = vmax.f32 %v1083, %v1415
      %v1432 = vmax.f32 %v1084, %v1416
      %v1433 = vmax.f32 %v1085, %v1417
      %v1434 = vmax.f32 %v1086, %v1418
      %v1435 = vmax.f32 %v1087, %v1419
      %v1436 = vmax.f32 %v1088, %v1420
      %v1437 = vmax.f32 %v1089, %v1421
      %v1438 = vmax.f32 %v1090, %v1422
      %v1439 = vmax.f32 %v1091, %v1423
      %v1440 = vmax.f32 %v1092, %v1424
      %v1441 = vmax.f32 %v1093, %v1425
      %v1442 = vmax.f32 %v1094, %v1426
      %v1443 = vmax.f32 %v1095, %v1427
      %v1444 = vmax.f32 %v1096, %v1428
      %v1445 = vmax.f32 %v1097, %v1429
      %v1446 = vld [vmem:[%s360] sm:$0xff]
      %v1447 = vld [vmem:[%s360 + $0x8] sm:$0xff]
      %v1448 = vld [vmem:[%s360 + $0x10] sm:$0xff]
      %v1449 = vld [vmem:[%s360 + $0x18] sm:$0xff]
      %v1450 = vld [vmem:[%s360 + $0x20] sm:$0xff]
      %v1451 = vld [vmem:[%s360 + $0x28] sm:$0xff]
      %v1452 = vld [vmem:[%s360 + $0x30] sm:$0xff]
      %v1453 = vld [vmem:[%s360 + $0x38] sm:$0xff]
      %v1454 = vld [vmem:[%s360 + $0x40] sm:$0xff]
      %v1455 = vld [vmem:[%s360 + $0x48] sm:$0xff]
      %v1456 = vld [vmem:[%s360 + $0x50] sm:$0xff]
      %v1457 = vld [vmem:[%s360 + $0x58] sm:$0xff]
      %v1458 = vld [vmem:[%s360 + $0x60] sm:$0x33]
      %v1459 = vld [vmem:[%s360 + $0x68] sm:$0x33]
      %v1460 = vld [vmem:[%s360 + $0x70] sm:$0x33]
      %v1461 = vld [vmem:[%s360 + $0x78] sm:$0x33]
      %v1478 = vunpack.c.l.b16 %v1446
      %v1479 = vunpack.c.h.b16 %v1446
      %v1480 = vunpack.c.l.b16 %v1447
      %v1481 = vunpack.c.h.b16 %v1447
      %v1482 = vunpack.c.l.b16 %v1448
      %v1483 = vunpack.c.h.b16 %v1448
      %v1484 = vunpack.c.l.b16 %v1449
      %v1485 = vunpack.c.h.b16 %v1449
      %v1486 = vunpack.c.l.b16 %v1450
      %v1487 = vunpack.c.h.b16 %v1450
      %v1488 = vunpack.c.l.b16 %v1451
      %v1489 = vunpack.c.h.b16 %v1451
      %v1490 = vunpack.c.l.b16 %v1452
      %v1491 = vunpack.c.h.b16 %v1452
      %v1492 = vunpack.c.l.b16 %v1453
      %v1493 = vunpack.c.h.b16 %v1453
      %v1494 = vunpack.c.l.b16 %v1454
      %v1495 = vunpack.c.h.b16 %v1454
      %v1496 = vunpack.c.l.b16 %v1455
      %v1497 = vunpack.c.h.b16 %v1455
      %v1498 = vunpack.c.l.b16 %v1456
      %v1499 = vunpack.c.h.b16 %v1456
      %v1500 = vunpack.c.l.b16 %v1457
      %v1501 = vunpack.c.h.b16 %v1457
      %v1502 = vunpack.c.l.b16 %v1458
      %v1503 = vunpack.c.h.b16 %v1458
      %v1504 = vunpack.c.l.b16 %v1459
      %v1505 = vunpack.c.h.b16 %v1459
      %v1506 = vunpack.c.l.b16 %v1460
      %v1507 = vunpack.c.h.b16 %v1460
      %v1508 = vunpack.c.l.b16 %v1461
      %v1509 = vunpack.c.h.b16 %v1461
      %v1510 = vpack.c.b16 %v1486, %v1478
      %v1511 = vpack.c.b16 %v1487, %v1479
      %v1512 = vpack.c.b16 %v1488, %v1480
      %v1513 = vpack.c.b16 %v1489, %v1481
      %v1514 = vpack.c.b16 %v1490, %v1482
      %v1515 = vpack.c.b16 %v1491, %v1483
      %v1516 = vpack.c.b16 %v1492, %v1484
      %v1517 = vpack.c.b16 %v1493, %v1485
      %v1518 = vpack.c.b16 %v1502, %v1494
      %v1519 = vpack.c.b16 %v1503, %v1495
      %v1520 = vpack.c.b16 %v1504, %v1496
      %v1521 = vpack.c.b16 %v1505, %v1497
      %v1522 = vpack.c.b16 %v1506, %v1498
      %v1523 = vpack.c.b16 %v1507, %v1499
      %v1524 = vpack.c.b16 %v1508, %v1500
      %v1525 = vpack.c.b16 %v1509, %v1501
      %v1535 = vand.u32 %v1518, %v485
      %v1538 = vand.u32 %v1519, %v485
      %v1541 = vand.u32 %v1520, %v485
      %v1544 = vand.u32 %v1521, %v485
      %v1547 = vand.u32 %v1522, %v485
      %v1550 = vand.u32 %v1523, %v485
      %v1553 = vand.u32 %v1524, %v485
      %v1556 = vand.u32 %v1525, %v485
      %1558 = vmatprep.subr.bf16.mxu0 0
      %1559 = vmatpush1.bf16.msra.mxu0 0
      %1560 = vmatprep.subr.bf16.mxu0 0
      %1561 = vmatpush1.bf16.msra.mxu0 0
      %1562 = vmatprep.subr.bf16.mxu0 0
      %1563 = vmatpush1.bf16.msra.mxu0 0
      %1564 = vmatprep.subr.bf16.mxu0 0
      %1565 = vmatpush1.bf16.msra.mxu0 0
      %1566 = vmatprep.subr.bf16.mxu0 0
      %1567 = vmatpush1.bf16.msra.mxu0 0
      %1568 = vmatprep.subr.bf16.mxu0 0
      %1569 = vmatpush1.bf16.msra.mxu0 0
      %1570 = vmatprep.subr.bf16.mxu0 %v1538
      %1571 = vmatpush1.bf16.msra.mxu0 %v1535
      %1572 = vmatprep.subr.bf16.mxu0 %v1511
      %1573 = vmatpush1.bf16.msra.mxu0 %v1510
      %1574 = vmatprep.subr.bf16.mxu0 0
      %1575 = vmatpush2.bf16.msra.mxu0 0
      %1576 = vmatprep.subr.bf16.mxu0 0
      %1577 = vmatpush2.bf16.msra.mxu0 0
      %1578 = vmatprep.subr.bf16.mxu0 0
      %1579 = vmatpush2.bf16.msra.mxu0 0
      %1580 = vmatprep.subr.bf16.mxu0 0
      %1581 = vmatpush2.bf16.msra.mxu0 0
      %1582 = vmatprep.subr.bf16.mxu0 0
      %1583 = vmatpush2.bf16.msra.mxu0 0
      %1584 = vmatprep.subr.bf16.mxu0 0
      %1585 = vmatpush2.bf16.msra.mxu0 0
      %1586 = vmatprep.subr.bf16.mxu0 0
      %1587 = vmatpush2.bf16.msra.mxu0 0
      %1588 = vmatprep.subr.bf16.mxu0 0
      %1589 = vmatpush2.bf16.msra.mxu0 0
      %1590 = vmatprep.mubr.bf16.mxu0 0
      %1591 = vmatmul.mubr.bf16.gmra.mxu0 %v480
      %v1592 = vpop.f32.mrf.mxu0
      %v1593 = vadd.f32 %v394, %v1592
      %v1594 = vpop.f32.mrf.mxu0
      %v1595 = vadd.f32 %v394, %v1594
      %v1596 = vpop.f32.mrf.mxu0
      %v1597 = vadd.f32 %v399, %v1596
      %v1598 = vpop.f32.mrf.mxu0
      %v1599 = vadd.f32 %v399, %v1598
      %1600 = vdwg.mxu0
      %1601 = vmatprep.subr.bf16.mxu0 0
      %1602 = vmatpush1.bf16.msra.mxu0 0
      %1603 = vmatprep.subr.bf16.mxu0 0
      %1604 = vmatpush1.bf16.msra.mxu0 0
      %1605 = vmatprep.subr.bf16.mxu0 0
      %1606 = vmatpush1.bf16.msra.mxu0 0
      %1607 = vmatprep.subr.bf16.mxu0 0
      %1608 = vmatpush1.bf16.msra.mxu0 0
      %1609 = vmatprep.subr.bf16.mxu0 0
      %1610 = vmatpush1.bf16.msra.mxu0 0
      %1611 = vmatprep.subr.bf16.mxu0 0
      %1612 = vmatpush1.bf16.msra.mxu0 0
      %1613 = vmatprep.subr.bf16.mxu0 %v1544
      %1614 = vmatpush1.bf16.msra.mxu0 %v1541
      %1615 = vmatprep.subr.bf16.mxu0 %v1513
      %1616 = vmatpush1.bf16.msra.mxu0 %v1512
      %1617 = vmatprep.subr.bf16.mxu0 0
      %1618 = vmatpush2.bf16.msra.mxu0 0
      %1619 = vmatprep.subr.bf16.mxu0 0
      %1620 = vmatpush2.bf16.msra.mxu0 0
      %1621 = vmatprep.subr.bf16.mxu0 0
      %1622 = vmatpush2.bf16.msra.mxu0 0
      %1623 = vmatprep.subr.bf16.mxu0 0
      %1624 = vmatpush2.bf16.msra.mxu0 0
      %1625 = vmatprep.subr.bf16.mxu0 0
      %1626 = vmatpush2.bf16.msra.mxu0 0
      %1627 = vmatprep.subr.bf16.mxu0 0
      %1628 = vmatpush2.bf16.msra.mxu0 0
      %1629 = vmatprep.subr.bf16.mxu0 0
      %1630 = vmatpush2.bf16.msra.mxu0 0
      %1631 = vmatprep.subr.bf16.mxu0 0
      %1632 = vmatpush2.bf16.msra.mxu0 0
      %1633 = vmatprep.mubr.bf16.mxu0 0
      %1634 = vmatmul.mubr.bf16.gmra.mxu0 %v480
      %v1635 = vpop.f32.mrf.mxu0
      %v1636 = vadd.f32 %v394, %v1635
      %v1637 = vpop.f32.mrf.mxu0
      %v1638 = vadd.f32 %v394, %v1637
      %v1639 = vpop.f32.mrf.mxu0
      %v1640 = vadd.f32 %v399, %v1639
      %v1641 = vpop.f32.mrf.mxu0
      %v1642 = vadd.f32 %v399, %v1641
      %1643 = vdwg.mxu0
      %1644 = vmatprep.subr.bf16.mxu0 0
      %1645 = vmatpush1.bf16.msra.mxu0 0
      %1646 = vmatprep.subr.bf16.mxu0 0
      %1647 = vmatpush1.bf16.msra.mxu0 0
      %1648 = vmatprep.subr.bf16.mxu0 0
      %1649 = vmatpush1.bf16.msra.mxu0 0
      %1650 = vmatprep.subr.bf16.mxu0 0
      %1651 = vmatpush1.bf16.msra.mxu0 0
      %1652 = vmatprep.subr.bf16.mxu0 0
      %1653 = vmatpush1.bf16.msra.mxu0 0
      %1654 = vmatprep.subr.bf16.mxu0 0
      %1655 = vmatpush1.bf16.msra.mxu0 0
      %1656 = vmatprep.subr.bf16.mxu0 %v1550
      %1657 = vmatpush1.bf16.msra.mxu0 %v1547
      %1658 = vmatprep.subr.bf16.mxu0 %v1515
      %1659 = vmatpush1.bf16.msra.mxu0 %v1514
      %1660 = vmatprep.subr.bf16.mxu0 0
      %1661 = vmatpush2.bf16.msra.mxu0 0
      %1662 = vmatprep.subr.bf16.mxu0 0
      %1663 = vmatpush2.bf16.msra.mxu0 0
      %1664 = vmatprep.subr.bf16.mxu0 0
      %1665 = vmatpush2.bf16.msra.mxu0 0
      %1666 = vmatprep.subr.bf16.mxu0 0
      %1667 = vmatpush2.bf16.msra.mxu0 0
      %1668 = vmatprep.subr.bf16.mxu0 0
      %1669 = vmatpush2.bf16.msra.mxu0 0
      %1670 = vmatprep.subr.bf16.mxu0 0
      %1671 = vmatpush2.bf16.msra.mxu0 0
      %1672 = vmatprep.subr.bf16.mxu0 0
      %1673 = vmatpush2.bf16.msra.mxu0 0
      %1674 = vmatprep.subr.bf16.mxu0 0
      %1675 = vmatpush2.bf16.msra.mxu0 0
      %1676 = vmatprep.mubr.bf16.mxu0 0
      %1677 = vmatmul.mubr.bf16.gmra.mxu0 %v480
      %v1678 = vpop.f32.mrf.mxu0
      %v1679 = vadd.f32 %v394, %v1678
      %v1680 = vpop.f32.mrf.mxu0
      %v1681 = vadd.f32 %v394, %v1680
      %v1682 = vpop.f32.mrf.mxu0
      %v1683 = vadd.f32 %v399, %v1682
      %v1684 = vpop.f32.mrf.mxu0
      %v1685 = vadd.f32 %v399, %v1684
      %1686 = vdwg.mxu0
      %1687 = vmatprep.subr.bf16.mxu0 0
      %1688 = vmatpush1.bf16.msra.mxu0 0
      %1689 = vmatprep.subr.bf16.mxu0 0
      %1690 = vmatpush1.bf16.msra.mxu0 0
      %1691 = vmatprep.subr.bf16.mxu0 0
      %1692 = vmatpush1.bf16.msra.mxu0 0
      %1693 = vmatprep.subr.bf16.mxu0 0
      %1694 = vmatpush1.bf16.msra.mxu0 0
      %1695 = vmatprep.subr.bf16.mxu0 0
      %1696 = vmatpush1.bf16.msra.mxu0 0
      %1697 = vmatprep.subr.bf16.mxu0 0
      %1698 = vmatpush1.bf16.msra.mxu0 0
      %1699 = vmatprep.subr.bf16.mxu0 %v1556
      %1700 = vmatpush1.bf16.msra.mxu0 %v1553
      %1701 = vmatprep.subr.bf16.mxu0 %v1517
      %1702 = vmatpush1.bf16.msra.mxu0 %v1516
      %1703 = vmatprep.subr.bf16.mxu0 0
      %1704 = vmatpush2.bf16.msra.mxu0 0
      %1705 = vmatprep.subr.bf16.mxu0 0
      %1706 = vmatpush2.bf16.msra.mxu0 0
      %1707 = vmatprep.subr.bf16.mxu0 0
      %1708 = vmatpush2.bf16.msra.mxu0 0
      %1709 = vmatprep.subr.bf16.mxu0 0
      %1710 = vmatpush2.bf16.msra.mxu0 0
      %1711 = vmatprep.subr.bf16.mxu0 0
      %1712 = vmatpush2.bf16.msra.mxu0 0
      %1713 = vmatprep.subr.bf16.mxu0 0
      %1714 = vmatpush2.bf16.msra.mxu0 0
      %1715 = vmatprep.subr.bf16.mxu0 0
      %1716 = vmatpush2.bf16.msra.mxu0 0
      %1717 = vmatprep.subr.bf16.mxu0 0
      %1718 = vmatpush2.bf16.msra.mxu0 0
      %1719 = vmatprep.mubr.bf16.mxu0 0
      %1720 = vmatmul.mubr.bf16.gmra.mxu0 %v480
      %v1721 = vpop.f32.mrf.mxu0
      %v1722 = vadd.f32 %v394, %v1721
      %v1723 = vpop.f32.mrf.mxu0
      %v1724 = vadd.f32 %v394, %v1723
      %v1725 = vpop.f32.mrf.mxu0
      %v1726 = vadd.f32 %v399, %v1725
      %v1727 = vpop.f32.mrf.mxu0
      %v1728 = vadd.f32 %v399, %v1727
      %1729 = vdwg.mxu0
      %v1730 = vmax.f32 %v1593, 0.0
      %v1731 = vmax.f32 %v1595, 0.0
      %v1732 = vmax.f32 %v1636, 0.0
      %v1733 = vmax.f32 %v1638, 0.0
      %v1734 = vmax.f32 %v1679, 0.0
      %v1735 = vmax.f32 %v1681, 0.0
      %v1736 = vmax.f32 %v1722, 0.0
      %v1737 = vmax.f32 %v1724, 0.0
      %v1738 = vmax.f32 %v1597, 0.0
      %v1739 = vmax.f32 %v1599, 0.0
      %v1740 = vmax.f32 %v1640, 0.0
      %v1741 = vmax.f32 %v1642, 0.0
      %v1742 = vmax.f32 %v1683, 0.0
      %v1743 = vmax.f32 %v1685, 0.0
      %v1744 = vmax.f32 %v1726, 0.0
      %v1745 = vmax.f32 %v1728, 0.0
      %v1746 = vmul.f32 %v1730, %v701
      %v1747 = vmul.f32 %v1731, %v701
      %v1748 = vmul.f32 %v1732, %v701
      %v1749 = vmul.f32 %v1733, %v701
      %v1750 = vmul.f32 %v1734, %v701
      %v1751 = vmul.f32 %v1735, %v701
      %v1752 = vmul.f32 %v1736, %v701
      %v1753 = vmul.f32 %v1737, %v701
      %v1754 = vmul.f32 %v1738, %v706
      %v1755 = vmul.f32 %v1739, %v706
      %v1756 = vmul.f32 %v1740, %v706
      %v1757 = vmul.f32 %v1741, %v706
      %v1758 = vmul.f32 %v1742, %v706
      %v1759 = vmul.f32 %v1743, %v706
      %v1760 = vmul.f32 %v1744, %v706
      %v1761 = vmul.f32 %v1745, %v706
      %v1762 = vadd.f32 %v1746, %v727
      %v1763 = vadd.f32 %v1747, %v727
      %v1764 = vadd.f32 %v1748, %v727
      %v1765 = vadd.f32 %v1749, %v727
      %v1766 = vadd.f32 %v1750, %v727
      %v1767 = vadd.f32 %v1751, %v727
      %v1768 = vadd.f32 %v1752, %v727
      %v1769 = vadd.f32 %v1753, %v727
      %v1770 = vadd.f32 %v1754, %v732
      %v1771 = vadd.f32 %v1755, %v732
      %v1772 = vadd.f32 %v1756, %v732
      %v1773 = vadd.f32 %v1757, %v732
      %v1774 = vadd.f32 %v1758, %v732
      %v1775 = vadd.f32 %v1759, %v732
      %v1776 = vadd.f32 %v1760, %v732
      %v1777 = vadd.f32 %v1761, %v732
      %v1778 = vmax.f32 %v1430, %v1762
      %v1779 = vmax.f32 %v1431, %v1763
      %v1780 = vmax.f32 %v1432, %v1764
      %v1781 = vmax.f32 %v1433, %v1765
      %v1782 = vmax.f32 %v1434, %v1766
      %v1783 = vmax.f32 %v1435, %v1767
      %v1784 = vmax.f32 %v1436, %v1768
      %v1785 = vmax.f32 %v1437, %v1769
      %v1786 = vmax.f32 %v1438, %v1770
      %v1787 = vmax.f32 %v1439, %v1771
      %v1788 = vmax.f32 %v1440, %v1772
      %v1789 = vmax.f32 %v1441, %v1773
      %v1790 = vmax.f32 %v1442, %v1774
      %v1791 = vmax.f32 %v1443, %v1775
      %v1792 = vmax.f32 %v1444, %v1776
      %v1793 = vmax.f32 %v1445, %v1777
      %v1794 = vpack.c.bf16 %v1786, %v1778
      %v1795 = vpack.c.bf16 %v1787, %v1779
      %v1796 = vpack.c.bf16 %v1788, %v1780
      %v1797 = vpack.c.bf16 %v1789, %v1781
      %v1798 = vpack.c.bf16 %v1790, %v1782
      %v1799 = vpack.c.bf16 %v1791, %v1783
      %v1800 = vpack.c.bf16 %v1792, %v1784
      %v1801 = vpack.c.bf16 %v1793, %v1785
      %v1810 = vunpack.c.l.b16 %v1794
      %v1811 = vunpack.c.l.b16 %v1795
      %v1812 = vunpack.c.l.b16 %v1796
      %v1813 = vunpack.c.l.b16 %v1797
      %v1814 = vunpack.c.l.b16 %v1798
      %v1815 = vunpack.c.l.b16 %v1799
      %v1816 = vunpack.c.l.b16 %v1800
      %v1817 = vunpack.c.l.b16 %v1801
      %v1818 = vunpack.c.h.b16 %v1794
      %v1819 = vunpack.c.h.b16 %v1795
      %v1820 = vunpack.c.h.b16 %v1796
      %v1821 = vunpack.c.h.b16 %v1797
      %v1822 = vunpack.c.h.b16 %v1798
      %v1823 = vunpack.c.h.b16 %v1799
      %v1824 = vunpack.c.h.b16 %v1800
      %v1825 = vunpack.c.h.b16 %v1801
      %v1826 = vpack.c.b16 %v1811, %v1810
      %v1827 = vpack.c.b16 %v1813, %v1812
      %v1828 = vpack.c.b16 %v1815, %v1814
      %v1829 = vpack.c.b16 %v1817, %v1816
      %v1830 = vpack.c.b16 %v1819, %v1818
      %v1831 = vpack.c.b16 %v1821, %v1820
      %v1832 = vpack.c.b16 %v1823, %v1822
      %v1833 = vpack.c.b16 %v1825, %v1824
      %1842 = vst [vmem:[%s365] sm:$0xff] %v1826
      %1843 = vst [vmem:[%s365 + $0x8] sm:$0xff] %v1827
      %1844 = vst [vmem:[%s365 + $0x10] sm:$0xff] %v1828
      %vm1845 = vcmask 1043456
      %vm1846 = vcmask 531460
      %vm1847 = vmor %vm1846, %vm1845
      %1848 = vst.msk [vmem:[%s365 + $0x18] sm:$0xff] %vm1847, %v1829
      %1849 = vst [vmem:[%s365 + $0x20] sm:$0xff] %v1830
      %1850 = vst [vmem:[%s365 + $0x28] sm:$0xff] %v1831
      %1851 = vst [vmem:[%s365 + $0x30] sm:$0xff] %v1832
      %1852 = vst.msk [vmem:[%s365 + $0x38] sm:$0xff] %vm1847, %v1833
      %p1853 = scmp.lt.s32.totalorder %s19, 1
      %s1854 = scalar_select %p1853, %s19, 1
      %s1855 = smul.addr %s1854, 16
      %s1856 = smul.addr %s1855, 4
      %s1857 = scalar_lea.vmem %s8, %s1856
      // Predicated region
      $region53: #{net_forward.3} parent=51 // pred_check
        %p1858 = pneg %p225
      $region54: #{net_forward.3} parent=51 // pred_check_branch
        %1860 = sbr.rel (%p1858) target = $region56
      $region55: #{net_forward.3} parent=51 // pred_region
        _
      $region56: #{net_forward.3} parent=51 // pred_fallthru
        _
    $region52: #{net_forward.3} parent=5 // pred_fallthru
      _
    %p1861 = scmp.le.s32.totalorder 2, %s14
    // Predicated region
    $region57: #{net_forward.3} parent=5 // pred_check
      %p1862 = pneg %p1861
    $region58: #{net_forward.3} parent=5 // pred_check_branch
      %1864 = sbr.rel (%p1862) target = $region60
    $region59: #{net_forward.3} parent=5 // pred_region
      %s1865 = ssub.s32 %s14, 2
      // Predicated region
      $region61: #{net_forward.3} parent=59 // pred_check
        %p1866 = pneg %p231
      $region62: #{net_forward.3} parent=59 // pred_check_branch
        %1868 = sbr.rel (%p1866) target = $region64
      $region63: #{net_forward.3} parent=59 // pred_region
        %p1869 = scmp.lt.s32.totalorder %s20, 1
        %s1870 = scalar_select %p1869, %s20, 1
        %s1871 = smul.addr %s1870, 16
        %s1872 = smul.addr %s1871, 4
        %s1873 = scalar_lea.vmem %s8, %s1872
      $region64: #{net_forward.3} parent=59 // pred_fallthru
        _
    $region60: #{net_forward.3} parent=5 // pred_fallthru
      _
  $region6: #{net_forward.3} parent=0 // loop_footer
    %s18 = sadd.s32 1, %s14
  $region7: #{net_forward.3} parent=0 // loop_footer_branch
    %13 = sbr.rel target = $region3
  $region8: #{net_forward.3} parent=0 // loop_exit
    _

// kernel: net_forward.4
$region0: #{net_forward.4}
  #allocation0 [shape = 'u32[]', space=smem, size = 0x4, offset = 0x4, fixed_abs, tag = 'smem constant byte address 0x4 - core index']
  #allocation1 [shape = 'u32[144,128]{1,0:T(1,128)}', space=vmem, size = 0x12000, scoped, tag = 'internal scratch']
  %s0 = inlined_call_operand.vmem [shape: bf16[2,144,196], index: 0, kind: input, shape index: {}]
  %s1 = inlined_call_operand.vmem [shape: bf16[2,144,196], index: 1, kind: input, shape index: {}]
  %s2 = inlined_call_operand.vmem [shape: bf16[2,144,196], index: 2, kind: input, shape index: {}]
  %s3 = inlined_call_operand.vmem [shape: bf16[2,144,196], index: 3, kind: input, shape index: {}]
  %s4 = inlined_call_operand.vmem [shape: bf16[32,144], index: 4, kind: input, shape index: {}]
  %s5 = inlined_call_operand.vmem [shape: f32[32,1], index: 5, kind: input, shape index: {}]
  %s6 = inlined_call_operand.vmem [shape: f32[32,1], index: 6, kind: input, shape index: {}]
  %s7 = inlined_call_operand.vmem [shape: f32[32,1], index: 7, kind: input, shape index: {}]
  %s8 = inlined_call_operand.vmem [shape: bf16[2,32,196], index: 8, kind: output, shape index: {}]
  %s9 = sld [smem:[#allocation0]]
  $region65: #{net_forward.4} parent=0
    _
  %s11 = ssub.s32 1, %s9
  %s12 = scalar_select 0, %s11, %s9
  loop: start=0, step=1, limit=4
  $region2: #{net_forward.4} parent=0 // loop_pre_header
    _
  $region3: #{net_forward.4} parent=0 // loop_header
    %s14 = sphi 0, %s18
    %p15 = scmp.ge.s32.totalorder %s14, 4
    %s24 = sphi 0, %s26
    %s27 = sphi 0, %s24
    %s28 = sphi 0, %s27
    %s44 = sphi 0, %s28
    %s50 = sphi 0, %s52
    %s53 = sphi 0, %s50
    %s54 = sphi 0, %s53
    %s70 = sphi 0, %s54
    %s76 = sphi 0, %s78
    %s79 = sphi 0, %s76
    %s80 = sphi 0, %s79
    %s96 = sphi 0, %s80
    %s102 = sphi 0, %s104
    %s105 = sphi 0, %s102
    %s106 = sphi 0, %s105
    %s122 = sphi 0, %s106
    %s126 = sphi 0, %s126
    %s128 = sphi 0, %s126
    %s129 = sphi 0, %s128
    %s143 = sphi 0, %s129
    %s147 = sphi 0, %s147
    %s149 = sphi 0, %s147
    %s150 = sphi 0, %s149
    %s164 = sphi 0, %s150
    %s168 = sphi 0, %s168
    %s170 = sphi 0, %s168
    %s171 = sphi 0, %s170
    %s185 = sphi 0, %s171
    %s189 = sphi 0, %s189
    %s191 = sphi 0, %s189
    %s192 = sphi 0, %s191
    %s206 = sphi 0, %s192
    %s212 = sphi 0, %s214
    %s215 = sphi 0, %s212
    %s216 = sphi 0, %s215
    %s232 = sphi 0, %s216
  $region4: #{net_forward.4} parent=0 // loop_header_branch
    %17 = sbr.rel (%p15) target = $region8
  $region5: #{net_forward.4} parent=0 // loop_body
    %s19 = ssub.s32 %s14, 1
    %s20 = ssub.s32 %s14, 2
    %s21 = sadd.s32 %s14, 1
    %s22 = ssub.s32 %s14, %s21
    %p23 = scmp.eq.s32.totalorder %s22, 0
    %s25 = sadd.s32 %s24, 1
    %s26 = scalar_select %p23, %s24, %s25
    %p29 = pneg %p23
    %p30 = scmp.eq.s32.totalorder %s14, 1
    %p31 = por %p29, %p30
    %p32 = scmp.ne.s32.totalorder %s24, %s27
    %p33 = scmp.eq.s32.totalorder %s14, 0
    %p34 = por %p32, %p33
    %p35 = scmp.ne.s32.totalorder %s24, %s27
    %p36 = scmp.eq.s32.totalorder %s19, 1
    %p37 = por %p35, %p36
    %p38 = scmp.ne.s32.totalorder %s27, %s28
    %p39 = scmp.eq.s32.totalorder %s19, 0
    %p40 = por %p38, %p39
    %p41 = scmp.ne.s32.totalorder %s27, %s28
    %p42 = scmp.eq.s32.totalorder %s20, 1
    %p43 = por %p41, %p42
    %p45 = scmp.ne.s32.totalorder %s28, %s44
    %p46 = scmp.eq.s32.totalorder %s20, 0
    %p47 = por %p45, %p46
    %s48 = ssub.s32 %s14, %s21
    %p49 = scmp.eq.s32.totalorder %s48, 0
    %s51 = sadd.s32 %s50, 1
    %s52 = scalar_select %p49, %s50, %s51
    %p55 = pneg %p49
    %p56 = scmp.eq.s32.totalorder %s14, 1
    %p57 = por %p55, %p56
    %p58 = scmp.ne.s32.totalorder %s50, %s53
    %p59 = scmp.eq.s32.totalorder %s14, 0
    %p60 = por %p58, %p59
    %p61 = scmp.ne.s32.totalorder %s50, %s53
    %p62 = scmp.eq.s32.totalorder %s19, 1
    %p63 = por %p61, %p62
    %p64 = scmp.ne.s32.totalorder %s53, %s54
    %p65 = scmp.eq.s32.totalorder %s19, 0
    %p66 = por %p64, %p65
    %p67 = scmp.ne.s32.totalorder %s53, %s54
    %p68 = scmp.eq.s32.totalorder %s20, 1
    %p69 = por %p67, %p68
    %p71 = scmp.ne.s32.totalorder %s54, %s70
    %p72 = scmp.eq.s32.totalorder %s20, 0
    %p73 = por %p71, %p72
    %s74 = ssub.s32 %s14, %s21
    %p75 = scmp.eq.s32.totalorder %s74, 0
    %s77 = sadd.s32 %s76, 1
    %s78 = scalar_select %p75, %s76, %s77
    %p81 = pneg %p75
    %p82 = scmp.eq.s32.totalorder %s14, 1
    %p83 = por %p81, %p82
    %p84 = scmp.ne.s32.totalorder %s76, %s79
    %p85 = scmp.eq.s32.totalorder %s14, 0
    %p86 = por %p84, %p85
    %p87 = scmp.ne.s32.totalorder %s76, %s79
    %p88 = scmp.eq.s32.totalorder %s19, 1
    %p89 = por %p87, %p88
    %p90 = scmp.ne.s32.totalorder %s79, %s80
    %p91 = scmp.eq.s32.totalorder %s19, 0
    %p92 = por %p90, %p91
    %p93 = scmp.ne.s32.totalorder %s79, %s80
    %p94 = scmp.eq.s32.totalorder %s20, 1
    %p95 = por %p93, %p94
    %p97 = scmp.ne.s32.totalorder %s80, %s96
    %p98 = scmp.eq.s32.totalorder %s20, 0
    %p99 = por %p97, %p98
    %s100 = ssub.s32 %s14, %s21
    %p101 = scmp.eq.s32.totalorder %s100, 0
    %s103 = sadd.s32 %s102, 1
    %s104 = scalar_select %p101, %s102, %s103
    %p107 = pneg %p101
    %p108 = scmp.eq.s32.totalorder %s14, 1
    %p109 = por %p107, %p108
    %p110 = scmp.ne.s32.totalorder %s102, %s105
    %p111 = scmp.eq.s32.totalorder %s14, 0
    %p112 = por %p110, %p111
    %p113 = scmp.ne.s32.totalorder %s102, %s105
    %p114 = scmp.eq.s32.totalorder %s19, 1
    %p115 = por %p113, %p114
    %p116 = scmp.ne.s32.totalorder %s105, %s106
    %p117 = scmp.eq.s32.totalorder %s19, 0
    %p118 = por %p116, %p117
    %p119 = scmp.ne.s32.totalorder %s105, %s106
    %p120 = scmp.eq.s32.totalorder %s20, 1
    %p121 = por %p119, %p120
    %p123 = scmp.ne.s32.totalorder %s106, %s122
    %p124 = scmp.eq.s32.totalorder %s20, 0
    %p125 = por %p123, %p124
    %s127 = sadd.s32 %s126, 1
    %p130 = scmp.eq.s32.totalorder %s14, 1
    %p131 = scmp.ne.s32.totalorder %s126, %s128
    %p132 = scmp.eq.s32.totalorder %s14, 0
    %p133 = por %p131, %p132
    %p134 = scmp.ne.s32.totalorder %s126, %s128
    %p135 = scmp.eq.s32.totalorder %s19, 1
    %p136 = por %p134, %p135
    %p137 = scmp.ne.s32.totalorder %s128, %s129
    %p138 = scmp.eq.s32.totalorder %s19, 0
    %p139 = por %p137, %p138
    %p140 = scmp.ne.s32.totalorder %s128, %s129
    %p141 = scmp.eq.s32.totalorder %s20, 1
    %p142 = por %p140, %p141
    %p144 = scmp.ne.s32.totalorder %s129, %s143
    %p145 = scmp.eq.s32.totalorder %s20, 0
    %p146 = por %p144, %p145
    %s148 = sadd.s32 %s147, 1
    %p151 = scmp.eq.s32.totalorder %s14, 1
    %p152 = scmp.ne.s32.totalorder %s147, %s149
    %p153 = scmp.eq.s32.totalorder %s14, 0
    %p154 = por %p152, %p153
    %p155 = scmp.ne.s32.totalorder %s147, %s149
    %p156 = scmp.eq.s32.totalorder %s19, 1
    %p157 = por %p155, %p156
    %p158 = scmp.ne.s32.totalorder %s149, %s150
    %p159 = scmp.eq.s32.totalorder %s19, 0
    %p160 = por %p158, %p159
    %p161 = scmp.ne.s32.totalorder %s149, %s150
    %p162 = scmp.eq.s32.totalorder %s20, 1
    %p163 = por %p161, %p162
    %p165 = scmp.ne.s32.totalorder %s150, %s164
    %p166 = scmp.eq.s32.totalorder %s20, 0
    %p167 = por %p165, %p166
    %s169 = sadd.s32 %s168, 1
    %p172 = scmp.eq.s32.totalorder %s14, 1
    %p173 = scmp.ne.s32.totalorder %s168, %s170
    %p174 = scmp.eq.s32.totalorder %s14, 0
    %p175 = por %p173, %p174
    %p176 = scmp.ne.s32.totalorder %s168, %s170
    %p177 = scmp.eq.s32.totalorder %s19, 1
    %p178 = por %p176, %p177
    %p179 = scmp.ne.s32.totalorder %s170, %s171
    %p180 = scmp.eq.s32.totalorder %s19, 0
    %p181 = por %p179, %p180
    %p182 = scmp.ne.s32.totalorder %s170, %s171
    %p183 = scmp.eq.s32.totalorder %s20, 1
    %p184 = por %p182, %p183
    %p186 = scmp.ne.s32.totalorder %s171, %s185
    %p187 = scmp.eq.s32.totalorder %s20, 0
    %p188 = por %p186, %p187
    %s190 = sadd.s32 %s189, 1
    %p193 = scmp.eq.s32.totalorder %s14, 1
    %p194 = scmp.ne.s32.totalorder %s189, %s191
    %p195 = scmp.eq.s32.totalorder %s14, 0
    %p196 = por %p194, %p195
    %p197 = scmp.ne.s32.totalorder %s189, %s191
    %p198 = scmp.eq.s32.totalorder %s19, 1
    %p199 = por %p197, %p198
    %p200 = scmp.ne.s32.totalorder %s191, %s192
    %p201 = scmp.eq.s32.totalorder %s19, 0
    %p202 = por %p200, %p201
    %p203 = scmp.ne.s32.totalorder %s191, %s192
    %p204 = scmp.eq.s32.totalorder %s20, 1
    %p205 = por %p203, %p204
    %p207 = scmp.ne.s32.totalorder %s192, %s206
    %p208 = scmp.eq.s32.totalorder %s20, 0
    %p209 = por %p207, %p208
    %s210 = ssub.s32 %s14, %s21
    %p211 = scmp.eq.s32.totalorder %s210, 0
    %s213 = sadd.s32 %s212, 1
    %s214 = scalar_select %p211, %s212, %s213
    %p217 = pneg %p211
    %p218 = scmp.eq.s32.totalorder %s14, 1
    %p219 = por %p217, %p218
    %p220 = scmp.ne.s32.totalorder %s212, %s215
    %p221 = scmp.eq.s32.totalorder %s14, 0
    %p222 = por %p220, %p221
    %p223 = scmp.ne.s32.totalorder %s212, %s215
    %p224 = scmp.eq.s32.totalorder %s19, 1
    %p225 = por %p223, %p224
    %p226 = scmp.ne.s32.totalorder %s215, %s216
    %p227 = scmp.eq.s32.totalorder %s19, 0
    %p228 = por %p226, %p227
    %p229 = scmp.ne.s32.totalorder %s215, %s216
    %p230 = scmp.eq.s32.totalorder %s20, 1
    %p231 = por %p229, %p230
    %p233 = scmp.ne.s32.totalorder %s216, %s232
    %p234 = scmp.eq.s32.totalorder %s20, 0
    %p235 = por %p233, %p234
    %p236 = scmp.le.s32.totalorder 1, %s14
    %p237 = scmp.lt.s32.totalorder %s14, 3
    %p238 = pnand %p236, %p237
    %p239 = pneg %p238
    // Predicated region
    $region9: #{net_forward.4} parent=5 // pred_check
      _
    $region10: #{net_forward.4} parent=5 // pred_check_branch
      %241 = sbr.rel (%p238) target = $region12
    $region11: #{net_forward.4} parent=5 // pred_region
      %s242 = ssub.s32 %s14, 1
      // Predicated region
      $region13: #{net_forward.4} parent=11 // pred_check
        %p243 = pneg %p139
      $region14: #{net_forward.4} parent=11 // pred_check_branch
        %245 = sbr.rel (%p243) target = $region16
      $region15: #{net_forward.4} parent=11 // pred_region
        _
      $region16: #{net_forward.4} parent=11 // pred_fallthru
        _
      // Predicated region
      $region17: #{net_forward.4} parent=11 // pred_check
        %p246 = pneg %p160
      $region18: #{net_forward.4} parent=11 // pred_check_branch
        %248 = sbr.rel (%p246) target = $region20
      $region19: #{net_forward.4} parent=11 // pred_region
        _
      $region20: #{net_forward.4} parent=11 // pred_fallthru
        _
      // Predicated region
      $region21: #{net_forward.4} parent=11 // pred_check
        %p249 = pneg %p181
      $region22: #{net_forward.4} parent=11 // pred_check_branch
        %251 = sbr.rel (%p249) target = $region24
      $region23: #{net_forward.4} parent=11 // pred_region
        _
      $region24: #{net_forward.4} parent=11 // pred_fallthru
        _
      // Predicated region
      $region25: #{net_forward.4} parent=11 // pred_check
        %p252 = pneg %p202
      $region26: #{net_forward.4} parent=11 // pred_check_branch
        %254 = sbr.rel (%p252) target = $region28
      $region27: #{net_forward.4} parent=11 // pred_region
        _
      $region28: #{net_forward.4} parent=11 // pred_fallthru
        _
    $region12: #{net_forward.4} parent=5 // pred_fallthru
      _
    %p255 = scmp.lt.s32.totalorder %s14, 2
    // Predicated region
    $region29: #{net_forward.4} parent=5 // pred_check
      %p256 = pneg %p255
    $region30: #{net_forward.4} parent=5 // pred_check_branch
      %258 = sbr.rel (%p256) target = $region32
    $region31: #{net_forward.4} parent=5 // pred_region
      // Predicated region
      $region33: #{net_forward.4} parent=31 // pred_check
        %p259 = pneg %p34
      $region34: #{net_forward.4} parent=31 // pred_check_branch
        %261 = sbr.rel (%p259) target = $region36
      $region35: #{net_forward.4} parent=31 // pred_region
        %p262 = scmp.lt.s32.totalorder %s14, 1
        %s263 = scalar_select %p262, %s14, 1
        %s264 = smul.addr %s263, 36
        %s265 = smul.addr %s264, 4
        %s266 = scalar_lea.vmem %s0, %s265
      $region36: #{net_forward.4} parent=31 // pred_fallthru
        _
      // Predicated region
      $region37: #{net_forward.4} parent=31 // pred_check
        %p267 = pneg %p60
      $region38: #{net_forward.4} parent=31 // pred_check_branch
        %269 = sbr.rel (%p267) target = $region40
      $region39: #{net_forward.4} parent=31 // pred_region
        %p270 = scmp.lt.s32.totalorder %s14, 1
        %s271 = scalar_select %p270, %s14, 1
        %s272 = smul.addr %s271, 36
        %s273 = smul.addr %s272, 4
        %s274 = scalar_lea.vmem %s1, %s273
      $region40: #{net_forward.4} parent=31 // pred_fallthru
        _
      // Predicated region
      $region41: #{net_forward.4} parent=31 // pred_check
        %p275 = pneg %p86
      $region42: #{net_forward.4} parent=31 // pred_check_branch
        %277 = sbr.rel (%p275) target = $region44
      $region43: #{net_forward.4} parent=31 // pred_region
        %p278 = scmp.lt.s32.totalorder %s14, 1
        %s279 = scalar_select %p278, %s14, 1
        %s280 = smul.addr %s279, 36
        %s281 = smul.addr %s280, 4
        %s282 = scalar_lea.vmem %s2, %s281
      $region44: #{net_forward.4} parent=31 // pred_fallthru
        _
      // Predicated region
      $region45: #{net_forward.4} parent=31 // pred_check
        %p283 = pneg %p112
      $region46: #{net_forward.4} parent=31 // pred_check_branch
        %285 = sbr.rel (%p283) target = $region48
      $region47: #{net_forward.4} parent=31 // pred_region
        %p286 = scmp.lt.s32.totalorder %s14, 1
        %s287 = scalar_select %p286, %s14, 1
        %s288 = smul.addr %s287, 36
        %s289 = smul.addr %s288, 4
        %s290 = scalar_lea.vmem %s3, %s289
      $region48: #{net_forward.4} parent=31 // pred_fallthru
        _
    $region32: #{net_forward.4} parent=5 // pred_fallthru
      _
    %p291 = scmp.le.s32.totalorder 1, %s14
    %p292 = scmp.lt.s32.totalorder %s14, 3
    %p293 = pnand %p291, %p292
    %p294 = pneg %p293
    // Predicated region
    $region49: #{net_forward.4} parent=5 // pred_check
      _
    $region50: #{net_forward.4} parent=5 // pred_check_branch
      %296 = sbr.rel (%p293) target = $region52
    $region51: #{net_forward.4} parent=5 // pred_region
      %s297 = ssub.s32 %s14, 1
      %p298 = scmp.lt.s32.totalorder %s19, 1
      %s299 = scalar_select %p298, %s19, 1
      %s300 = smul.addr %s299, 36
      %s301 = smul.addr %s300, 4
      %s302 = scalar_lea.vmem %s0, %s301
      %p303 = pneg %p40
      %p304 = pneg %p37
      %p305 = scmp.lt.s32.totalorder %s19, 1
      %s306 = scalar_select %p305, %s19, 1
      %s307 = smul.addr %s306, 36
      %s308 = smul.addr %s307, 4
      %s309 = scalar_lea.vmem %s1, %s308
      %p310 = pneg %p66
      %p311 = pneg %p63
      %p312 = scmp.lt.s32.totalorder %s19, 1
      %s313 = scalar_select %p312, %s19, 1
      %s314 = smul.addr %s313, 36
      %s315 = smul.addr %s314, 4
      %s316 = scalar_lea.vmem %s2, %s315
      %p317 = pneg %p92
      %p318 = pneg %p89
      %p319 = scmp.lt.s32.totalorder %s19, 1
      %s320 = scalar_select %p319, %s19, 1
      %s321 = smul.addr %s320, 36
      %s322 = smul.addr %s321, 4
      %s323 = scalar_lea.vmem %s3, %s322
      %p324 = pneg %p118
      %p325 = pneg %p115
      %p326 = pneg %p139
      %p327 = pneg %p136
      %p328 = pneg %p160
      %p329 = pneg %p157
      %p330 = pneg %p181
      %p331 = pneg %p178
      %p332 = pneg %p202
      %p333 = pneg %p199
      %p334 = pneg %p228
      %p335 = pneg %p225
      %p336 = scmp.lt.s32.totalorder %s19, 1
      %s337 = scalar_select %p336, %s19, 1
      %s338 = smul.addr %s337, 8
      %s339 = smul.addr %s338, 4
      %s340 = scalar_lea.vmem %s8, %s339
      %p341 = scmp.lt.s32.totalorder %s19, 1
      %s342 = scalar_select %p341, %s19, 1
      %s343 = smul.addr %s342, 36
      %s344 = smul.addr %s343, 4
      %s345 = scalar_lea.vmem %s0, %s344
      %p346 = scmp.lt.s32.totalorder %s19, 1
      %s347 = scalar_select %p346, %s19, 1
      %s348 = smul.addr %s347, 36
      %s349 = smul.addr %s348, 4
      %s350 = scalar_lea.vmem %s1, %s349
      %p351 = scmp.lt.s32.totalorder %s19, 1
      %s352 = scalar_select %p351, %s19, 1
      %s353 = smul.addr %s352, 36
      %s354 = smul.addr %s353, 4
      %s355 = scalar_lea.vmem %s2, %s354
      %p356 = scmp.lt.s32.totalorder %s19, 1
      %s357 = scalar_select %p356, %s19, 1
      %s358 = smul.addr %s357, 36
      %s359 = smul.addr %s358, 4
      %s360 = scalar_lea.vmem %s3, %s359
      %p361 = scmp.lt.s32.totalorder %s19, 1
      %s362 = scalar_select %p361, %s19, 1
      %s363 = smul.addr %s362, 8
      %s364 = smul.addr %s363, 4
      %s365 = scalar_lea.vmem %s8, %s364
      %v367 = vld [vmem:[%s4] sm:$0xff]
      %v368 = vld [vmem:[%s4 + $0x8] sm:$0xff]
      %v369 = vld [vmem:[%s4 + $0x10] sm:$0xff]
      %v370 = vld [vmem:[%s4 + $0x18] sm:$0xff]
      %v371 = vld [vmem:[%s5] sm:$0xff]
      %v372 = vld [vmem:[%s5 + $0x8] sm:$0xff]
      %v373 = vld [vmem:[%s5 + $0x10] sm:$0xff]
      %v374 = vld [vmem:[%s5 + $0x18] sm:$0xff]
      %v375 = vld [vmem:[%s6] sm:$0xff]
      %v376 = vld [vmem:[%s6 + $0x8] sm:$0xff]
      %v377 = vld [vmem:[%s6 + $0x10] sm:$0xff]
      %v378 = vld [vmem:[%s6 + $0x18] sm:$0xff]
      %v379 = vld [vmem:[%s7] sm:$0xff]
      %v380 = vld [vmem:[%s7 + $0x8] sm:$0xff]
      %v381 = vld [vmem:[%s7 + $0x10] sm:$0xff]
      %v382 = vld [vmem:[%s7 + $0x18] sm:$0xff]
      %v383 = vld [vmem:[%s345] sm:$0xff]
      %v384 = vld [vmem:[%s345 + $0x8] sm:$0xff]
      %v385 = vld [vmem:[%s345 + $0x10] sm:$0xff]
      %v386 = vld [vmem:[%s345 + $0x18] sm:$0xff]
      %v387 = vld [vmem:[%s345 + $0x20] sm:$0xff]
      %v388 = vld [vmem:[%s345 + $0x28] sm:$0xff]
      %v389 = vld [vmem:[%s345 + $0x30] sm:$0xff]
      %v390 = vld [vmem:[%s345 + $0x38] sm:$0xff]
      %v391 = vld [vmem:[%s345 + $0x40] sm:$0xff]
      %v392 = vld [vmem:[%s345 + $0x48] sm:$0xff]
      %v393 = vld [vmem:[%s345 + $0x50] sm:$0xff]
      %v394 = vld [vmem:[%s345 + $0x58] sm:$0xff]
      %v395 = vld [vmem:[%s345 + $0x60] sm:$0xff]
      %v396 = vld [vmem:[%s345 + $0x68] sm:$0xff]
      %v397 = vld [vmem:[%s345 + $0x70] sm:$0xff]
      %v398 = vld [vmem:[%s345 + $0x78] sm:$0xff]
      %v399 = vld [vmem:[%s345 + $0x80] sm:$0xff]
      %v400 = vld [vmem:[%s345 + $0x88] sm:$0xff]
      %402 = vset.pattern.permute.xlu0 0
      %403 = vperm.xlu0 %402, %v371
      %v404 = vpop.permute.xlu0 %403
      %407 = vset.pattern.permute.xlu0 0
      %408 = vperm.xlu0 %407, %v372
      %v409 = vpop.permute.xlu0 %408
      %412 = vset.pattern.permute.xlu0 0
      %413 = vperm.xlu0 %412, %v373
      %v414 = vpop.permute.xlu0 %413
      %417 = vset.pattern.permute.xlu0 0
      %418 = vperm.xlu0 %417, %v374
      %v419 = vpop.permute.xlu0 %418
      %v425 = vunpack.c.l.b16 %v367
      %v426 = vunpack.c.h.b16 %v367
      %v427 = vunpack.c.l.b16 %v368
      %v428 = vunpack.c.h.b16 %v368
      %v429 = vunpack.c.l.b16 %v369
      %v430 = vunpack.c.h.b16 %v369
      %v431 = vunpack.c.l.b16 %v370
      %v432 = vunpack.c.h.b16 %v370
      %v433 = vpack.c.b16 %v427, %v425
      %v434 = vpack.c.b16 %v428, %v426
      %v435 = vpack.c.b16 %v431, %v429
      %v436 = vpack.c.b16 %v432, %v430
      %v457 = vunpack.c.l.b16 %v383
      %v458 = vunpack.c.h.b16 %v383
      %v459 = vunpack.c.l.b16 %v384
      %v460 = vunpack.c.h.b16 %v384
      %v461 = vunpack.c.l.b16 %v385
      %v462 = vunpack.c.h.b16 %v385
      %v463 = vunpack.c.l.b16 %v386
      %v464 = vunpack.c.h.b16 %v386
      %v465 = vunpack.c.l.b16 %v387
      %v466 = vunpack.c.h.b16 %v387
      %v467 = vunpack.c.l.b16 %v388
      %v468 = vunpack.c.h.b16 %v388
      %v469 = vunpack.c.l.b16 %v389
      %v470 = vunpack.c.h.b16 %v389
      %v471 = vunpack.c.l.b16 %v390
      %v472 = vunpack.c.h.b16 %v390
      %v473 = vunpack.c.l.b16 %v391
      %v474 = vunpack.c.h.b16 %v391
      %v475 = vunpack.c.l.b16 %v392
      %v476 = vunpack.c.h.b16 %v392
      %v477 = vunpack.c.l.b16 %v393
      %v478 = vunpack.c.h.b16 %v393
      %v479 = vunpack.c.l.b16 %v394
      %v480 = vunpack.c.h.b16 %v394
      %v481 = vunpack.c.l.b16 %v395
      %v482 = vunpack.c.h.b16 %v395
      %v483 = vunpack.c.l.b16 %v396
      %v484 = vunpack.c.h.b16 %v396
      %v485 = vunpack.c.l.b16 %v397
      %v486 = vunpack.c.h.b16 %v397
      %v487 = vunpack.c.l.b16 %v398
      %v488 = vunpack.c.h.b16 %v398
      %v489 = vunpack.c.l.b16 %v399
      %v490 = vunpack.c.h.b16 %v399
      %v491 = vunpack.c.l.b16 %v400
      %v492 = vunpack.c.h.b16 %v400
      %v493 = vpack.c.b16 %v459, %v457
      %v494 = vpack.c.b16 %v460, %v458
      %v495 = vpack.c.b16 %v463, %v461
      %v496 = vpack.c.b16 %v464, %v462
      %v497 = vpack.c.b16 %v467, %v465
      %v498 = vpack.c.b16 %v468, %v466
      %v499 = vpack.c.b16 %v471, %v469
      %v500 = vpack.c.b16 %v472, %v470
      %v501 = vpack.c.b16 %v475, %v473
      %v502 = vpack.c.b16 %v476, %v474
      %v503 = vpack.c.b16 %v479, %v477
      %v504 = vpack.c.b16 %v480, %v478
      %v505 = vpack.c.b16 %v483, %v481
      %v506 = vpack.c.b16 %v484, %v482
      %v507 = vpack.c.b16 %v487, %v485
      %v508 = vpack.c.b16 %v488, %v486
      %v509 = vpack.c.b16 %v491, %v489
      %v510 = vpack.c.b16 %v492, %v490
      %vm529 = vcmask 130048
      %v531 = vsel %vm529, %v434, 0
      %v534 = vsel %vm529, %v436, 0
      %536 = vmatprep.subr.bf16.mxu0 %v508
      %537 = vmatpush1.bf16.msra.mxu0 %v507
      %538 = vmatprep.subr.bf16.mxu0 %v506
      %539 = vmatpush1.bf16.msra.mxu0 %v505
      %540 = vmatprep.subr.bf16.mxu0 %v504
      %541 = vmatpush1.bf16.msra.mxu0 %v503
      %542 = vmatprep.subr.bf16.mxu0 %v502
      %543 = vmatpush1.bf16.msra.mxu0 %v501
      %544 = vmatprep.subr.bf16.mxu0 %v500
      %545 = vmatpush1.bf16.msra.mxu0 %v499
      %546 = vmatprep.subr.bf16.mxu0 %v498
      %547 = vmatpush1.bf16.msra.mxu0 %v497
      %548 = vmatprep.subr.bf16.mxu0 %v496
      %549 = vmatpush1.bf16.msra.mxu0 %v495
      %550 = vmatprep.subr.bf16.mxu0 %v494
      %551 = vmatpush1.bf16.msra.mxu0 %v493
      %552 = vmatprep.subr.bf16.mxu0 0
      %553 = vmatpush2.bf16.msra.mxu0 0
      %554 = vmatprep.subr.bf16.mxu0 0
      %555 = vmatpush2.bf16.msra.mxu0 0
      %556 = vmatprep.subr.bf16.mxu0 0
      %557 = vmatpush2.bf16.msra.mxu0 0
      %558 = vmatprep.subr.bf16.mxu0 0
      %559 = vmatpush2.bf16.msra.mxu0 0
      %560 = vmatprep.subr.bf16.mxu0 0
      %561 = vmatpush2.bf16.msra.mxu0 0
      %562 = vmatprep.subr.bf16.mxu0 0
      %563 = vmatpush2.bf16.msra.mxu0 0
      %564 = vmatprep.subr.bf16.mxu0 0
      %565 = vmatpush2.bf16.msra.mxu0 0
      %566 = vmatprep.subr.bf16.mxu0 %v510
      %567 = vmatpush2.bf16.msra.mxu0 %v509
      %568 = vmatprep.mubr.bf16.mxu0 %v531
      %569 = vmatmul.mubr.bf16.gmra.mxu0 %v433
      %v570 = vpop.f32.mrf.mxu0
      %v571 = vadd.f32 %v404, %v570
      %v572 = vpop.f32.mrf.mxu0
      %v573 = vadd.f32 %v404, %v572
      %v574 = vpop.f32.mrf.mxu0
      %v575 = vadd.f32 %v409, %v574
      %v576 = vpop.f32.mrf.mxu0
      %v577 = vadd.f32 %v409, %v576
      %578 = vmatprep.mubr.bf16.mxu0 %v534
      %579 = vmatmul.mubr.bf16.gmra.mxu0 %v435
      %v580 = vpop.f32.mrf.mxu0
      %v581 = vadd.f32 %v414, %v580
      %v582 = vpop.f32.mrf.mxu0
      %v583 = vadd.f32 %v414, %v582
      %v584 = vpop.f32.mrf.mxu0
      %v585 = vadd.f32 %v419, %v584
      %v586 = vpop.f32.mrf.mxu0
      %v587 = vadd.f32 %v419, %v586
      %588 = vdwg.mxu0
      %v589 = vmax.f32 %v571, 0.0
      %v590 = vmax.f32 %v573, 0.0
      %v591 = vmax.f32 %v575, 0.0
      %v592 = vmax.f32 %v577, 0.0
      %v593 = vmax.f32 %v581, 0.0
      %v594 = vmax.f32 %v583, 0.0
      %v595 = vmax.f32 %v585, 0.0
      %v596 = vmax.f32 %v587, 0.0
      %598 = vset.pattern.permute.xlu0 0
      %599 = vperm.xlu0 %598, %v375
      %v600 = vpop.permute.xlu0 %599
      %603 = vset.pattern.permute.xlu0 0
      %604 = vperm.xlu0 %603, %v376
      %v605 = vpop.permute.xlu0 %604
      %608 = vset.pattern.permute.xlu0 0
      %609 = vperm.xlu0 %608, %v377
      %v610 = vpop.permute.xlu0 %609
      %613 = vset.pattern.permute.xlu0 0
      %614 = vperm.xlu0 %613, %v378
      %v615 = vpop.permute.xlu0 %614
      %v617 = vmul.f32 %v589, %v600
      %v618 = vmul.f32 %v590, %v600
      %v619 = vmul.f32 %v591, %v605
      %v620 = vmul.f32 %v592, %v605
      %v621 = vmul.f32 %v593, %v610
      %v622 = vmul.f32 %v594, %v610
      %v623 = vmul.f32 %v595, %v615
      %v624 = vmul.f32 %v596, %v615
      %626 = vset.pattern.permute.xlu0 0
      %627 = vperm.xlu0 %626, %v379
      %v628 = vpop.permute.xlu0 %627
      %631 = vset.pattern.permute.xlu0 0
      %632 = vperm.xlu0 %631, %v380
      %v633 = vpop.permute.xlu0 %632
      %636 = vset.pattern.permute.xlu0 0
      %637 = vperm.xlu0 %636, %v381
      %v638 = vpop.permute.xlu0 %637
      %641 = vset.pattern.permute.xlu0 0
      %642 = vperm.xlu0 %641, %v382
      %v643 = vpop.permute.xlu0 %642
      %v645 = vadd.f32 %v617, %v628
      %v646 = vadd.f32 %v618, %v628
      %v647 = vadd.f32 %v619, %v633
      %v648 = vadd.f32 %v620, %v633
      %v649 = vadd.f32 %v621, %v638
      %v650 = vadd.f32 %v622, %v638
      %v651 = vadd.f32 %v623, %v643
      %v652 = vadd.f32 %v624, %v643
      %v653 = vld [vmem:[%s350] sm:$0xff]
      %v654 = vld [vmem:[%s350 + $0x8] sm:$0xff]
      %v655 = vld [vmem:[%s350 + $0x10] sm:$0xff]
      %v656 = vld [vmem:[%s350 + $0x18] sm:$0xff]
      %v657 = vld [vmem:[%s350 + $0x20] sm:$0xff]
      %v658 = vld [vmem:[%s350 + $0x28] sm:$0xff]
      %v659 = vld [vmem:[%s350 + $0x30] sm:$0xff]
      %v660 = vld [vmem:[%s350 + $0x38] sm:$0xff]
      %v661 = vld [vmem:[%s350 + $0x40] sm:$0xff]
      %v662 = vld [vmem:[%s350 + $0x48] sm:$0xff]
      %v663 = vld [vmem:[%s350 + $0x50] sm:$0xff]
      %v664 = vld [vmem:[%s350 + $0x58] sm:$0xff]
      %v665 = vld [vmem:[%s350 + $0x60] sm:$0xff]
      %v666 = vld [vmem:[%s350 + $0x68] sm:$0xff]
      %v667 = vld [vmem:[%s350 + $0x70] sm:$0xff]
      %v668 = vld [vmem:[%s350 + $0x78] sm:$0xff]
      %v669 = vld [vmem:[%s350 + $0x80] sm:$0xff]
      %v670 = vld [vmem:[%s350 + $0x88] sm:$0xff]
      %v689 = vunpack.c.l.b16 %v653
      %v690 = vunpack.c.h.b16 %v653
      %v691 = vunpack.c.l.b16 %v654
      %v692 = vunpack.c.h.b16 %v654
      %v693 = vunpack.c.l.b16 %v655
      %v694 = vunpack.c.h.b16 %v655
      %v695 = vunpack.c.l.b16 %v656
      %v696 = vunpack.c.h.b16 %v656
      %v697 = vunpack.c.l.b16 %v657
      %v698 = vunpack.c.h.b16 %v657
      %v699 = vunpack.c.l.b16 %v658
      %v700 = vunpack.c.h.b16 %v658
      %v701 = vunpack.c.l.b16 %v659
      %v702 = vunpack.c.h.b16 %v659
      %v703 = vunpack.c.l.b16 %v660
      %v704 = vunpack.c.h.b16 %v660
      %v705 = vunpack.c.l.b16 %v661
      %v706 = vunpack.c.h.b16 %v661
      %v707 = vunpack.c.l.b16 %v662
      %v708 = vunpack.c.h.b16 %v662
      %v709 = vunpack.c.l.b16 %v663
      %v710 = vunpack.c.h.b16 %v663
      %v711 = vunpack.c.l.b16 %v664
      %v712 = vunpack.c.h.b16 %v664
      %v713 = vunpack.c.l.b16 %v665
      %v714 = vunpack.c.h.b16 %v665
      %v715 = vunpack.c.l.b16 %v666
      %v716 = vunpack.c.h.b16 %v666
      %v717 = vunpack.c.l.b16 %v667
      %v718 = vunpack.c.h.b16 %v667
      %v719 = vunpack.c.l.b16 %v668
      %v720 = vunpack.c.h.b16 %v668
      %v721 = vunpack.c.l.b16 %v669
      %v722 = vunpack.c.h.b16 %v669
      %v723 = vunpack.c.l.b16 %v670
      %v724 = vunpack.c.h.b16 %v670
      %v725 = vpack.c.b16 %v691, %v689
      %v726 = vpack.c.b16 %v692, %v690
      %v727 = vpack.c.b16 %v695, %v693
      %v728 = vpack.c.b16 %v696, %v694
      %v729 = vpack.c.b16 %v699, %v697
      %v730 = vpack.c.b16 %v700, %v698
      %v731 = vpack.c.b16 %v703, %v701
      %v732 = vpack.c.b16 %v704, %v702
      %v733 = vpack.c.b16 %v707, %v705
      %v734 = vpack.c.b16 %v708, %v706
      %v735 = vpack.c.b16 %v711, %v709
      %v736 = vpack.c.b16 %v712, %v710
      %v737 = vpack.c.b16 %v715, %v713
      %v738 = vpack.c.b16 %v716, %v714
      %v739 = vpack.c.b16 %v719, %v717
      %v740 = vpack.c.b16 %v720, %v718
      %v741 = vpack.c.b16 %v723, %v721
      %v742 = vpack.c.b16 %v724, %v722
      %761 = vmatprep.subr.bf16.mxu0 %v740
      %762 = vmatpush1.bf16.msra.mxu0 %v739
      %763 = vmatprep.subr.bf16.mxu0 %v738
      %764 = vmatpush1.bf16.msra.mxu0 %v737
      %765 = vmatprep.subr.bf16.mxu0 %v736
      %766 = vmatpush1.bf16.msra.mxu0 %v735
      %767 = vmatprep.subr.bf16.mxu0 %v734
      %768 = vmatpush1.bf16.msra.mxu0 %v733
      %769 = vmatprep.subr.bf16.mxu0 %v732
      %770 = vmatpush1.bf16.msra.mxu0 %v731
      %771 = vmatprep.subr.bf16.mxu0 %v730
      %772 = vmatpush1.bf16.msra.mxu0 %v729
      %773 = vmatprep.subr.bf16.mxu0 %v728
      %774 = vmatpush1.bf16.msra.mxu0 %v727
      %775 = vmatprep.subr.bf16.mxu0 %v726
      %776 = vmatpush1.bf16.msra.mxu0 %v725
      %777 = vmatprep.subr.bf16.mxu0 0
      %778 = vmatpush2.bf16.msra.mxu0 0
      %779 = vmatprep.subr.bf16.mxu0 0
      %780 = vmatpush2.bf16.msra.mxu0 0
      %781 = vmatprep.subr.bf16.mxu0 0
      %782 = vmatpush2.bf16.msra.mxu0 0
      %783 = vmatprep.subr.bf16.mxu0 0
      %784 = vmatpush2.bf16.msra.mxu0 0
      %785 = vmatprep.subr.bf16.mxu0 0
      %786 = vmatpush2.bf16.msra.mxu0 0
      %787 = vmatprep.subr.bf16.mxu0 0
      %788 = vmatpush2.bf16.msra.mxu0 0
      %789 = vmatprep.subr.bf16.mxu0 0
      %790 = vmatpush2.bf16.msra.mxu0 0
      %791 = vmatprep.subr.bf16.mxu0 %v742
      %792 = vmatpush2.bf16.msra.mxu0 %v741
      %793 = vmatprep.mubr.bf16.mxu0 %v531
      %794 = vmatmul.mubr.bf16.gmra.mxu0 %v433
      %v795 = vpop.f32.mrf.mxu0
      %v796 = vadd.f32 %v404, %v795
      %v797 = vpop.f32.mrf.mxu0
      %v798 = vadd.f32 %v404, %v797
      %v799 = vpop.f32.mrf.mxu0
      %v800 = vadd.f32 %v409, %v799
      %v801 = vpop.f32.mrf.mxu0
      %v802 = vadd.f32 %v409, %v801
      %803 = vmatprep.mubr.bf16.mxu0 %v534
      %804 = vmatmul.mubr.bf16.gmra.mxu0 %v435
      %v805 = vpop.f32.mrf.mxu0
      %v806 = vadd.f32 %v414, %v805
      %v807 = vpop.f32.mrf.mxu0
      %v808 = vadd.f32 %v414, %v807
      %v809 = vpop.f32.mrf.mxu0
      %v810 = vadd.f32 %v419, %v809
      %v811 = vpop.f32.mrf.mxu0
      %v812 = vadd.f32 %v419, %v811
      %813 = vdwg.mxu0
      %v814 = vmax.f32 %v796, 0.0
      %v815 = vmax.f32 %v798, 0.0
      %v816 = vmax.f32 %v800, 0.0
      %v817 = vmax.f32 %v802, 0.0
      %v818 = vmax.f32 %v806, 0.0
      %v819 = vmax.f32 %v808, 0.0
      %v820 = vmax.f32 %v810, 0.0
      %v821 = vmax.f32 %v812, 0.0
      %v822 = vmul.f32 %v814, %v600
      %v823 = vmul.f32 %v815, %v600
      %v824 = vmul.f32 %v816, %v605
      %v825 = vmul.f32 %v817, %v605
      %v826 = vmul.f32 %v818, %v610
      %v827 = vmul.f32 %v819, %v610
      %v828 = vmul.f32 %v820, %v615
      %v829 = vmul.f32 %v821, %v615
      %v830 = vadd.f32 %v822, %v628
      %v831 = vadd.f32 %v823, %v628
      %v832 = vadd.f32 %v824, %v633
      %v833 = vadd.f32 %v825, %v633
      %v834 = vadd.f32 %v826, %v638
      %v835 = vadd.f32 %v827, %v638
      %v836 = vadd.f32 %v828, %v643
      %v837 = vadd.f32 %v829, %v643
      %v838 = vadd.f32 %v645, %v830
      %v839 = vadd.f32 %v646, %v831
      %v840 = vadd.f32 %v647, %v832
      %v841 = vadd.f32 %v648, %v833
      %v842 = vadd.f32 %v649, %v834
      %v843 = vadd.f32 %v650, %v835
      %v844 = vadd.f32 %v651, %v836
      %v845 = vadd.f32 %v652, %v837
      %v846 = vld [vmem:[%s355] sm:$0xff]
      %v847 = vld [vmem:[%s355 + $0x8] sm:$0xff]
      %v848 = vld [vmem:[%s355 + $0x10] sm:$0xff]
      %v849 = vld [vmem:[%s355 + $0x18] sm:$0xff]
      %v850 = vld [vmem:[%s355 + $0x20] sm:$0xff]
      %v851 = vld [vmem:[%s355 + $0x28] sm:$0xff]
      %v852 = vld [vmem:[%s355 + $0x30] sm:$0xff]
      %v853 = vld [vmem:[%s355 + $0x38] sm:$0xff]
      %v854 = vld [vmem:[%s355 + $0x40] sm:$0xff]
      %v855 = vld [vmem:[%s355 + $0x48] sm:$0xff]
      %v856 = vld [vmem:[%s355 + $0x50] sm:$0xff]
      %v857 = vld [vmem:[%s355 + $0x58] sm:$0xff]
      %v858 = vld [vmem:[%s355 + $0x60] sm:$0xff]
      %v859 = vld [vmem:[%s355 + $0x68] sm:$0xff]
      %v860 = vld [vmem:[%s355 + $0x70] sm:$0xff]
      %v861 = vld [vmem:[%s355 + $0x78] sm:$0xff]
      %v862 = vld [vmem:[%s355 + $0x80] sm:$0xff]
      %v863 = vld [vmem:[%s355 + $0x88] sm:$0xff]
      %v882 = vunpack.c.l.b16 %v846
      %v883 = vunpack.c.h.b16 %v846
      %v884 = vunpack.c.l.b16 %v847
      %v885 = vunpack.c.h.b16 %v847
      %v886 = vunpack.c.l.b16 %v848
      %v887 = vunpack.c.h.b16 %v848
      %v888 = vunpack.c.l.b16 %v849
      %v889 = vunpack.c.h.b16 %v849
      %v890 = vunpack.c.l.b16 %v850
      %v891 = vunpack.c.h.b16 %v850
      %v892 = vunpack.c.l.b16 %v851
      %v893 = vunpack.c.h.b16 %v851
      %v894 = vunpack.c.l.b16 %v852
      %v895 = vunpack.c.h.b16 %v852
      %v896 = vunpack.c.l.b16 %v853
      %v897 = vunpack.c.h.b16 %v853
      %v898 = vunpack.c.l.b16 %v854
      %v899 = vunpack.c.h.b16 %v854
      %v900 = vunpack.c.l.b16 %v855
      %v901 = vunpack.c.h.b16 %v855
      %v902 = vunpack.c.l.b16 %v856
      %v903 = vunpack.c.h.b16 %v856
      %v904 = vunpack.c.l.b16 %v857
      %v905 = vunpack.c.h.b16 %v857
      %v906 = vunpack.c.l.b16 %v858
      %v907 = vunpack.c.h.b16 %v858
      %v908 = vunpack.c.l.b16 %v859
      %v909 = vunpack.c.h.b16 %v859
      %v910 = vunpack.c.l.b16 %v860
      %v911 = vunpack.c.h.b16 %v860
      %v912 = vunpack.c.l.b16 %v861
      %v913 = vunpack.c.h.b16 %v861
      %v914 = vunpack.c.l.b16 %v862
      %v915 = vunpack.c.h.b16 %v862
      %v916 = vunpack.c.l.b16 %v863
      %v917 = vunpack.c.h.b16 %v863
      %v918 = vpack.c.b16 %v884, %v882
      %v919 = vpack.c.b16 %v885, %v883
      %v920 = vpack.c.b16 %v888, %v886
      %v921 = vpack.c.b16 %v889, %v887
      %v922 = vpack.c.b16 %v892, %v890
      %v923 = vpack.c.b16 %v893, %v891
      %v924 = vpack.c.b16 %v896, %v894
      %v925 = vpack.c.b16 %v897, %v895
      %v926 = vpack.c.b16 %v900, %v898
      %v927 = vpack.c.b16 %v901, %v899
      %v928 = vpack.c.b16 %v904, %v902
      %v929 = vpack.c.b16 %v905, %v903
      %v930 = vpack.c.b16 %v908, %v906
      %v931 = vpack.c.b16 %v909, %v907
      %v932 = vpack.c.b16 %v912, %v910
      %v933 = vpack.c.b16 %v913, %v911
      %v934 = vpack.c.b16 %v916, %v914
      %v935 = vpack.c.b16 %v917, %v915
      %954 = vmatprep.subr.bf16.mxu0 %v933
      %955 = vmatpush1.bf16.msra.mxu0 %v932
      %956 = vmatprep.subr.bf16.mxu0 %v931
      %957 = vmatpush1.bf16.msra.mxu0 %v930
      %958 = vmatprep.subr.bf16.mxu0 %v929
      %959 = vmatpush1.bf16.msra.mxu0 %v928
      %960 = vmatprep.subr.bf16.mxu0 %v927
      %961 = vmatpush1.bf16.msra.mxu0 %v926
      %962 = vmatprep.subr.bf16.mxu0 %v925
      %963 = vmatpush1.bf16.msra.mxu0 %v924
      %964 = vmatprep.subr.bf16.mxu0 %v923
      %965 = vmatpush1.bf16.msra.mxu0 %v922
      %966 = vmatprep.subr.bf16.mxu0 %v921
      %967 = vmatpush1.bf16.msra.mxu0 %v920
      %968 = vmatprep.subr.bf16.mxu0 %v919
      %969 = vmatpush1.bf16.msra.mxu0 %v918
      %970 = vmatprep.subr.bf16.mxu0 0
      %971 = vmatpush2.bf16.msra.mxu0 0
      %972 = vmatprep.subr.bf16.mxu0 0
      %973 = vmatpush2.bf16.msra.mxu0 0
      %974 = vmatprep.subr.bf16.mxu0 0
      %975 = vmatpush2.bf16.msra.mxu0 0
      %976 = vmatprep.subr.bf16.mxu0 0
      %977 = vmatpush2.bf16.msra.mxu0 0
      %978 = vmatprep.subr.bf16.mxu0 0
      %979 = vmatpush2.bf16.msra.mxu0 0
      %980 = vmatprep.subr.bf16.mxu0 0
      %981 = vmatpush2.bf16.msra.mxu0 0
      %982 = vmatprep.subr.bf16.mxu0 0
      %983 = vmatpush2.bf16.msra.mxu0 0
      %984 = vmatprep.subr.bf16.mxu0 %v935
      %985 = vmatpush2.bf16.msra.mxu0 %v934
      %986 = vmatprep.mubr.bf16.mxu0 %v531
      %987 = vmatmul.mubr.bf16.gmra.mxu0 %v433
      %v988 = vpop.f32.mrf.mxu0
      %v989 = vadd.f32 %v404, %v988
      %v990 = vpop.f32.mrf.mxu0
      %v991 = vadd.f32 %v404, %v990
      %v992 = vpop.f32.mrf.mxu0
      %v993 = vadd.f32 %v409, %v992
      %v994 = vpop.f32.mrf.mxu0
      %v995 = vadd.f32 %v409, %v994
      %996 = vmatprep.mubr.bf16.mxu0 %v534
      %997 = vmatmul.mubr.bf16.gmra.mxu0 %v435
      %v998 = vpop.f32.mrf.mxu0
      %v999 = vadd.f32 %v414, %v998
      %v1000 = vpop.f32.mrf.mxu0
      %v1001 = vadd.f32 %v414, %v1000
      %v1002 = vpop.f32.mrf.mxu0
      %v1003 = vadd.f32 %v419, %v1002
      %v1004 = vpop.f32.mrf.mxu0
      %v1005 = vadd.f32 %v419, %v1004
      %1006 = vdwg.mxu0
      %v1007 = vmax.f32 %v989, 0.0
      %v1008 = vmax.f32 %v991, 0.0
      %v1009 = vmax.f32 %v993, 0.0
      %v1010 = vmax.f32 %v995, 0.0
      %v1011 = vmax.f32 %v999, 0.0
      %v1012 = vmax.f32 %v1001, 0.0
      %v1013 = vmax.f32 %v1003, 0.0
      %v1014 = vmax.f32 %v1005, 0.0
      %v1015 = vmul.f32 %v1007, %v600
      %v1016 = vmul.f32 %v1008, %v600
      %v1017 = vmul.f32 %v1009, %v605
      %v1018 = vmul.f32 %v1010, %v605
      %v1019 = vmul.f32 %v1011, %v610
      %v1020 = vmul.f32 %v1012, %v610
      %v1021 = vmul.f32 %v1013, %v615
      %v1022 = vmul.f32 %v1014, %v615
      %v1023 = vadd.f32 %v1015, %v628
      %v1024 = vadd.f32 %v1016, %v628
      %v1025 = vadd.f32 %v1017, %v633
      %v1026 = vadd.f32 %v1018, %v633
      %v1027 = vadd.f32 %v1019, %v638
      %v1028 = vadd.f32 %v1020, %v638
      %v1029 = vadd.f32 %v1021, %v643
      %v1030 = vadd.f32 %v1022, %v643
      %v1031 = vadd.f32 %v838, %v1023
      %v1032 = vadd.f32 %v839, %v1024
      %v1033 = vadd.f32 %v840, %v1025
      %v1034 = vadd.f32 %v841, %v1026
      %v1035 = vadd.f32 %v842, %v1027
      %v1036 = vadd.f32 %v843, %v1028
      %v1037 = vadd.f32 %v844, %v1029
      %v1038 = vadd.f32 %v845, %v1030
      %v1039 = vld [vmem:[%s360] sm:$0xff]
      %v1040 = vld [vmem:[%s360 + $0x8] sm:$0xff]
      %v1041 = vld [vmem:[%s360 + $0x10] sm:$0xff]
      %v1042 = vld [vmem:[%s360 + $0x18] sm:$0xff]
      %v1043 = vld [vmem:[%s360 + $0x20] sm:$0xff]
      %v1044 = vld [vmem:[%s360 + $0x28] sm:$0xff]
      %v1045 = vld [vmem:[%s360 + $0x30] sm:$0xff]
      %v1046 = vld [vmem:[%s360 + $0x38] sm:$0xff]
      %v1047 = vld [vmem:[%s360 + $0x40] sm:$0xff]
      %v1048 = vld [vmem:[%s360 + $0x48] sm:$0xff]
      %v1049 = vld [vmem:[%s360 + $0x50] sm:$0xff]
      %v1050 = vld [vmem:[%s360 + $0x58] sm:$0xff]
      %v1051 = vld [vmem:[%s360 + $0x60] sm:$0xff]
      %v1052 = vld [vmem:[%s360 + $0x68] sm:$0xff]
      %v1053 = vld [vmem:[%s360 + $0x70] sm:$0xff]
      %v1054 = vld [vmem:[%s360 + $0x78] sm:$0xff]
      %v1055 = vld [vmem:[%s360 + $0x80] sm:$0xff]
      %v1056 = vld [vmem:[%s360 + $0x88] sm:$0xff]
      %v1075 = vunpack.c.l.b16 %v1039
      %v1076 = vunpack.c.h.b16 %v1039
      %v1077 = vunpack.c.l.b16 %v1040
      %v1078 = vunpack.c.h.b16 %v1040
      %v1079 = vunpack.c.l.b16 %v1041
      %v1080 = vunpack.c.h.b16 %v1041
      %v1081 = vunpack.c.l.b16 %v1042
      %v1082 = vunpack.c.h.b16 %v1042
      %v1083 = vunpack.c.l.b16 %v1043
      %v1084 = vunpack.c.h.b16 %v1043
      %v1085 = vunpack.c.l.b16 %v1044
      %v1086 = vunpack.c.h.b16 %v1044
      %v1087 = vunpack.c.l.b16 %v1045
      %v1088 = vunpack.c.h.b16 %v1045
      %v1089 = vunpack.c.l.b16 %v1046
      %v1090 = vunpack.c.h.b16 %v1046
      %v1091 = vunpack.c.l.b16 %v1047
      %v1092 = vunpack.c.h.b16 %v1047
      %v1093 = vunpack.c.l.b16 %v1048
      %v1094 = vunpack.c.h.b16 %v1048
      %v1095 = vunpack.c.l.b16 %v1049
      %v1096 = vunpack.c.h.b16 %v1049
      %v1097 = vunpack.c.l.b16 %v1050
      %v1098 = vunpack.c.h.b16 %v1050
      %v1099 = vunpack.c.l.b16 %v1051
      %v1100 = vunpack.c.h.b16 %v1051
      %v1101 = vunpack.c.l.b16 %v1052
      %v1102 = vunpack.c.h.b16 %v1052
      %v1103 = vunpack.c.l.b16 %v1053
      %v1104 = vunpack.c.h.b16 %v1053
      %v1105 = vunpack.c.l.b16 %v1054
      %v1106 = vunpack.c.h.b16 %v1054
      %v1107 = vunpack.c.l.b16 %v1055
      %v1108 = vunpack.c.h.b16 %v1055
      %v1109 = vunpack.c.l.b16 %v1056
      %v1110 = vunpack.c.h.b16 %v1056
      %v1111 = vpack.c.b16 %v1077, %v1075
      %v1112 = vpack.c.b16 %v1078, %v1076
      %v1113 = vpack.c.b16 %v1081, %v1079
      %v1114 = vpack.c.b16 %v1082, %v1080
      %v1115 = vpack.c.b16 %v1085, %v1083
      %v1116 = vpack.c.b16 %v1086, %v1084
      %v1117 = vpack.c.b16 %v1089, %v1087
      %v1118 = vpack.c.b16 %v1090, %v1088
      %v1119 = vpack.c.b16 %v1093, %v1091
      %v1120 = vpack.c.b16 %v1094, %v1092
      %v1121 = vpack.c.b16 %v1097, %v1095
      %v1122 = vpack.c.b16 %v1098, %v1096
      %v1123 = vpack.c.b16 %v1101, %v1099
      %v1124 = vpack.c.b16 %v1102, %v1100
      %v1125 = vpack.c.b16 %v1105, %v1103
      %v1126 = vpack.c.b16 %v1106, %v1104
      %v1127 = vpack.c.b16 %v1109, %v1107
      %v1128 = vpack.c.b16 %v1110, %v1108
      %1147 = vmatprep.subr.bf16.mxu0 %v1126
      %1148 = vmatpush1.bf16.msra.mxu0 %v1125
      %1149 = vmatprep.subr.bf16.mxu0 %v1124
      %1150 = vmatpush1.bf16.msra.mxu0 %v1123
      %1151 = vmatprep.subr.bf16.mxu0 %v1122
      %1152 = vmatpush1.bf16.msra.mxu0 %v1121
      %1153 = vmatprep.subr.bf16.mxu0 %v1120
      %1154 = vmatpush1.bf16.msra.mxu0 %v1119
      %1155 = vmatprep.subr.bf16.mxu0 %v1118
      %1156 = vmatpush1.bf16.msra.mxu0 %v1117
      %1157 = vmatprep.subr.bf16.mxu0 %v1116
      %1158 = vmatpush1.bf16.msra.mxu0 %v1115
      %1159 = vmatprep.subr.bf16.mxu0 %v1114
      %1160 = vmatpush1.bf16.msra.mxu0 %v1113
      %1161 = vmatprep.subr.bf16.mxu0 %v1112
      %1162 = vmatpush1.bf16.msra.mxu0 %v1111
      %1163 = vmatprep.subr.bf16.mxu0 0
      %1164 = vmatpush2.bf16.msra.mxu0 0
      %1165 = vmatprep.subr.bf16.mxu0 0
      %1166 = vmatpush2.bf16.msra.mxu0 0
      %1167 = vmatprep.subr.bf16.mxu0 0
      %1168 = vmatpush2.bf16.msra.mxu0 0
      %1169 = vmatprep.subr.bf16.mxu0 0
      %1170 = vmatpush2.bf16.msra.mxu0 0
      %1171 = vmatprep.subr.bf16.mxu0 0
      %1172 = vmatpush2.bf16.msra.mxu0 0
      %1173 = vmatprep.subr.bf16.mxu0 0
      %1174 = vmatpush2.bf16.msra.mxu0 0
      %1175 = vmatprep.subr.bf16.mxu0 0
      %1176 = vmatpush2.bf16.msra.mxu0 0
      %1177 = vmatprep.subr.bf16.mxu0 %v1128
      %1178 = vmatpush2.bf16.msra.mxu0 %v1127
      %1179 = vmatprep.mubr.bf16.mxu0 %v531
      %1180 = vmatmul.mubr.bf16.gmra.mxu0 %v433
      %v1181 = vpop.f32.mrf.mxu0
      %v1182 = vadd.f32 %v404, %v1181
      %v1183 = vpop.f32.mrf.mxu0
      %v1184 = vadd.f32 %v404, %v1183
      %v1185 = vpop.f32.mrf.mxu0
      %v1186 = vadd.f32 %v409, %v1185
      %v1187 = vpop.f32.mrf.mxu0
      %v1188 = vadd.f32 %v409, %v1187
      %1189 = vmatprep.mubr.bf16.mxu0 %v534
      %1190 = vmatmul.mubr.bf16.gmra.mxu0 %v435
      %v1191 = vpop.f32.mrf.mxu0
      %v1192 = vadd.f32 %v414, %v1191
      %v1193 = vpop.f32.mrf.mxu0
      %v1194 = vadd.f32 %v414, %v1193
      %v1195 = vpop.f32.mrf.mxu0
      %v1196 = vadd.f32 %v419, %v1195
      %v1197 = vpop.f32.mrf.mxu0
      %v1198 = vadd.f32 %v419, %v1197
      %1199 = vdwg.mxu0
      %v1200 = vmax.f32 %v1182, 0.0
      %v1201 = vmax.f32 %v1184, 0.0
      %v1202 = vmax.f32 %v1186, 0.0
      %v1203 = vmax.f32 %v1188, 0.0
      %v1204 = vmax.f32 %v1192, 0.0
      %v1205 = vmax.f32 %v1194, 0.0
      %v1206 = vmax.f32 %v1196, 0.0
      %v1207 = vmax.f32 %v1198, 0.0
      %v1208 = vmul.f32 %v1200, %v600
      %v1209 = vmul.f32 %v1201, %v600
      %v1210 = vmul.f32 %v1202, %v605
      %v1211 = vmul.f32 %v1203, %v605
      %v1212 = vmul.f32 %v1204, %v610
      %v1213 = vmul.f32 %v1205, %v610
      %v1214 = vmul.f32 %v1206, %v615
      %v1215 = vmul.f32 %v1207, %v615
      %v1216 = vadd.f32 %v1208, %v628
      %v1217 = vadd.f32 %v1209, %v628
      %v1218 = vadd.f32 %v1210, %v633
      %v1219 = vadd.f32 %v1211, %v633
      %v1220 = vadd.f32 %v1212, %v638
      %v1221 = vadd.f32 %v1213, %v638
      %v1222 = vadd.f32 %v1214, %v643
      %v1223 = vadd.f32 %v1215, %v643
      %v1224 = vadd.f32 %v1031, %v1216
      %v1225 = vadd.f32 %v1032, %v1217
      %v1226 = vadd.f32 %v1033, %v1218
      %v1227 = vadd.f32 %v1034, %v1219
      %v1228 = vadd.f32 %v1035, %v1220
      %v1229 = vadd.f32 %v1036, %v1221
      %v1230 = vadd.f32 %v1037, %v1222
      %v1231 = vadd.f32 %v1038, %v1223
      %v1232 = vmul.f32 %v1224, 0.25
      %v1233 = vmul.f32 %v1225, 0.25
      %v1234 = vmul.f32 %v1226, 0.25
      %v1235 = vmul.f32 %v1227, 0.25
      %v1236 = vmul.f32 %v1228, 0.25
      %v1237 = vmul.f32 %v1229, 0.25
      %v1238 = vmul.f32 %v1230, 0.25
      %v1239 = vmul.f32 %v1231, 0.25
      %v1240 = vpack.c.bf16 %v1234, %v1232
      %v1241 = vpack.c.bf16 %v1235, %v1233
      %v1242 = vpack.c.bf16 %v1238, %v1236
      %v1243 = vpack.c.bf16 %v1239, %v1237
      %v1248 = vunpack.c.l.b16 %v1240
      %v1249 = vunpack.c.l.b16 %v1241
      %v1250 = vunpack.c.h.b16 %v1240
      %v1251 = vunpack.c.h.b16 %v1241
      %v1252 = vunpack.c.l.b16 %v1242
      %v1253 = vunpack.c.l.b16 %v1243
      %v1254 = vunpack.c.h.b16 %v1242
      %v1255 = vunpack.c.h.b16 %v1243
      %v1256 = vpack.c.b16 %v1249, %v1248
      %v1257 = vpack.c.b16 %v1251, %v1250
      %v1258 = vpack.c.b16 %v1253, %v1252
      %v1259 = vpack.c.b16 %v1255, %v1254
      %vm1264 = vcmask 1043456
      %vm1265 = vcmask 556036
      %vm1266 = vmor %vm1265, %vm1264
      %1267 = vst.msk [vmem:[%s365] sm:$0xff] %vm1266, %v1256
      %1268 = vst.msk [vmem:[%s365 + $0x8] sm:$0xff] %vm1266, %v1257
      %1269 = vst.msk [vmem:[%s365 + $0x10] sm:$0xff] %vm1266, %v1258
      %1270 = vst.msk [vmem:[%s365 + $0x18] sm:$0xff] %vm1266, %v1259
      %p1271 = scmp.lt.s32.totalorder %s19, 1
      %s1272 = scalar_select %p1271, %s19, 1
      %s1273 = smul.addr %s1272, 8
      %s1274 = smul.addr %s1273, 4
      %s1275 = scalar_lea.vmem %s8, %s1274
      // Predicated region
      $region53: #{net_forward.4} parent=51 // pred_check
        %p1276 = pneg %p225
      $region54: #{net_forward.4} parent=51 // pred_check_branch
        %1278 = sbr.rel (%p1276) target = $region56
      $region55: #{net_forward.4} parent=51 // pred_region
        _
      $region56: #{net_forward.4} parent=51 // pred_fallthru
        _
    $region52: #{net_forward.4} parent=5 // pred_fallthru
      _
    %p1279 = scmp.le.s32.totalorder 2, %s14
    // Predicated region
    $region57: #{net_forward.4} parent=5 // pred_check
      %p1280 = pneg %p1279
    $region58: #{net_forward.4} parent=5 // pred_check_branch
      %1282 = sbr.rel (%p1280) target = $region60
    $region59: #{net_forward.4} parent=5 // pred_region
      %s1283 = ssub.s32 %s14, 2
      // Predicated region
      $region61: #{net_forward.4} parent=59 // pred_check
        %p1284 = pneg %p231
      $region62: #{net_forward.4} parent=59 // pred_check_branch
        %1286 = sbr.rel (%p1284) target = $region64
      $region63: #{net_forward.4} parent=59 // pred_region
        %p1287 = scmp.lt.s32.totalorder %s20, 1
        %s1288 = scalar_select %p1287, %s20, 1
        %s1289 = smul.addr %s1288, 8
        %s1290 = smul.addr %s1289, 4
        %s1291 = scalar_lea.vmem %s8, %s1290
      $region64: #{net_forward.4} parent=59 // pred_fallthru
        _
    $region60: #{net_forward.4} parent=5 // pred_fallthru
      _
  $region6: #{net_forward.4} parent=0 // loop_footer
    %s18 = sadd.s32 1, %s14
  $region7: #{net_forward.4} parent=0 // loop_footer_branch
    %13 = sbr.rel target = $region3
  $region8: #{net_forward.4} parent=0 // loop_exit
    _

// kernel: net_forward.5
$region0: #{net_forward.5}
  #allocation0 [shape = 'u32[]', space=smem, size = 0x4, offset = 0x4, fixed_abs, tag = 'smem constant byte address 0x4 - core index']
  #allocation1 [shape = 'u32[144,128]{1,0:T(1,128)}', space=vmem, size = 0x12000, scoped, tag = 'internal scratch']
  %s0 = inlined_call_operand.vmem [shape: bf16[2,6272], index: 0, kind: input, shape index: {}]
  %s1 = inlined_call_operand.vmem [shape: bf16[6272,32], index: 1, kind: input, shape index: {}]
  %s2 = inlined_call_operand.vmem [shape: f32[1,32], index: 2, kind: input, shape index: {}]
  %s3 = inlined_call_operand.vmem [shape: f32[1,32], index: 3, kind: input, shape index: {}]
  %s4 = inlined_call_operand.vmem [shape: f32[1,32], index: 4, kind: input, shape index: {}]
  %s5 = inlined_call_operand.vmem [shape: f32[32,128], index: 5, kind: input, shape index: {}]
  %s6 = inlined_call_operand.vmem [shape: f32[1,128], index: 6, kind: input, shape index: {}]
  %s7 = inlined_call_operand.hbm [shape: f32[2,128], index: 7, kind: output, shape index: {}]
  %s8 = sld [smem:[#allocation0]]
  $region38: #{net_forward.5} parent=0
    _
  %s10 = ssub.s32 1, %s8
  %s11 = scalar_select 0, %s10, %s8
  $region1: #{net_forward.5} parent=0
    #allocation2 [shape = 'u8[1024]{0}', space=vmem, size = 0x400, scoped, tag = 'output window, operand 0, single buffered']
    #allocation3 [shape = 's32[1]{0}', space=sflag, size = 0x4, scoped, tag = 'scoped memory for net_forward.5']
    %12 = vsyncpa [#allocation3], 0
    // Predicated region
    $region2: #{net_forward.5} parent=1 // pred_check
      _
    $region3: #{net_forward.5} parent=1 // pred_check_branch
      %14 = sbr.rel (0) target = $region5
    $region4: #{net_forward.5} parent=1 // pred_region
      _
    $region5: #{net_forward.5} parent=1 // pred_fallthru
      _
    // Predicated region
    $region6: #{net_forward.5} parent=1 // pred_check
      _
    $region7: #{net_forward.5} parent=1 // pred_check_branch
      %16 = sbr.rel (0) target = $region9
    $region8: #{net_forward.5} parent=1 // pred_region
      _
    $region9: #{net_forward.5} parent=1 // pred_fallthru
      _
    // Predicated region
    $region10: #{net_forward.5} parent=1 // pred_check
      _
    $region11: #{net_forward.5} parent=1 // pred_check_branch
      %18 = sbr.rel (0) target = $region13
    $region12: #{net_forward.5} parent=1 // pred_region
      _
    $region13: #{net_forward.5} parent=1 // pred_fallthru
      _
    // Predicated region
    $region14: #{net_forward.5} parent=1 // pred_check
      _
    $region15: #{net_forward.5} parent=1 // pred_check_branch
      %20 = sbr.rel (0) target = $region17
    $region16: #{net_forward.5} parent=1 // pred_region
      _
    $region17: #{net_forward.5} parent=1 // pred_fallthru
      _
    // Predicated region
    $region18: #{net_forward.5} parent=1 // pred_check
      _
    $region19: #{net_forward.5} parent=1 // pred_check_branch
      %22 = sbr.rel (0) target = $region21
    $region20: #{net_forward.5} parent=1 // pred_region
      _
    $region21: #{net_forward.5} parent=1 // pred_fallthru
      _
    // Predicated region
    $region22: #{net_forward.5} parent=1 // pred_check
      _
    $region23: #{net_forward.5} parent=1 // pred_check_branch
      %24 = sbr.rel (0) target = $region25
    $region24: #{net_forward.5} parent=1 // pred_region
      _
    $region25: #{net_forward.5} parent=1 // pred_fallthru
      _
    // Predicated region
    $region26: #{net_forward.5} parent=1 // pred_check
      _
    $region27: #{net_forward.5} parent=1 // pred_check_branch
      %26 = sbr.rel (0) target = $region29
    $region28: #{net_forward.5} parent=1 // pred_region
      _
    $region29: #{net_forward.5} parent=1 // pred_fallthru
      _
    %v28 = vld [vmem:[%s0] sm:$0xff]
    %v29 = vld [vmem:[%s0 + $0x8] sm:$0xff]
    %v30 = vld [vmem:[%s0 + $0x10] sm:$0xff]
    %v31 = vld [vmem:[%s0 + $0x18] sm:$0xff]
    %v32 = vld [vmem:[%s0 + $0x20] sm:$0xff]
    %v33 = vld [vmem:[%s0 + $0x28] sm:$0xff]
    %v34 = vld [vmem:[%s0 + $0x30] sm:$0x1]
    %v35 = vld [vmem:[%s1] sm:$0xf]
    %v36 = vld [vmem:[%s1 + $0x4] sm:$0xf]
    %v37 = vld [vmem:[%s1 + $0x8] sm:$0xf]
    %v38 = vld [vmem:[%s1 + $0xc] sm:$0xf]
    %v39 = vld [vmem:[%s1 + $0x10] sm:$0xf]
    %v40 = vld [vmem:[%s1 + $0x14] sm:$0xf]
    %v41 = vld [vmem:[%s1 + $0x18] sm:$0xf]
    %v42 = vld [vmem:[%s1 + $0x1c] sm:$0xf]
    %v43 = vld [vmem:[%s1 + $0x20] sm:$0xf]
    %v44 = vld [vmem:[%s1 + $0x24] sm:$0xf]
    %v45 = vld [vmem:[%s1 + $0x28] sm:$0xf]
    %v46 = vld [vmem:[%s1 + $0x2c] sm:$0xf]
    %v47 = vld [vmem:[%s1 + $0x30] sm:$0xf]
    %v48 = vld [vmem:[%s1 + $0x34] sm:$0xf]
    %v49 = vld [vmem:[%s1 + $0x38] sm:$0xf]
    %v50 = vld [vmem:[%s1 + $0x3c] sm:$0xf]
    %v51 = vld [vmem:[%s1 + $0x40] sm:$0xf]
    %v52 = vld [vmem:[%s1 + $0x44] sm:$0xf]
    %v53 = vld [vmem:[%s1 + $0x48] sm:$0xf]
    %v54 = vld [vmem:[%s1 + $0x4c] sm:$0xf]
    %v55 = vld [vmem:[%s1 + $0x50] sm:$0xf]
    %v56 = vld [vmem:[%s1 + $0x54] sm:$0xf]
    %v57 = vld [vmem:[%s1 + $0x58] sm:$0xf]
    %v58 = vld [vmem:[%s1 + $0x5c] sm:$0xf]
    %v59 = vld [vmem:[%s1 + $0x60] sm:$0xf]
    %v60 = vld [vmem:[%s1 + $0x64] sm:$0xf]
    %v61 = vld [vmem:[%s1 + $0x68] sm:$0xf]
    %v62 = vld [vmem:[%s1 + $0x6c] sm:$0xf]
    %v63 = vld [vmem:[%s1 + $0x70] sm:$0xf]
    %v64 = vld [vmem:[%s1 + $0x74] sm:$0xf]
    %v65 = vld [vmem:[%s1 + $0x78] sm:$0xf]
    %v66 = vld [vmem:[%s1 + $0x7c] sm:$0xf]
    %v67 = vld [vmem:[%s1 + $0x80] sm:$0xf]
    %v68 = vld [vmem:[%s1 + $0x84] sm:$0xf]
    %v69 = vld [vmem:[%s1 + $0x88] sm:$0xf]
    %v70 = vld [vmem:[%s1 + $0x8c] sm:$0xf]
    %v71 = vld [vmem:[%s1 + $0x90] sm:$0xf]
    %v72 = vld [vmem:[%s1 + $0x94] sm:$0xf]
    %v73 = vld [vmem:[%s1 + $0x98] sm:$0xf]
    %v74 = vld [vmem:[%s1 + $0x9c] sm:$0xf]
    %v75 = vld [vmem:[%s1 + $0xa0] sm:$0xf]
    %v76 = vld [vmem:[%s1 + $0xa4] sm:$0xf]
    %v77 = vld [vmem:[%s1 + $0xa8] sm:$0xf]
    %v78 = vld [vmem:[%s1 + $0xac] sm:$0xf]
    %v79 = vld [vmem:[%s1 + $0xb0] sm:$0xf]
    %v80 = vld [vmem:[%s1 + $0xb4] sm:$0xf]
    %v81 = vld [vmem:[%s1 + $0xb8] sm:$0xf]
    %v82 = vld [vmem:[%s1 + $0xbc] sm:$0xf]
    %v83 = vld [vmem:[%s1 + $0xc0] sm:$0xf]
    %v84 = vld [vmem:[%s1 + $0xc4] sm:$0xf]
    %v85 = vld [vmem:[%s1 + $0xc8] sm:$0xf]
    %v86 = vld [vmem:[%s1 + $0xcc] sm:$0xf]
    %v87 = vld [vmem:[%s1 + $0xd0] sm:$0xf]
    %v88 = vld [vmem:[%s1 + $0xd4] sm:$0xf]
    %v89 = vld [vmem:[%s1 + $0xd8] sm:$0xf]
    %v90 = vld [vmem:[%s1 + $0xdc] sm:$0xf]
    %v91 = vld [vmem:[%s1 + $0xe0] sm:$0xf]
    %v92 = vld [vmem:[%s1 + $0xe4] sm:$0xf]
    %v93 = vld [vmem:[%s1 + $0xe8] sm:$0xf]
    %v94 = vld [vmem:[%s1 + $0xec] sm:$0xf]
    %v95 = vld [vmem:[%s1 + $0xf0] sm:$0xf]
    %v96 = vld [vmem:[%s1 + $0xf4] sm:$0xf]
    %v97 = vld [vmem:[%s1 + $0xf8] sm:$0xf]
    %v98 = vld [vmem:[%s1 + $0xfc] sm:$0xf]
    %v99 = vld [vmem:[%s1 + $0x100] sm:$0xf]
    %v100 = vld [vmem:[%s1 + $0x104] sm:$0xf]
    %v101 = vld [vmem:[%s1 + $0x108] sm:$0xf]
    %v102 = vld [vmem:[%s1 + $0x10c] sm:$0xf]
    %v103 = vld [vmem:[%s1 + $0x110] sm:$0xf]
    %v104 = vld [vmem:[%s1 + $0x114] sm:$0xf]
    %v105 = vld [vmem:[%s1 + $0x118] sm:$0xf]
    %v106 = vld [vmem:[%s1 + $0x11c] sm:$0xf]
    %v107 = vld [vmem:[%s1 + $0x120] sm:$0xf]
    %v108 = vld [vmem:[%s1 + $0x124] sm:$0xf]
    %v109 = vld [vmem:[%s1 + $0x128] sm:$0xf]
    %v110 = vld [vmem:[%s1 + $0x12c] sm:$0xf]
    %v111 = vld [vmem:[%s1 + $0x130] sm:$0xf]
    %v112 = vld [vmem:[%s1 + $0x134] sm:$0xf]
    %v113 = vld [vmem:[%s1 + $0x138] sm:$0xf]
    %v114 = vld [vmem:[%s1 + $0x13c] sm:$0xf]
    %v115 = vld [vmem:[%s1 + $0x140] sm:$0xf]
    %v116 = vld [vmem:[%s1 + $0x144] sm:$0xf]
    %v117 = vld [vmem:[%s1 + $0x148] sm:$0xf]
    %v118 = vld [vmem:[%s1 + $0x14c] sm:$0xf]
    %v119 = vld [vmem:[%s1 + $0x150] sm:$0xf]
    %v120 = vld [vmem:[%s1 + $0x154] sm:$0xf]
    %v121 = vld [vmem:[%s1 + $0x158] sm:$0xf]
    %v122 = vld [vmem:[%s1 + $0x15c] sm:$0xf]
    %v123 = vld [vmem:[%s1 + $0x160] sm:$0xf]
    %v124 = vld [vmem:[%s1 + $0x164] sm:$0xf]
    %v125 = vld [vmem:[%s1 + $0x168] sm:$0xf]
    %v126 = vld [vmem:[%s1 + $0x16c] sm:$0xf]
    %v127 = vld [vmem:[%s1 + $0x170] sm:$0xf]
    %v128 = vld [vmem:[%s1 + $0x174] sm:$0xf]
    %v129 = vld [vmem:[%s1 + $0x178] sm:$0xf]
    %v130 = vld [vmem:[%s1 + $0x17c] sm:$0xf]
    %v131 = vld [vmem:[%s1 + $0x180] sm:$0xf]
    %v132 = vld [vmem:[%s1 + $0x184] sm:$0xf]
    %v133 = vld [vmem:[%s1 + $0x188] sm:$0xf]
    %v134 = vld [vmem:[%s1 + $0x18c] sm:$0xf]
    %v135 = vld [vmem:[%s1 + $0x190] sm:$0xf]
    %v136 = vld [vmem:[%s1 + $0x194] sm:$0xf]
    %v137 = vld [vmem:[%s1 + $0x198] sm:$0xf]
    %v138 = vld [vmem:[%s1 + $0x19c] sm:$0xf]
    %v139 = vld [vmem:[%s1 + $0x1a0] sm:$0xf]
    %v140 = vld [vmem:[%s1 + $0x1a4] sm:$0xf]
    %v141 = vld [vmem:[%s1 + $0x1a8] sm:$0xf]
    %v142 = vld [vmem:[%s1 + $0x1ac] sm:$0xf]
    %v143 = vld [vmem:[%s1 + $0x1b0] sm:$0xf]
    %v144 = vld [vmem:[%s1 + $0x1b4] sm:$0xf]
    %v145 = vld [vmem:[%s1 + $0x1b8] sm:$0xf]
    %v146 = vld [vmem:[%s1 + $0x1bc] sm:$0xf]
    %v147 = vld [vmem:[%s1 + $0x1c0] sm:$0xf]
    %v148 = vld [vmem:[%s1 + $0x1c4] sm:$0xf]
    %v149 = vld [vmem:[%s1 + $0x1c8] sm:$0xf]
    %v150 = vld [vmem:[%s1 + $0x1cc] sm:$0xf]
    %v151 = vld [vmem:[%s1 + $0x1d0] sm:$0xf]
    %v152 = vld [vmem:[%s1 + $0x1d4] sm:$0xf]
    %v153 = vld [vmem:[%s1 + $0x1d8] sm:$0xf]
    %v154 = vld [vmem:[%s1 + $0x1dc] sm:$0xf]
    %v155 = vld [vmem:[%s1 + $0x1e0] sm:$0xf]
    %v156 = vld [vmem:[%s1 + $0x1e4] sm:$0xf]
    %v157 = vld [vmem:[%s1 + $0x1e8] sm:$0xf]
    %v158 = vld [vmem:[%s1 + $0x1ec] sm:$0xf]
    %v159 = vld [vmem:[%s1 + $0x1f0] sm:$0xf]
    %v160 = vld [vmem:[%s1 + $0x1f4] sm:$0xf]
    %v161 = vld [vmem:[%s1 + $0x1f8] sm:$0xf]
    %v162 = vld [vmem:[%s1 + $0x1fc] sm:$0xf]
    %v163 = vld [vmem:[%s1 + $0x200] sm:$0xf]
    %v164 = vld [vmem:[%s1 + $0x204] sm:$0xf]
    %v165 = vld [vmem:[%s1 + $0x208] sm:$0xf]
    %v166 = vld [vmem:[%s1 + $0x20c] sm:$0xf]
    %v167 = vld [vmem:[%s1 + $0x210] sm:$0xf]
    %v168 = vld [vmem:[%s1 + $0x214] sm:$0xf]
    %v169 = vld [vmem:[%s1 + $0x218] sm:$0xf]
    %v170 = vld [vmem:[%s1 + $0x21c] sm:$0xf]
    %v171 = vld [vmem:[%s1 + $0x220] sm:$0xf]
    %v172 = vld [vmem:[%s1 + $0x224] sm:$0xf]
    %v173 = vld [vmem:[%s1 + $0x228] sm:$0xf]
    %v174 = vld [vmem:[%s1 + $0x22c] sm:$0xf]
    %v175 = vld [vmem:[%s1 + $0x230] sm:$0xf]
    %v176 = vld [vmem:[%s1 + $0x234] sm:$0xf]
    %v177 = vld [vmem:[%s1 + $0x238] sm:$0xf]
    %v178 = vld [vmem:[%s1 + $0x23c] sm:$0xf]
    %v179 = vld [vmem:[%s1 + $0x240] sm:$0xf]
    %v180 = vld [vmem:[%s1 + $0x244] sm:$0xf]
    %v181 = vld [vmem:[%s1 + $0x248] sm:$0xf]
    %v182 = vld [vmem:[%s1 + $0x24c] sm:$0xf]
    %v183 = vld [vmem:[%s1 + $0x250] sm:$0xf]
    %v184 = vld [vmem:[%s1 + $0x254] sm:$0xf]
    %v185 = vld [vmem:[%s1 + $0x258] sm:$0xf]
    %v186 = vld [vmem:[%s1 + $0x25c] sm:$0xf]
    %v187 = vld [vmem:[%s1 + $0x260] sm:$0xf]
    %v188 = vld [vmem:[%s1 + $0x264] sm:$0xf]
    %v189 = vld [vmem:[%s1 + $0x268] sm:$0xf]
    %v190 = vld [vmem:[%s1 + $0x26c] sm:$0xf]
    %v191 = vld [vmem:[%s1 + $0x270] sm:$0xf]
    %v192 = vld [vmem:[%s1 + $0x274] sm:$0xf]
    %v193 = vld [vmem:[%s1 + $0x278] sm:$0xf]
    %v194 = vld [vmem:[%s1 + $0x27c] sm:$0xf]
    %v195 = vld [vmem:[%s1 + $0x280] sm:$0xf]
    %v196 = vld [vmem:[%s1 + $0x284] sm:$0xf]
    %v197 = vld [vmem:[%s1 + $0x288] sm:$0xf]
    %v198 = vld [vmem:[%s1 + $0x28c] sm:$0xf]
    %v199 = vld [vmem:[%s1 + $0x290] sm:$0xf]
    %v200 = vld [vmem:[%s1 + $0x294] sm:$0xf]
    %v201 = vld [vmem:[%s1 + $0x298] sm:$0xf]
    %v202 = vld [vmem:[%s1 + $0x29c] sm:$0xf]
    %v203 = vld [vmem:[%s1 + $0x2a0] sm:$0xf]
    %v204 = vld [vmem:[%s1 + $0x2a4] sm:$0xf]
    %v205 = vld [vmem:[%s1 + $0x2a8] sm:$0xf]
    %v206 = vld [vmem:[%s1 + $0x2ac] sm:$0xf]
    %v207 = vld [vmem:[%s1 + $0x2b0] sm:$0xf]
    %v208 = vld [vmem:[%s1 + $0x2b4] sm:$0xf]
    %v209 = vld [vmem:[%s1 + $0x2b8] sm:$0xf]
    %v210 = vld [vmem:[%s1 + $0x2bc] sm:$0xf]
    %v211 = vld [vmem:[%s1 + $0x2c0] sm:$0xf]
    %v212 = vld [vmem:[%s1 + $0x2c4] sm:$0xf]
    %v213 = vld [vmem:[%s1 + $0x2c8] sm:$0xf]
    %v214 = vld [vmem:[%s1 + $0x2cc] sm:$0xf]
    %v215 = vld [vmem:[%s1 + $0x2d0] sm:$0xf]
    %v216 = vld [vmem:[%s1 + $0x2d4] sm:$0xf]
    %v217 = vld [vmem:[%s1 + $0x2d8] sm:$0xf]
    %v218 = vld [vmem:[%s1 + $0x2dc] sm:$0xf]
    %v219 = vld [vmem:[%s1 + $0x2e0] sm:$0xf]
    %v220 = vld [vmem:[%s1 + $0x2e4] sm:$0xf]
    %v221 = vld [vmem:[%s1 + $0x2e8] sm:$0xf]
    %v222 = vld [vmem:[%s1 + $0x2ec] sm:$0xf]
    %v223 = vld [vmem:[%s1 + $0x2f0] sm:$0xf]
    %v224 = vld [vmem:[%s1 + $0x2f4] sm:$0xf]
    %v225 = vld [vmem:[%s1 + $0x2f8] sm:$0xf]
    %v226 = vld [vmem:[%s1 + $0x2fc] sm:$0xf]
    %v227 = vld [vmem:[%s1 + $0x300] sm:$0xf]
    %v228 = vld [vmem:[%s1 + $0x304] sm:$0xf]
    %v229 = vld [vmem:[%s1 + $0x308] sm:$0xf]
    %v230 = vld [vmem:[%s1 + $0x30c] sm:$0xf]
    %v231 = vld [vmem:[%s1 + $0x310] sm:$0xf]
    %v232 = vld [vmem:[%s1 + $0x314] sm:$0xf]
    %v233 = vld [vmem:[%s1 + $0x318] sm:$0xf]
    %v234 = vld [vmem:[%s1 + $0x31c] sm:$0xf]
    %v235 = vld [vmem:[%s1 + $0x320] sm:$0xf]
    %v236 = vld [vmem:[%s1 + $0x324] sm:$0xf]
    %v237 = vld [vmem:[%s1 + $0x328] sm:$0xf]
    %v238 = vld [vmem:[%s1 + $0x32c] sm:$0xf]
    %v239 = vld [vmem:[%s1 + $0x330] sm:$0xf]
    %v240 = vld [vmem:[%s1 + $0x334] sm:$0xf]
    %v241 = vld [vmem:[%s1 + $0x338] sm:$0xf]
    %v242 = vld [vmem:[%s1 + $0x33c] sm:$0xf]
    %v243 = vld [vmem:[%s1 + $0x340] sm:$0xf]
    %v244 = vld [vmem:[%s1 + $0x344] sm:$0xf]
    %v245 = vld [vmem:[%s1 + $0x348] sm:$0xf]
    %v246 = vld [vmem:[%s1 + $0x34c] sm:$0xf]
    %v247 = vld [vmem:[%s1 + $0x350] sm:$0xf]
    %v248 = vld [vmem:[%s1 + $0x354] sm:$0xf]
    %v249 = vld [vmem:[%s1 + $0x358] sm:$0xf]
    %v250 = vld [vmem:[%s1 + $0x35c] sm:$0xf]
    %v251 = vld [vmem:[%s1 + $0x360] sm:$0xf]
    %v252 = vld [vmem:[%s1 + $0x364] sm:$0xf]
    %v253 = vld [vmem:[%s1 + $0x368] sm:$0xf]
    %v254 = vld [vmem:[%s1 + $0x36c] sm:$0xf]
    %v255 = vld [vmem:[%s1 + $0x370] sm:$0xf]
    %v256 = vld [vmem:[%s1 + $0x374] sm:$0xf]
    %v257 = vld [vmem:[%s1 + $0x378] sm:$0xf]
    %v258 = vld [vmem:[%s1 + $0x37c] sm:$0xf]
    %v259 = vld [vmem:[%s1 + $0x380] sm:$0xf]
    %v260 = vld [vmem:[%s1 + $0x384] sm:$0xf]
    %v261 = vld [vmem:[%s1 + $0x388] sm:$0xf]
    %v262 = vld [vmem:[%s1 + $0x38c] sm:$0xf]
    %v263 = vld [vmem:[%s1 + $0x390] sm:$0xf]
    %v264 = vld [vmem:[%s1 + $0x394] sm:$0xf]
    %v265 = vld [vmem:[%s1 + $0x398] sm:$0xf]
    %v266 = vld [vmem:[%s1 + $0x39c] sm:$0xf]
    %v267 = vld [vmem:[%s1 + $0x3a0] sm:$0xf]
    %v268 = vld [vmem:[%s1 + $0x3a4] sm:$0xf]
    %v269 = vld [vmem:[%s1 + $0x3a8] sm:$0xf]
    %v270 = vld [vmem:[%s1 + $0x3ac] sm:$0xf]
    %v271 = vld [vmem:[%s1 + $0x3b0] sm:$0xf]
    %v272 = vld [vmem:[%s1 + $0x3b4] sm:$0xf]
    %v273 = vld [vmem:[%s1 + $0x3b8] sm:$0xf]
    %v274 = vld [vmem:[%s1 + $0x3bc] sm:$0xf]
    %v275 = vld [vmem:[%s1 + $0x3c0] sm:$0xf]
    %v276 = vld [vmem:[%s1 + $0x3c4] sm:$0xf]
    %v277 = vld [vmem:[%s1 + $0x3c8] sm:$0xf]
    %v278 = vld [vmem:[%s1 + $0x3cc] sm:$0xf]
    %v279 = vld [vmem:[%s1 + $0x3d0] sm:$0xf]
    %v280 = vld [vmem:[%s1 + $0x3d4] sm:$0xf]
    %v281 = vld [vmem:[%s1 + $0x3d8] sm:$0xf]
    %v282 = vld [vmem:[%s1 + $0x3dc] sm:$0xf]
    %v283 = vld [vmem:[%s1 + $0x3e0] sm:$0xf]
    %v284 = vld [vmem:[%s1 + $0x3e4] sm:$0xf]
    %v285 = vld [vmem:[%s1 + $0x3e8] sm:$0xf]
    %v286 = vld [vmem:[%s1 + $0x3ec] sm:$0xf]
    %v287 = vld [vmem:[%s1 + $0x3f0] sm:$0xf]
    %v288 = vld [vmem:[%s1 + $0x3f4] sm:$0xf]
    %v289 = vld [vmem:[%s1 + $0x3f8] sm:$0xf]
    %v290 = vld [vmem:[%s1 + $0x3fc] sm:$0xf]
    %v291 = vld [vmem:[%s1 + $0x400] sm:$0xf]
    %v292 = vld [vmem:[%s1 + $0x404] sm:$0xf]
    %v293 = vld [vmem:[%s1 + $0x408] sm:$0xf]
    %v294 = vld [vmem:[%s1 + $0x40c] sm:$0xf]
    %v295 = vld [vmem:[%s1 + $0x410] sm:$0xf]
    %v296 = vld [vmem:[%s1 + $0x414] sm:$0xf]
    %v297 = vld [vmem:[%s1 + $0x418] sm:$0xf]
    %v298 = vld [vmem:[%s1 + $0x41c] sm:$0xf]
    %v299 = vld [vmem:[%s1 + $0x420] sm:$0xf]
    %v300 = vld [vmem:[%s1 + $0x424] sm:$0xf]
    %v301 = vld [vmem:[%s1 + $0x428] sm:$0xf]
    %v302 = vld [vmem:[%s1 + $0x42c] sm:$0xf]
    %v303 = vld [vmem:[%s1 + $0x430] sm:$0xf]
    %v304 = vld [vmem:[%s1 + $0x434] sm:$0xf]
    %v305 = vld [vmem:[%s1 + $0x438] sm:$0xf]
    %v306 = vld [vmem:[%s1 + $0x43c] sm:$0xf]
    %v307 = vld [vmem:[%s1 + $0x440] sm:$0xf]
    %v308 = vld [vmem:[%s1 + $0x444] sm:$0xf]
    %v309 = vld [vmem:[%s1 + $0x448] sm:$0xf]
    %v310 = vld [vmem:[%s1 + $0x44c] sm:$0xf]
    %v311 = vld [vmem:[%s1 + $0x450] sm:$0xf]
    %v312 = vld [vmem:[%s1 + $0x454] sm:$0xf]
    %v313 = vld [vmem:[%s1 + $0x458] sm:$0xf]
    %v314 = vld [vmem:[%s1 + $0x45c] sm:$0xf]
    %v315 = vld [vmem:[%s1 + $0x460] sm:$0xf]
    %v316 = vld [vmem:[%s1 + $0x464] sm:$0xf]
    %v317 = vld [vmem:[%s1 + $0x468] sm:$0xf]
    %v318 = vld [vmem:[%s1 + $0x46c] sm:$0xf]
    %v319 = vld [vmem:[%s1 + $0x470] sm:$0xf]
    %v320 = vld [vmem:[%s1 + $0x474] sm:$0xf]
    %v321 = vld [vmem:[%s1 + $0x478] sm:$0xf]
    %v322 = vld [vmem:[%s1 + $0x47c] sm:$0xf]
    %v323 = vld [vmem:[%s1 + $0x480] sm:$0xf]
    %v324 = vld [vmem:[%s1 + $0x484] sm:$0xf]
    %v325 = vld [vmem:[%s1 + $0x488] sm:$0xf]
    %v326 = vld [vmem:[%s1 + $0x48c] sm:$0xf]
    %v327 = vld [vmem:[%s1 + $0x490] sm:$0xf]
    %v328 = vld [vmem:[%s1 + $0x494] sm:$0xf]
    %v329 = vld [vmem:[%s1 + $0x498] sm:$0xf]
    %v330 = vld [vmem:[%s1 + $0x49c] sm:$0xf]
    %v331 = vld [vmem:[%s1 + $0x4a0] sm:$0xf]
    %v332 = vld [vmem:[%s1 + $0x4a4] sm:$0xf]
    %v333 = vld [vmem:[%s1 + $0x4a8] sm:$0xf]
    %v334 = vld [vmem:[%s1 + $0x4ac] sm:$0xf]
    %v335 = vld [vmem:[%s1 + $0x4b0] sm:$0xf]
    %v336 = vld [vmem:[%s1 + $0x4b4] sm:$0xf]
    %v337 = vld [vmem:[%s1 + $0x4b8] sm:$0xf]
    %v338 = vld [vmem:[%s1 + $0x4bc] sm:$0xf]
    %v339 = vld [vmem:[%s1 + $0x4c0] sm:$0xf]
    %v340 = vld [vmem:[%s1 + $0x4c4] sm:$0xf]
    %v341 = vld [vmem:[%s1 + $0x4c8] sm:$0xf]
    %v342 = vld [vmem:[%s1 + $0x4cc] sm:$0xf]
    %v343 = vld [vmem:[%s1 + $0x4d0] sm:$0xf]
    %v344 = vld [vmem:[%s1 + $0x4d4] sm:$0xf]
    %v345 = vld [vmem:[%s1 + $0x4d8] sm:$0xf]
    %v346 = vld [vmem:[%s1 + $0x4dc] sm:$0xf]
    %v347 = vld [vmem:[%s1 + $0x4e0] sm:$0xf]
    %v348 = vld [vmem:[%s1 + $0x4e4] sm:$0xf]
    %v349 = vld [vmem:[%s1 + $0x4e8] sm:$0xf]
    %v350 = vld [vmem:[%s1 + $0x4ec] sm:$0xf]
    %v351 = vld [vmem:[%s1 + $0x4f0] sm:$0xf]
    %v352 = vld [vmem:[%s1 + $0x4f4] sm:$0xf]
    %v353 = vld [vmem:[%s1 + $0x4f8] sm:$0xf]
    %v354 = vld [vmem:[%s1 + $0x4fc] sm:$0xf]
    %v355 = vld [vmem:[%s1 + $0x500] sm:$0xf]
    %v356 = vld [vmem:[%s1 + $0x504] sm:$0xf]
    %v357 = vld [vmem:[%s1 + $0x508] sm:$0xf]
    %v358 = vld [vmem:[%s1 + $0x50c] sm:$0xf]
    %v359 = vld [vmem:[%s1 + $0x510] sm:$0xf]
    %v360 = vld [vmem:[%s1 + $0x514] sm:$0xf]
    %v361 = vld [vmem:[%s1 + $0x518] sm:$0xf]
    %v362 = vld [vmem:[%s1 + $0x51c] sm:$0xf]
    %v363 = vld [vmem:[%s1 + $0x520] sm:$0xf]
    %v364 = vld [vmem:[%s1 + $0x524] sm:$0xf]
    %v365 = vld [vmem:[%s1 + $0x528] sm:$0xf]
    %v366 = vld [vmem:[%s1 + $0x52c] sm:$0xf]
    %v367 = vld [vmem:[%s1 + $0x530] sm:$0xf]
    %v368 = vld [vmem:[%s1 + $0x534] sm:$0xf]
    %v369 = vld [vmem:[%s1 + $0x538] sm:$0xf]
    %v370 = vld [vmem:[%s1 + $0x53c] sm:$0xf]
    %v371 = vld [vmem:[%s1 + $0x540] sm:$0xf]
    %v372 = vld [vmem:[%s1 + $0x544] sm:$0xf]
    %v373 = vld [vmem:[%s1 + $0x548] sm:$0xf]
    %v374 = vld [vmem:[%s1 + $0x54c] sm:$0xf]
    %v375 = vld [vmem:[%s1 + $0x550] sm:$0xf]
    %v376 = vld [vmem:[%s1 + $0x554] sm:$0xf]
    %v377 = vld [vmem:[%s1 + $0x558] sm:$0xf]
    %v378 = vld [vmem:[%s1 + $0x55c] sm:$0xf]
    %v379 = vld [vmem:[%s1 + $0x560] sm:$0xf]
    %v380 = vld [vmem:[%s1 + $0x564] sm:$0xf]
    %v381 = vld [vmem:[%s1 + $0x568] sm:$0xf]
    %v382 = vld [vmem:[%s1 + $0x56c] sm:$0xf]
    %v383 = vld [vmem:[%s1 + $0x570] sm:$0xf]
    %v384 = vld [vmem:[%s1 + $0x574] sm:$0xf]
    %v385 = vld [vmem:[%s1 + $0x578] sm:$0xf]
    %v386 = vld [vmem:[%s1 + $0x57c] sm:$0xf]
    %v387 = vld [vmem:[%s1 + $0x580] sm:$0xf]
    %v388 = vld [vmem:[%s1 + $0x584] sm:$0xf]
    %v389 = vld [vmem:[%s1 + $0x588] sm:$0xf]
    %v390 = vld [vmem:[%s1 + $0x58c] sm:$0xf]
    %v391 = vld [vmem:[%s1 + $0x590] sm:$0xf]
    %v392 = vld [vmem:[%s1 + $0x594] sm:$0xf]
    %v393 = vld [vmem:[%s1 + $0x598] sm:$0xf]
    %v394 = vld [vmem:[%s1 + $0x59c] sm:$0xf]
    %v395 = vld [vmem:[%s1 + $0x5a0] sm:$0xf]
    %v396 = vld [vmem:[%s1 + $0x5a4] sm:$0xf]
    %v397 = vld [vmem:[%s1 + $0x5a8] sm:$0xf]
    %v398 = vld [vmem:[%s1 + $0x5ac] sm:$0xf]
    %v399 = vld [vmem:[%s1 + $0x5b0] sm:$0xf]
    %v400 = vld [vmem:[%s1 + $0x5b4] sm:$0xf]
    %v401 = vld [vmem:[%s1 + $0x5b8] sm:$0xf]
    %v402 = vld [vmem:[%s1 + $0x5bc] sm:$0xf]
    %v403 = vld [vmem:[%s1 + $0x5c0] sm:$0xf]
    %v404 = vld [vmem:[%s1 + $0x5c4] sm:$0xf]
    %v405 = vld [vmem:[%s1 + $0x5c8] sm:$0xf]
    %v406 = vld [vmem:[%s1 + $0x5cc] sm:$0xf]
    %v407 = vld [vmem:[%s1 + $0x5d0] sm:$0xf]
    %v408 = vld [vmem:[%s1 + $0x5d4] sm:$0xf]
    %v409 = vld [vmem:[%s1 + $0x5d8] sm:$0xf]
    %v410 = vld [vmem:[%s1 + $0x5dc] sm:$0xf]
    %v411 = vld [vmem:[%s1 + $0x5e0] sm:$0xf]
    %v412 = vld [vmem:[%s1 + $0x5e4] sm:$0xf]
    %v413 = vld [vmem:[%s1 + $0x5e8] sm:$0xf]
    %v414 = vld [vmem:[%s1 + $0x5ec] sm:$0xf]
    %v415 = vld [vmem:[%s1 + $0x5f0] sm:$0xf]
    %v416 = vld [vmem:[%s1 + $0x5f4] sm:$0xf]
    %v417 = vld [vmem:[%s1 + $0x5f8] sm:$0xf]
    %v418 = vld [vmem:[%s1 + $0x5fc] sm:$0xf]
    %v419 = vld [vmem:[%s1 + $0x600] sm:$0xf]
    %v420 = vld [vmem:[%s1 + $0x604] sm:$0xf]
    %v421 = vld [vmem:[%s1 + $0x608] sm:$0xf]
    %v422 = vld [vmem:[%s1 + $0x60c] sm:$0xf]
    %v423 = vld [vmem:[%s1 + $0x610] sm:$0xf]
    %v424 = vld [vmem:[%s1 + $0x614] sm:$0xf]
    %v425 = vld [vmem:[%s1 + $0x618] sm:$0xf]
    %v426 = vld [vmem:[%s1 + $0x61c] sm:$0xf]
    %v427 = vld [vmem:[%s1 + $0x620] sm:$0xf]
    %v428 = vld [vmem:[%s1 + $0x624] sm:$0xf]
    %v429 = vld [vmem:[%s1 + $0x628] sm:$0xf]
    %v430 = vld [vmem:[%s1 + $0x62c] sm:$0xf]
    %v431 = vld [vmem:[%s1 + $0x630] sm:$0xf]
    %v432 = vld [vmem:[%s1 + $0x634] sm:$0xf]
    %v433 = vld [vmem:[%s1 + $0x638] sm:$0xf]
    %v434 = vld [vmem:[%s1 + $0x63c] sm:$0xf]
    %v435 = vld [vmem:[%s1 + $0x640] sm:$0xf]
    %v436 = vld [vmem:[%s1 + $0x644] sm:$0xf]
    %v437 = vld [vmem:[%s1 + $0x648] sm:$0xf]
    %v438 = vld [vmem:[%s1 + $0x64c] sm:$0xf]
    %v439 = vld [vmem:[%s1 + $0x650] sm:$0xf]
    %v440 = vld [vmem:[%s1 + $0x654] sm:$0xf]
    %v441 = vld [vmem:[%s1 + $0x658] sm:$0xf]
    %v442 = vld [vmem:[%s1 + $0x65c] sm:$0xf]
    %v443 = vld [vmem:[%s1 + $0x660] sm:$0xf]
    %v444 = vld [vmem:[%s1 + $0x664] sm:$0xf]
    %v445 = vld [vmem:[%s1 + $0x668] sm:$0xf]
    %v446 = vld [vmem:[%s1 + $0x66c] sm:$0xf]
    %v447 = vld [vmem:[%s1 + $0x670] sm:$0xf]
    %v448 = vld [vmem:[%s1 + $0x674] sm:$0xf]
    %v449 = vld [vmem:[%s1 + $0x678] sm:$0xf]
    %v450 = vld [vmem:[%s1 + $0x67c] sm:$0xf]
    %v451 = vld [vmem:[%s1 + $0x680] sm:$0xf]
    %v452 = vld [vmem:[%s1 + $0x684] sm:$0xf]
    %v453 = vld [vmem:[%s1 + $0x688] sm:$0xf]
    %v454 = vld [vmem:[%s1 + $0x68c] sm:$0xf]
    %v455 = vld [vmem:[%s1 + $0x690] sm:$0xf]
    %v456 = vld [vmem:[%s1 + $0x694] sm:$0xf]
    %v457 = vld [vmem:[%s1 + $0x698] sm:$0xf]
    %v458 = vld [vmem:[%s1 + $0x69c] sm:$0xf]
    %v459 = vld [vmem:[%s1 + $0x6a0] sm:$0xf]
    %v460 = vld [vmem:[%s1 + $0x6a4] sm:$0xf]
    %v461 = vld [vmem:[%s1 + $0x6a8] sm:$0xf]
    %v462 = vld [vmem:[%s1 + $0x6ac] sm:$0xf]
    %v463 = vld [vmem:[%s1 + $0x6b0] sm:$0xf]
    %v464 = vld [vmem:[%s1 + $0x6b4] sm:$0xf]
    %v465 = vld [vmem:[%s1 + $0x6b8] sm:$0xf]
    %v466 = vld [vmem:[%s1 + $0x6bc] sm:$0xf]
    %v467 = vld [vmem:[%s1 + $0x6c0] sm:$0xf]
    %v468 = vld [vmem:[%s1 + $0x6c4] sm:$0xf]
    %v469 = vld [vmem:[%s1 + $0x6c8] sm:$0xf]
    %v470 = vld [vmem:[%s1 + $0x6cc] sm:$0xf]
    %v471 = vld [vmem:[%s1 + $0x6d0] sm:$0xf]
    %v472 = vld [vmem:[%s1 + $0x6d4] sm:$0xf]
    %v473 = vld [vmem:[%s1 + $0x6d8] sm:$0xf]
    %v474 = vld [vmem:[%s1 + $0x6dc] sm:$0xf]
    %v475 = vld [vmem:[%s1 + $0x6e0] sm:$0xf]
    %v476 = vld [vmem:[%s1 + $0x6e4] sm:$0xf]
    %v477 = vld [vmem:[%s1 + $0x6e8] sm:$0xf]
    %v478 = vld [vmem:[%s1 + $0x6ec] sm:$0xf]
    %v479 = vld [vmem:[%s1 + $0x6f0] sm:$0xf]
    %v480 = vld [vmem:[%s1 + $0x6f4] sm:$0xf]
    %v481 = vld [vmem:[%s1 + $0x6f8] sm:$0xf]
    %v482 = vld [vmem:[%s1 + $0x6fc] sm:$0xf]
    %v483 = vld [vmem:[%s1 + $0x700] sm:$0xf]
    %v484 = vld [vmem:[%s1 + $0x704] sm:$0xf]
    %v485 = vld [vmem:[%s1 + $0x708] sm:$0xf]
    %v486 = vld [vmem:[%s1 + $0x70c] sm:$0xf]
    %v487 = vld [vmem:[%s1 + $0x710] sm:$0xf]
    %v488 = vld [vmem:[%s1 + $0x714] sm:$0xf]
    %v489 = vld [vmem:[%s1 + $0x718] sm:$0xf]
    %v490 = vld [vmem:[%s1 + $0x71c] sm:$0xf]
    %v491 = vld [vmem:[%s1 + $0x720] sm:$0xf]
    %v492 = vld [vmem:[%s1 + $0x724] sm:$0xf]
    %v493 = vld [vmem:[%s1 + $0x728] sm:$0xf]
    %v494 = vld [vmem:[%s1 + $0x72c] sm:$0xf]
    %v495 = vld [vmem:[%s1 + $0x730] sm:$0xf]
    %v496 = vld [vmem:[%s1 + $0x734] sm:$0xf]
    %v497 = vld [vmem:[%s1 + $0x738] sm:$0xf]
    %v498 = vld [vmem:[%s1 + $0x73c] sm:$0xf]
    %v499 = vld [vmem:[%s1 + $0x740] sm:$0xf]
    %v500 = vld [vmem:[%s1 + $0x744] sm:$0xf]
    %v501 = vld [vmem:[%s1 + $0x748] sm:$0xf]
    %v502 = vld [vmem:[%s1 + $0x74c] sm:$0xf]
    %v503 = vld [vmem:[%s1 + $0x750] sm:$0xf]
    %v504 = vld [vmem:[%s1 + $0x754] sm:$0xf]
    %v505 = vld [vmem:[%s1 + $0x758] sm:$0xf]
    %v506 = vld [vmem:[%s1 + $0x75c] sm:$0xf]
    %v507 = vld [vmem:[%s1 + $0x760] sm:$0xf]
    %v508 = vld [vmem:[%s1 + $0x764] sm:$0xf]
    %v509 = vld [vmem:[%s1 + $0x768] sm:$0xf]
    %v510 = vld [vmem:[%s1 + $0x76c] sm:$0xf]
    %v511 = vld [vmem:[%s1 + $0x770] sm:$0xf]
    %v512 = vld [vmem:[%s1 + $0x774] sm:$0xf]
    %v513 = vld [vmem:[%s1 + $0x778] sm:$0xf]
    %v514 = vld [vmem:[%s1 + $0x77c] sm:$0xf]
    %v515 = vld [vmem:[%s1 + $0x780] sm:$0xf]
    %v516 = vld [vmem:[%s1 + $0x784] sm:$0xf]
    %v517 = vld [vmem:[%s1 + $0x788] sm:$0xf]
    %v518 = vld [vmem:[%s1 + $0x78c] sm:$0xf]
    %v519 = vld [vmem:[%s1 + $0x790] sm:$0xf]
    %v520 = vld [vmem:[%s1 + $0x794] sm:$0xf]
    %v521 = vld [vmem:[%s1 + $0x798] sm:$0xf]
    %v522 = vld [vmem:[%s1 + $0x79c] sm:$0xf]
    %v523 = vld [vmem:[%s1 + $0x7a0] sm:$0xf]
    %v524 = vld [vmem:[%s1 + $0x7a4] sm:$0xf]
    %v525 = vld [vmem:[%s1 + $0x7a8] sm:$0xf]
    %v526 = vld [vmem:[%s1 + $0x7ac] sm:$0xf]
    %v527 = vld [vmem:[%s1 + $0x7b0] sm:$0xf]
    %v528 = vld [vmem:[%s1 + $0x7b4] sm:$0xf]
    %v529 = vld [vmem:[%s1 + $0x7b8] sm:$0xf]
    %v530 = vld [vmem:[%s1 + $0x7bc] sm:$0xf]
    %v531 = vld [vmem:[%s1 + $0x7c0] sm:$0xf]
    %v532 = vld [vmem:[%s1 + $0x7c4] sm:$0xf]
    %v533 = vld [vmem:[%s1 + $0x7c8] sm:$0xf]
    %v534 = vld [vmem:[%s1 + $0x7cc] sm:$0xf]
    %v535 = vld [vmem:[%s1 + $0x7d0] sm:$0xf]
    %v536 = vld [vmem:[%s1 + $0x7d4] sm:$0xf]
    %v537 = vld [vmem:[%s1 + $0x7d8] sm:$0xf]
    %v538 = vld [vmem:[%s1 + $0x7dc] sm:$0xf]
    %v539 = vld [vmem:[%s1 + $0x7e0] sm:$0xf]
    %v540 = vld [vmem:[%s1 + $0x7e4] sm:$0xf]
    %v541 = vld [vmem:[%s1 + $0x7e8] sm:$0xf]
    %v542 = vld [vmem:[%s1 + $0x7ec] sm:$0xf]
    %v543 = vld [vmem:[%s1 + $0x7f0] sm:$0xf]
    %v544 = vld [vmem:[%s1 + $0x7f4] sm:$0xf]
    %v545 = vld [vmem:[%s1 + $0x7f8] sm:$0xf]
    %v546 = vld [vmem:[%s1 + $0x7fc] sm:$0xf]
    %v547 = vld [vmem:[%s1 + $0x800] sm:$0xf]
    %v548 = vld [vmem:[%s1 + $0x804] sm:$0xf]
    %v549 = vld [vmem:[%s1 + $0x808] sm:$0xf]
    %v550 = vld [vmem:[%s1 + $0x80c] sm:$0xf]
    %v551 = vld [vmem:[%s1 + $0x810] sm:$0xf]
    %v552 = vld [vmem:[%s1 + $0x814] sm:$0xf]
    %v553 = vld [vmem:[%s1 + $0x818] sm:$0xf]
    %v554 = vld [vmem:[%s1 + $0x81c] sm:$0xf]
    %v555 = vld [vmem:[%s1 + $0x820] sm:$0xf]
    %v556 = vld [vmem:[%s1 + $0x824] sm:$0xf]
    %v557 = vld [vmem:[%s1 + $0x828] sm:$0xf]
    %v558 = vld [vmem:[%s1 + $0x82c] sm:$0xf]
    %v559 = vld [vmem:[%s1 + $0x830] sm:$0xf]
    %v560 = vld [vmem:[%s1 + $0x834] sm:$0xf]
    %v561 = vld [vmem:[%s1 + $0x838] sm:$0xf]
    %v562 = vld [vmem:[%s1 + $0x83c] sm:$0xf]
    %v563 = vld [vmem:[%s1 + $0x840] sm:$0xf]
    %v564 = vld [vmem:[%s1 + $0x844] sm:$0xf]
    %v565 = vld [vmem:[%s1 + $0x848] sm:$0xf]
    %v566 = vld [vmem:[%s1 + $0x84c] sm:$0xf]
    %v567 = vld [vmem:[%s1 + $0x850] sm:$0xf]
    %v568 = vld [vmem:[%s1 + $0x854] sm:$0xf]
    %v569 = vld [vmem:[%s1 + $0x858] sm:$0xf]
    %v570 = vld [vmem:[%s1 + $0x85c] sm:$0xf]
    %v571 = vld [vmem:[%s1 + $0x860] sm:$0xf]
    %v572 = vld [vmem:[%s1 + $0x864] sm:$0xf]
    %v573 = vld [vmem:[%s1 + $0x868] sm:$0xf]
    %v574 = vld [vmem:[%s1 + $0x86c] sm:$0xf]
    %v575 = vld [vmem:[%s1 + $0x870] sm:$0xf]
    %v576 = vld [vmem:[%s1 + $0x874] sm:$0xf]
    %v577 = vld [vmem:[%s1 + $0x878] sm:$0xf]
    %v578 = vld [vmem:[%s1 + $0x87c] sm:$0xf]
    %v579 = vld [vmem:[%s1 + $0x880] sm:$0xf]
    %v580 = vld [vmem:[%s1 + $0x884] sm:$0xf]
    %v581 = vld [vmem:[%s1 + $0x888] sm:$0xf]
    %v582 = vld [vmem:[%s1 + $0x88c] sm:$0xf]
    %v583 = vld [vmem:[%s1 + $0x890] sm:$0xf]
    %v584 = vld [vmem:[%s1 + $0x894] sm:$0xf]
    %v585 = vld [vmem:[%s1 + $0x898] sm:$0xf]
    %v586 = vld [vmem:[%s1 + $0x89c] sm:$0xf]
    %v587 = vld [vmem:[%s1 + $0x8a0] sm:$0xf]
    %v588 = vld [vmem:[%s1 + $0x8a4] sm:$0xf]
    %v589 = vld [vmem:[%s1 + $0x8a8] sm:$0xf]
    %v590 = vld [vmem:[%s1 + $0x8ac] sm:$0xf]
    %v591 = vld [vmem:[%s1 + $0x8b0] sm:$0xf]
    %v592 = vld [vmem:[%s1 + $0x8b4] sm:$0xf]
    %v593 = vld [vmem:[%s1 + $0x8b8] sm:$0xf]
    %v594 = vld [vmem:[%s1 + $0x8bc] sm:$0xf]
    %v595 = vld [vmem:[%s1 + $0x8c0] sm:$0xf]
    %v596 = vld [vmem:[%s1 + $0x8c4] sm:$0xf]
    %v597 = vld [vmem:[%s1 + $0x8c8] sm:$0xf]
    %v598 = vld [vmem:[%s1 + $0x8cc] sm:$0xf]
    %v599 = vld [vmem:[%s1 + $0x8d0] sm:$0xf]
    %v600 = vld [vmem:[%s1 + $0x8d4] sm:$0xf]
    %v601 = vld [vmem:[%s1 + $0x8d8] sm:$0xf]
    %v602 = vld [vmem:[%s1 + $0x8dc] sm:$0xf]
    %v603 = vld [vmem:[%s1 + $0x8e0] sm:$0xf]
    %v604 = vld [vmem:[%s1 + $0x8e4] sm:$0xf]
    %v605 = vld [vmem:[%s1 + $0x8e8] sm:$0xf]
    %v606 = vld [vmem:[%s1 + $0x8ec] sm:$0xf]
    %v607 = vld [vmem:[%s1 + $0x8f0] sm:$0xf]
    %v608 = vld [vmem:[%s1 + $0x8f4] sm:$0xf]
    %v609 = vld [vmem:[%s1 + $0x8f8] sm:$0xf]
    %v610 = vld [vmem:[%s1 + $0x8fc] sm:$0xf]
    %v611 = vld [vmem:[%s1 + $0x900] sm:$0xf]
    %v612 = vld [vmem:[%s1 + $0x904] sm:$0xf]
    %v613 = vld [vmem:[%s1 + $0x908] sm:$0xf]
    %v614 = vld [vmem:[%s1 + $0x90c] sm:$0xf]
    %v615 = vld [vmem:[%s1 + $0x910] sm:$0xf]
    %v616 = vld [vmem:[%s1 + $0x914] sm:$0xf]
    %v617 = vld [vmem:[%s1 + $0x918] sm:$0xf]
    %v618 = vld [vmem:[%s1 + $0x91c] sm:$0xf]
    %v619 = vld [vmem:[%s1 + $0x920] sm:$0xf]
    %v620 = vld [vmem:[%s1 + $0x924] sm:$0xf]
    %v621 = vld [vmem:[%s1 + $0x928] sm:$0xf]
    %v622 = vld [vmem:[%s1 + $0x92c] sm:$0xf]
    %v623 = vld [vmem:[%s1 + $0x930] sm:$0xf]
    %v624 = vld [vmem:[%s1 + $0x934] sm:$0xf]
    %v625 = vld [vmem:[%s1 + $0x938] sm:$0xf]
    %v626 = vld [vmem:[%s1 + $0x93c] sm:$0xf]
    %v627 = vld [vmem:[%s1 + $0x940] sm:$0xf]
    %v628 = vld [vmem:[%s1 + $0x944] sm:$0xf]
    %v629 = vld [vmem:[%s1 + $0x948] sm:$0xf]
    %v630 = vld [vmem:[%s1 + $0x94c] sm:$0xf]
    %v631 = vld [vmem:[%s1 + $0x950] sm:$0xf]
    %v632 = vld [vmem:[%s1 + $0x954] sm:$0xf]
    %v633 = vld [vmem:[%s1 + $0x958] sm:$0xf]
    %v634 = vld [vmem:[%s1 + $0x95c] sm:$0xf]
    %v635 = vld [vmem:[%s1 + $0x960] sm:$0xf]
    %v636 = vld [vmem:[%s1 + $0x964] sm:$0xf]
    %v637 = vld [vmem:[%s1 + $0x968] sm:$0xf]
    %v638 = vld [vmem:[%s1 + $0x96c] sm:$0xf]
    %v639 = vld [vmem:[%s1 + $0x970] sm:$0xf]
    %v640 = vld [vmem:[%s1 + $0x974] sm:$0xf]
    %v641 = vld [vmem:[%s1 + $0x978] sm:$0xf]
    %v642 = vld [vmem:[%s1 + $0x97c] sm:$0xf]
    %v643 = vld [vmem:[%s1 + $0x980] sm:$0xf]
    %v644 = vld [vmem:[%s1 + $0x984] sm:$0xf]
    %v645 = vld [vmem:[%s1 + $0x988] sm:$0xf]
    %v646 = vld [vmem:[%s1 + $0x98c] sm:$0xf]
    %v647 = vld [vmem:[%s1 + $0x990] sm:$0xf]
    %v648 = vld [vmem:[%s1 + $0x994] sm:$0xf]
    %v649 = vld [vmem:[%s1 + $0x998] sm:$0xf]
    %v650 = vld [vmem:[%s1 + $0x99c] sm:$0xf]
    %v651 = vld [vmem:[%s1 + $0x9a0] sm:$0xf]
    %v652 = vld [vmem:[%s1 + $0x9a4] sm:$0xf]
    %v653 = vld [vmem:[%s1 + $0x9a8] sm:$0xf]
    %v654 = vld [vmem:[%s1 + $0x9ac] sm:$0xf]
    %v655 = vld [vmem:[%s1 + $0x9b0] sm:$0xf]
    %v656 = vld [vmem:[%s1 + $0x9b4] sm:$0xf]
    %v657 = vld [vmem:[%s1 + $0x9b8] sm:$0xf]
    %v658 = vld [vmem:[%s1 + $0x9bc] sm:$0xf]
    %v659 = vld [vmem:[%s1 + $0x9c0] sm:$0xf]
    %v660 = vld [vmem:[%s1 + $0x9c4] sm:$0xf]
    %v661 = vld [vmem:[%s1 + $0x9c8] sm:$0xf]
    %v662 = vld [vmem:[%s1 + $0x9cc] sm:$0xf]
    %v663 = vld [vmem:[%s1 + $0x9d0] sm:$0xf]
    %v664 = vld [vmem:[%s1 + $0x9d4] sm:$0xf]
    %v665 = vld [vmem:[%s1 + $0x9d8] sm:$0xf]
    %v666 = vld [vmem:[%s1 + $0x9dc] sm:$0xf]
    %v667 = vld [vmem:[%s1 + $0x9e0] sm:$0xf]
    %v668 = vld [vmem:[%s1 + $0x9e4] sm:$0xf]
    %v669 = vld [vmem:[%s1 + $0x9e8] sm:$0xf]
    %v670 = vld [vmem:[%s1 + $0x9ec] sm:$0xf]
    %v671 = vld [vmem:[%s1 + $0x9f0] sm:$0xf]
    %v672 = vld [vmem:[%s1 + $0x9f4] sm:$0xf]
    %v673 = vld [vmem:[%s1 + $0x9f8] sm:$0xf]
    %v674 = vld [vmem:[%s1 + $0x9fc] sm:$0xf]
    %v675 = vld [vmem:[%s1 + $0xa00] sm:$0xf]
    %v676 = vld [vmem:[%s1 + $0xa04] sm:$0xf]
    %v677 = vld [vmem:[%s1 + $0xa08] sm:$0xf]
    %v678 = vld [vmem:[%s1 + $0xa0c] sm:$0xf]
    %v679 = vld [vmem:[%s1 + $0xa10] sm:$0xf]
    %v680 = vld [vmem:[%s1 + $0xa14] sm:$0xf]
    %v681 = vld [vmem:[%s1 + $0xa18] sm:$0xf]
    %v682 = vld [vmem:[%s1 + $0xa1c] sm:$0xf]
    %v683 = vld [vmem:[%s1 + $0xa20] sm:$0xf]
    %v684 = vld [vmem:[%s1 + $0xa24] sm:$0xf]
    %v685 = vld [vmem:[%s1 + $0xa28] sm:$0xf]
    %v686 = vld [vmem:[%s1 + $0xa2c] sm:$0xf]
    %v687 = vld [vmem:[%s1 + $0xa30] sm:$0xf]
    %v688 = vld [vmem:[%s1 + $0xa34] sm:$0xf]
    %v689 = vld [vmem:[%s1 + $0xa38] sm:$0xf]
    %v690 = vld [vmem:[%s1 + $0xa3c] sm:$0xf]
    %v691 = vld [vmem:[%s1 + $0xa40] sm:$0xf]
    %v692 = vld [vmem:[%s1 + $0xa44] sm:$0xf]
    %v693 = vld [vmem:[%s1 + $0xa48] sm:$0xf]
    %v694 = vld [vmem:[%s1 + $0xa4c] sm:$0xf]
    %v695 = vld [vmem:[%s1 + $0xa50] sm:$0xf]
    %v696 = vld [vmem:[%s1 + $0xa54] sm:$0xf]
    %v697 = vld [vmem:[%s1 + $0xa58] sm:$0xf]
    %v698 = vld [vmem:[%s1 + $0xa5c] sm:$0xf]
    %v699 = vld [vmem:[%s1 + $0xa60] sm:$0xf]
    %v700 = vld [vmem:[%s1 + $0xa64] sm:$0xf]
    %v701 = vld [vmem:[%s1 + $0xa68] sm:$0xf]
    %v702 = vld [vmem:[%s1 + $0xa6c] sm:$0xf]
    %v703 = vld [vmem:[%s1 + $0xa70] sm:$0xf]
    %v704 = vld [vmem:[%s1 + $0xa74] sm:$0xf]
    %v705 = vld [vmem:[%s1 + $0xa78] sm:$0xf]
    %v706 = vld [vmem:[%s1 + $0xa7c] sm:$0xf]
    %v707 = vld [vmem:[%s1 + $0xa80] sm:$0xf]
    %v708 = vld [vmem:[%s1 + $0xa84] sm:$0xf]
    %v709 = vld [vmem:[%s1 + $0xa88] sm:$0xf]
    %v710 = vld [vmem:[%s1 + $0xa8c] sm:$0xf]
    %v711 = vld [vmem:[%s1 + $0xa90] sm:$0xf]
    %v712 = vld [vmem:[%s1 + $0xa94] sm:$0xf]
    %v713 = vld [vmem:[%s1 + $0xa98] sm:$0xf]
    %v714 = vld [vmem:[%s1 + $0xa9c] sm:$0xf]
    %v715 = vld [vmem:[%s1 + $0xaa0] sm:$0xf]
    %v716 = vld [vmem:[%s1 + $0xaa4] sm:$0xf]
    %v717 = vld [vmem:[%s1 + $0xaa8] sm:$0xf]
    %v718 = vld [vmem:[%s1 + $0xaac] sm:$0xf]
    %v719 = vld [vmem:[%s1 + $0xab0] sm:$0xf]
    %v720 = vld [vmem:[%s1 + $0xab4] sm:$0xf]
    %v721 = vld [vmem:[%s1 + $0xab8] sm:$0xf]
    %v722 = vld [vmem:[%s1 + $0xabc] sm:$0xf]
    %v723 = vld [vmem:[%s1 + $0xac0] sm:$0xf]
    %v724 = vld [vmem:[%s1 + $0xac4] sm:$0xf]
    %v725 = vld [vmem:[%s1 + $0xac8] sm:$0xf]
    %v726 = vld [vmem:[%s1 + $0xacc] sm:$0xf]
    %v727 = vld [vmem:[%s1 + $0xad0] sm:$0xf]
    %v728 = vld [vmem:[%s1 + $0xad4] sm:$0xf]
    %v729 = vld [vmem:[%s1 + $0xad8] sm:$0xf]
    %v730 = vld [vmem:[%s1 + $0xadc] sm:$0xf]
    %v731 = vld [vmem:[%s1 + $0xae0] sm:$0xf]
    %v732 = vld [vmem:[%s1 + $0xae4] sm:$0xf]
    %v733 = vld [vmem:[%s1 + $0xae8] sm:$0xf]
    %v734 = vld [vmem:[%s1 + $0xaec] sm:$0xf]
    %v735 = vld [vmem:[%s1 + $0xaf0] sm:$0xf]
    %v736 = vld [vmem:[%s1 + $0xaf4] sm:$0xf]
    %v737 = vld [vmem:[%s1 + $0xaf8] sm:$0xf]
    %v738 = vld [vmem:[%s1 + $0xafc] sm:$0xf]
    %v739 = vld [vmem:[%s1 + $0xb00] sm:$0xf]
    %v740 = vld [vmem:[%s1 + $0xb04] sm:$0xf]
    %v741 = vld [vmem:[%s1 + $0xb08] sm:$0xf]
    %v742 = vld [vmem:[%s1 + $0xb0c] sm:$0xf]
    %v743 = vld [vmem:[%s1 + $0xb10] sm:$0xf]
    %v744 = vld [vmem:[%s1 + $0xb14] sm:$0xf]
    %v745 = vld [vmem:[%s1 + $0xb18] sm:$0xf]
    %v746 = vld [vmem:[%s1 + $0xb1c] sm:$0xf]
    %v747 = vld [vmem:[%s1 + $0xb20] sm:$0xf]
    %v748 = vld [vmem:[%s1 + $0xb24] sm:$0xf]
    %v749 = vld [vmem:[%s1 + $0xb28] sm:$0xf]
    %v750 = vld [vmem:[%s1 + $0xb2c] sm:$0xf]
    %v751 = vld [vmem:[%s1 + $0xb30] sm:$0xf]
    %v752 = vld [vmem:[%s1 + $0xb34] sm:$0xf]
    %v753 = vld [vmem:[%s1 + $0xb38] sm:$0xf]
    %v754 = vld [vmem:[%s1 + $0xb3c] sm:$0xf]
    %v755 = vld [vmem:[%s1 + $0xb40] sm:$0xf]
    %v756 = vld [vmem:[%s1 + $0xb44] sm:$0xf]
    %v757 = vld [vmem:[%s1 + $0xb48] sm:$0xf]
    %v758 = vld [vmem:[%s1 + $0xb4c] sm:$0xf]
    %v759 = vld [vmem:[%s1 + $0xb50] sm:$0xf]
    %v760 = vld [vmem:[%s1 + $0xb54] sm:$0xf]
    %v761 = vld [vmem:[%s1 + $0xb58] sm:$0xf]
    %v762 = vld [vmem:[%s1 + $0xb5c] sm:$0xf]
    %v763 = vld [vmem:[%s1 + $0xb60] sm:$0xf]
    %v764 = vld [vmem:[%s1 + $0xb64] sm:$0xf]
    %v765 = vld [vmem:[%s1 + $0xb68] sm:$0xf]
    %v766 = vld [vmem:[%s1 + $0xb6c] sm:$0xf]
    %v767 = vld [vmem:[%s1 + $0xb70] sm:$0xf]
    %v768 = vld [vmem:[%s1 + $0xb74] sm:$0xf]
    %v769 = vld [vmem:[%s1 + $0xb78] sm:$0xf]
    %v770 = vld [vmem:[%s1 + $0xb7c] sm:$0xf]
    %v771 = vld [vmem:[%s1 + $0xb80] sm:$0xf]
    %v772 = vld [vmem:[%s1 + $0xb84] sm:$0xf]
    %v773 = vld [vmem:[%s1 + $0xb88] sm:$0xf]
    %v774 = vld [vmem:[%s1 + $0xb8c] sm:$0xf]
    %v775 = vld [vmem:[%s1 + $0xb90] sm:$0xf]
    %v776 = vld [vmem:[%s1 + $0xb94] sm:$0xf]
    %v777 = vld [vmem:[%s1 + $0xb98] sm:$0xf]
    %v778 = vld [vmem:[%s1 + $0xb9c] sm:$0xf]
    %v779 = vld [vmem:[%s1 + $0xba0] sm:$0xf]
    %v780 = vld [vmem:[%s1 + $0xba4] sm:$0xf]
    %v781 = vld [vmem:[%s1 + $0xba8] sm:$0xf]
    %v782 = vld [vmem:[%s1 + $0xbac] sm:$0xf]
    %v783 = vld [vmem:[%s1 + $0xbb0] sm:$0xf]
    %v784 = vld [vmem:[%s1 + $0xbb4] sm:$0xf]
    %v785 = vld [vmem:[%s1 + $0xbb8] sm:$0xf]
    %v786 = vld [vmem:[%s1 + $0xbbc] sm:$0xf]
    %v787 = vld [vmem:[%s1 + $0xbc0] sm:$0xf]
    %v788 = vld [vmem:[%s1 + $0xbc4] sm:$0xf]
    %v789 = vld [vmem:[%s1 + $0xbc8] sm:$0xf]
    %v790 = vld [vmem:[%s1 + $0xbcc] sm:$0xf]
    %v791 = vld [vmem:[%s1 + $0xbd0] sm:$0xf]
    %v792 = vld [vmem:[%s1 + $0xbd4] sm:$0xf]
    %v793 = vld [vmem:[%s1 + $0xbd8] sm:$0xf]
    %v794 = vld [vmem:[%s1 + $0xbdc] sm:$0xf]
    %v795 = vld [vmem:[%s1 + $0xbe0] sm:$0xf]
    %v796 = vld [vmem:[%s1 + $0xbe4] sm:$0xf]
    %v797 = vld [vmem:[%s1 + $0xbe8] sm:$0xf]
    %v798 = vld [vmem:[%s1 + $0xbec] sm:$0xf]
    %v799 = vld [vmem:[%s1 + $0xbf0] sm:$0xf]
    %v800 = vld [vmem:[%s1 + $0xbf4] sm:$0xf]
    %v801 = vld [vmem:[%s1 + $0xbf8] sm:$0xf]
    %v802 = vld [vmem:[%s1 + $0xbfc] sm:$0xf]
    %v803 = vld [vmem:[%s1 + $0xc00] sm:$0xf]
    %v804 = vld [vmem:[%s1 + $0xc04] sm:$0xf]
    %v805 = vld [vmem:[%s1 + $0xc08] sm:$0xf]
    %v806 = vld [vmem:[%s1 + $0xc0c] sm:$0xf]
    %v807 = vld [vmem:[%s1 + $0xc10] sm:$0xf]
    %v808 = vld [vmem:[%s1 + $0xc14] sm:$0xf]
    %v809 = vld [vmem:[%s1 + $0xc18] sm:$0xf]
    %v810 = vld [vmem:[%s1 + $0xc1c] sm:$0xf]
    %v811 = vld [vmem:[%s1 + $0xc20] sm:$0xf]
    %v812 = vld [vmem:[%s1 + $0xc24] sm:$0xf]
    %v813 = vld [vmem:[%s1 + $0xc28] sm:$0xf]
    %v814 = vld [vmem:[%s1 + $0xc2c] sm:$0xf]
    %v815 = vld [vmem:[%s1 + $0xc30] sm:$0xf]
    %v816 = vld [vmem:[%s1 + $0xc34] sm:$0xf]
    %v817 = vld [vmem:[%s1 + $0xc38] sm:$0xf]
    %v818 = vld [vmem:[%s1 + $0xc3c] sm:$0xf]
    %v819 = vld [vmem:[%s2] sm:$0x1]
    %v821 = vlaneseq
    %v822 = vshrl.u32 %v821, 7
    %v823 = vsub.s32 0, %v822
    %v824 = vrot.slane %v819, %v823
    %v833 = vcombine.high %v28, %v28
    %v835 = vunpack.c.l.s4 1966171168
    %v836 = vunpack.c.0.s8 %v835
    %v837 = vlaneseq
    %v838 = vshrl.u32 %v837, 7
    %v839 = vsub.s32 %v836, %v838
    %v840 = vrot.slane %v28, %v839
    %v842 = vunpack.c.l.s4 1966171168
    %v843 = vunpack.c.0.s8 %v842
    %v844 = vlaneseq
    %v845 = vshrl.u32 %v844, 7
    %v846 = vsub.s32 %v843, %v845
    %v847 = vrot.slane %v833, %v846
    %v848 = vcombine.high %v840, %v840
    %v849 = vcombine.high %v847, %v847
    %v851 = vunpack.c.l.s4 1966171168
    %v852 = vunpack.c.0.s8 %v851
    %v853 = vlaneseq
    %v854 = vshrl.u32 %v853, 7
    %v855 = vsub.s32 %v852, %v854
    %v856 = vrot.slane %v840, %v855
    %v858 = vunpack.c.l.s4 1966171168
    %v859 = vunpack.c.0.s8 %v858
    %v860 = vlaneseq
    %v861 = vshrl.u32 %v860, 7
    %v862 = vsub.s32 %v859, %v861
    %v863 = vrot.slane %v847, %v862
    %v865 = vunpack.c.l.s4 1966171168
    %v866 = vunpack.c.0.s8 %v865
    %v867 = vlaneseq
    %v868 = vshrl.u32 %v867, 7
    %v869 = vsub.s32 %v866, %v868
    %v870 = vrot.slane %v848, %v869
    %v872 = vunpack.c.l.s4 1966171168
    %v873 = vunpack.c.0.s8 %v872
    %v874 = vlaneseq
    %v875 = vshrl.u32 %v874, 7
    %v876 = vsub.s32 %v873, %v875
    %v877 = vrot.slane %v849, %v876
    %v878 = vcombine.high %v856, %v856
    %v879 = vcombine.high %v863, %v863
    %v880 = vcombine.high %v870, %v870
    %v881 = vcombine.high %v877, %v877
    %v882 = vcombine.high %v29, %v29
    %v884 = vunpack.c.l.s4 1966171168
    %v885 = vunpack.c.0.s8 %v884
    %v886 = vlaneseq
    %v887 = vshrl.u32 %v886, 7
    %v888 = vsub.s32 %v885, %v887
    %v889 = vrot.slane %v29, %v888
    %v891 = vunpack.c.l.s4 1966171168
    %v892 = vunpack.c.0.s8 %v891
    %v893 = vlaneseq
    %v894 = vshrl.u32 %v893, 7
    %v895 = vsub.s32 %v892, %v894
    %v896 = vrot.slane %v882, %v895
    %v897 = vcombine.high %v889, %v889
    %v898 = vcombine.high %v896, %v896
    %v900 = vunpack.c.l.s4 1966171168
    %v901 = vunpack.c.0.s8 %v900
    %v902 = vlaneseq
    %v903 = vshrl.u32 %v902, 7
    %v904 = vsub.s32 %v901, %v903
    %v905 = vrot.slane %v889, %v904
    %v907 = vunpack.c.l.s4 1966171168
    %v908 = vunpack.c.0.s8 %v907
    %v909 = vlaneseq
    %v910 = vshrl.u32 %v909, 7
    %v911 = vsub.s32 %v908, %v910
    %v912 = vrot.slane %v896, %v911
    %v914 = vunpack.c.l.s4 1966171168
    %v915 = vunpack.c.0.s8 %v914
    %v916 = vlaneseq
    %v917 = vshrl.u32 %v916, 7
    %v918 = vsub.s32 %v915, %v917
    %v919 = vrot.slane %v897, %v918
    %v921 = vunpack.c.l.s4 1966171168
    %v922 = vunpack.c.0.s8 %v921
    %v923 = vlaneseq
    %v924 = vshrl.u32 %v923, 7
    %v925 = vsub.s32 %v922, %v924
    %v926 = vrot.slane %v898, %v925
    %v927 = vcombine.high %v905, %v905
    %v928 = vcombine.high %v912, %v912
    %v929 = vcombine.high %v919, %v919
    %v930 = vcombine.high %v926, %v926
    %v931 = vcombine.high %v30, %v30
    %v933 = vunpack.c.l.s4 1966171168
    %v934 = vunpack.c.0.s8 %v933
    %v935 = vlaneseq
    %v936 = vshrl.u32 %v935, 7
    %v937 = vsub.s32 %v934, %v936
    %v938 = vrot.slane %v30, %v937
    %v940 = vunpack.c.l.s4 1966171168
    %v941 = vunpack.c.0.s8 %v940
    %v942 = vlaneseq
    %v943 = vshrl.u32 %v942, 7
    %v944 = vsub.s32 %v941, %v943
    %v945 = vrot.slane %v931, %v944
    %v946 = vcombine.high %v938, %v938
    %v947 = vcombine.high %v945, %v945
    %v949 = vunpack.c.l.s4 1966171168
    %v950 = vunpack.c.0.s8 %v949
    %v951 = vlaneseq
    %v952 = vshrl.u32 %v951, 7
    %v953 = vsub.s32 %v950, %v952
    %v954 = vrot.slane %v938, %v953
    %v956 = vunpack.c.l.s4 1966171168
    %v957 = vunpack.c.0.s8 %v956
    %v958 = vlaneseq
    %v959 = vshrl.u32 %v958, 7
    %v960 = vsub.s32 %v957, %v959
    %v961 = vrot.slane %v945, %v960
    %v963 = vunpack.c.l.s4 1966171168
    %v964 = vunpack.c.0.s8 %v963
    %v965 = vlaneseq
    %v966 = vshrl.u32 %v965, 7
    %v967 = vsub.s32 %v964, %v966
    %v968 = vrot.slane %v946, %v967
    %v970 = vunpack.c.l.s4 1966171168
    %v971 = vunpack.c.0.s8 %v970
    %v972 = vlaneseq
    %v973 = vshrl.u32 %v972, 7
    %v974 = vsub.s32 %v971, %v973
    %v975 = vrot.slane %v947, %v974
    %v976 = vcombine.high %v954, %v954
    %v977 = vcombine.high %v961, %v961
    %v978 = vcombine.high %v968, %v968
    %v979 = vcombine.high %v975, %v975
    %v980 = vcombine.high %v31, %v31
    %v982 = vunpack.c.l.s4 1966171168
    %v983 = vunpack.c.0.s8 %v982
    %v984 = vlaneseq
    %v985 = vshrl.u32 %v984, 7
    %v986 = vsub.s32 %v983, %v985
    %v987 = vrot.slane %v31, %v986
    %v989 = vunpack.c.l.s4 1966171168
    %v990 = vunpack.c.0.s8 %v989
    %v991 = vlaneseq
    %v992 = vshrl.u32 %v991, 7
    %v993 = vsub.s32 %v990, %v992
    %v994 = vrot.slane %v980, %v993
    %v995 = vcombine.high %v987, %v987
    %v996 = vcombine.high %v994, %v994
    %v998 = vunpack.c.l.s4 1966171168
    %v999 = vunpack.c.0.s8 %v998
    %v1000 = vlaneseq
    %v1001 = vshrl.u32 %v1000, 7
    %v1002 = vsub.s32 %v999, %v1001
    %v1003 = vrot.slane %v987, %v1002
    %v1005 = vunpack.c.l.s4 1966171168
    %v1006 = vunpack.c.0.s8 %v1005
    %v1007 = vlaneseq
    %v1008 = vshrl.u32 %v1007, 7
    %v1009 = vsub.s32 %v1006, %v1008
    %v1010 = vrot.slane %v994, %v1009
    %v1012 = vunpack.c.l.s4 1966171168
    %v1013 = vunpack.c.0.s8 %v1012
    %v1014 = vlaneseq
    %v1015 = vshrl.u32 %v1014, 7
    %v1016 = vsub.s32 %v1013, %v1015
    %v1017 = vrot.slane %v995, %v1016
    %v1019 = vunpack.c.l.s4 1966171168
    %v1020 = vunpack.c.0.s8 %v1019
    %v1021 = vlaneseq
    %v1022 = vshrl.u32 %v1021, 7
    %v1023 = vsub.s32 %v1020, %v1022
    %v1024 = vrot.slane %v996, %v1023
    %v1025 = vcombine.high %v1003, %v1003
    %v1026 = vcombine.high %v1010, %v1010
    %v1027 = vcombine.high %v1017, %v1017
    %v1028 = vcombine.high %v1024, %v1024
    %v1029 = vcombine.high %v32, %v32
    %v1031 = vunpack.c.l.s4 1966171168
    %v1032 = vunpack.c.0.s8 %v1031
    %v1033 = vlaneseq
    %v1034 = vshrl.u32 %v1033, 7
    %v1035 = vsub.s32 %v1032, %v1034
    %v1036 = vrot.slane %v32, %v1035
    %v1038 = vunpack.c.l.s4 1966171168
    %v1039 = vunpack.c.0.s8 %v1038
    %v1040 = vlaneseq
    %v1041 = vshrl.u32 %v1040, 7
    %v1042 = vsub.s32 %v1039, %v1041
    %v1043 = vrot.slane %v1029, %v1042
    %v1044 = vcombine.high %v1036, %v1036
    %v1045 = vcombine.high %v1043, %v1043
    %v1047 = vunpack.c.l.s4 1966171168
    %v1048 = vunpack.c.0.s8 %v1047
    %v1049 = vlaneseq
    %v1050 = vshrl.u32 %v1049, 7
    %v1051 = vsub.s32 %v1048, %v1050
    %v1052 = vrot.slane %v1036, %v1051
    %v1054 = vunpack.c.l.s4 1966171168
    %v1055 = vunpack.c.0.s8 %v1054
    %v1056 = vlaneseq
    %v1057 = vshrl.u32 %v1056, 7
    %v1058 = vsub.s32 %v1055, %v1057
    %v1059 = vrot.slane %v1043, %v1058
    %v1061 = vunpack.c.l.s4 1966171168
    %v1062 = vunpack.c.0.s8 %v1061
    %v1063 = vlaneseq
    %v1064 = vshrl.u32 %v1063, 7
    %v1065 = vsub.s32 %v1062, %v1064
    %v1066 = vrot.slane %v1044, %v1065
    %v1068 = vunpack.c.l.s4 1966171168
    %v1069 = vunpack.c.0.s8 %v1068
    %v1070 = vlaneseq
    %v1071 = vshrl.u32 %v1070, 7
    %v1072 = vsub.s32 %v1069, %v1071
    %v1073 = vrot.slane %v1045, %v1072
    %v1074 = vcombine.high %v1052, %v1052
    %v1075 = vcombine.high %v1059, %v1059
    %v1076 = vcombine.high %v1066, %v1066
    %v1077 = vcombine.high %v1073, %v1073
    %v1078 = vcombine.high %v33, %v33
    %v1080 = vunpack.c.l.s4 1966171168
    %v1081 = vunpack.c.0.s8 %v1080
    %v1082 = vlaneseq
    %v1083 = vshrl.u32 %v1082, 7
    %v1084 = vsub.s32 %v1081, %v1083
    %v1085 = vrot.slane %v33, %v1084
    %v1087 = vunpack.c.l.s4 1966171168
    %v1088 = vunpack.c.0.s8 %v1087
    %v1089 = vlaneseq
    %v1090 = vshrl.u32 %v1089, 7
    %v1091 = vsub.s32 %v1088, %v1090
    %v1092 = vrot.slane %v1078, %v1091
    %v1093 = vcombine.high %v1085, %v1085
    %v1094 = vcombine.high %v1092, %v1092
    %v1096 = vunpack.c.l.s4 1966171168
    %v1097 = vunpack.c.0.s8 %v1096
    %v1098 = vlaneseq
    %v1099 = vshrl.u32 %v1098, 7
    %v1100 = vsub.s32 %v1097, %v1099
    %v1101 = vrot.slane %v1085, %v1100
    %v1103 = vunpack.c.l.s4 1966171168
    %v1104 = vunpack.c.0.s8 %v1103
    %v1105 = vlaneseq
    %v1106 = vshrl.u32 %v1105, 7
    %v1107 = vsub.s32 %v1104, %v1106
    %v1108 = vrot.slane %v1092, %v1107
    %v1110 = vunpack.c.l.s4 1966171168
    %v1111 = vunpack.c.0.s8 %v1110
    %v1112 = vlaneseq
    %v1113 = vshrl.u32 %v1112, 7
    %v1114 = vsub.s32 %v1111, %v1113
    %v1115 = vrot.slane %v1093, %v1114
    %v1117 = vunpack.c.l.s4 1966171168
    %v1118 = vunpack.c.0.s8 %v1117
    %v1119 = vlaneseq
    %v1120 = vshrl.u32 %v1119, 7
    %v1121 = vsub.s32 %v1118, %v1120
    %v1122 = vrot.slane %v1094, %v1121
    %v1123 = vcombine.high %v1101, %v1101
    %v1124 = vcombine.high %v1108, %v1108
    %v1125 = vcombine.high %v1115, %v1115
    %v1126 = vcombine.high %v1122, %v1122
    %v1128 = vunpack.c.l.s4 1966171168
    %v1129 = vunpack.c.0.s8 %v1128
    %v1130 = vlaneseq
    %v1131 = vshrl.u32 %v1130, 7
    %v1132 = vsub.s32 %v1129, %v1131
    %v1133 = vrot.slane %v34, %v1132
    %v1135 = vunpack.c.l.s4 1966171168
    %v1136 = vunpack.c.0.s8 %v1135
    %v1137 = vlaneseq
    %v1138 = vshrl.u32 %v1137, 7
    %v1139 = vsub.s32 %v1136, %v1138
    %v1140 = vrot.slane %v1133, %v1139
    %v1974 = vunpack.c.l.b16 %v35
    %v1975 = vunpack.c.l.b16 %v36
    %v1976 = vunpack.c.l.b16 %v37
    %v1977 = vunpack.c.l.b16 %v38
    %v1978 = vunpack.c.l.b16 %v39
    %v1979 = vunpack.c.l.b16 %v40
    %v1980 = vunpack.c.l.b16 %v41
    %v1981 = vunpack.c.l.b16 %v42
    %v1982 = vunpack.c.l.b16 %v43
    %v1983 = vunpack.c.l.b16 %v44
    %v1984 = vunpack.c.l.b16 %v45
    %v1985 = vunpack.c.l.b16 %v46
    %v1986 = vunpack.c.l.b16 %v47
    %v1987 = vunpack.c.l.b16 %v48
    %v1988 = vunpack.c.l.b16 %v49
    %v1989 = vunpack.c.l.b16 %v50
    %v1990 = vunpack.c.l.b16 %v51
    %v1991 = vunpack.c.l.b16 %v52
    %v1992 = vunpack.c.l.b16 %v53
    %v1993 = vunpack.c.l.b16 %v54
    %v1994 = vunpack.c.l.b16 %v55
    %v1995 = vunpack.c.l.b16 %v56
    %v1996 = vunpack.c.l.b16 %v57
    %v1997 = vunpack.c.l.b16 %v58
    %v1998 = vunpack.c.l.b16 %v59
    %v1999 = vunpack.c.l.b16 %v60
    %v2000 = vunpack.c.l.b16 %v61
    %v2001 = vunpack.c.l.b16 %v62
    %v2002 = vunpack.c.l.b16 %v63
    %v2003 = vunpack.c.l.b16 %v64
    %v2004 = vunpack.c.l.b16 %v65
    %v2005 = vunpack.c.l.b16 %v66
    %v2006 = vunpack.c.l.b16 %v67
    %v2007 = vunpack.c.l.b16 %v68
    %v2008 = vunpack.c.l.b16 %v69
    %v2009 = vunpack.c.l.b16 %v70
    %v2010 = vunpack.c.l.b16 %v71
    %v2011 = vunpack.c.l.b16 %v72
    %v2012 = vunpack.c.l.b16 %v73
    %v2013 = vunpack.c.l.b16 %v74
    %v2014 = vunpack.c.l.b16 %v75
    %v2015 = vunpack.c.l.b16 %v76
    %v2016 = vunpack.c.l.b16 %v77
    %v2017 = vunpack.c.l.b16 %v78
    %v2018 = vunpack.c.l.b16 %v79
    %v2019 = vunpack.c.l.b16 %v80
    %v2020 = vunpack.c.l.b16 %v81
    %v2021 = vunpack.c.l.b16 %v82
    %v2022 = vunpack.c.l.b16 %v83
    %v2023 = vunpack.c.l.b16 %v84
    %v2024 = vunpack.c.l.b16 %v85
    %v2025 = vunpack.c.l.b16 %v86
    %v2026 = vunpack.c.l.b16 %v87
    %v2027 = vunpack.c.l.b16 %v88
    %v2028 = vunpack.c.l.b16 %v89
    %v2029 = vunpack.c.l.b16 %v90
    %v2030 = vunpack.c.l.b16 %v91
    %v2031 = vunpack.c.l.b16 %v92
    %v2032 = vunpack.c.l.b16 %v93
    %v2033 = vunpack.c.l.b16 %v94
    %v2034 = vunpack.c.l.b16 %v95
    %v2035 = vunpack.c.l.b16 %v96
    %v2036 = vunpack.c.l.b16 %v97
    %v2037 = vunpack.c.l.b16 %v98
    %v2038 = vunpack.c.l.b16 %v99
    %v2039 = vunpack.c.l.b16 %v100
    %v2040 = vunpack.c.l.b16 %v101
    %v2041 = vunpack.c.l.b16 %v102
    %v2042 = vunpack.c.l.b16 %v103
    %v2043 = vunpack.c.l.b16 %v104
    %v2044 = vunpack.c.l.b16 %v105
    %v2045 = vunpack.c.l.b16 %v106
    %v2046 = vunpack.c.l.b16 %v107
    %v2047 = vunpack.c.l.b16 %v108
    %v2048 = vunpack.c.l.b16 %v109
    %v2049 = vunpack.c.l.b16 %v110
    %v2050 = vunpack.c.l.b16 %v111
    %v2051 = vunpack.c.l.b16 %v112
    %v2052 = vunpack.c.l.b16 %v113
    %v2053 = vunpack.c.l.b16 %v114
    %v2054 = vunpack.c.l.b16 %v115
    %v2055 = vunpack.c.l.b16 %v116
    %v2056 = vunpack.c.l.b16 %v117
    %v2057 = vunpack.c.l.b16 %v118
    %v2058 = vunpack.c.l.b16 %v119
    %v2059 = vunpack.c.l.b16 %v120
    %v2060 = vunpack.c.l.b16 %v121
    %v2061 = vunpack.c.l.b16 %v122
    %v2062 = vunpack.c.l.b16 %v123
    %v2063 = vunpack.c.l.b16 %v124
    %v2064 = vunpack.c.l.b16 %v125
    %v2065 = vunpack.c.l.b16 %v126
    %v2066 = vunpack.c.l.b16 %v127
    %v2067 = vunpack.c.l.b16 %v128
    %v2068 = vunpack.c.l.b16 %v129
    %v2069 = vunpack.c.l.b16 %v130
    %v2070 = vunpack.c.l.b16 %v131
    %v2071 = vunpack.c.l.b16 %v132
    %v2072 = vunpack.c.l.b16 %v133
    %v2073 = vunpack.c.l.b16 %v134
    %v2074 = vunpack.c.l.b16 %v135
    %v2075 = vunpack.c.l.b16 %v136
    %v2076 = vunpack.c.l.b16 %v137
    %v2077 = vunpack.c.l.b16 %v138
    %v2078 = vunpack.c.l.b16 %v139
    %v2079 = vunpack.c.l.b16 %v140
    %v2080 = vunpack.c.l.b16 %v141
    %v2081 = vunpack.c.l.b16 %v142
    %v2082 = vunpack.c.l.b16 %v143
    %v2083 = vunpack.c.l.b16 %v144
    %v2084 = vunpack.c.l.b16 %v145
    %v2085 = vunpack.c.l.b16 %v146
    %v2086 = vunpack.c.l.b16 %v147
    %v2087 = vunpack.c.l.b16 %v148
    %v2088 = vunpack.c.l.b16 %v149
    %v2089 = vunpack.c.l.b16 %v150
    %v2090 = vunpack.c.l.b16 %v151
    %v2091 = vunpack.c.l.b16 %v152
    %v2092 = vunpack.c.l.b16 %v153
    %v2093 = vunpack.c.l.b16 %v154
    %v2094 = vunpack.c.l.b16 %v155
    %v2095 = vunpack.c.l.b16 %v156
    %v2096 = vunpack.c.l.b16 %v157
    %v2097 = vunpack.c.l.b16 %v158
    %v2098 = vunpack.c.l.b16 %v159
    %v2099 = vunpack.c.l.b16 %v160
    %v2100 = vunpack.c.l.b16 %v161
    %v2101 = vunpack.c.l.b16 %v162
    %v2102 = vunpack.c.l.b16 %v163
    %v2103 = vunpack.c.l.b16 %v164
    %v2104 = vunpack.c.l.b16 %v165
    %v2105 = vunpack.c.l.b16 %v166
    %v2106 = vunpack.c.l.b16 %v167
    %v2107 = vunpack.c.l.b16 %v168
    %v2108 = vunpack.c.l.b16 %v169
    %v2109 = vunpack.c.l.b16 %v170
    %v2110 = vunpack.c.l.b16 %v171
    %v2111 = vunpack.c.l.b16 %v172
    %v2112 = vunpack.c.l.b16 %v173
    %v2113 = vunpack.c.l.b16 %v174
    %v2114 = vunpack.c.l.b16 %v175
    %v2115 = vunpack.c.l.b16 %v176
    %v2116 = vunpack.c.l.b16 %v177
    %v2117 = vunpack.c.l.b16 %v178
    %v2118 = vunpack.c.l.b16 %v179
    %v2119 = vunpack.c.l.b16 %v180
    %v2120 = vunpack.c.l.b16 %v181
    %v2121 = vunpack.c.l.b16 %v182
    %v2122 = vunpack.c.l.b16 %v183
    %v2123 = vunpack.c.l.b16 %v184
    %v2124 = vunpack.c.l.b16 %v185
    %v2125 = vunpack.c.l.b16 %v186
    %v2126 = vunpack.c.l.b16 %v187
    %v2127 = vunpack.c.l.b16 %v188
    %v2128 = vunpack.c.l.b16 %v189
    %v2129 = vunpack.c.l.b16 %v190
    %v2130 = vunpack.c.l.b16 %v191
    %v2131 = vunpack.c.l.b16 %v192
    %v2132 = vunpack.c.l.b16 %v193
    %v2133 = vunpack.c.l.b16 %v194
    %v2134 = vunpack.c.l.b16 %v195
    %v2135 = vunpack.c.l.b16 %v196
    %v2136 = vunpack.c.l.b16 %v197
    %v2137 = vunpack.c.l.b16 %v198
    %v2138 = vunpack.c.l.b16 %v199
    %v2139 = vunpack.c.l.b16 %v200
    %v2140 = vunpack.c.l.b16 %v201
    %v2141 = vunpack.c.l.b16 %v202
    %v2142 = vunpack.c.l.b16 %v203
    %v2143 = vunpack.c.l.b16 %v204
    %v2144 = vunpack.c.l.b16 %v205
    %v2145 = vunpack.c.l.b16 %v206
    %v2146 = vunpack.c.l.b16 %v207
    %v2147 = vunpack.c.l.b16 %v208
    %v2148 = vunpack.c.l.b16 %v209
    %v2149 = vunpack.c.l.b16 %v210
    %v2150 = vunpack.c.l.b16 %v211
    %v2151 = vunpack.c.l.b16 %v212
    %v2152 = vunpack.c.l.b16 %v213
    %v2153 = vunpack.c.l.b16 %v214
    %v2154 = vunpack.c.l.b16 %v215
    %v2155 = vunpack.c.l.b16 %v216
    %v2156 = vunpack.c.l.b16 %v217
    %v2157 = vunpack.c.l.b16 %v218
    %v2158 = vunpack.c.l.b16 %v219
    %v2159 = vunpack.c.l.b16 %v220
    %v2160 = vunpack.c.l.b16 %v221
    %v2161 = vunpack.c.l.b16 %v222
    %v2162 = vunpack.c.l.b16 %v223
    %v2163 = vunpack.c.l.b16 %v224
    %v2164 = vunpack.c.l.b16 %v225
    %v2165 = vunpack.c.l.b16 %v226
    %v2166 = vunpack.c.l.b16 %v227
    %v2167 = vunpack.c.l.b16 %v228
    %v2168 = vunpack.c.l.b16 %v229
    %v2169 = vunpack.c.l.b16 %v230
    %v2170 = vunpack.c.l.b16 %v231
    %v2171 = vunpack.c.l.b16 %v232
    %v2172 = vunpack.c.l.b16 %v233
    %v2173 = vunpack.c.l.b16 %v234
    %v2174 = vunpack.c.l.b16 %v235
    %v2175 = vunpack.c.l.b16 %v236
    %v2176 = vunpack.c.l.b16 %v237
    %v2177 = vunpack.c.l.b16 %v238
    %v2178 = vunpack.c.l.b16 %v239
    %v2179 = vunpack.c.l.b16 %v240
    %v2180 = vunpack.c.l.b16 %v241
    %v2181 = vunpack.c.l.b16 %v242
    %v2182 = vunpack.c.l.b16 %v243
    %v2183 = vunpack.c.l.b16 %v244
    %v2184 = vunpack.c.l.b16 %v245
    %v2185 = vunpack.c.l.b16 %v246
    %v2186 = vunpack.c.l.b16 %v247
    %v2187 = vunpack.c.l.b16 %v248
    %v2188 = vunpack.c.l.b16 %v249
    %v2189 = vunpack.c.l.b16 %v250
    %v2190 = vunpack.c.l.b16 %v251
    %v2191 = vunpack.c.l.b16 %v252
    %v2192 = vunpack.c.l.b16 %v253
    %v2193 = vunpack.c.l.b16 %v254
    %v2194 = vunpack.c.l.b16 %v255
    %v2195 = vunpack.c.l.b16 %v256
    %v2196 = vunpack.c.l.b16 %v257
    %v2197 = vunpack.c.l.b16 %v258
    %v2198 = vunpack.c.l.b16 %v259
    %v2199 = vunpack.c.l.b16 %v260
    %v2200 = vunpack.c.l.b16 %v261
    %v2201 = vunpack.c.l.b16 %v262
    %v2202 = vunpack.c.l.b16 %v263
    %v2203 = vunpack.c.l.b16 %v264
    %v2204 = vunpack.c.l.b16 %v265
    %v2205 = vunpack.c.l.b16 %v266
    %v2206 = vunpack.c.l.b16 %v267
    %v2207 = vunpack.c.l.b16 %v268
    %v2208 = vunpack.c.l.b16 %v269
    %v2209 = vunpack.c.l.b16 %v270
    %v2210 = vunpack.c.l.b16 %v271
    %v2211 = vunpack.c.l.b16 %v272
    %v2212 = vunpack.c.l.b16 %v273
    %v2213 = vunpack.c.l.b16 %v274
    %v2214 = vunpack.c.l.b16 %v275
    %v2215 = vunpack.c.l.b16 %v276
    %v2216 = vunpack.c.l.b16 %v277
    %v2217 = vunpack.c.l.b16 %v278
    %v2218 = vunpack.c.l.b16 %v279
    %v2219 = vunpack.c.l.b16 %v280
    %v2220 = vunpack.c.l.b16 %v281
    %v2221 = vunpack.c.l.b16 %v282
    %v2222 = vunpack.c.l.b16 %v283
    %v2223 = vunpack.c.l.b16 %v284
    %v2224 = vunpack.c.l.b16 %v285
    %v2225 = vunpack.c.l.b16 %v286
    %v2226 = vunpack.c.l.b16 %v287
    %v2227 = vunpack.c.l.b16 %v288
    %v2228 = vunpack.c.l.b16 %v289
    %v2229 = vunpack.c.l.b16 %v290
    %v2230 = vunpack.c.l.b16 %v291
    %v2231 = vunpack.c.l.b16 %v292
    %v2232 = vunpack.c.l.b16 %v293
    %v2233 = vunpack.c.l.b16 %v294
    %v2234 = vunpack.c.l.b16 %v295
    %v2235 = vunpack.c.l.b16 %v296
    %v2236 = vunpack.c.l.b16 %v297
    %v2237 = vunpack.c.l.b16 %v298
    %v2238 = vunpack.c.l.b16 %v299
    %v2239 = vunpack.c.l.b16 %v300
    %v2240 = vunpack.c.l.b16 %v301
    %v2241 = vunpack.c.l.b16 %v302
    %v2242 = vunpack.c.l.b16 %v303
    %v2243 = vunpack.c.l.b16 %v304
    %v2244 = vunpack.c.l.b16 %v305
    %v2245 = vunpack.c.l.b16 %v306
    %v2246 = vunpack.c.l.b16 %v307
    %v2247 = vunpack.c.l.b16 %v308
    %v2248 = vunpack.c.l.b16 %v309
    %v2249 = vunpack.c.l.b16 %v310
    %v2250 = vunpack.c.l.b16 %v311
    %v2251 = vunpack.c.l.b16 %v312
    %v2252 = vunpack.c.l.b16 %v313
    %v2253 = vunpack.c.l.b16 %v314
    %v2254 = vunpack.c.l.b16 %v315
    %v2255 = vunpack.c.l.b16 %v316
    %v2256 = vunpack.c.l.b16 %v317
    %v2257 = vunpack.c.l.b16 %v318
    %v2258 = vunpack.c.l.b16 %v319
    %v2259 = vunpack.c.l.b16 %v320
    %v2260 = vunpack.c.l.b16 %v321
    %v2261 = vunpack.c.l.b16 %v322
    %v2262 = vunpack.c.l.b16 %v323
    %v2263 = vunpack.c.l.b16 %v324
    %v2264 = vunpack.c.l.b16 %v325
    %v2265 = vunpack.c.l.b16 %v326
    %v2266 = vunpack.c.l.b16 %v327
    %v2267 = vunpack.c.l.b16 %v328
    %v2268 = vunpack.c.l.b16 %v329
    %v2269 = vunpack.c.l.b16 %v330
    %v2270 = vunpack.c.l.b16 %v331
    %v2271 = vunpack.c.l.b16 %v332
    %v2272 = vunpack.c.l.b16 %v333
    %v2273 = vunpack.c.l.b16 %v334
    %v2274 = vunpack.c.l.b16 %v335
    %v2275 = vunpack.c.l.b16 %v336
    %v2276 = vunpack.c.l.b16 %v337
    %v2277 = vunpack.c.l.b16 %v338
    %v2278 = vunpack.c.l.b16 %v339
    %v2279 = vunpack.c.l.b16 %v340
    %v2280 = vunpack.c.l.b16 %v341
    %v2281 = vunpack.c.l.b16 %v342
    %v2282 = vunpack.c.l.b16 %v343
    %v2283 = vunpack.c.l.b16 %v344
    %v2284 = vunpack.c.l.b16 %v345
    %v2285 = vunpack.c.l.b16 %v346
    %v2286 = vunpack.c.l.b16 %v347
    %v2287 = vunpack.c.l.b16 %v348
    %v2288 = vunpack.c.l.b16 %v349
    %v2289 = vunpack.c.l.b16 %v350
    %v2290 = vunpack.c.l.b16 %v351
    %v2291 = vunpack.c.l.b16 %v352
    %v2292 = vunpack.c.l.b16 %v353
    %v2293 = vunpack.c.l.b16 %v354
    %v2294 = vunpack.c.l.b16 %v355
    %v2295 = vunpack.c.l.b16 %v356
    %v2296 = vunpack.c.l.b16 %v357
    %v2297 = vunpack.c.l.b16 %v358
    %v2298 = vunpack.c.l.b16 %v359
    %v2299 = vunpack.c.l.b16 %v360
    %v2300 = vunpack.c.l.b16 %v361
    %v2301 = vunpack.c.l.b16 %v362
    %v2302 = vunpack.c.l.b16 %v363
    %v2303 = vunpack.c.l.b16 %v364
    %v2304 = vunpack.c.l.b16 %v365
    %v2305 = vunpack.c.l.b16 %v366
    %v2306 = vunpack.c.l.b16 %v367
    %v2307 = vunpack.c.l.b16 %v368
    %v2308 = vunpack.c.l.b16 %v369
    %v2309 = vunpack.c.l.b16 %v370
    %v2310 = vunpack.c.l.b16 %v371
    %v2311 = vunpack.c.l.b16 %v372
    %v2312 = vunpack.c.l.b16 %v373
    %v2313 = vunpack.c.l.b16 %v374
    %v2314 = vunpack.c.l.b16 %v375
    %v2315 = vunpack.c.l.b16 %v376
    %v2316 = vunpack.c.l.b16 %v377
    %v2317 = vunpack.c.l.b16 %v378
    %v2318 = vunpack.c.l.b16 %v379
    %v2319 = vunpack.c.l.b16 %v380
    %v2320 = vunpack.c.l.b16 %v381
    %v2321 = vunpack.c.l.b16 %v382
    %v2322 = vunpack.c.l.b16 %v383
    %v2323 = vunpack.c.l.b16 %v384
    %v2324 = vunpack.c.l.b16 %v385
    %v2325 = vunpack.c.l.b16 %v386
    %v2326 = vunpack.c.l.b16 %v387
    %v2327 = vunpack.c.l.b16 %v388
    %v2328 = vunpack.c.l.b16 %v389
    %v2329 = vunpack.c.l.b16 %v390
    %v2330 = vunpack.c.l.b16 %v391
    %v2331 = vunpack.c.l.b16 %v392
    %v2332 = vunpack.c.l.b16 %v393
    %v2333 = vunpack.c.l.b16 %v394
    %v2334 = vunpack.c.l.b16 %v395
    %v2335 = vunpack.c.l.b16 %v396
    %v2336 = vunpack.c.l.b16 %v397
    %v2337 = vunpack.c.l.b16 %v398
    %v2338 = vunpack.c.l.b16 %v399
    %v2339 = vunpack.c.l.b16 %v400
    %v2340 = vunpack.c.l.b16 %v401
    %v2341 = vunpack.c.l.b16 %v402
    %v2342 = vunpack.c.l.b16 %v403
    %v2343 = vunpack.c.l.b16 %v404
    %v2344 = vunpack.c.l.b16 %v405
    %v2345 = vunpack.c.l.b16 %v406
    %v2346 = vunpack.c.l.b16 %v407
    %v2347 = vunpack.c.l.b16 %v408
    %v2348 = vunpack.c.l.b16 %v409
    %v2349 = vunpack.c.l.b16 %v410
    %v2350 = vunpack.c.l.b16 %v411
    %v2351 = vunpack.c.l.b16 %v412
    %v2352 = vunpack.c.l.b16 %v413
    %v2353 = vunpack.c.l.b16 %v414
    %v2354 = vunpack.c.l.b16 %v415
    %v2355 = vunpack.c.l.b16 %v416
    %v2356 = vunpack.c.l.b16 %v417
    %v2357 = vunpack.c.l.b16 %v418
    %v2358 = vunpack.c.l.b16 %v419
    %v2359 = vunpack.c.l.b16 %v420
    %v2360 = vunpack.c.l.b16 %v421
    %v2361 = vunpack.c.l.b16 %v422
    %v2362 = vunpack.c.l.b16 %v423
    %v2363 = vunpack.c.l.b16 %v424
    %v2364 = vunpack.c.l.b16 %v425
    %v2365 = vunpack.c.l.b16 %v426
    %v2366 = vunpack.c.l.b16 %v427
    %v2367 = vunpack.c.l.b16 %v428
    %v2368 = vunpack.c.l.b16 %v429
    %v2369 = vunpack.c.l.b16 %v430
    %v2370 = vunpack.c.l.b16 %v431
    %v2371 = vunpack.c.l.b16 %v432
    %v2372 = vunpack.c.l.b16 %v433
    %v2373 = vunpack.c.l.b16 %v434
    %v2374 = vunpack.c.l.b16 %v435
    %v2375 = vunpack.c.l.b16 %v436
    %v2376 = vunpack.c.l.b16 %v437
    %v2377 = vunpack.c.l.b16 %v438
    %v2378 = vunpack.c.l.b16 %v439
    %v2379 = vunpack.c.l.b16 %v440
    %v2380 = vunpack.c.l.b16 %v441
    %v2381 = vunpack.c.l.b16 %v442
    %v2382 = vunpack.c.l.b16 %v443
    %v2383 = vunpack.c.l.b16 %v444
    %v2384 = vunpack.c.l.b16 %v445
    %v2385 = vunpack.c.l.b16 %v446
    %v2386 = vunpack.c.l.b16 %v447
    %v2387 = vunpack.c.l.b16 %v448
    %v2388 = vunpack.c.l.b16 %v449
    %v2389 = vunpack.c.l.b16 %v450
    %v2390 = vunpack.c.l.b16 %v451
    %v2391 = vunpack.c.l.b16 %v452
    %v2392 = vunpack.c.l.b16 %v453
    %v2393 = vunpack.c.l.b16 %v454
    %v2394 = vunpack.c.l.b16 %v455
    %v2395 = vunpack.c.l.b16 %v456
    %v2396 = vunpack.c.l.b16 %v457
    %v2397 = vunpack.c.l.b16 %v458
    %v2398 = vunpack.c.l.b16 %v459
    %v2399 = vunpack.c.l.b16 %v460
    %v2400 = vunpack.c.l.b16 %v461
    %v2401 = vunpack.c.l.b16 %v462
    %v2402 = vunpack.c.l.b16 %v463
    %v2403 = vunpack.c.l.b16 %v464
    %v2404 = vunpack.c.l.b16 %v465
    %v2405 = vunpack.c.l.b16 %v466
    %v2406 = vunpack.c.l.b16 %v467
    %v2407 = vunpack.c.l.b16 %v468
    %v2408 = vunpack.c.l.b16 %v469
    %v2409 = vunpack.c.l.b16 %v470
    %v2410 = vunpack.c.l.b16 %v471
    %v2411 = vunpack.c.l.b16 %v472
    %v2412 = vunpack.c.l.b16 %v473
    %v2413 = vunpack.c.l.b16 %v474
    %v2414 = vunpack.c.l.b16 %v475
    %v2415 = vunpack.c.l.b16 %v476
    %v2416 = vunpack.c.l.b16 %v477
    %v2417 = vunpack.c.l.b16 %v478
    %v2418 = vunpack.c.l.b16 %v479
    %v2419 = vunpack.c.l.b16 %v480
    %v2420 = vunpack.c.l.b16 %v481
    %v2421 = vunpack.c.l.b16 %v482
    %v2422 = vunpack.c.l.b16 %v483
    %v2423 = vunpack.c.l.b16 %v484
    %v2424 = vunpack.c.l.b16 %v485
    %v2425 = vunpack.c.l.b16 %v486
    %v2426 = vunpack.c.l.b16 %v487
    %v2427 = vunpack.c.l.b16 %v488
    %v2428 = vunpack.c.l.b16 %v489
    %v2429 = vunpack.c.l.b16 %v490
    %v2430 = vunpack.c.l.b16 %v491
    %v2431 = vunpack.c.l.b16 %v492
    %v2432 = vunpack.c.l.b16 %v493
    %v2433 = vunpack.c.l.b16 %v494
    %v2434 = vunpack.c.l.b16 %v495
    %v2435 = vunpack.c.l.b16 %v496
    %v2436 = vunpack.c.l.b16 %v497
    %v2437 = vunpack.c.l.b16 %v498
    %v2438 = vunpack.c.l.b16 %v499
    %v2439 = vunpack.c.l.b16 %v500
    %v2440 = vunpack.c.l.b16 %v501
    %v2441 = vunpack.c.l.b16 %v502
    %v2442 = vunpack.c.l.b16 %v503
    %v2443 = vunpack.c.l.b16 %v504
    %v2444 = vunpack.c.l.b16 %v505
    %v2445 = vunpack.c.l.b16 %v506
    %v2446 = vunpack.c.l.b16 %v507
    %v2447 = vunpack.c.l.b16 %v508
    %v2448 = vunpack.c.l.b16 %v509
    %v2449 = vunpack.c.l.b16 %v510
    %v2450 = vunpack.c.l.b16 %v511
    %v2451 = vunpack.c.l.b16 %v512
    %v2452 = vunpack.c.l.b16 %v513
    %v2453 = vunpack.c.l.b16 %v514
    %v2454 = vunpack.c.l.b16 %v515
    %v2455 = vunpack.c.l.b16 %v516
    %v2456 = vunpack.c.l.b16 %v517
    %v2457 = vunpack.c.l.b16 %v518
    %v2458 = vunpack.c.l.b16 %v519
    %v2459 = vunpack.c.l.b16 %v520
    %v2460 = vunpack.c.l.b16 %v521
    %v2461 = vunpack.c.l.b16 %v522
    %v2462 = vunpack.c.l.b16 %v523
    %v2463 = vunpack.c.l.b16 %v524
    %v2464 = vunpack.c.l.b16 %v525
    %v2465 = vunpack.c.l.b16 %v526
    %v2466 = vunpack.c.l.b16 %v527
    %v2467 = vunpack.c.l.b16 %v528
    %v2468 = vunpack.c.l.b16 %v529
    %v2469 = vunpack.c.l.b16 %v530
    %v2470 = vunpack.c.l.b16 %v531
    %v2471 = vunpack.c.l.b16 %v532
    %v2472 = vunpack.c.l.b16 %v533
    %v2473 = vunpack.c.l.b16 %v534
    %v2474 = vunpack.c.l.b16 %v535
    %v2475 = vunpack.c.l.b16 %v536
    %v2476 = vunpack.c.l.b16 %v537
    %v2477 = vunpack.c.l.b16 %v538
    %v2478 = vunpack.c.l.b16 %v539
    %v2479 = vunpack.c.l.b16 %v540
    %v2480 = vunpack.c.l.b16 %v541
    %v2481 = vunpack.c.l.b16 %v542
    %v2482 = vunpack.c.l.b16 %v543
    %v2483 = vunpack.c.l.b16 %v544
    %v2484 = vunpack.c.l.b16 %v545
    %v2485 = vunpack.c.l.b16 %v546
    %v2486 = vunpack.c.l.b16 %v547
    %v2487 = vunpack.c.l.b16 %v548
    %v2488 = vunpack.c.l.b16 %v549
    %v2489 = vunpack.c.l.b16 %v550
    %v2490 = vunpack.c.l.b16 %v551
    %v2491 = vunpack.c.l.b16 %v552
    %v2492 = vunpack.c.l.b16 %v553
    %v2493 = vunpack.c.l.b16 %v554
    %v2494 = vunpack.c.l.b16 %v555
    %v2495 = vunpack.c.l.b16 %v556
    %v2496 = vunpack.c.l.b16 %v557
    %v2497 = vunpack.c.l.b16 %v558
    %v2498 = vunpack.c.l.b16 %v559
    %v2499 = vunpack.c.l.b16 %v560
    %v2500 = vunpack.c.l.b16 %v561
    %v2501 = vunpack.c.l.b16 %v562
    %v2502 = vunpack.c.l.b16 %v563
    %v2503 = vunpack.c.l.b16 %v564
    %v2504 = vunpack.c.l.b16 %v565
    %v2505 = vunpack.c.l.b16 %v566
    %v2506 = vunpack.c.l.b16 %v567
    %v2507 = vunpack.c.l.b16 %v568
    %v2508 = vunpack.c.l.b16 %v569
    %v2509 = vunpack.c.l.b16 %v570
    %v2510 = vunpack.c.l.b16 %v571
    %v2511 = vunpack.c.l.b16 %v572
    %v2512 = vunpack.c.l.b16 %v573
    %v2513 = vunpack.c.l.b16 %v574
    %v2514 = vunpack.c.l.b16 %v575
    %v2515 = vunpack.c.l.b16 %v576
    %v2516 = vunpack.c.l.b16 %v577
    %v2517 = vunpack.c.l.b16 %v578
    %v2518 = vunpack.c.l.b16 %v579
    %v2519 = vunpack.c.l.b16 %v580
    %v2520 = vunpack.c.l.b16 %v581
    %v2521 = vunpack.c.l.b16 %v582
    %v2522 = vunpack.c.l.b16 %v583
    %v2523 = vunpack.c.l.b16 %v584
    %v2524 = vunpack.c.l.b16 %v585
    %v2525 = vunpack.c.l.b16 %v586
    %v2526 = vunpack.c.l.b16 %v587
    %v2527 = vunpack.c.l.b16 %v588
    %v2528 = vunpack.c.l.b16 %v589
    %v2529 = vunpack.c.l.b16 %v590
    %v2530 = vunpack.c.l.b16 %v591
    %v2531 = vunpack.c.l.b16 %v592
    %v2532 = vunpack.c.l.b16 %v593
    %v2533 = vunpack.c.l.b16 %v594
    %v2534 = vunpack.c.l.b16 %v595
    %v2535 = vunpack.c.l.b16 %v596
    %v2536 = vunpack.c.l.b16 %v597
    %v2537 = vunpack.c.l.b16 %v598
    %v2538 = vunpack.c.l.b16 %v599
    %v2539 = vunpack.c.l.b16 %v600
    %v2540 = vunpack.c.l.b16 %v601
    %v2541 = vunpack.c.l.b16 %v602
    %v2542 = vunpack.c.l.b16 %v603
    %v2543 = vunpack.c.l.b16 %v604
    %v2544 = vunpack.c.l.b16 %v605
    %v2545 = vunpack.c.l.b16 %v606
    %v2546 = vunpack.c.l.b16 %v607
    %v2547 = vunpack.c.l.b16 %v608
    %v2548 = vunpack.c.l.b16 %v609
    %v2549 = vunpack.c.l.b16 %v610
    %v2550 = vunpack.c.l.b16 %v611
    %v2551 = vunpack.c.l.b16 %v612
    %v2552 = vunpack.c.l.b16 %v613
    %v2553 = vunpack.c.l.b16 %v614
    %v2554 = vunpack.c.l.b16 %v615
    %v2555 = vunpack.c.l.b16 %v616
    %v2556 = vunpack.c.l.b16 %v617
    %v2557 = vunpack.c.l.b16 %v618
    %v2558 = vunpack.c.l.b16 %v619
    %v2559 = vunpack.c.l.b16 %v620
    %v2560 = vunpack.c.l.b16 %v621
    %v2561 = vunpack.c.l.b16 %v622
    %v2562 = vunpack.c.l.b16 %v623
    %v2563 = vunpack.c.l.b16 %v624
    %v2564 = vunpack.c.l.b16 %v625
    %v2565 = vunpack.c.l.b16 %v626
    %v2566 = vunpack.c.l.b16 %v627
    %v2567 = vunpack.c.l.b16 %v628
    %v2568 = vunpack.c.l.b16 %v629
    %v2569 = vunpack.c.l.b16 %v630
    %v2570 = vunpack.c.l.b16 %v631
    %v2571 = vunpack.c.l.b16 %v632
    %v2572 = vunpack.c.l.b16 %v633
    %v2573 = vunpack.c.l.b16 %v634
    %v2574 = vunpack.c.l.b16 %v635
    %v2575 = vunpack.c.l.b16 %v636
    %v2576 = vunpack.c.l.b16 %v637
    %v2577 = vunpack.c.l.b16 %v638
    %v2578 = vunpack.c.l.b16 %v639
    %v2579 = vunpack.c.l.b16 %v640
    %v2580 = vunpack.c.l.b16 %v641
    %v2581 = vunpack.c.l.b16 %v642
    %v2582 = vunpack.c.l.b16 %v643
    %v2583 = vunpack.c.l.b16 %v644
    %v2584 = vunpack.c.l.b16 %v645
    %v2585 = vunpack.c.l.b16 %v646
    %v2586 = vunpack.c.l.b16 %v647
    %v2587 = vunpack.c.l.b16 %v648
    %v2588 = vunpack.c.l.b16 %v649
    %v2589 = vunpack.c.l.b16 %v650
    %v2590 = vunpack.c.l.b16 %v651
    %v2591 = vunpack.c.l.b16 %v652
    %v2592 = vunpack.c.l.b16 %v653
    %v2593 = vunpack.c.l.b16 %v654
    %v2594 = vunpack.c.l.b16 %v655
    %v2595 = vunpack.c.l.b16 %v656
    %v2596 = vunpack.c.l.b16 %v657
    %v2597 = vunpack.c.l.b16 %v658
    %v2598 = vunpack.c.l.b16 %v659
    %v2599 = vunpack.c.l.b16 %v660
    %v2600 = vunpack.c.l.b16 %v661
    %v2601 = vunpack.c.l.b16 %v662
    %v2602 = vunpack.c.l.b16 %v663
    %v2603 = vunpack.c.l.b16 %v664
    %v2604 = vunpack.c.l.b16 %v665
    %v2605 = vunpack.c.l.b16 %v666
    %v2606 = vunpack.c.l.b16 %v667
    %v2607 = vunpack.c.l.b16 %v668
    %v2608 = vunpack.c.l.b16 %v669
    %v2609 = vunpack.c.l.b16 %v670
    %v2610 = vunpack.c.l.b16 %v671
    %v2611 = vunpack.c.l.b16 %v672
    %v2612 = vunpack.c.l.b16 %v673
    %v2613 = vunpack.c.l.b16 %v674
    %v2614 = vunpack.c.l.b16 %v675
    %v2615 = vunpack.c.l.b16 %v676
    %v2616 = vunpack.c.l.b16 %v677
    %v2617 = vunpack.c.l.b16 %v678
    %v2618 = vunpack.c.l.b16 %v679
    %v2619 = vunpack.c.l.b16 %v680
    %v2620 = vunpack.c.l.b16 %v681
    %v2621 = vunpack.c.l.b16 %v682
    %v2622 = vunpack.c.l.b16 %v683
    %v2623 = vunpack.c.l.b16 %v684
    %v2624 = vunpack.c.l.b16 %v685
    %v2625 = vunpack.c.l.b16 %v686
    %v2626 = vunpack.c.l.b16 %v687
    %v2627 = vunpack.c.l.b16 %v688
    %v2628 = vunpack.c.l.b16 %v689
    %v2629 = vunpack.c.l.b16 %v690
    %v2630 = vunpack.c.l.b16 %v691
    %v2631 = vunpack.c.l.b16 %v692
    %v2632 = vunpack.c.l.b16 %v693
    %v2633 = vunpack.c.l.b16 %v694
    %v2634 = vunpack.c.l.b16 %v695
    %v2635 = vunpack.c.l.b16 %v696
    %v2636 = vunpack.c.l.b16 %v697
    %v2637 = vunpack.c.l.b16 %v698
    %v2638 = vunpack.c.l.b16 %v699
    %v2639 = vunpack.c.l.b16 %v700
    %v2640 = vunpack.c.l.b16 %v701
    %v2641 = vunpack.c.l.b16 %v702
    %v2642 = vunpack.c.l.b16 %v703
    %v2643 = vunpack.c.l.b16 %v704
    %v2644 = vunpack.c.l.b16 %v705
    %v2645 = vunpack.c.l.b16 %v706
    %v2646 = vunpack.c.l.b16 %v707
    %v2647 = vunpack.c.l.b16 %v708
    %v2648 = vunpack.c.l.b16 %v709
    %v2649 = vunpack.c.l.b16 %v710
    %v2650 = vunpack.c.l.b16 %v711
    %v2651 = vunpack.c.l.b16 %v712
    %v2652 = vunpack.c.l.b16 %v713
    %v2653 = vunpack.c.l.b16 %v714
    %v2654 = vunpack.c.l.b16 %v715
    %v2655 = vunpack.c.l.b16 %v716
    %v2656 = vunpack.c.l.b16 %v717
    %v2657 = vunpack.c.l.b16 %v718
    %v2658 = vunpack.c.l.b16 %v719
    %v2659 = vunpack.c.l.b16 %v720
    %v2660 = vunpack.c.l.b16 %v721
    %v2661 = vunpack.c.l.b16 %v722
    %v2662 = vunpack.c.l.b16 %v723
    %v2663 = vunpack.c.l.b16 %v724
    %v2664 = vunpack.c.l.b16 %v725
    %v2665 = vunpack.c.l.b16 %v726
    %v2666 = vunpack.c.l.b16 %v727
    %v2667 = vunpack.c.l.b16 %v728
    %v2668 = vunpack.c.l.b16 %v729
    %v2669 = vunpack.c.l.b16 %v730
    %v2670 = vunpack.c.l.b16 %v731
    %v2671 = vunpack.c.l.b16 %v732
    %v2672 = vunpack.c.l.b16 %v733
    %v2673 = vunpack.c.l.b16 %v734
    %v2674 = vunpack.c.l.b16 %v735
    %v2675 = vunpack.c.l.b16 %v736
    %v2676 = vunpack.c.l.b16 %v737
    %v2677 = vunpack.c.l.b16 %v738
    %v2678 = vunpack.c.l.b16 %v739
    %v2679 = vunpack.c.l.b16 %v740
    %v2680 = vunpack.c.l.b16 %v741
    %v2681 = vunpack.c.l.b16 %v742
    %v2682 = vunpack.c.l.b16 %v743
    %v2683 = vunpack.c.l.b16 %v744
    %v2684 = vunpack.c.l.b16 %v745
    %v2685 = vunpack.c.l.b16 %v746
    %v2686 = vunpack.c.l.b16 %v747
    %v2687 = vunpack.c.l.b16 %v748
    %v2688 = vunpack.c.l.b16 %v749
    %v2689 = vunpack.c.l.b16 %v750
    %v2690 = vunpack.c.l.b16 %v751
    %v2691 = vunpack.c.l.b16 %v752
    %v2692 = vunpack.c.l.b16 %v753
    %v2693 = vunpack.c.l.b16 %v754
    %v2694 = vunpack.c.l.b16 %v755
    %v2695 = vunpack.c.l.b16 %v756
    %v2696 = vunpack.c.l.b16 %v757
    %v2697 = vunpack.c.l.b16 %v758
    %v2698 = vunpack.c.l.b16 %v759
    %v2699 = vunpack.c.l.b16 %v760
    %v2700 = vunpack.c.l.b16 %v761
    %v2701 = vunpack.c.l.b16 %v762
    %v2702 = vunpack.c.l.b16 %v763
    %v2703 = vunpack.c.l.b16 %v764
    %v2704 = vunpack.c.l.b16 %v765
    %v2705 = vunpack.c.l.b16 %v766
    %v2706 = vunpack.c.l.b16 %v767
    %v2707 = vunpack.c.l.b16 %v768
    %v2708 = vunpack.c.l.b16 %v769
    %v2709 = vunpack.c.l.b16 %v770
    %v2710 = vunpack.c.l.b16 %v771
    %v2711 = vunpack.c.l.b16 %v772
    %v2712 = vunpack.c.l.b16 %v773
    %v2713 = vunpack.c.l.b16 %v774
    %v2714 = vunpack.c.l.b16 %v775
    %v2715 = vunpack.c.l.b16 %v776
    %v2716 = vunpack.c.l.b16 %v777
    %v2717 = vunpack.c.l.b16 %v778
    %v2718 = vunpack.c.l.b16 %v779
    %v2719 = vunpack.c.l.b16 %v780
    %v2720 = vunpack.c.l.b16 %v781
    %v2721 = vunpack.c.l.b16 %v782
    %v2722 = vunpack.c.l.b16 %v783
    %v2723 = vunpack.c.l.b16 %v784
    %v2724 = vunpack.c.l.b16 %v785
    %v2725 = vunpack.c.l.b16 %v786
    %v2726 = vunpack.c.l.b16 %v787
    %v2727 = vunpack.c.l.b16 %v788
    %v2728 = vunpack.c.l.b16 %v789
    %v2729 = vunpack.c.l.b16 %v790
    %v2730 = vunpack.c.l.b16 %v791
    %v2731 = vunpack.c.l.b16 %v792
    %v2732 = vunpack.c.l.b16 %v793
    %v2733 = vunpack.c.l.b16 %v794
    %v2734 = vunpack.c.l.b16 %v795
    %v2735 = vunpack.c.l.b16 %v796
    %v2736 = vunpack.c.l.b16 %v797
    %v2737 = vunpack.c.l.b16 %v798
    %v2738 = vunpack.c.l.b16 %v799
    %v2739 = vunpack.c.l.b16 %v800
    %v2740 = vunpack.c.l.b16 %v801
    %v2741 = vunpack.c.l.b16 %v802
    %v2742 = vunpack.c.l.b16 %v803
    %v2743 = vunpack.c.l.b16 %v804
    %v2744 = vunpack.c.l.b16 %v805
    %v2745 = vunpack.c.l.b16 %v806
    %v2746 = vunpack.c.l.b16 %v807
    %v2747 = vunpack.c.l.b16 %v808
    %v2748 = vunpack.c.l.b16 %v809
    %v2749 = vunpack.c.l.b16 %v810
    %v2750 = vunpack.c.l.b16 %v811
    %v2751 = vunpack.c.l.b16 %v812
    %v2752 = vunpack.c.l.b16 %v813
    %v2753 = vunpack.c.l.b16 %v814
    %v2754 = vunpack.c.l.b16 %v815
    %v2755 = vunpack.c.l.b16 %v816
    %v2756 = vunpack.c.l.b16 %v817
    %v2757 = vunpack.c.l.b16 %v818
    %v2758 = vpack.c.b16 %v1975, %v1974
    %v2759 = vpack.c.b16 %v1977, %v1976
    %v2760 = vpack.c.b16 %v1979, %v1978
    %v2761 = vpack.c.b16 %v1981, %v1980
    %v2762 = vpack.c.b16 %v1983, %v1982
    %v2763 = vpack.c.b16 %v1985, %v1984
    %v2764 = vpack.c.b16 %v1987, %v1986
    %v2765 = vpack.c.b16 %v1989, %v1988
    %v2766 = vpack.c.b16 %v1991, %v1990
    %v2767 = vpack.c.b16 %v1993, %v1992
    %v2768 = vpack.c.b16 %v1995, %v1994
    %v2769 = vpack.c.b16 %v1997, %v1996
    %v2770 = vpack.c.b16 %v1999, %v1998
    %v2771 = vpack.c.b16 %v2001, %v2000
    %v2772 = vpack.c.b16 %v2003, %v2002
    %v2773 = vpack.c.b16 %v2005, %v2004
    %v2774 = vpack.c.b16 %v2007, %v2006
    %v2775 = vpack.c.b16 %v2009, %v2008
    %v2776 = vpack.c.b16 %v2011, %v2010
    %v2777 = vpack.c.b16 %v2013, %v2012
    %v2778 = vpack.c.b16 %v2015, %v2014
    %v2779 = vpack.c.b16 %v2017, %v2016
    %v2780 = vpack.c.b16 %v2019, %v2018
    %v2781 = vpack.c.b16 %v2021, %v2020
    %v2782 = vpack.c.b16 %v2023, %v2022
    %v2783 = vpack.c.b16 %v2025, %v2024
    %v2784 = vpack.c.b16 %v2027, %v2026
    %v2785 = vpack.c.b16 %v2029, %v2028
    %v2786 = vpack.c.b16 %v2031, %v2030
    %v2787 = vpack.c.b16 %v2033, %v2032
    %v2788 = vpack.c.b16 %v2035, %v2034
    %v2789 = vpack.c.b16 %v2037, %v2036
    %v2790 = vpack.c.b16 %v2039, %v2038
    %v2791 = vpack.c.b16 %v2041, %v2040
    %v2792 = vpack.c.b16 %v2043, %v2042
    %v2793 = vpack.c.b16 %v2045, %v2044
    %v2794 = vpack.c.b16 %v2047, %v2046
    %v2795 = vpack.c.b16 %v2049, %v2048
    %v2796 = vpack.c.b16 %v2051, %v2050
    %v2797 = vpack.c.b16 %v2053, %v2052
    %v2798 = vpack.c.b16 %v2055, %v2054
    %v2799 = vpack.c.b16 %v2057, %v2056
    %v2800 = vpack.c.b16 %v2059, %v2058
    %v2801 = vpack.c.b16 %v2061, %v2060
    %v2802 = vpack.c.b16 %v2063, %v2062
    %v2803 = vpack.c.b16 %v2065, %v2064
    %v2804 = vpack.c.b16 %v2067, %v2066
    %v2805 = vpack.c.b16 %v2069, %v2068
    %v2806 = vpack.c.b16 %v2071, %v2070
    %v2807 = vpack.c.b16 %v2073, %v2072
    %v2808 = vpack.c.b16 %v2075, %v2074
    %v2809 = vpack.c.b16 %v2077, %v2076
    %v2810 = vpack.c.b16 %v2079, %v2078
    %v2811 = vpack.c.b16 %v2081, %v2080
    %v2812 = vpack.c.b16 %v2083, %v2082
    %v2813 = vpack.c.b16 %v2085, %v2084
    %v2814 = vpack.c.b16 %v2087, %v2086
    %v2815 = vpack.c.b16 %v2089, %v2088
    %v2816 = vpack.c.b16 %v2091, %v2090
    %v2817 = vpack.c.b16 %v2093, %v2092
    %v2818 = vpack.c.b16 %v2095, %v2094
    %v2819 = vpack.c.b16 %v2097, %v2096
    %v2820 = vpack.c.b16 %v2099, %v2098
    %v2821 = vpack.c.b16 %v2101, %v2100
    %v2822 = vpack.c.b16 %v2103, %v2102
    %v2823 = vpack.c.b16 %v2105, %v2104
    %v2824 = vpack.c.b16 %v2107, %v2106
    %v2825 = vpack.c.b16 %v2109, %v2108
    %v2826 = vpack.c.b16 %v2111, %v2110
    %v2827 = vpack.c.b16 %v2113, %v2112
    %v2828 = vpack.c.b16 %v2115, %v2114
    %v2829 = vpack.c.b16 %v2117, %v2116
    %v2830 = vpack.c.b16 %v2119, %v2118
    %v2831 = vpack.c.b16 %v2121, %v2120
    %v2832 = vpack.c.b16 %v2123, %v2122
    %v2833 = vpack.c.b16 %v2125, %v2124
    %v2834 = vpack.c.b16 %v2127, %v2126
    %v2835 = vpack.c.b16 %v2129, %v2128
    %v2836 = vpack.c.b16 %v2131, %v2130
    %v2837 = vpack.c.b16 %v2133, %v2132
    %v2838 = vpack.c.b16 %v2135, %v2134
    %v2839 = vpack.c.b16 %v2137, %v2136
    %v2840 = vpack.c.b16 %v2139, %v2138
    %v2841 = vpack.c.b16 %v2141, %v2140
    %v2842 = vpack.c.b16 %v2143, %v2142
    %v2843 = vpack.c.b16 %v2145, %v2144
    %v2844 = vpack.c.b16 %v2147, %v2146
    %v2845 = vpack.c.b16 %v2149, %v2148
    %v2846 = vpack.c.b16 %v2151, %v2150
    %v2847 = vpack.c.b16 %v2153, %v2152
    %v2848 = vpack.c.b16 %v2155, %v2154
    %v2849 = vpack.c.b16 %v2157, %v2156
    %v2850 = vpack.c.b16 %v2159, %v2158
    %v2851 = vpack.c.b16 %v2161, %v2160
    %v2852 = vpack.c.b16 %v2163, %v2162
    %v2853 = vpack.c.b16 %v2165, %v2164
    %v2854 = vpack.c.b16 %v2167, %v2166
    %v2855 = vpack.c.b16 %v2169, %v2168
    %v2856 = vpack.c.b16 %v2171, %v2170
    %v2857 = vpack.c.b16 %v2173, %v2172
    %v2858 = vpack.c.b16 %v2175, %v2174
    %v2859 = vpack.c.b16 %v2177, %v2176
    %v2860 = vpack.c.b16 %v2179, %v2178
    %v2861 = vpack.c.b16 %v2181, %v2180
    %v2862 = vpack.c.b16 %v2183, %v2182
    %v2863 = vpack.c.b16 %v2185, %v2184
    %v2864 = vpack.c.b16 %v2187, %v2186
    %v2865 = vpack.c.b16 %v2189, %v2188
    %v2866 = vpack.c.b16 %v2191, %v2190
    %v2867 = vpack.c.b16 %v2193, %v2192
    %v2868 = vpack.c.b16 %v2195, %v2194
    %v2869 = vpack.c.b16 %v2197, %v2196
    %v2870 = vpack.c.b16 %v2199, %v2198
    %v2871 = vpack.c.b16 %v2201, %v2200
    %v2872 = vpack.c.b16 %v2203, %v2202
    %v2873 = vpack.c.b16 %v2205, %v2204
    %v2874 = vpack.c.b16 %v2207, %v2206
    %v2875 = vpack.c.b16 %v2209, %v2208
    %v2876 = vpack.c.b16 %v2211, %v2210
    %v2877 = vpack.c.b16 %v2213, %v2212
    %v2878 = vpack.c.b16 %v2215, %v2214
    %v2879 = vpack.c.b16 %v2217, %v2216
    %v2880 = vpack.c.b16 %v2219, %v2218
    %v2881 = vpack.c.b16 %v2221, %v2220
    %v2882 = vpack.c.b16 %v2223, %v2222
    %v2883 = vpack.c.b16 %v2225, %v2224
    %v2884 = vpack.c.b16 %v2227, %v2226
    %v2885 = vpack.c.b16 %v2229, %v2228
    %v2886 = vpack.c.b16 %v2231, %v2230
    %v2887 = vpack.c.b16 %v2233, %v2232
    %v2888 = vpack.c.b16 %v2235, %v2234
    %v2889 = vpack.c.b16 %v2237, %v2236
    %v2890 = vpack.c.b16 %v2239, %v2238
    %v2891 = vpack.c.b16 %v2241, %v2240
    %v2892 = vpack.c.b16 %v2243, %v2242
    %v2893 = vpack.c.b16 %v2245, %v2244
    %v2894 = vpack.c.b16 %v2247, %v2246
    %v2895 = vpack.c.b16 %v2249, %v2248
    %v2896 = vpack.c.b16 %v2251, %v2250
    %v2897 = vpack.c.b16 %v2253, %v2252
    %v2898 = vpack.c.b16 %v2255, %v2254
    %v2899 = vpack.c.b16 %v2257, %v2256
    %v2900 = vpack.c.b16 %v2259, %v2258
    %v2901 = vpack.c.b16 %v2261, %v2260
    %v2902 = vpack.c.b16 %v2263, %v2262
    %v2903 = vpack.c.b16 %v2265, %v2264
    %v2904 = vpack.c.b16 %v2267, %v2266
    %v2905 = vpack.c.b16 %v2269, %v2268
    %v2906 = vpack.c.b16 %v2271, %v2270
    %v2907 = vpack.c.b16 %v2273, %v2272
    %v2908 = vpack.c.b16 %v2275, %v2274
    %v2909 = vpack.c.b16 %v2277, %v2276
    %v2910 = vpack.c.b16 %v2279, %v2278
    %v2911 = vpack.c.b16 %v2281, %v2280
    %v2912 = vpack.c.b16 %v2283, %v2282
    %v2913 = vpack.c.b16 %v2285, %v2284
    %v2914 = vpack.c.b16 %v2287, %v2286
    %v2915 = vpack.c.b16 %v2289, %v2288
    %v2916 = vpack.c.b16 %v2291, %v2290
    %v2917 = vpack.c.b16 %v2293, %v2292
    %v2918 = vpack.c.b16 %v2295, %v2294
    %v2919 = vpack.c.b16 %v2297, %v2296
    %v2920 = vpack.c.b16 %v2299, %v2298
    %v2921 = vpack.c.b16 %v2301, %v2300
    %v2922 = vpack.c.b16 %v2303, %v2302
    %v2923 = vpack.c.b16 %v2305, %v2304
    %v2924 = vpack.c.b16 %v2307, %v2306
    %v2925 = vpack.c.b16 %v2309, %v2308
    %v2926 = vpack.c.b16 %v2311, %v2310
    %v2927 = vpack.c.b16 %v2313, %v2312
    %v2928 = vpack.c.b16 %v2315, %v2314
    %v2929 = vpack.c.b16 %v2317, %v2316
    %v2930 = vpack.c.b16 %v2319, %v2318
    %v2931 = vpack.c.b16 %v2321, %v2320
    %v2932 = vpack.c.b16 %v2323, %v2322
    %v2933 = vpack.c.b16 %v2325, %v2324
    %v2934 = vpack.c.b16 %v2327, %v2326
    %v2935 = vpack.c.b16 %v2329, %v2328
    %v2936 = vpack.c.b16 %v2331, %v2330
    %v2937 = vpack.c.b16 %v2333, %v2332
    %v2938 = vpack.c.b16 %v2335, %v2334
    %v2939 = vpack.c.b16 %v2337, %v2336
    %v2940 = vpack.c.b16 %v2339, %v2338
    %v2941 = vpack.c.b16 %v2341, %v2340
    %v2942 = vpack.c.b16 %v2343, %v2342
    %v2943 = vpack.c.b16 %v2345, %v2344
    %v2944 = vpack.c.b16 %v2347, %v2346
    %v2945 = vpack.c.b16 %v2349, %v2348
    %v2946 = vpack.c.b16 %v2351, %v2350
    %v2947 = vpack.c.b16 %v2353, %v2352
    %v2948 = vpack.c.b16 %v2355, %v2354
    %v2949 = vpack.c.b16 %v2357, %v2356
    %v2950 = vpack.c.b16 %v2359, %v2358
    %v2951 = vpack.c.b16 %v2361, %v2360
    %v2952 = vpack.c.b16 %v2363, %v2362
    %v2953 = vpack.c.b16 %v2365, %v2364
    %v2954 = vpack.c.b16 %v2367, %v2366
    %v2955 = vpack.c.b16 %v2369, %v2368
    %v2956 = vpack.c.b16 %v2371, %v2370
    %v2957 = vpack.c.b16 %v2373, %v2372
    %v2958 = vpack.c.b16 %v2375, %v2374
    %v2959 = vpack.c.b16 %v2377, %v2376
    %v2960 = vpack.c.b16 %v2379, %v2378
    %v2961 = vpack.c.b16 %v2381, %v2380
    %v2962 = vpack.c.b16 %v2383, %v2382
    %v2963 = vpack.c.b16 %v2385, %v2384
    %v2964 = vpack.c.b16 %v2387, %v2386
    %v2965 = vpack.c.b16 %v2389, %v2388
    %v2966 = vpack.c.b16 %v2391, %v2390
    %v2967 = vpack.c.b16 %v2393, %v2392
    %v2968 = vpack.c.b16 %v2395, %v2394
    %v2969 = vpack.c.b16 %v2397, %v2396
    %v2970 = vpack.c.b16 %v2399, %v2398
    %v2971 = vpack.c.b16 %v2401, %v2400
    %v2972 = vpack.c.b16 %v2403, %v2402
    %v2973 = vpack.c.b16 %v2405, %v2404
    %v2974 = vpack.c.b16 %v2407, %v2406
    %v2975 = vpack.c.b16 %v2409, %v2408
    %v2976 = vpack.c.b16 %v2411, %v2410
    %v2977 = vpack.c.b16 %v2413, %v2412
    %v2978 = vpack.c.b16 %v2415, %v2414
    %v2979 = vpack.c.b16 %v2417, %v2416
    %v2980 = vpack.c.b16 %v2419, %v2418
    %v2981 = vpack.c.b16 %v2421, %v2420
    %v2982 = vpack.c.b16 %v2423, %v2422
    %v2983 = vpack.c.b16 %v2425, %v2424
    %v2984 = vpack.c.b16 %v2427, %v2426
    %v2985 = vpack.c.b16 %v2429, %v2428
    %v2986 = vpack.c.b16 %v2431, %v2430
    %v2987 = vpack.c.b16 %v2433, %v2432
    %v2988 = vpack.c.b16 %v2435, %v2434
    %v2989 = vpack.c.b16 %v2437, %v2436
    %v2990 = vpack.c.b16 %v2439, %v2438
    %v2991 = vpack.c.b16 %v2441, %v2440
    %v2992 = vpack.c.b16 %v2443, %v2442
    %v2993 = vpack.c.b16 %v2445, %v2444
    %v2994 = vpack.c.b16 %v2447, %v2446
    %v2995 = vpack.c.b16 %v2449, %v2448
    %v2996 = vpack.c.b16 %v2451, %v2450
    %v2997 = vpack.c.b16 %v2453, %v2452
    %v2998 = vpack.c.b16 %v2455, %v2454
    %v2999 = vpack.c.b16 %v2457, %v2456
    %v3000 = vpack.c.b16 %v2459, %v2458
    %v3001 = vpack.c.b16 %v2461, %v2460
    %v3002 = vpack.c.b16 %v2463, %v2462
    %v3003 = vpack.c.b16 %v2465, %v2464
    %v3004 = vpack.c.b16 %v2467, %v2466
    %v3005 = vpack.c.b16 %v2469, %v2468
    %v3006 = vpack.c.b16 %v2471, %v2470
    %v3007 = vpack.c.b16 %v2473, %v2472
    %v3008 = vpack.c.b16 %v2475, %v2474
    %v3009 = vpack.c.b16 %v2477, %v2476
    %v3010 = vpack.c.b16 %v2479, %v2478
    %v3011 = vpack.c.b16 %v2481, %v2480
    %v3012 = vpack.c.b16 %v2483, %v2482
    %v3013 = vpack.c.b16 %v2485, %v2484
    %v3014 = vpack.c.b16 %v2487, %v2486
    %v3015 = vpack.c.b16 %v2489, %v2488
    %v3016 = vpack.c.b16 %v2491, %v2490
    %v3017 = vpack.c.b16 %v2493, %v2492
    %v3018 = vpack.c.b16 %v2495, %v2494
    %v3019 = vpack.c.b16 %v2497, %v2496
    %v3020 = vpack.c.b16 %v2499, %v2498
    %v3021 = vpack.c.b16 %v2501, %v2500
    %v3022 = vpack.c.b16 %v2503, %v2502
    %v3023 = vpack.c.b16 %v2505, %v2504
    %v3024 = vpack.c.b16 %v2507, %v2506
    %v3025 = vpack.c.b16 %v2509, %v2508
    %v3026 = vpack.c.b16 %v2511, %v2510
    %v3027 = vpack.c.b16 %v2513, %v2512
    %v3028 = vpack.c.b16 %v2515, %v2514
    %v3029 = vpack.c.b16 %v2517, %v2516
    %v3030 = vpack.c.b16 %v2519, %v2518
    %v3031 = vpack.c.b16 %v2521, %v2520
    %v3032 = vpack.c.b16 %v2523, %v2522
    %v3033 = vpack.c.b16 %v2525, %v2524
    %v3034 = vpack.c.b16 %v2527, %v2526
    %v3035 = vpack.c.b16 %v2529, %v2528
    %v3036 = vpack.c.b16 %v2531, %v2530
    %v3037 = vpack.c.b16 %v2533, %v2532
    %v3038 = vpack.c.b16 %v2535, %v2534
    %v3039 = vpack.c.b16 %v2537, %v2536
    %v3040 = vpack.c.b16 %v2539, %v2538
    %v3041 = vpack.c.b16 %v2541, %v2540
    %v3042 = vpack.c.b16 %v2543, %v2542
    %v3043 = vpack.c.b16 %v2545, %v2544
    %v3044 = vpack.c.b16 %v2547, %v2546
    %v3045 = vpack.c.b16 %v2549, %v2548
    %v3046 = vpack.c.b16 %v2551, %v2550
    %v3047 = vpack.c.b16 %v2553, %v2552
    %v3048 = vpack.c.b16 %v2555, %v2554
    %v3049 = vpack.c.b16 %v2557, %v2556
    %v3050 = vpack.c.b16 %v2559, %v2558
    %v3051 = vpack.c.b16 %v2561, %v2560
    %v3052 = vpack.c.b16 %v2563, %v2562
    %v3053 = vpack.c.b16 %v2565, %v2564
    %v3054 = vpack.c.b16 %v2567, %v2566
    %v3055 = vpack.c.b16 %v2569, %v2568
    %v3056 = vpack.c.b16 %v2571, %v2570
    %v3057 = vpack.c.b16 %v2573, %v2572
    %v3058 = vpack.c.b16 %v2575, %v2574
    %v3059 = vpack.c.b16 %v2577, %v2576
    %v3060 = vpack.c.b16 %v2579, %v2578
    %v3061 = vpack.c.b16 %v2581, %v2580
    %v3062 = vpack.c.b16 %v2583, %v2582
    %v3063 = vpack.c.b16 %v2585, %v2584
    %v3064 = vpack.c.b16 %v2587, %v2586
    %v3065 = vpack.c.b16 %v2589, %v2588
    %v3066 = vpack.c.b16 %v2591, %v2590
    %v3067 = vpack.c.b16 %v2593, %v2592
    %v3068 = vpack.c.b16 %v2595, %v2594
    %v3069 = vpack.c.b16 %v2597, %v2596
    %v3070 = vpack.c.b16 %v2599, %v2598
    %v3071 = vpack.c.b16 %v2601, %v2600
    %v3072 = vpack.c.b16 %v2603, %v2602
    %v3073 = vpack.c.b16 %v2605, %v2604
    %v3074 = vpack.c.b16 %v2607, %v2606
    %v3075 = vpack.c.b16 %v2609, %v2608
    %v3076 = vpack.c.b16 %v2611, %v2610
    %v3077 = vpack.c.b16 %v2613, %v2612
    %v3078 = vpack.c.b16 %v2615, %v2614
    %v3079 = vpack.c.b16 %v2617, %v2616
    %v3080 = vpack.c.b16 %v2619, %v2618
    %v3081 = vpack.c.b16 %v2621, %v2620
    %v3082 = vpack.c.b16 %v2623, %v2622
    %v3083 = vpack.c.b16 %v2625, %v2624
    %v3084 = vpack.c.b16 %v2627, %v2626
    %v3085 = vpack.c.b16 %v2629, %v2628
    %v3086 = vpack.c.b16 %v2631, %v2630
    %v3087 = vpack.c.b16 %v2633, %v2632
    %v3088 = vpack.c.b16 %v2635, %v2634
    %v3089 = vpack.c.b16 %v2637, %v2636
    %v3090 = vpack.c.b16 %v2639, %v2638
    %v3091 = vpack.c.b16 %v2641, %v2640
    %v3092 = vpack.c.b16 %v2643, %v2642
    %v3093 = vpack.c.b16 %v2645, %v2644
    %v3094 = vpack.c.b16 %v2647, %v2646
    %v3095 = vpack.c.b16 %v2649, %v2648
    %v3096 = vpack.c.b16 %v2651, %v2650
    %v3097 = vpack.c.b16 %v2653, %v2652
    %v3098 = vpack.c.b16 %v2655, %v2654
    %v3099 = vpack.c.b16 %v2657, %v2656
    %v3100 = vpack.c.b16 %v2659, %v2658
    %v3101 = vpack.c.b16 %v2661, %v2660
    %v3102 = vpack.c.b16 %v2663, %v2662
    %v3103 = vpack.c.b16 %v2665, %v2664
    %v3104 = vpack.c.b16 %v2667, %v2666
    %v3105 = vpack.c.b16 %v2669, %v2668
    %v3106 = vpack.c.b16 %v2671, %v2670
    %v3107 = vpack.c.b16 %v2673, %v2672
    %v3108 = vpack.c.b16 %v2675, %v2674
    %v3109 = vpack.c.b16 %v2677, %v2676
    %v3110 = vpack.c.b16 %v2679, %v2678
    %v3111 = vpack.c.b16 %v2681, %v2680
    %v3112 = vpack.c.b16 %v2683, %v2682
    %v3113 = vpack.c.b16 %v2685, %v2684
    %v3114 = vpack.c.b16 %v2687, %v2686
    %v3115 = vpack.c.b16 %v2689, %v2688
    %v3116 = vpack.c.b16 %v2691, %v2690
    %v3117 = vpack.c.b16 %v2693, %v2692
    %v3118 = vpack.c.b16 %v2695, %v2694
    %v3119 = vpack.c.b16 %v2697, %v2696
    %v3120 = vpack.c.b16 %v2699, %v2698
    %v3121 = vpack.c.b16 %v2701, %v2700
    %v3122 = vpack.c.b16 %v2703, %v2702
    %v3123 = vpack.c.b16 %v2705, %v2704
    %v3124 = vpack.c.b16 %v2707, %v2706
    %v3125 = vpack.c.b16 %v2709, %v2708
    %v3126 = vpack.c.b16 %v2711, %v2710
    %v3127 = vpack.c.b16 %v2713, %v2712
    %v3128 = vpack.c.b16 %v2715, %v2714
    %v3129 = vpack.c.b16 %v2717, %v2716
    %v3130 = vpack.c.b16 %v2719, %v2718
    %v3131 = vpack.c.b16 %v2721, %v2720
    %v3132 = vpack.c.b16 %v2723, %v2722
    %v3133 = vpack.c.b16 %v2725, %v2724
    %v3134 = vpack.c.b16 %v2727, %v2726
    %v3135 = vpack.c.b16 %v2729, %v2728
    %v3136 = vpack.c.b16 %v2731, %v2730
    %v3137 = vpack.c.b16 %v2733, %v2732
    %v3138 = vpack.c.b16 %v2735, %v2734
    %v3139 = vpack.c.b16 %v2737, %v2736
    %v3140 = vpack.c.b16 %v2739, %v2738
    %v3141 = vpack.c.b16 %v2741, %v2740
    %v3142 = vpack.c.b16 %v2743, %v2742
    %v3143 = vpack.c.b16 %v2745, %v2744
    %v3144 = vpack.c.b16 %v2747, %v2746
    %v3145 = vpack.c.b16 %v2749, %v2748
    %v3146 = vpack.c.b16 %v2751, %v2750
    %v3147 = vpack.c.b16 %v2753, %v2752
    %v3148 = vpack.c.b16 %v2755, %v2754
    %v3149 = vpack.c.b16 %v2757, %v2756
    %3542 = vmatprep.subr.bf16.mxu0 0
    %3543 = vmatpush1.bf16.msra.mxu0 %v2765
    %3544 = vmatprep.subr.bf16.mxu0 0
    %3545 = vmatpush1.bf16.msra.mxu0 %v2764
    %3546 = vmatprep.subr.bf16.mxu0 0
    %3547 = vmatpush1.bf16.msra.mxu0 %v2763
    %3548 = vmatprep.subr.bf16.mxu0 0
    %3549 = vmatpush1.bf16.msra.mxu0 %v2762
    %3550 = vmatprep.subr.bf16.mxu0 0
    %3551 = vmatpush1.bf16.msra.mxu0 %v2761
    %3552 = vmatprep.subr.bf16.mxu0 0
    %3553 = vmatpush1.bf16.msra.mxu0 %v2760
    %3554 = vmatprep.subr.bf16.mxu0 0
    %3555 = vmatpush1.bf16.msra.mxu0 %v2759
    %3556 = vmatprep.subr.bf16.mxu0 0
    %3557 = vmatpush1.bf16.msra.mxu0 %v2758
    %3558 = vmatprep.subr.bf16.mxu0 0
    %3559 = vmatpush2.bf16.msra.mxu0 %v2773
    %3560 = vmatprep.subr.bf16.mxu0 0
    %3561 = vmatpush2.bf16.msra.mxu0 %v2772
    %3562 = vmatprep.subr.bf16.mxu0 0
    %3563 = vmatpush2.bf16.msra.mxu0 %v2771
    %3564 = vmatprep.subr.bf16.mxu0 0
    %3565 = vmatpush2.bf16.msra.mxu0 %v2770
    %3566 = vmatprep.subr.bf16.mxu0 0
    %3567 = vmatpush2.bf16.msra.mxu0 %v2769
    %3568 = vmatprep.subr.bf16.mxu0 0
    %3569 = vmatpush2.bf16.msra.mxu0 %v2768
    %3570 = vmatprep.subr.bf16.mxu0 0
    %3571 = vmatpush2.bf16.msra.mxu0 %v2767
    %3572 = vmatprep.subr.bf16.mxu0 0
    %3573 = vmatpush2.bf16.msra.mxu0 %v2766
    %3574 = vmatprep.mubr.bf16.mxu0 %v870
    %3575 = vmatmul.mubr.bf16.gmra.mxu0 %v856
    %v3576 = vpop.f32.mrf.mxu0
    %v3577 = vadd.f32 %v824, %v3576
    %v3578 = vpop.f32.mrf.mxu0
    %v3579 = vpop.f32.mrf.mxu0
    %v3580 = vpop.f32.mrf.mxu0
    %3581 = vdwg.mxu0
    %3582 = vmatprep.subr.bf16.mxu0 0
    %3583 = vmatpush1.bf16.msra.mxu0 %v2781
    %3584 = vmatprep.subr.bf16.mxu0 0
    %3585 = vmatpush1.bf16.msra.mxu0 %v2780
    %3586 = vmatprep.subr.bf16.mxu0 0
    %3587 = vmatpush1.bf16.msra.mxu0 %v2779
    %3588 = vmatprep.subr.bf16.mxu0 0
    %3589 = vmatpush1.bf16.msra.mxu0 %v2778
    %3590 = vmatprep.subr.bf16.mxu0 0
    %3591 = vmatpush1.bf16.msra.mxu0 %v2777
    %3592 = vmatprep.subr.bf16.mxu0 0
    %3593 = vmatpush1.bf16.msra.mxu0 %v2776
    %3594 = vmatprep.subr.bf16.mxu0 0
    %3595 = vmatpush1.bf16.msra.mxu0 %v2775
    %3596 = vmatprep.subr.bf16.mxu0 0
    %3597 = vmatpush1.bf16.msra.mxu0 %v2774
    %3598 = vmatprep.subr.bf16.mxu0 0
    %3599 = vmatpush2.bf16.msra.mxu0 %v2789
    %3600 = vmatprep.subr.bf16.mxu0 0
    %3601 = vmatpush2.bf16.msra.mxu0 %v2788
    %3602 = vmatprep.subr.bf16.mxu0 0
    %3603 = vmatpush2.bf16.msra.mxu0 %v2787
    %3604 = vmatprep.subr.bf16.mxu0 0
    %3605 = vmatpush2.bf16.msra.mxu0 %v2786
    %3606 = vmatprep.subr.bf16.mxu0 0
    %3607 = vmatpush2.bf16.msra.mxu0 %v2785
    %3608 = vmatprep.subr.bf16.mxu0 0
    %3609 = vmatpush2.bf16.msra.mxu0 %v2784
    %3610 = vmatprep.subr.bf16.mxu0 0
    %3611 = vmatpush2.bf16.msra.mxu0 %v2783
    %3612 = vmatprep.subr.bf16.mxu0 0
    %3613 = vmatpush2.bf16.msra.mxu0 %v2782
    %3614 = vmatprep.mubr.bf16.mxu0 %v880
    %3615 = vmatmul.mubr.bf16.gmra.mxu0 %v878
    %v3616 = vpop.f32.mrf.mxu0
    %v3617 = vadd.f32 %v3577, %v3616
    %v3618 = vpop.f32.mrf.mxu0
    %v3619 = vpop.f32.mrf.mxu0
    %v3620 = vpop.f32.mrf.mxu0
    %3621 = vdwg.mxu0
    %3622 = vmatprep.subr.bf16.mxu0 0
    %3623 = vmatpush1.bf16.msra.mxu0 %v2797
    %3624 = vmatprep.subr.bf16.mxu0 0
    %3625 = vmatpush1.bf16.msra.mxu0 %v2796
    %3626 = vmatprep.subr.bf16.mxu0 0
    %3627 = vmatpush1.bf16.msra.mxu0 %v2795
    %3628 = vmatprep.subr.bf16.mxu0 0
    %3629 = vmatpush1.bf16.msra.mxu0 %v2794
    %3630 = vmatprep.subr.bf16.mxu0 0
    %3631 = vmatpush1.bf16.msra.mxu0 %v2793
    %3632 = vmatprep.subr.bf16.mxu0 0
    %3633 = vmatpush1.bf16.msra.mxu0 %v2792
    %3634 = vmatprep.subr.bf16.mxu0 0
    %3635 = vmatpush1.bf16.msra.mxu0 %v2791
    %3636 = vmatprep.subr.bf16.mxu0 0
    %3637 = vmatpush1.bf16.msra.mxu0 %v2790
    %3638 = vmatprep.subr.bf16.mxu0 0
    %3639 = vmatpush2.bf16.msra.mxu0 %v2805
    %3640 = vmatprep.subr.bf16.mxu0 0
    %3641 = vmatpush2.bf16.msra.mxu0 %v2804
    %3642 = vmatprep.subr.bf16.mxu0 0
    %3643 = vmatpush2.bf16.msra.mxu0 %v2803
    %3644 = vmatprep.subr.bf16.mxu0 0
    %3645 = vmatpush2.bf16.msra.mxu0 %v2802
    %3646 = vmatprep.subr.bf16.mxu0 0
    %3647 = vmatpush2.bf16.msra.mxu0 %v2801
    %3648 = vmatprep.subr.bf16.mxu0 0
    %3649 = vmatpush2.bf16.msra.mxu0 %v2800
    %3650 = vmatprep.subr.bf16.mxu0 0
    %3651 = vmatpush2.bf16.msra.mxu0 %v2799
    %3652 = vmatprep.subr.bf16.mxu0 0
    %3653 = vmatpush2.bf16.msra.mxu0 %v2798
    %3654 = vmatprep.mubr.bf16.mxu0 %v877
    %3655 = vmatmul.mubr.bf16.gmra.mxu0 %v863
    %v3656 = vpop.f32.mrf.mxu0
    %v3657 = vadd.f32 %v3617, %v3656
    %v3658 = vpop.f32.mrf.mxu0
    %v3659 = vpop.f32.mrf.mxu0
    %v3660 = vpop.f32.mrf.mxu0
    %3661 = vdwg.mxu0
    %3662 = vmatprep.subr.bf16.mxu0 0
    %3663 = vmatpush1.bf16.msra.mxu0 %v2813
    %3664 = vmatprep.subr.bf16.mxu0 0
    %3665 = vmatpush1.bf16.msra.mxu0 %v2812
    %3666 = vmatprep.subr.bf16.mxu0 0
    %3667 = vmatpush1.bf16.msra.mxu0 %v2811
    %3668 = vmatprep.subr.bf16.mxu0 0
    %3669 = vmatpush1.bf16.msra.mxu0 %v2810
    %3670 = vmatprep.subr.bf16.mxu0 0
    %3671 = vmatpush1.bf16.msra.mxu0 %v2809
    %3672 = vmatprep.subr.bf16.mxu0 0
    %3673 = vmatpush1.bf16.msra.mxu0 %v2808
    %3674 = vmatprep.subr.bf16.mxu0 0
    %3675 = vmatpush1.bf16.msra.mxu0 %v2807
    %3676 = vmatprep.subr.bf16.mxu0 0
    %3677 = vmatpush1.bf16.msra.mxu0 %v2806
    %3678 = vmatprep.subr.bf16.mxu0 0
    %3679 = vmatpush2.bf16.msra.mxu0 %v2821
    %3680 = vmatprep.subr.bf16.mxu0 0
    %3681 = vmatpush2.bf16.msra.mxu0 %v2820
    %3682 = vmatprep.subr.bf16.mxu0 0
    %3683 = vmatpush2.bf16.msra.mxu0 %v2819
    %3684 = vmatprep.subr.bf16.mxu0 0
    %3685 = vmatpush2.bf16.msra.mxu0 %v2818
    %3686 = vmatprep.subr.bf16.mxu0 0
    %3687 = vmatpush2.bf16.msra.mxu0 %v2817
    %3688 = vmatprep.subr.bf16.mxu0 0
    %3689 = vmatpush2.bf16.msra.mxu0 %v2816
    %3690 = vmatprep.subr.bf16.mxu0 0
    %3691 = vmatpush2.bf16.msra.mxu0 %v2815
    %3692 = vmatprep.subr.bf16.mxu0 0
    %3693 = vmatpush2.bf16.msra.mxu0 %v2814
    %3694 = vmatprep.mubr.bf16.mxu0 %v881
    %3695 = vmatmul.mubr.bf16.gmra.mxu0 %v879
    %v3696 = vpop.f32.mrf.mxu0
    %v3697 = vadd.f32 %v3657, %v3696
    %v3698 = vpop.f32.mrf.mxu0
    %v3699 = vpop.f32.mrf.mxu0
    %v3700 = vpop.f32.mrf.mxu0
    %3701 = vdwg.mxu0
    %3702 = vmatprep.subr.bf16.mxu0 0
    %3703 = vmatpush1.bf16.msra.mxu0 %v2829
    %3704 = vmatprep.subr.bf16.mxu0 0
    %3705 = vmatpush1.bf16.msra.mxu0 %v2828
    %3706 = vmatprep.subr.bf16.mxu0 0
    %3707 = vmatpush1.bf16.msra.mxu0 %v2827
    %3708 = vmatprep.subr.bf16.mxu0 0
    %3709 = vmatpush1.bf16.msra.mxu0 %v2826
    %3710 = vmatprep.subr.bf16.mxu0 0
    %3711 = vmatpush1.bf16.msra.mxu0 %v2825
    %3712 = vmatprep.subr.bf16.mxu0 0
    %3713 = vmatpush1.bf16.msra.mxu0 %v2824
    %3714 = vmatprep.subr.bf16.mxu0 0
    %3715 = vmatpush1.bf16.msra.mxu0 %v2823
    %3716 = vmatprep.subr.bf16.mxu0 0
    %3717 = vmatpush1.bf16.msra.mxu0 %v2822
    %3718 = vmatprep.subr.bf16.mxu0 0
    %3719 = vmatpush2.bf16.msra.mxu0 %v2837
    %3720 = vmatprep.subr.bf16.mxu0 0
    %3721 = vmatpush2.bf16.msra.mxu0 %v2836
    %3722 = vmatprep.subr.bf16.mxu0 0
    %3723 = vmatpush2.bf16.msra.mxu0 %v2835
    %3724 = vmatprep.subr.bf16.mxu0 0
    %3725 = vmatpush2.bf16.msra.mxu0 %v2834
    %3726 = vmatprep.subr.bf16.mxu0 0
    %3727 = vmatpush2.bf16.msra.mxu0 %v2833
    %3728 = vmatprep.subr.bf16.mxu0 0
    %3729 = vmatpush2.bf16.msra.mxu0 %v2832
    %3730 = vmatprep.subr.bf16.mxu0 0
    %3731 = vmatpush2.bf16.msra.mxu0 %v2831
    %3732 = vmatprep.subr.bf16.mxu0 0
    %3733 = vmatpush2.bf16.msra.mxu0 %v2830
    %3734 = vmatprep.mubr.bf16.mxu0 %v919
    %3735 = vmatmul.mubr.bf16.gmra.mxu0 %v905
    %v3736 = vpop.f32.mrf.mxu0
    %v3737 = vadd.f32 %v3697, %v3736
    %v3738 = vpop.f32.mrf.mxu0
    %v3739 = vpop.f32.mrf.mxu0
    %v3740 = vpop.f32.mrf.mxu0
    %3741 = vdwg.mxu0
    %3742 = vmatprep.subr.bf16.mxu0 0
    %3743 = vmatpush1.bf16.msra.mxu0 %v2845
    %3744 = vmatprep.subr.bf16.mxu0 0
    %3745 = vmatpush1.bf16.msra.mxu0 %v2844
    %3746 = vmatprep.subr.bf16.mxu0 0
    %3747 = vmatpush1.bf16.msra.mxu0 %v2843
    %3748 = vmatprep.subr.bf16.mxu0 0
    %3749 = vmatpush1.bf16.msra.mxu0 %v2842
    %3750 = vmatprep.subr.bf16.mxu0 0
    %3751 = vmatpush1.bf16.msra.mxu0 %v2841
    %3752 = vmatprep.subr.bf16.mxu0 0
    %3753 = vmatpush1.bf16.msra.mxu0 %v2840
    %3754 = vmatprep.subr.bf16.mxu0 0
    %3755 = vmatpush1.bf16.msra.mxu0 %v2839
    %3756 = vmatprep.subr.bf16.mxu0 0
    %3757 = vmatpush1.bf16.msra.mxu0 %v2838
    %3758 = vmatprep.subr.bf16.mxu0 0
    %3759 = vmatpush2.bf16.msra.mxu0 %v2853
    %3760 = vmatprep.subr.bf16.mxu0 0
    %3761 = vmatpush2.bf16.msra.mxu0 %v2852
    %3762 = vmatprep.subr.bf16.mxu0 0
    %3763 = vmatpush2.bf16.msra.mxu0 %v2851
    %3764 = vmatprep.subr.bf16.mxu0 0
    %3765 = vmatpush2.bf16.msra.mxu0 %v2850
    %3766 = vmatprep.subr.bf16.mxu0 0
    %3767 = vmatpush2.bf16.msra.mxu0 %v2849
    %3768 = vmatprep.subr.bf16.mxu0 0
    %3769 = vmatpush2.bf16.msra.mxu0 %v2848
    %3770 = vmatprep.subr.bf16.mxu0 0
    %3771 = vmatpush2.bf16.msra.mxu0 %v2847
    %3772 = vmatprep.subr.bf16.mxu0 0
    %3773 = vmatpush2.bf16.msra.mxu0 %v2846
    %3774 = vmatprep.mubr.bf16.mxu0 %v929
    %3775 = vmatmul.mubr.bf16.gmra.mxu0 %v927
    %v3776 = vpop.f32.mrf.mxu0
    %v3777 = vadd.f32 %v3737, %v3776
    %v3778 = vpop.f32.mrf.mxu0
    %v3779 = vpop.f32.mrf.mxu0
    %v3780 = vpop.f32.mrf.mxu0
    %3781 = vdwg.mxu0
    %3782 = vmatprep.subr.bf16.mxu0 0
    %3783 = vmatpush1.bf16.msra.mxu0 %v2861
    %3784 = vmatprep.subr.bf16.mxu0 0
    %3785 = vmatpush1.bf16.msra.mxu0 %v2860
    %3786 = vmatprep.subr.bf16.mxu0 0
    %3787 = vmatpush1.bf16.msra.mxu0 %v2859
    %3788 = vmatprep.subr.bf16.mxu0 0
    %3789 = vmatpush1.bf16.msra.mxu0 %v2858
    %3790 = vmatprep.subr.bf16.mxu0 0
    %3791 = vmatpush1.bf16.msra.mxu0 %v2857
    %3792 = vmatprep.subr.bf16.mxu0 0
    %3793 = vmatpush1.bf16.msra.mxu0 %v2856
    %3794 = vmatprep.subr.bf16.mxu0 0
    %3795 = vmatpush1.bf16.msra.mxu0 %v2855
    %3796 = vmatprep.subr.bf16.mxu0 0
    %3797 = vmatpush1.bf16.msra.mxu0 %v2854
    %3798 = vmatprep.subr.bf16.mxu0 0
    %3799 = vmatpush2.bf16.msra.mxu0 %v2869
    %3800 = vmatprep.subr.bf16.mxu0 0
    %3801 = vmatpush2.bf16.msra.mxu0 %v2868
    %3802 = vmatprep.subr.bf16.mxu0 0
    %3803 = vmatpush2.bf16.msra.mxu0 %v2867
    %3804 = vmatprep.subr.bf16.mxu0 0
    %3805 = vmatpush2.bf16.msra.mxu0 %v2866
    %3806 = vmatprep.subr.bf16.mxu0 0
    %3807 = vmatpush2.bf16.msra.mxu0 %v2865
    %3808 = vmatprep.subr.bf16.mxu0 0
    %3809 = vmatpush2.bf16.msra.mxu0 %v2864
    %3810 = vmatprep.subr.bf16.mxu0 0
    %3811 = vmatpush2.bf16.msra.mxu0 %v2863
    %3812 = vmatprep.subr.bf16.mxu0 0
    %3813 = vmatpush2.bf16.msra.mxu0 %v2862
    %3814 = vmatprep.mubr.bf16.mxu0 %v926
    %3815 = vmatmul.mubr.bf16.gmra.mxu0 %v912
    %v3816 = vpop.f32.mrf.mxu0
    %v3817 = vadd.f32 %v3777, %v3816
    %v3818 = vpop.f32.mrf.mxu0
    %v3819 = vpop.f32.mrf.mxu0
    %v3820 = vpop.f32.mrf.mxu0
    %3821 = vdwg.mxu0
    %3822 = vmatprep.subr.bf16.mxu0 0
    %3823 = vmatpush1.bf16.msra.mxu0 %v2877
    %3824 = vmatprep.subr.bf16.mxu0 0
    %3825 = vmatpush1.bf16.msra.mxu0 %v2876
    %3826 = vmatprep.subr.bf16.mxu0 0
    %3827 = vmatpush1.bf16.msra.mxu0 %v2875
    %3828 = vmatprep.subr.bf16.mxu0 0
    %3829 = vmatpush1.bf16.msra.mxu0 %v2874
    %3830 = vmatprep.subr.bf16.mxu0 0
    %3831 = vmatpush1.bf16.msra.mxu0 %v2873
    %3832 = vmatprep.subr.bf16.mxu0 0
    %3833 = vmatpush1.bf16.msra.mxu0 %v2872
    %3834 = vmatprep.subr.bf16.mxu0 0
    %3835 = vmatpush1.bf16.msra.mxu0 %v2871
    %3836 = vmatprep.subr.bf16.mxu0 0
    %3837 = vmatpush1.bf16.msra.mxu0 %v2870
    %3838 = vmatprep.subr.bf16.mxu0 0
    %3839 = vmatpush2.bf16.msra.mxu0 %v2885
    %3840 = vmatprep.subr.bf16.mxu0 0
    %3841 = vmatpush2.bf16.msra.mxu0 %v2884
    %3842 = vmatprep.subr.bf16.mxu0 0
    %3843 = vmatpush2.bf16.msra.mxu0 %v2883
    %3844 = vmatprep.subr.bf16.mxu0 0
    %3845 = vmatpush2.bf16.msra.mxu0 %v2882
    %3846 = vmatprep.subr.bf16.mxu0 0
    %3847 = vmatpush2.bf16.msra.mxu0 %v2881
    %3848 = vmatprep.subr.bf16.mxu0 0
    %3849 = vmatpush2.bf16.msra.mxu0 %v2880
    %3850 = vmatprep.subr.bf16.mxu0 0
    %3851 = vmatpush2.bf16.msra.mxu0 %v2879
    %3852 = vmatprep.subr.bf16.mxu0 0
    %3853 = vmatpush2.bf16.msra.mxu0 %v2878
    %3854 = vmatprep.mubr.bf16.mxu0 %v930
    %3855 = vmatmul.mubr.bf16.gmra.mxu0 %v928
    %v3856 = vpop.f32.mrf.mxu0
    %v3857 = vadd.f32 %v3817, %v3856
    %v3858 = vpop.f32.mrf.mxu0
    %v3859 = vpop.f32.mrf.mxu0
    %v3860 = vpop.f32.mrf.mxu0
    %3861 = vdwg.mxu0
    %3862 = vmatprep.subr.bf16.mxu0 0
    %3863 = vmatpush1.bf16.msra.mxu0 %v2893
    %3864 = vmatprep.subr.bf16.mxu0 0
    %3865 = vmatpush1.bf16.msra.mxu0 %v2892
    %3866 = vmatprep.subr.bf16.mxu0 0
    %3867 = vmatpush1.bf16.msra.mxu0 %v2891
    %3868 = vmatprep.subr.bf16.mxu0 0
    %3869 = vmatpush1.bf16.msra.mxu0 %v2890
    %3870 = vmatprep.subr.bf16.mxu0 0
    %3871 = vmatpush1.bf16.msra.mxu0 %v2889
    %3872 = vmatprep.subr.bf16.mxu0 0
    %3873 = vmatpush1.bf16.msra.mxu0 %v2888
    %3874 = vmatprep.subr.bf16.mxu0 0
    %3875 = vmatpush1.bf16.msra.mxu0 %v2887
    %3876 = vmatprep.subr.bf16.mxu0 0
    %3877 = vmatpush1.bf16.msra.mxu0 %v2886
    %3878 = vmatprep.subr.bf16.mxu0 0
    %3879 = vmatpush2.bf16.msra.mxu0 %v2901
    %3880 = vmatprep.subr.bf16.mxu0 0
    %3881 = vmatpush2.bf16.msra.mxu0 %v2900
    %3882 = vmatprep.subr.bf16.mxu0 0
    %3883 = vmatpush2.bf16.msra.mxu0 %v2899
    %3884 = vmatprep.subr.bf16.mxu0 0
    %3885 = vmatpush2.bf16.msra.mxu0 %v2898
    %3886 = vmatprep.subr.bf16.mxu0 0
    %3887 = vmatpush2.bf16.msra.mxu0 %v2897
    %3888 = vmatprep.subr.bf16.mxu0 0
    %3889 = vmatpush2.bf16.msra.mxu0 %v2896
    %3890 = vmatprep.subr.bf16.mxu0 0
    %3891 = vmatpush2.bf16.msra.mxu0 %v2895
    %3892 = vmatprep.subr.bf16.mxu0 0
    %3893 = vmatpush2.bf16.msra.mxu0 %v2894
    %3894 = vmatprep.mubr.bf16.mxu0 %v968
    %3895 = vmatmul.mubr.bf16.gmra.mxu0 %v954
    %v3896 = vpop.f32.mrf.mxu0
    %v3897 = vadd.f32 %v3857, %v3896
    %v3898 = vpop.f32.mrf.mxu0
    %v3899 = vpop.f32.mrf.mxu0
    %v3900 = vpop.f32.mrf.mxu0
    %3901 = vdwg.mxu0
    %3902 = vmatprep.subr.bf16.mxu0 0
    %3903 = vmatpush1.bf16.msra.mxu0 %v2909
    %3904 = vmatprep.subr.bf16.mxu0 0
    %3905 = vmatpush1.bf16.msra.mxu0 %v2908
    %3906 = vmatprep.subr.bf16.mxu0 0
    %3907 = vmatpush1.bf16.msra.mxu0 %v2907
    %3908 = vmatprep.subr.bf16.mxu0 0
    %3909 = vmatpush1.bf16.msra.mxu0 %v2906
    %3910 = vmatprep.subr.bf16.mxu0 0
    %3911 = vmatpush1.bf16.msra.mxu0 %v2905
    %3912 = vmatprep.subr.bf16.mxu0 0
    %3913 = vmatpush1.bf16.msra.mxu0 %v2904
    %3914 = vmatprep.subr.bf16.mxu0 0
    %3915 = vmatpush1.bf16.msra.mxu0 %v2903
    %3916 = vmatprep.subr.bf16.mxu0 0
    %3917 = vmatpush1.bf16.msra.mxu0 %v2902
    %3918 = vmatprep.subr.bf16.mxu0 0
    %3919 = vmatpush2.bf16.msra.mxu0 %v2917
    %3920 = vmatprep.subr.bf16.mxu0 0
    %3921 = vmatpush2.bf16.msra.mxu0 %v2916
    %3922 = vmatprep.subr.bf16.mxu0 0
    %3923 = vmatpush2.bf16.msra.mxu0 %v2915
    %3924 = vmatprep.subr.bf16.mxu0 0
    %3925 = vmatpush2.bf16.msra.mxu0 %v2914
    %3926 = vmatprep.subr.bf16.mxu0 0
    %3927 = vmatpush2.bf16.msra.mxu0 %v2913
    %3928 = vmatprep.subr.bf16.mxu0 0
    %3929 = vmatpush2.bf16.msra.mxu0 %v2912
    %3930 = vmatprep.subr.bf16.mxu0 0
    %3931 = vmatpush2.bf16.msra.mxu0 %v2911
    %3932 = vmatprep.subr.bf16.mxu0 0
    %3933 = vmatpush2.bf16.msra.mxu0 %v2910
    %3934 = vmatprep.mubr.bf16.mxu0 %v978
    %3935 = vmatmul.mubr.bf16.gmra.mxu0 %v976
    %v3936 = vpop.f32.mrf.mxu0
    %v3937 = vadd.f32 %v3897, %v3936
    %v3938 = vpop.f32.mrf.mxu0
    %v3939 = vpop.f32.mrf.mxu0
    %v3940 = vpop.f32.mrf.mxu0
    %3941 = vdwg.mxu0
    %3942 = vmatprep.subr.bf16.mxu0 0
    %3943 = vmatpush1.bf16.msra.mxu0 %v2925
    %3944 = vmatprep.subr.bf16.mxu0 0
    %3945 = vmatpush1.bf16.msra.mxu0 %v2924
    %3946 = vmatprep.subr.bf16.mxu0 0
    %3947 = vmatpush1.bf16.msra.mxu0 %v2923
    %3948 = vmatprep.subr.bf16.mxu0 0
    %3949 = vmatpush1.bf16.msra.mxu0 %v2922
    %3950 = vmatprep.subr.bf16.mxu0 0
    %3951 = vmatpush1.bf16.msra.mxu0 %v2921
    %3952 = vmatprep.subr.bf16.mxu0 0
    %3953 = vmatpush1.bf16.msra.mxu0 %v2920
    %3954 = vmatprep.subr.bf16.mxu0 0
    %3955 = vmatpush1.bf16.msra.mxu0 %v2919
    %3956 = vmatprep.subr.bf16.mxu0 0
    %3957 = vmatpush1.bf16.msra.mxu0 %v2918
    %3958 = vmatprep.subr.bf16.mxu0 0
    %3959 = vmatpush2.bf16.msra.mxu0 %v2933
    %3960 = vmatprep.subr.bf16.mxu0 0
    %3961 = vmatpush2.bf16.msra.mxu0 %v2932
    %3962 = vmatprep.subr.bf16.mxu0 0
    %3963 = vmatpush2.bf16.msra.mxu0 %v2931
    %3964 = vmatprep.subr.bf16.mxu0 0
    %3965 = vmatpush2.bf16.msra.mxu0 %v2930
    %3966 = vmatprep.subr.bf16.mxu0 0
    %3967 = vmatpush2.bf16.msra.mxu0 %v2929
    %3968 = vmatprep.subr.bf16.mxu0 0
    %3969 = vmatpush2.bf16.msra.mxu0 %v2928
    %3970 = vmatprep.subr.bf16.mxu0 0
    %3971 = vmatpush2.bf16.msra.mxu0 %v2927
    %3972 = vmatprep.subr.bf16.mxu0 0
    %3973 = vmatpush2.bf16.msra.mxu0 %v2926
    %3974 = vmatprep.mubr.bf16.mxu0 %v975
    %3975 = vmatmul.mubr.bf16.gmra.mxu0 %v961
    %v3976 = vpop.f32.mrf.mxu0
    %v3977 = vadd.f32 %v3937, %v3976
    %v3978 = vpop.f32.mrf.mxu0
    %v3979 = vpop.f32.mrf.mxu0
    %v3980 = vpop.f32.mrf.mxu0
    %3981 = vdwg.mxu0
    %3982 = vmatprep.subr.bf16.mxu0 0
    %3983 = vmatpush1.bf16.msra.mxu0 %v2941
    %3984 = vmatprep.subr.bf16.mxu0 0
    %3985 = vmatpush1.bf16.msra.mxu0 %v2940
    %3986 = vmatprep.subr.bf16.mxu0 0
    %3987 = vmatpush1.bf16.msra.mxu0 %v2939
    %3988 = vmatprep.subr.bf16.mxu0 0
    %3989 = vmatpush1.bf16.msra.mxu0 %v2938
    %3990 = vmatprep.subr.bf16.mxu0 0
    %3991 = vmatpush1.bf16.msra.mxu0 %v2937
    %3992 = vmatprep.subr.bf16.mxu0 0
    %3993 = vmatpush1.bf16.msra.mxu0 %v2936
    %3994 = vmatprep.subr.bf16.mxu0 0
    %3995 = vmatpush1.bf16.msra.mxu0 %v2935
    %3996 = vmatprep.subr.bf16.mxu0 0
    %3997 = vmatpush1.bf16.msra.mxu0 %v2934
    %3998 = vmatprep.subr.bf16.mxu0 0
    %3999 = vmatpush2.bf16.msra.mxu0 %v2949
    %4000 = vmatprep.subr.bf16.mxu0 0
    %4001 = vmatpush2.bf16.msra.mxu0 %v2948
    %4002 = vmatprep.subr.bf16.mxu0 0
    %4003 = vmatpush2.bf16.msra.mxu0 %v2947
    %4004 = vmatprep.subr.bf16.mxu0 0
    %4005 = vmatpush2.bf16.msra.mxu0 %v2946
    %4006 = vmatprep.subr.bf16.mxu0 0
    %4007 = vmatpush2.bf16.msra.mxu0 %v2945
    %4008 = vmatprep.subr.bf16.mxu0 0
    %4009 = vmatpush2.bf16.msra.mxu0 %v2944
    %4010 = vmatprep.subr.bf16.mxu0 0
    %4011 = vmatpush2.bf16.msra.mxu0 %v2943
    %4012 = vmatprep.subr.bf16.mxu0 0
    %4013 = vmatpush2.bf16.msra.mxu0 %v2942
    %4014 = vmatprep.mubr.bf16.mxu0 %v979
    %4015 = vmatmul.mubr.bf16.gmra.mxu0 %v977
    %v4016 = vpop.f32.mrf.mxu0
    %v4017 = vadd.f32 %v3977, %v4016
    %v4018 = vpop.f32.mrf.mxu0
    %v4019 = vpop.f32.mrf.mxu0
    %v4020 = vpop.f32.mrf.mxu0
    %4021 = vdwg.mxu0
    %4022 = vmatprep.subr.bf16.mxu0 0
    %4023 = vmatpush1.bf16.msra.mxu0 %v2957
    %4024 = vmatprep.subr.bf16.mxu0 0
    %4025 = vmatpush1.bf16.msra.mxu0 %v2956
    %4026 = vmatprep.subr.bf16.mxu0 0
    %4027 = vmatpush1.bf16.msra.mxu0 %v2955
    %4028 = vmatprep.subr.bf16.mxu0 0
    %4029 = vmatpush1.bf16.msra.mxu0 %v2954
    %4030 = vmatprep.subr.bf16.mxu0 0
    %4031 = vmatpush1.bf16.msra.mxu0 %v2953
    %4032 = vmatprep.subr.bf16.mxu0 0
    %4033 = vmatpush1.bf16.msra.mxu0 %v2952
    %4034 = vmatprep.subr.bf16.mxu0 0
    %4035 = vmatpush1.bf16.msra.mxu0 %v2951
    %4036 = vmatprep.subr.bf16.mxu0 0
    %4037 = vmatpush1.bf16.msra.mxu0 %v2950
    %4038 = vmatprep.subr.bf16.mxu0 0
    %4039 = vmatpush2.bf16.msra.mxu0 %v2965
    %4040 = vmatprep.subr.bf16.mxu0 0
    %4041 = vmatpush2.bf16.msra.mxu0 %v2964
    %4042 = vmatprep.subr.bf16.mxu0 0
    %4043 = vmatpush2.bf16.msra.mxu0 %v2963
    %4044 = vmatprep.subr.bf16.mxu0 0
    %4045 = vmatpush2.bf16.msra.mxu0 %v2962
    %4046 = vmatprep.subr.bf16.mxu0 0
    %4047 = vmatpush2.bf16.msra.mxu0 %v2961
    %4048 = vmatprep.subr.bf16.mxu0 0
    %4049 = vmatpush2.bf16.msra.mxu0 %v2960
    %4050 = vmatprep.subr.bf16.mxu0 0
    %4051 = vmatpush2.bf16.msra.mxu0 %v2959
    %4052 = vmatprep.subr.bf16.mxu0 0
    %4053 = vmatpush2.bf16.msra.mxu0 %v2958
    %4054 = vmatprep.mubr.bf16.mxu0 %v1017
    %4055 = vmatmul.mubr.bf16.gmra.mxu0 %v1003
    %v4056 = vpop.f32.mrf.mxu0
    %v4057 = vadd.f32 %v4017, %v4056
    %v4058 = vpop.f32.mrf.mxu0
    %v4059 = vpop.f32.mrf.mxu0
    %v4060 = vpop.f32.mrf.mxu0
    %4061 = vdwg.mxu0
    %4062 = vmatprep.subr.bf16.mxu0 0
    %4063 = vmatpush1.bf16.msra.mxu0 %v2973
    %4064 = vmatprep.subr.bf16.mxu0 0
    %4065 = vmatpush1.bf16.msra.mxu0 %v2972
    %4066 = vmatprep.subr.bf16.mxu0 0
    %4067 = vmatpush1.bf16.msra.mxu0 %v2971
    %4068 = vmatprep.subr.bf16.mxu0 0
    %4069 = vmatpush1.bf16.msra.mxu0 %v2970
    %4070 = vmatprep.subr.bf16.mxu0 0
    %4071 = vmatpush1.bf16.msra.mxu0 %v2969
    %4072 = vmatprep.subr.bf16.mxu0 0
    %4073 = vmatpush1.bf16.msra.mxu0 %v2968
    %4074 = vmatprep.subr.bf16.mxu0 0
    %4075 = vmatpush1.bf16.msra.mxu0 %v2967
    %4076 = vmatprep.subr.bf16.mxu0 0
    %4077 = vmatpush1.bf16.msra.mxu0 %v2966
    %4078 = vmatprep.subr.bf16.mxu0 0
    %4079 = vmatpush2.bf16.msra.mxu0 %v2981
    %4080 = vmatprep.subr.bf16.mxu0 0
    %4081 = vmatpush2.bf16.msra.mxu0 %v2980
    %4082 = vmatprep.subr.bf16.mxu0 0
    %4083 = vmatpush2.bf16.msra.mxu0 %v2979
    %4084 = vmatprep.subr.bf16.mxu0 0
    %4085 = vmatpush2.bf16.msra.mxu0 %v2978
    %4086 = vmatprep.subr.bf16.mxu0 0
    %4087 = vmatpush2.bf16.msra.mxu0 %v2977
    %4088 = vmatprep.subr.bf16.mxu0 0
    %4089 = vmatpush2.bf16.msra.mxu0 %v2976
    %4090 = vmatprep.subr.bf16.mxu0 0
    %4091 = vmatpush2.bf16.msra.mxu0 %v2975
    %4092 = vmatprep.subr.bf16.mxu0 0
    %4093 = vmatpush2.bf16.msra.mxu0 %v2974
    %4094 = vmatprep.mubr.bf16.mxu0 %v1027
    %4095 = vmatmul.mubr.bf16.gmra.mxu0 %v1025
    %v4096 = vpop.f32.mrf.mxu0
    %v4097 = vadd.f32 %v4057, %v4096
    %v4098 = vpop.f32.mrf.mxu0
    %v4099 = vpop.f32.mrf.mxu0
    %v4100 = vpop.f32.mrf.mxu0
    %4101 = vdwg.mxu0
    %4102 = vmatprep.subr.bf16.mxu0 0
    %4103 = vmatpush1.bf16.msra.mxu0 %v2989
    %4104 = vmatprep.subr.bf16.mxu0 0
    %4105 = vmatpush1.bf16.msra.mxu0 %v2988
    %4106 = vmatprep.subr.bf16.mxu0 0
    %4107 = vmatpush1.bf16.msra.mxu0 %v2987
    %4108 = vmatprep.subr.bf16.mxu0 0
    %4109 = vmatpush1.bf16.msra.mxu0 %v2986
    %4110 = vmatprep.subr.bf16.mxu0 0
    %4111 = vmatpush1.bf16.msra.mxu0 %v2985
    %4112 = vmatprep.subr.bf16.mxu0 0
    %4113 = vmatpush1.bf16.msra.mxu0 %v2984
    %4114 = vmatprep.subr.bf16.mxu0 0
    %4115 = vmatpush1.bf16.msra.mxu0 %v2983
    %4116 = vmatprep.subr.bf16.mxu0 0
    %4117 = vmatpush1.bf16.msra.mxu0 %v2982
    %4118 = vmatprep.subr.bf16.mxu0 0
    %4119 = vmatpush2.bf16.msra.mxu0 %v2997
    %4120 = vmatprep.subr.bf16.mxu0 0
    %4121 = vmatpush2.bf16.msra.mxu0 %v2996
    %4122 = vmatprep.subr.bf16.mxu0 0
    %4123 = vmatpush2.bf16.msra.mxu0 %v2995
    %4124 = vmatprep.subr.bf16.mxu0 0
    %4125 = vmatpush2.bf16.msra.mxu0 %v2994
    %4126 = vmatprep.subr.bf16.mxu0 0
    %4127 = vmatpush2.bf16.msra.mxu0 %v2993
    %4128 = vmatprep.subr.bf16.mxu0 0
    %4129 = vmatpush2.bf16.msra.mxu0 %v2992
    %4130 = vmatprep.subr.bf16.mxu0 0
    %4131 = vmatpush2.bf16.msra.mxu0 %v2991
    %4132 = vmatprep.subr.bf16.mxu0 0
    %4133 = vmatpush2.bf16.msra.mxu0 %v2990
    %4134 = vmatprep.mubr.bf16.mxu0 %v1024
    %4135 = vmatmul.mubr.bf16.gmra.mxu0 %v1010
    %v4136 = vpop.f32.mrf.mxu0
    %v4137 = vadd.f32 %v4097, %v4136
    %v4138 = vpop.f32.mrf.mxu0
    %v4139 = vpop.f32.mrf.mxu0
    %v4140 = vpop.f32.mrf.mxu0
    %4141 = vdwg.mxu0
    %4142 = vmatprep.subr.bf16.mxu0 0
    %4143 = vmatpush1.bf16.msra.mxu0 %v3005
    %4144 = vmatprep.subr.bf16.mxu0 0
    %4145 = vmatpush1.bf16.msra.mxu0 %v3004
    %4146 = vmatprep.subr.bf16.mxu0 0
    %4147 = vmatpush1.bf16.msra.mxu0 %v3003
    %4148 = vmatprep.subr.bf16.mxu0 0
    %4149 = vmatpush1.bf16.msra.mxu0 %v3002
    %4150 = vmatprep.subr.bf16.mxu0 0
    %4151 = vmatpush1.bf16.msra.mxu0 %v3001
    %4152 = vmatprep.subr.bf16.mxu0 0
    %4153 = vmatpush1.bf16.msra.mxu0 %v3000
    %4154 = vmatprep.subr.bf16.mxu0 0
    %4155 = vmatpush1.bf16.msra.mxu0 %v2999
    %4156 = vmatprep.subr.bf16.mxu0 0
    %4157 = vmatpush1.bf16.msra.mxu0 %v2998
    %4158 = vmatprep.subr.bf16.mxu0 0
    %4159 = vmatpush2.bf16.msra.mxu0 %v3013
    %4160 = vmatprep.subr.bf16.mxu0 0
    %4161 = vmatpush2.bf16.msra.mxu0 %v3012
    %4162 = vmatprep.subr.bf16.mxu0 0
    %4163 = vmatpush2.bf16.msra.mxu0 %v3011
    %4164 = vmatprep.subr.bf16.mxu0 0
    %4165 = vmatpush2.bf16.msra.mxu0 %v3010
    %4166 = vmatprep.subr.bf16.mxu0 0
    %4167 = vmatpush2.bf16.msra.mxu0 %v3009
    %4168 = vmatprep.subr.bf16.mxu0 0
    %4169 = vmatpush2.bf16.msra.mxu0 %v3008
    %4170 = vmatprep.subr.bf16.mxu0 0
    %4171 = vmatpush2.bf16.msra.mxu0 %v3007
    %4172 = vmatprep.subr.bf16.mxu0 0
    %4173 = vmatpush2.bf16.msra.mxu0 %v3006
    %4174 = vmatprep.mubr.bf16.mxu0 %v1028
    %4175 = vmatmul.mubr.bf16.gmra.mxu0 %v1026
    %v4176 = vpop.f32.mrf.mxu0
    %v4177 = vadd.f32 %v4137, %v4176
    %v4178 = vpop.f32.mrf.mxu0
    %v4179 = vpop.f32.mrf.mxu0
    %v4180 = vpop.f32.mrf.mxu0
    %4181 = vdwg.mxu0
    %4182 = vmatprep.subr.bf16.mxu0 0
    %4183 = vmatpush1.bf16.msra.mxu0 %v3021
    %4184 = vmatprep.subr.bf16.mxu0 0
    %4185 = vmatpush1.bf16.msra.mxu0 %v3020
    %4186 = vmatprep.subr.bf16.mxu0 0
    %4187 = vmatpush1.bf16.msra.mxu0 %v3019
    %4188 = vmatprep.subr.bf16.mxu0 0
    %4189 = vmatpush1.bf16.msra.mxu0 %v3018
    %4190 = vmatprep.subr.bf16.mxu0 0
    %4191 = vmatpush1.bf16.msra.mxu0 %v3017
    %4192 = vmatprep.subr.bf16.mxu0 0
    %4193 = vmatpush1.bf16.msra.mxu0 %v3016
    %4194 = vmatprep.subr.bf16.mxu0 0
    %4195 = vmatpush1.bf16.msra.mxu0 %v3015
    %4196 = vmatprep.subr.bf16.mxu0 0
    %4197 = vmatpush1.bf16.msra.mxu0 %v3014
    %4198 = vmatprep.subr.bf16.mxu0 0
    %4199 = vmatpush2.bf16.msra.mxu0 %v3029
    %4200 = vmatprep.subr.bf16.mxu0 0
    %4201 = vmatpush2.bf16.msra.mxu0 %v3028
    %4202 = vmatprep.subr.bf16.mxu0 0
    %4203 = vmatpush2.bf16.msra.mxu0 %v3027
    %4204 = vmatprep.subr.bf16.mxu0 0
    %4205 = vmatpush2.bf16.msra.mxu0 %v3026
    %4206 = vmatprep.subr.bf16.mxu0 0
    %4207 = vmatpush2.bf16.msra.mxu0 %v3025
    %4208 = vmatprep.subr.bf16.mxu0 0
    %4209 = vmatpush2.bf16.msra.mxu0 %v3024
    %4210 = vmatprep.subr.bf16.mxu0 0
    %4211 = vmatpush2.bf16.msra.mxu0 %v3023
    %4212 = vmatprep.subr.bf16.mxu0 0
    %4213 = vmatpush2.bf16.msra.mxu0 %v3022
    %4214 = vmatprep.mubr.bf16.mxu0 %v1066
    %4215 = vmatmul.mubr.bf16.gmra.mxu0 %v1052
    %v4216 = vpop.f32.mrf.mxu0
    %v4217 = vadd.f32 %v4177, %v4216
    %v4218 = vpop.f32.mrf.mxu0
    %v4219 = vpop.f32.mrf.mxu0
    %v4220 = vpop.f32.mrf.mxu0
    %4221 = vdwg.mxu0
    %4222 = vmatprep.subr.bf16.mxu0 0
    %4223 = vmatpush1.bf16.msra.mxu0 %v3037
    %4224 = vmatprep.subr.bf16.mxu0 0
    %4225 = vmatpush1.bf16.msra.mxu0 %v3036
    %4226 = vmatprep.subr.bf16.mxu0 0
    %4227 = vmatpush1.bf16.msra.mxu0 %v3035
    %4228 = vmatprep.subr.bf16.mxu0 0
    %4229 = vmatpush1.bf16.msra.mxu0 %v3034
    %4230 = vmatprep.subr.bf16.mxu0 0
    %4231 = vmatpush1.bf16.msra.mxu0 %v3033
    %4232 = vmatprep.subr.bf16.mxu0 0
    %4233 = vmatpush1.bf16.msra.mxu0 %v3032
    %4234 = vmatprep.subr.bf16.mxu0 0
    %4235 = vmatpush1.bf16.msra.mxu0 %v3031
    %4236 = vmatprep.subr.bf16.mxu0 0
    %4237 = vmatpush1.bf16.msra.mxu0 %v3030
    %4238 = vmatprep.subr.bf16.mxu0 0
    %4239 = vmatpush2.bf16.msra.mxu0 %v3045
    %4240 = vmatprep.subr.bf16.mxu0 0
    %4241 = vmatpush2.bf16.msra.mxu0 %v3044
    %4242 = vmatprep.subr.bf16.mxu0 0
    %4243 = vmatpush2.bf16.msra.mxu0 %v3043
    %4244 = vmatprep.subr.bf16.mxu0 0
    %4245 = vmatpush2.bf16.msra.mxu0 %v3042
    %4246 = vmatprep.subr.bf16.mxu0 0
    %4247 = vmatpush2.bf16.msra.mxu0 %v3041
    %4248 = vmatprep.subr.bf16.mxu0 0
    %4249 = vmatpush2.bf16.msra.mxu0 %v3040
    %4250 = vmatprep.subr.bf16.mxu0 0
    %4251 = vmatpush2.bf16.msra.mxu0 %v3039
    %4252 = vmatprep.subr.bf16.mxu0 0
    %4253 = vmatpush2.bf16.msra.mxu0 %v3038
    %4254 = vmatprep.mubr.bf16.mxu0 %v1076
    %4255 = vmatmul.mubr.bf16.gmra.mxu0 %v1074
    %v4256 = vpop.f32.mrf.mxu0
    %v4257 = vadd.f32 %v4217, %v4256
    %v4258 = vpop.f32.mrf.mxu0
    %v4259 = vpop.f32.mrf.mxu0
    %v4260 = vpop.f32.mrf.mxu0
    %4261 = vdwg.mxu0
    %4262 = vmatprep.subr.bf16.mxu0 0
    %4263 = vmatpush1.bf16.msra.mxu0 %v3053
    %4264 = vmatprep.subr.bf16.mxu0 0
    %4265 = vmatpush1.bf16.msra.mxu0 %v3052
    %4266 = vmatprep.subr.bf16.mxu0 0
    %4267 = vmatpush1.bf16.msra.mxu0 %v3051
    %4268 = vmatprep.subr.bf16.mxu0 0
    %4269 = vmatpush1.bf16.msra.mxu0 %v3050
    %4270 = vmatprep.subr.bf16.mxu0 0
    %4271 = vmatpush1.bf16.msra.mxu0 %v3049
    %4272 = vmatprep.subr.bf16.mxu0 0
    %4273 = vmatpush1.bf16.msra.mxu0 %v3048
    %4274 = vmatprep.subr.bf16.mxu0 0
    %4275 = vmatpush1.bf16.msra.mxu0 %v3047
    %4276 = vmatprep.subr.bf16.mxu0 0
    %4277 = vmatpush1.bf16.msra.mxu0 %v3046
    %4278 = vmatprep.subr.bf16.mxu0 0
    %4279 = vmatpush2.bf16.msra.mxu0 %v3061
    %4280 = vmatprep.subr.bf16.mxu0 0
    %4281 = vmatpush2.bf16.msra.mxu0 %v3060
    %4282 = vmatprep.subr.bf16.mxu0 0
    %4283 = vmatpush2.bf16.msra.mxu0 %v3059
    %4284 = vmatprep.subr.bf16.mxu0 0
    %4285 = vmatpush2.bf16.msra.mxu0 %v3058
    %4286 = vmatprep.subr.bf16.mxu0 0
    %4287 = vmatpush2.bf16.msra.mxu0 %v3057
    %4288 = vmatprep.subr.bf16.mxu0 0
    %4289 = vmatpush2.bf16.msra.mxu0 %v3056
    %4290 = vmatprep.subr.bf16.mxu0 0
    %4291 = vmatpush2.bf16.msra.mxu0 %v3055
    %4292 = vmatprep.subr.bf16.mxu0 0
    %4293 = vmatpush2.bf16.msra.mxu0 %v3054
    %4294 = vmatprep.mubr.bf16.mxu0 %v1073
    %4295 = vmatmul.mubr.bf16.gmra.mxu0 %v1059
    %v4296 = vpop.f32.mrf.mxu0
    %v4297 = vadd.f32 %v4257, %v4296
    %v4298 = vpop.f32.mrf.mxu0
    %v4299 = vpop.f32.mrf.mxu0
    %v4300 = vpop.f32.mrf.mxu0
    %4301 = vdwg.mxu0
    %4302 = vmatprep.subr.bf16.mxu0 0
    %4303 = vmatpush1.bf16.msra.mxu0 %v3069
    %4304 = vmatprep.subr.bf16.mxu0 0
    %4305 = vmatpush1.bf16.msra.mxu0 %v3068
    %4306 = vmatprep.subr.bf16.mxu0 0
    %4307 = vmatpush1.bf16.msra.mxu0 %v3067
    %4308 = vmatprep.subr.bf16.mxu0 0
    %4309 = vmatpush1.bf16.msra.mxu0 %v3066
    %4310 = vmatprep.subr.bf16.mxu0 0
    %4311 = vmatpush1.bf16.msra.mxu0 %v3065
    %4312 = vmatprep.subr.bf16.mxu0 0
    %4313 = vmatpush1.bf16.msra.mxu0 %v3064
    %4314 = vmatprep.subr.bf16.mxu0 0
    %4315 = vmatpush1.bf16.msra.mxu0 %v3063
    %4316 = vmatprep.subr.bf16.mxu0 0
    %4317 = vmatpush1.bf16.msra.mxu0 %v3062
    %4318 = vmatprep.subr.bf16.mxu0 0
    %4319 = vmatpush2.bf16.msra.mxu0 %v3077
    %4320 = vmatprep.subr.bf16.mxu0 0
    %4321 = vmatpush2.bf16.msra.mxu0 %v3076
    %4322 = vmatprep.subr.bf16.mxu0 0
    %4323 = vmatpush2.bf16.msra.mxu0 %v3075
    %4324 = vmatprep.subr.bf16.mxu0 0
    %4325 = vmatpush2.bf16.msra.mxu0 %v3074
    %4326 = vmatprep.subr.bf16.mxu0 0
    %4327 = vmatpush2.bf16.msra.mxu0 %v3073
    %4328 = vmatprep.subr.bf16.mxu0 0
    %4329 = vmatpush2.bf16.msra.mxu0 %v3072
    %4330 = vmatprep.subr.bf16.mxu0 0
    %4331 = vmatpush2.bf16.msra.mxu0 %v3071
    %4332 = vmatprep.subr.bf16.mxu0 0
    %4333 = vmatpush2.bf16.msra.mxu0 %v3070
    %4334 = vmatprep.mubr.bf16.mxu0 %v1077
    %4335 = vmatmul.mubr.bf16.gmra.mxu0 %v1075
    %v4336 = vpop.f32.mrf.mxu0
    %v4337 = vadd.f32 %v4297, %v4336
    %v4338 = vpop.f32.mrf.mxu0
    %v4339 = vpop.f32.mrf.mxu0
    %v4340 = vpop.f32.mrf.mxu0
    %4341 = vdwg.mxu0
    %4342 = vmatprep.subr.bf16.mxu0 0
    %4343 = vmatpush1.bf16.msra.mxu0 %v3085
    %4344 = vmatprep.subr.bf16.mxu0 0
    %4345 = vmatpush1.bf16.msra.mxu0 %v3084
    %4346 = vmatprep.subr.bf16.mxu0 0
    %4347 = vmatpush1.bf16.msra.mxu0 %v3083
    %4348 = vmatprep.subr.bf16.mxu0 0
    %4349 = vmatpush1.bf16.msra.mxu0 %v3082
    %4350 = vmatprep.subr.bf16.mxu0 0
    %4351 = vmatpush1.bf16.msra.mxu0 %v3081
    %4352 = vmatprep.subr.bf16.mxu0 0
    %4353 = vmatpush1.bf16.msra.mxu0 %v3080
    %4354 = vmatprep.subr.bf16.mxu0 0
    %4355 = vmatpush1.bf16.msra.mxu0 %v3079
    %4356 = vmatprep.subr.bf16.mxu0 0
    %4357 = vmatpush1.bf16.msra.mxu0 %v3078
    %4358 = vmatprep.subr.bf16.mxu0 0
    %4359 = vmatpush2.bf16.msra.mxu0 %v3093
    %4360 = vmatprep.subr.bf16.mxu0 0
    %4361 = vmatpush2.bf16.msra.mxu0 %v3092
    %4362 = vmatprep.subr.bf16.mxu0 0
    %4363 = vmatpush2.bf16.msra.mxu0 %v3091
    %4364 = vmatprep.subr.bf16.mxu0 0
    %4365 = vmatpush2.bf16.msra.mxu0 %v3090
    %4366 = vmatprep.subr.bf16.mxu0 0
    %4367 = vmatpush2.bf16.msra.mxu0 %v3089
    %4368 = vmatprep.subr.bf16.mxu0 0
    %4369 = vmatpush2.bf16.msra.mxu0 %v3088
    %4370 = vmatprep.subr.bf16.mxu0 0
    %4371 = vmatpush2.bf16.msra.mxu0 %v3087
    %4372 = vmatprep.subr.bf16.mxu0 0
    %4373 = vmatpush2.bf16.msra.mxu0 %v3086
    %4374 = vmatprep.mubr.bf16.mxu0 %v1115
    %4375 = vmatmul.mubr.bf16.gmra.mxu0 %v1101
    %v4376 = vpop.f32.mrf.mxu0
    %v4377 = vadd.f32 %v4337, %v4376
    %v4378 = vpop.f32.mrf.mxu0
    %v4379 = vpop.f32.mrf.mxu0
    %v4380 = vpop.f32.mrf.mxu0
    %4381 = vdwg.mxu0
    %4382 = vmatprep.subr.bf16.mxu0 0
    %4383 = vmatpush1.bf16.msra.mxu0 %v3101
    %4384 = vmatprep.subr.bf16.mxu0 0
    %4385 = vmatpush1.bf16.msra.mxu0 %v3100
    %4386 = vmatprep.subr.bf16.mxu0 0
    %4387 = vmatpush1.bf16.msra.mxu0 %v3099
    %4388 = vmatprep.subr.bf16.mxu0 0
    %4389 = vmatpush1.bf16.msra.mxu0 %v3098
    %4390 = vmatprep.subr.bf16.mxu0 0
    %4391 = vmatpush1.bf16.msra.mxu0 %v3097
    %4392 = vmatprep.subr.bf16.mxu0 0
    %4393 = vmatpush1.bf16.msra.mxu0 %v3096
    %4394 = vmatprep.subr.bf16.mxu0 0
    %4395 = vmatpush1.bf16.msra.mxu0 %v3095
    %4396 = vmatprep.subr.bf16.mxu0 0
    %4397 = vmatpush1.bf16.msra.mxu0 %v3094
    %4398 = vmatprep.subr.bf16.mxu0 0
    %4399 = vmatpush2.bf16.msra.mxu0 %v3109
    %4400 = vmatprep.subr.bf16.mxu0 0
    %4401 = vmatpush2.bf16.msra.mxu0 %v3108
    %4402 = vmatprep.subr.bf16.mxu0 0
    %4403 = vmatpush2.bf16.msra.mxu0 %v3107
    %4404 = vmatprep.subr.bf16.mxu0 0
    %4405 = vmatpush2.bf16.msra.mxu0 %v3106
    %4406 = vmatprep.subr.bf16.mxu0 0
    %4407 = vmatpush2.bf16.msra.mxu0 %v3105
    %4408 = vmatprep.subr.bf16.mxu0 0
    %4409 = vmatpush2.bf16.msra.mxu0 %v3104
    %4410 = vmatprep.subr.bf16.mxu0 0
    %4411 = vmatpush2.bf16.msra.mxu0 %v3103
    %4412 = vmatprep.subr.bf16.mxu0 0
    %4413 = vmatpush2.bf16.msra.mxu0 %v3102
    %4414 = vmatprep.mubr.bf16.mxu0 %v1125
    %4415 = vmatmul.mubr.bf16.gmra.mxu0 %v1123
    %v4416 = vpop.f32.mrf.mxu0
    %v4417 = vadd.f32 %v4377, %v4416
    %v4418 = vpop.f32.mrf.mxu0
    %v4419 = vpop.f32.mrf.mxu0
    %v4420 = vpop.f32.mrf.mxu0
    %4421 = vdwg.mxu0
    %4422 = vmatprep.subr.bf16.mxu0 0
    %4423 = vmatpush1.bf16.msra.mxu0 %v3117
    %4424 = vmatprep.subr.bf16.mxu0 0
    %4425 = vmatpush1.bf16.msra.mxu0 %v3116
    %4426 = vmatprep.subr.bf16.mxu0 0
    %4427 = vmatpush1.bf16.msra.mxu0 %v3115
    %4428 = vmatprep.subr.bf16.mxu0 0
    %4429 = vmatpush1.bf16.msra.mxu0 %v3114
    %4430 = vmatprep.subr.bf16.mxu0 0
    %4431 = vmatpush1.bf16.msra.mxu0 %v3113
    %4432 = vmatprep.subr.bf16.mxu0 0
    %4433 = vmatpush1.bf16.msra.mxu0 %v3112
    %4434 = vmatprep.subr.bf16.mxu0 0
    %4435 = vmatpush1.bf16.msra.mxu0 %v3111
    %4436 = vmatprep.subr.bf16.mxu0 0
    %4437 = vmatpush1.bf16.msra.mxu0 %v3110
    %4438 = vmatprep.subr.bf16.mxu0 0
    %4439 = vmatpush2.bf16.msra.mxu0 %v3125
    %4440 = vmatprep.subr.bf16.mxu0 0
    %4441 = vmatpush2.bf16.msra.mxu0 %v3124
    %4442 = vmatprep.subr.bf16.mxu0 0
    %4443 = vmatpush2.bf16.msra.mxu0 %v3123
    %4444 = vmatprep.subr.bf16.mxu0 0
    %4445 = vmatpush2.bf16.msra.mxu0 %v3122
    %4446 = vmatprep.subr.bf16.mxu0 0
    %4447 = vmatpush2.bf16.msra.mxu0 %v3121
    %4448 = vmatprep.subr.bf16.mxu0 0
    %4449 = vmatpush2.bf16.msra.mxu0 %v3120
    %4450 = vmatprep.subr.bf16.mxu0 0
    %4451 = vmatpush2.bf16.msra.mxu0 %v3119
    %4452 = vmatprep.subr.bf16.mxu0 0
    %4453 = vmatpush2.bf16.msra.mxu0 %v3118
    %4454 = vmatprep.mubr.bf16.mxu0 %v1122
    %4455 = vmatmul.mubr.bf16.gmra.mxu0 %v1108
    %v4456 = vpop.f32.mrf.mxu0
    %v4457 = vadd.f32 %v4417, %v4456
    %v4458 = vpop.f32.mrf.mxu0
    %v4459 = vpop.f32.mrf.mxu0
    %v4460 = vpop.f32.mrf.mxu0
    %4461 = vdwg.mxu0
    %4462 = vmatprep.subr.bf16.mxu0 0
    %4463 = vmatpush1.bf16.msra.mxu0 %v3133
    %4464 = vmatprep.subr.bf16.mxu0 0
    %4465 = vmatpush1.bf16.msra.mxu0 %v3132
    %4466 = vmatprep.subr.bf16.mxu0 0
    %4467 = vmatpush1.bf16.msra.mxu0 %v3131
    %4468 = vmatprep.subr.bf16.mxu0 0
    %4469 = vmatpush1.bf16.msra.mxu0 %v3130
    %4470 = vmatprep.subr.bf16.mxu0 0
    %4471 = vmatpush1.bf16.msra.mxu0 %v3129
    %4472 = vmatprep.subr.bf16.mxu0 0
    %4473 = vmatpush1.bf16.msra.mxu0 %v3128
    %4474 = vmatprep.subr.bf16.mxu0 0
    %4475 = vmatpush1.bf16.msra.mxu0 %v3127
    %4476 = vmatprep.subr.bf16.mxu0 0
    %4477 = vmatpush1.bf16.msra.mxu0 %v3126
    %4478 = vmatprep.subr.bf16.mxu0 0
    %4479 = vmatpush2.bf16.msra.mxu0 %v3141
    %4480 = vmatprep.subr.bf16.mxu0 0
    %4481 = vmatpush2.bf16.msra.mxu0 %v3140
    %4482 = vmatprep.subr.bf16.mxu0 0
    %4483 = vmatpush2.bf16.msra.mxu0 %v3139
    %4484 = vmatprep.subr.bf16.mxu0 0
    %4485 = vmatpush2.bf16.msra.mxu0 %v3138
    %4486 = vmatprep.subr.bf16.mxu0 0
    %4487 = vmatpush2.bf16.msra.mxu0 %v3137
    %4488 = vmatprep.subr.bf16.mxu0 0
    %4489 = vmatpush2.bf16.msra.mxu0 %v3136
    %4490 = vmatprep.subr.bf16.mxu0 0
    %4491 = vmatpush2.bf16.msra.mxu0 %v3135
    %4492 = vmatprep.subr.bf16.mxu0 0
    %4493 = vmatpush2.bf16.msra.mxu0 %v3134
    %4494 = vmatprep.mubr.bf16.mxu0 %v1126
    %4495 = vmatmul.mubr.bf16.gmra.mxu0 %v1124
    %v4496 = vpop.f32.mrf.mxu0
    %v4497 = vadd.f32 %v4457, %v4496
    %v4498 = vpop.f32.mrf.mxu0
    %v4499 = vpop.f32.mrf.mxu0
    %v4500 = vpop.f32.mrf.mxu0
    %4501 = vdwg.mxu0
    %4502 = vmatprep.subr.bf16.mxu0 0
    %4503 = vmatpush1.bf16.msra.mxu0 %v3149
    %4504 = vmatprep.subr.bf16.mxu0 0
    %4505 = vmatpush1.bf16.msra.mxu0 %v3148
    %4506 = vmatprep.subr.bf16.mxu0 0
    %4507 = vmatpush1.bf16.msra.mxu0 %v3147
    %4508 = vmatprep.subr.bf16.mxu0 0
    %4509 = vmatpush1.bf16.msra.mxu0 %v3146
    %4510 = vmatprep.subr.bf16.mxu0 0
    %4511 = vmatpush1.bf16.msra.mxu0 %v3145
    %4512 = vmatprep.subr.bf16.mxu0 0
    %4513 = vmatpush1.bf16.msra.mxu0 %v3144
    %4514 = vmatprep.subr.bf16.mxu0 0
    %4515 = vmatpush1.bf16.msra.mxu0 %v3143
    %4516 = vmatprep.subr.bf16.mxu0 0
    %4517 = vmatpush1.bf16.msra.mxu0 %v3142
    %4518 = vmatprep.subr.bf16.mxu0 0
    %4519 = vmatpush2.bf16.msra.mxu0 0
    %4520 = vmatprep.subr.bf16.mxu0 0
    %4521 = vmatpush2.bf16.msra.mxu0 0
    %4522 = vmatprep.subr.bf16.mxu0 0
    %4523 = vmatpush2.bf16.msra.mxu0 0
    %4524 = vmatprep.subr.bf16.mxu0 0
    %4525 = vmatpush2.bf16.msra.mxu0 0
    %4526 = vmatprep.subr.bf16.mxu0 0
    %4527 = vmatpush2.bf16.msra.mxu0 0
    %4528 = vmatprep.subr.bf16.mxu0 0
    %4529 = vmatpush2.bf16.msra.mxu0 0
    %4530 = vmatprep.subr.bf16.mxu0 0
    %4531 = vmatpush2.bf16.msra.mxu0 0
    %4532 = vmatprep.subr.bf16.mxu0 0
    %4533 = vmatpush2.bf16.msra.mxu0 0
    %4534 = vmatprep.mubr.bf16.mxu0 0
    %4535 = vmatmul.mubr.bf16.gmra.mxu0 %v1140
    %v4536 = vpop.f32.mrf.mxu0
    %v4537 = vadd.f32 %v4497, %v4536
    %v4538 = vpop.f32.mrf.mxu0
    %v4539 = vpop.f32.mrf.mxu0
    %v4540 = vpop.f32.mrf.mxu0
    %4541 = vdwg.mxu0
    %v4542 = vmax.f32 %v4537, 0.0
    %v4543 = vld [vmem:[%s3] sm:$0x1]
    %v4545 = vlaneseq
    %v4546 = vshrl.u32 %v4545, 7
    %v4547 = vsub.s32 0, %v4546
    %v4548 = vrot.slane %v4543, %v4547
    %v4550 = vmul.f32 %v4542, %v4548
    %v4551 = vld [vmem:[%s4] sm:$0x1]
    %v4553 = vlaneseq
    %v4554 = vshrl.u32 %v4553, 7
    %v4555 = vsub.s32 0, %v4554
    %v4556 = vrot.slane %v4551, %v4555
    %v4558 = vadd.f32 %v4550, %v4556
    %v4559 = vld [vmem:[%s5] sm:$0xff]
    %v4560 = vld [vmem:[%s5 + $0x8] sm:$0xff]
    %v4561 = vld [vmem:[%s5 + $0x10] sm:$0xff]
    %v4562 = vld [vmem:[%s5 + $0x18] sm:$0xff]
    %v4563 = vld [vmem:[%s6] sm:$0x1]
    %v4565 = vlaneseq
    %v4566 = vshrl.u32 %v4565, 7
    %v4567 = vsub.s32 0, %v4566
    %v4568 = vrot.slane %v4563, %v4567
    %vm4570 = vcmask 261120
    %v4572 = vsel %vm4570, %v4558, 0
    %4574 = vmatprep.subr.mxu0 0.0
    %4575 = vmatpush1.msra.mxu0 0.0
    %4576 = vmatprep.subr.mxu0 0.0
    %4577 = vmatpush1.msra.mxu0 0.0
    %4578 = vmatprep.subr.mxu0 0.0
    %4579 = vmatpush1.msra.mxu0 0.0
    %4580 = vmatprep.subr.mxu0 0.0
    %4581 = vmatpush1.msra.mxu0 0.0
    %4582 = vmatprep.subr.mxu0 0.0
    %4583 = vmatpush1.msra.mxu0 0.0
    %4584 = vmatprep.subr.mxu0 0.0
    %4585 = vmatpush1.msra.mxu0 0.0
    %4586 = vmatprep.subr.mxu0 0.0
    %4587 = vmatpush1.msra.mxu0 0.0
    %4588 = vmatprep.subr.mxu0 0.0
    %4589 = vmatpush1.msra.mxu0 0.0
    %4590 = vmatprep.subr.mxu0 0.0
    %4591 = vmatpush1.msra.mxu0 0.0
    %4592 = vmatprep.subr.mxu0 0.0
    %4593 = vmatpush1.msra.mxu0 0.0
    %4594 = vmatprep.subr.mxu0 0.0
    %4595 = vmatpush1.msra.mxu0 0.0
    %4596 = vmatprep.subr.mxu0 0.0
    %4597 = vmatpush1.msra.mxu0 0.0
    %4598 = vmatprep.subr.mxu0 0.0
    %4599 = vmatpush1.msra.mxu0 %v4562
    %4600 = vmatprep.subr.mxu0 0.0
    %4601 = vmatpush1.msra.mxu0 %v4561
    %4602 = vmatprep.subr.mxu0 0.0
    %4603 = vmatpush1.msra.mxu0 %v4560
    %4604 = vmatprep.subr.mxu0 0.0
    %4605 = vmatpush1.msra.mxu0 %v4559
    %4606 = vmatprep.subr.mxu0 0.0
    %4607 = vmatpush2.msra.mxu0 0.0
    %4608 = vmatprep.subr.mxu0 0.0
    %4609 = vmatpush2.msra.mxu0 0.0
    %4610 = vmatprep.subr.mxu0 0.0
    %4611 = vmatpush2.msra.mxu0 0.0
    %4612 = vmatprep.subr.mxu0 0.0
    %4613 = vmatpush2.msra.mxu0 0.0
    %4614 = vmatprep.subr.mxu0 0.0
    %4615 = vmatpush2.msra.mxu0 0.0
    %4616 = vmatprep.subr.mxu0 0.0
    %4617 = vmatpush2.msra.mxu0 0.0
    %4618 = vmatprep.subr.mxu0 0.0
    %4619 = vmatpush2.msra.mxu0 0.0
    %4620 = vmatprep.subr.mxu0 0.0
    %4621 = vmatpush2.msra.mxu0 0.0
    %4622 = vmatprep.subr.mxu0 0.0
    %4623 = vmatpush2.msra.mxu0 0.0
    %4624 = vmatprep.subr.mxu0 0.0
    %4625 = vmatpush2.msra.mxu0 0.0
    %4626 = vmatprep.subr.mxu0 0.0
    %4627 = vmatpush2.msra.mxu0 0.0
    %4628 = vmatprep.subr.mxu0 0.0
    %4629 = vmatpush2.msra.mxu0 0.0
    %4630 = vmatprep.subr.mxu0 0.0
    %4631 = vmatpush2.msra.mxu0 0.0
    %4632 = vmatprep.subr.mxu0 0.0
    %4633 = vmatpush2.msra.mxu0 0.0
    %4634 = vmatprep.subr.mxu0 0.0
    %4635 = vmatpush2.msra.mxu0 0.0
    %4636 = vmatprep.subr.mxu0 0.0
    %4637 = vmatpush2.msra.mxu0 0.0
    %4638 = vmatprep.mubr.f32.mxu0 0.0
    %4639 = vmatmul.mubr.f32.gmra.mxu0 %v4572
    %v4640 = vpop.f32.mrf.mxu0
    %v4641 = vadd.f32 %v4568, %v4640
    %v4642 = vpop.f32.mrf.mxu0
    %4643 = vdwg.mxu0
    %4644 = vst [vmem:[#allocation2] sm:$0x3] %v4641
    // Predicated region
    $region30: #{net_forward.5} parent=1 // pred_check
      _
    $region31: #{net_forward.5} parent=1 // pred_check_branch
      %4646 = sbr.rel (0) target = $region33
    $region32: #{net_forward.5} parent=1 // pred_region
      %s4648 = ssub.s32 32, 32
      %4649 = vsyncadd [#allocation3], %s4648
      %s4651 = sshll.u32 [#allocation2], 4
      %s4652 = int_to_ptr.vmem [resolvable:$true] %s4651
      %4654 = dma.vmem_to_hbm [thread:$0]  %s4652, 32, %s7, [#allocation3]
    $region33: #{net_forward.5} parent=1 // pred_fallthru
      _
    // Predicated region
    $region34: #{net_forward.5} parent=1 // pred_check
      _
    $region35: #{net_forward.5} parent=1 // pred_check_branch
      %4656 = sbr.rel (0) target = $region37
    $region36: #{net_forward.5} parent=1 // pred_region
      %4657 = dma.done [#allocation3], 32
    $region37: #{net_forward.5} parent=1 // pred_fallthru
      _
    %4658 = vsyncpa [#allocation3], 1

</llo_original>
